<compile_context>
chip_gen: v6e
topology: v6e:2x2x1
jax: 0.10.0
libtpu: 0.0.40
codegen_flags: <defaults>
</compile_context>

<pallas_src>
import jax
import jax.numpy as jnp
from jax.experimental import pallas as pl
from jax.experimental.pallas import tpu as pltpu

EPS = 1e-5
LANE = 128
H1, H2, H3, H4 = 900, 700, 500, 300  # natural (unpadded) hidden sizes


def _round_up(n, m=LANE):
    return ((n + m - 1) // m) * m


# ---------------------------------------------------------------------------
# Kernel
# ---------------------------------------------------------------------------
def _make_kernel(out_pad):
    def kernel(x_ref, vec_ref, w1_ref,            # VMEM inputs
               w2_hbm, w3_hbm, w4_hbm, w5_hbm,    # HBM (pl.ANY) inputs
               o_ref,                             # VMEM output
               w2_v, w3_v, w4_v, w5_v, sem):      # scratch
        # Kick off all deeper-layer weight DMAs immediately: they stream HBM->VMEM
        # while the MXU/VPU work on earlier layers (DMA/compute overlap).
        cp2 = pltpu.make_async_copy(w2_hbm, w2_v, sem.at[0]); cp2.start()
        cp3 = pltpu.make_async_copy(w3_hbm, w3_v, sem.at[1]); cp3.start()
        cp4 = pltpu.make_async_copy(w4_hbm, w4_v, sem.at[2]); cp4.start()
        cp5 = pltpu.make_async_copy(w5_hbm, w5_v, sem.at[3]); cp5.start()

        def linear(h, w, b):
            # bf16 operands -> MXU, f32 accumulation; bias add stays f32 on the VPU.
            return jnp.dot(h.astype(jnp.bfloat16), w,
                           preferred_element_type=jnp.float32) + b

        def relu(h):
            return jnp.maximum(h, 0.0)

        def batchnorm(h, g, be):
            # Training-mode BN (batch stats, biased variance), fused affine apply:
            #   y = h*s + t  with  s = gamma*rsqrt(var+eps),  t = beta - mu*s
            mu = jnp.mean(h, axis=0, keepdims=True)
            var = jnp.mean((h - mu) ** 2, axis=0, keepdims=True)  # two-pass
            s = g * jax.lax.rsqrt(var + EPS)
            t = be - mu * s
            return h * s + t

        # Packed vector table rows: [b1,g1,be1, b2,g2,be2, b3,g3,be3, b4, b5]
        b1, g1, be1 = vec_ref[0:1, :H1], vec_ref[1:2, :H1], vec_ref[2:3, :H1]
        b2, g2, be2 = vec_ref[3:4, :H2], vec_ref[4:5, :H2], vec_ref[5:6, :H2]
        b3, g3, be3 = vec_ref[6:7, :H3], vec_ref[7:8, :H3], vec_ref[8:9, :H3]
        b4 = vec_ref[9:10, :H4]
        b5 = vec_ref[10:11, :out_pad]

        h = batchnorm(relu(linear(x_ref[...], w1_ref[...], b1)), g1, be1)  # layer 1
        cp2.wait()
        h = batchnorm(relu(linear(h, w2_v[...], b2)), g2, be2)             # layer 2
        cp3.wait()
        h = batchnorm(relu(linear(h, w3_v[...], b3)), g3, be3)             # layer 3
        cp4.wait()
        h = relu(linear(h, w4_v[...], b4))                                 # layer 4
        cp5.wait()
        o_ref[...] = linear(h, w5_v[...], b5)                              # layer 5

    return kernel


# ---------------------------------------------------------------------------
# Wrapper
# ---------------------------------------------------------------------------
def nn_model_forward(x, kp, word_dim):
    """x: (B, prefix_size*word_dim) f32. kp: packed/bf16 kernel params."""
    B = x.shape[0]
    out_pad = kp["w5"].shape[1]
    kernel = _make_kernel(out_pad)
    out = pl.pallas_call(
        kernel,
        out_shape=jax.ShapeDtypeStruct((B, out_pad), jnp.float32),
        in_specs=(
            [pl.BlockSpec(memory_space=pltpu.MemorySpace.VMEM)] * 3   # x, vecs, w1
            + [pl.BlockSpec(memory_space=pl.ANY)] * 4                 # w2..w5 in HBM
        ),
        out_specs=pl.BlockSpec(memory_space=pltpu.MemorySpace.VMEM),
        scratch_shapes=[
            pltpu.VMEM((H1, H2), jnp.bfloat16),       # w2 landing buffer
            pltpu.VMEM((H2, H3), jnp.bfloat16),       # w3
            pltpu.VMEM((H3, H4), jnp.bfloat16),       # w4
            pltpu.VMEM((H4, out_pad), jnp.bfloat16),  # w5
            pltpu.SemaphoreType.DMA((4,)),
        ],
    )(x, kp["vecs"], kp["w1"], kp["w2"], kp["w3"], kp["w4"], kp["w5"])
    return out[:, :word_dim]


# ---------------------------------------------------------------------------
# Parameter construction
# ---------------------------------------------------------------------------
def init_params(key, prefix_size, word_dim):
    """Unpadded f32 params mimicking PyTorch Linear defaults (U(+/- 1/sqrt(fan_in)))."""
    dims = [prefix_size * word_dim, H1, H2, H3, H4, word_dim]
    params = {}
    keys = jax.random.split(key, 16)
    ki = 0
    for layer in range(5):
        fan_in, fan_out = dims[layer], dims[layer + 1]
        bound = 1.0 / jnp.sqrt(fan_in)
        params[f"w{layer + 1}"] = jax.random.uniform(
            keys[ki], (fan_in, fan_out), jnp.float32, -bound, bound); ki += 1
        params[f"b{layer + 1}"] = jax.random.uniform(
            keys[ki], (1, fan_out), jnp.float32, -bound, bound); ki += 1
    # BatchNorm affine params (PyTorch default gamma=1, beta=0); perturbed slightly
    # but deterministically so the BN path is actually exercised.
    for i, feat in zip((1, 2, 3), (H1, H2, H3)):
        params[f"g{i}"] = 1.0 + 0.1 * jax.random.normal(keys[ki], (1, feat), jnp.float32); ki += 1
        params[f"be{i}"] = 0.1 * jax.random.normal(keys[ki], (1, feat), jnp.float32); ki += 1
    return params


def prepare_kernel_params(p, word_dim):
    """Cast weights to bf16 (natural hidden dims), pad only w5's output column to
    a lane-dense 128 (zero padding -> inert), and pack all (1, N) vectors into a
    single f32 table so the kernel gets one DMA instead of eleven."""
    out_pad = _round_up(word_dim)
    kp = {
        "w1": p["w1"].astype(jnp.bfloat16),
        "w2": p["w2"].astype(jnp.bfloat16),
        "w3": p["w3"].astype(jnp.bfloat16),
        "w4": p["w4"].astype(jnp.bfloat16),
        "w5": jnp.zeros((H4, out_pad), jnp.float32)
                 .at[:, :word_dim].set(p["w5"]).astype(jnp.bfloat16),
    }
    vw = max(H1, out_pad)
    rows = [("b1", H1), ("g1", H1), ("be1", H1),
            ("b2", H2), ("g2", H2), ("be2", H2),
            ("b3", H3), ("g3", H3), ("be3", H3),
            ("b4", H4)]
    vecs = jnp.zeros((11, vw), jnp.float32)
    for r, (name, n) in enumerate(rows):
        vecs = vecs.at[r, :n].set(p[name][0])
    vecs = vecs.at[10, :word_dim].set(p["b5"][0])   # b5, padded tail stays 0
    kp["vecs"] = vecs
    return kp


# ---------------------------------------------------------------------------
# References
# ---------------------------------------------------------------------------
def reference_forward_exact(x, kp, word_dim):
    """Plain-JAX mirror of the kernel math (bf16 weights, padded w5) — tight check."""
    def lin(h, w, b):
        return jnp.dot(h.astype(jnp.bfloat16), w, preferred_element_type=jnp.float32) + b

    def bn(h, g, be):
        mu = jnp.mean(h, axis=0, keepdims=True)
        var = jnp.mean((h - mu) ** 2, axis=0, keepdims=True)
        s = g * jax.lax.rsqrt(var + EPS)
        return h * s + (be - mu * s)

    v = kp["vecs"]
    out_pad = kp["w5"].shape[1]
    b1, g1, be1 = v[0:1, :H1], v[1:2, :H1], v[2:3, :H1]
    b2, g2, be2 = v[3:4, :H2], v[4:5, :H2], v[5:6, :H2]
    b3, g3, be3 = v[6:7, :H3], v[7:8, :H3], v[8:9, :H3]
    b4, b5 = v[9:10, :H4], v[10:11, :out_pad]

    h = bn(jnp.maximum(lin(x, kp["w1"], b1), 0.0), g1, be1)
    h = bn(jnp.maximum(lin(h, kp["w2"], b2), 0.0), g2, be2)
    h = bn(jnp.maximum(lin(h, kp["w3"], b3), 0.0), g3, be3)
    h = jnp.maximum(lin(h, kp["w4"], b4), 0.0)
    return lin(h, kp["w5"], b5)[:, :word_dim]


def reference_forward_f32(x, p):
    """Original full-f32, unpadded semantics (PyTorch training-mode forward)."""
    def bn(h, g, be):
        mu = jnp.mean(h, axis=0, keepdims=True)
        var = jnp.mean((h - mu) ** 2, axis=0, keepdims=True)
        return (h - mu) / jnp.sqrt(var + EPS) * g + be

    h = jnp.maximum(x @ p["w1"] + p["b1"], 0.0)
    h = bn(h, p["g1"], p["be1"])
    h = jnp.maximum(h @ p["w2"] + p["b2"], 0.0)
    h = bn(h, p["g2"], p["be2"])
    h = jnp.maximum(h @ p["w3"] + p["b3"], 0.0)
    h = bn(h, p["g3"], p["be3"])
    h = jnp.maximum(h @ p["w4"] + p["b4"], 0.0)
    return h @ p["w5"] + p["b5"]


# ---------------------------------------------------------------------------
# Main
# ---------------------------------------------------------------------------
if __name__ == "__main__":
    prefix_size = 4
    word_dim = 32
    batch = 8

    key = jax.random.PRNGKey(0)
    kx, kparams = jax.random.split(key)
    x = jax.random.normal(kx, (batch, prefix_size * word_dim), jnp.float32)

    params = init_params(kparams, prefix_size, word_dim)
    kp = prepare_kernel_params(params, word_dim)

    out = nn_model_forward(x, kp, word_dim)
    out = jax.block_until_ready(out)
    assert out.shape == (batch, word_dim)

    # Tight check: kernel vs plain-JAX with identical (bf16-weight) math.
    ref_exact = reference_forward_exact(x, kp, word_dim)
    assert jnp.allclose(out, ref_exact, atol=1e-2, rtol=1e-2), "mismatch vs exact-math reference"

    # Loose sanity check: bf16 weights / output padding didn't change module semantics.
    ref_f32 = reference_forward_f32(x, params)
    assert jnp.allclose(out, ref_f32, atol=2e-1, rtol=2e-1), "mismatch vs f32 semantics reference"

    print("KERNEL_OK")
</pallas_src>

<mosaic_0001>
module attributes {stable_mosaic.version = 11 : i64} {
  func.func @kernel(%arg0: memref<8x128xf32, #tpu.memory_space<vmem>>, %arg1: memref<11x900xf32, #tpu.memory_space<vmem>>, %arg2: memref<128x900xbf16, #tpu.memory_space<vmem>>, %arg3: memref<900x700xbf16, #tpu.memory_space<any>>, %arg4: memref<700x500xbf16, #tpu.memory_space<any>>, %arg5: memref<500x300xbf16, #tpu.memory_space<any>>, %arg6: memref<300x128xbf16, #tpu.memory_space<any>>, %arg7: memref<8x128xf32, #tpu.memory_space<vmem>>, %arg8: memref<900x700xbf16, #tpu.memory_space<vmem>>, %arg9: memref<700x500xbf16, #tpu.memory_space<vmem>>, %arg10: memref<500x300xbf16, #tpu.memory_space<vmem>>, %arg11: memref<300x128xbf16, #tpu.memory_space<vmem>>, %arg12: memref<4x!tpu.dma_semaphore, #tpu.memory_space<semaphore_mem>>) attributes {dimension_semantics = [], scalar_prefetch = 0 : i64, scratch_operands = 5 : i64, tpu.core_type = #tpu.core_type<tc>} {
    %c0_i32 = arith.constant 0 : i32
    %0 = tpu.memref_slice %arg12[%c0_i32] : memref<4x!tpu.dma_semaphore, #tpu.memory_space<semaphore_mem>> -> memref<1x!tpu.dma_semaphore, #tpu.memory_space<semaphore_mem>>
    %1 = tpu.memref_squeeze %0 : memref<1x!tpu.dma_semaphore, #tpu.memory_space<semaphore_mem>> -> memref<!tpu.dma_semaphore, #tpu.memory_space<semaphore_mem>>
    tpu.enqueue_dma source(%arg3 : memref<900x700xbf16, #tpu.memory_space<any>>) target(%arg8 : memref<900x700xbf16, #tpu.memory_space<vmem>>) target_semaphore(%1 : memref<!tpu.dma_semaphore, #tpu.memory_space<semaphore_mem>>)
    %c1_i32 = arith.constant 1 : i32
    %2 = tpu.memref_slice %arg12[%c1_i32] : memref<4x!tpu.dma_semaphore, #tpu.memory_space<semaphore_mem>> -> memref<1x!tpu.dma_semaphore, #tpu.memory_space<semaphore_mem>>
    %3 = tpu.memref_squeeze %2 : memref<1x!tpu.dma_semaphore, #tpu.memory_space<semaphore_mem>> -> memref<!tpu.dma_semaphore, #tpu.memory_space<semaphore_mem>>
    tpu.enqueue_dma source(%arg4 : memref<700x500xbf16, #tpu.memory_space<any>>) target(%arg9 : memref<700x500xbf16, #tpu.memory_space<vmem>>) target_semaphore(%3 : memref<!tpu.dma_semaphore, #tpu.memory_space<semaphore_mem>>)
    %c2_i32 = arith.constant 2 : i32
    %4 = tpu.memref_slice %arg12[%c2_i32] : memref<4x!tpu.dma_semaphore, #tpu.memory_space<semaphore_mem>> -> memref<1x!tpu.dma_semaphore, #tpu.memory_space<semaphore_mem>>
    %5 = tpu.memref_squeeze %4 : memref<1x!tpu.dma_semaphore, #tpu.memory_space<semaphore_mem>> -> memref<!tpu.dma_semaphore, #tpu.memory_space<semaphore_mem>>
    tpu.enqueue_dma source(%arg5 : memref<500x300xbf16, #tpu.memory_space<any>>) target(%arg10 : memref<500x300xbf16, #tpu.memory_space<vmem>>) target_semaphore(%5 : memref<!tpu.dma_semaphore, #tpu.memory_space<semaphore_mem>>)
    %c3_i32 = arith.constant 3 : i32
    %6 = tpu.memref_slice %arg12[%c3_i32] : memref<4x!tpu.dma_semaphore, #tpu.memory_space<semaphore_mem>> -> memref<1x!tpu.dma_semaphore, #tpu.memory_space<semaphore_mem>>
    %7 = tpu.memref_squeeze %6 : memref<1x!tpu.dma_semaphore, #tpu.memory_space<semaphore_mem>> -> memref<!tpu.dma_semaphore, #tpu.memory_space<semaphore_mem>>
    tpu.enqueue_dma source(%arg6 : memref<300x128xbf16, #tpu.memory_space<any>>) target(%arg11 : memref<300x128xbf16, #tpu.memory_space<vmem>>) target_semaphore(%7 : memref<!tpu.dma_semaphore, #tpu.memory_space<semaphore_mem>>)
    %c0 = arith.constant 0 : index
    %c0_0 = arith.constant 0 : index
    %8 = vector.load %arg1[%c0, %c0_0] : memref<11x900xf32, #tpu.memory_space<vmem>>, vector<1x900xf32>
    %c1 = arith.constant 1 : index
    %c0_1 = arith.constant 0 : index
    %9 = vector.load %arg1[%c1, %c0_1] : memref<11x900xf32, #tpu.memory_space<vmem>>, vector<1x900xf32>
    %c2 = arith.constant 2 : index
    %c0_2 = arith.constant 0 : index
    %10 = vector.load %arg1[%c2, %c0_2] : memref<11x900xf32, #tpu.memory_space<vmem>>, vector<1x900xf32>
    %c3 = arith.constant 3 : index
    %c0_3 = arith.constant 0 : index
    %11 = vector.load %arg1[%c3, %c0_3] : memref<11x900xf32, #tpu.memory_space<vmem>>, vector<1x700xf32>
    %c4 = arith.constant 4 : index
    %c0_4 = arith.constant 0 : index
    %12 = vector.load %arg1[%c4, %c0_4] : memref<11x900xf32, #tpu.memory_space<vmem>>, vector<1x700xf32>
    %c5 = arith.constant 5 : index
    %c0_5 = arith.constant 0 : index
    %13 = vector.load %arg1[%c5, %c0_5] : memref<11x900xf32, #tpu.memory_space<vmem>>, vector<1x700xf32>
    %c6 = arith.constant 6 : index
    %c0_6 = arith.constant 0 : index
    %14 = vector.load %arg1[%c6, %c0_6] : memref<11x900xf32, #tpu.memory_space<vmem>>, vector<1x500xf32>
    %c7 = arith.constant 7 : index
    %c0_7 = arith.constant 0 : index
    %15 = vector.load %arg1[%c7, %c0_7] : memref<11x900xf32, #tpu.memory_space<vmem>>, vector<1x500xf32>
    %c8 = arith.constant 8 : index
    %c0_8 = arith.constant 0 : index
    %16 = vector.load %arg1[%c8, %c0_8] : memref<11x900xf32, #tpu.memory_space<vmem>>, vector<1x500xf32>
    %c9 = arith.constant 9 : index
    %c0_9 = arith.constant 0 : index
    %17 = vector.load %arg1[%c9, %c0_9] : memref<11x900xf32, #tpu.memory_space<vmem>>, vector<1x300xf32>
    %c10 = arith.constant 10 : index
    %c0_10 = arith.constant 0 : index
    %18 = vector.load %arg1[%c10, %c0_10] : memref<11x900xf32, #tpu.memory_space<vmem>>, vector<1x128xf32>
    %c0_11 = arith.constant 0 : index
    %c0_12 = arith.constant 0 : index
    %19 = vector.load %arg0[%c0_11, %c0_12] : memref<8x128xf32, #tpu.memory_space<vmem>>, vector<8x128xf32>
    %c0_13 = arith.constant 0 : index
    %c0_14 = arith.constant 0 : index
    %20 = vector.load %arg2[%c0_13, %c0_14] : memref<128x900xbf16, #tpu.memory_space<vmem>>, vector<128x900xbf16>
    %21 = arith.truncf %19 : vector<8x128xf32> to vector<8x128xbf16>
    %cst = arith.constant dense<0.000000e+00> : vector<8x900xf32>
    %22 = tpu.matmul %21, %20, %cst {dimension_numbers = #tpu.dot_dimension_numbers<[1], [0], [0], [1], [0, 0, 1, 1], [], []>} : vector<8x128xbf16>, vector<128x900xbf16>, vector<8x900xf32> -> vector<8x900xf32>
    %23 = vector.broadcast %8 : vector<1x900xf32> to vector<8x900xf32>
    %24 = arith.addf %22, %23 : vector<8x900xf32>
    %cst_15 = arith.constant 0.000000e+00 : f32
    %25 = vector.broadcast %cst_15 : f32 to vector<8x900xf32>
    %26 = arith.maximumf %24, %25 : vector<8x900xf32>
    %cst_16 = arith.constant dense<0.000000e+00> : vector<900xf32>
    %27 = vector.multi_reduction <add>, %26, %cst_16 [0] : vector<8x900xf32> to vector<900xf32>
    %28 = vector.shape_cast %27 : vector<900xf32> to vector<1x900xf32>
    %cst_17 = arith.constant 8.000000e+00 : f32
    %29 = vector.broadcast %cst_17 : f32 to vector<1x900xf32>
    %30 = arith.divf %28, %29 : vector<1x900xf32>
    %31 = vector.broadcast %30 : vector<1x900xf32> to vector<8x900xf32>
    %32 = arith.subf %26, %31 : vector<8x900xf32>
    %33 = arith.mulf %32, %32 : vector<8x900xf32>
    %cst_18 = arith.constant dense<0.000000e+00> : vector<900xf32>
    %34 = vector.multi_reduction <add>, %33, %cst_18 [0] : vector<8x900xf32> to vector<900xf32>
    %35 = vector.shape_cast %34 : vector<900xf32> to vector<1x900xf32>
    %cst_19 = arith.constant 8.000000e+00 : f32
    %36 = vector.broadcast %cst_19 : f32 to vector<1x900xf32>
    %37 = arith.divf %35, %36 : vector<1x900xf32>
    %cst_20 = arith.constant 9.99999974E-6 : f32
    %38 = vector.broadcast %cst_20 : f32 to vector<1x900xf32>
    %39 = arith.addf %37, %38 : vector<1x900xf32>
    %40 = math.rsqrt %39 : vector<1x900xf32>
    %41 = arith.mulf %9, %40 : vector<1x900xf32>
    %42 = arith.mulf %30, %41 : vector<1x900xf32>
    %43 = arith.subf %10, %42 : vector<1x900xf32>
    %44 = vector.broadcast %41 : vector<1x900xf32> to vector<8x900xf32>
    %45 = arith.mulf %26, %44 : vector<8x900xf32>
    %46 = vector.broadcast %43 : vector<1x900xf32> to vector<8x900xf32>
    %47 = arith.addf %45, %46 : vector<8x900xf32>
    %c0_i32_21 = arith.constant 0 : i32
    %48 = tpu.memref_slice %arg12[%c0_i32_21] : memref<4x!tpu.dma_semaphore, #tpu.memory_space<semaphore_mem>> -> memref<1x!tpu.dma_semaphore, #tpu.memory_space<semaphore_mem>>
    %49 = tpu.memref_squeeze %48 : memref<1x!tpu.dma_semaphore, #tpu.memory_space<semaphore_mem>> -> memref<!tpu.dma_semaphore, #tpu.memory_space<semaphore_mem>>
    tpu.wait_dma2 semaphore(%49 : memref<!tpu.dma_semaphore, #tpu.memory_space<semaphore_mem>>) src(%arg3 : memref<900x700xbf16, #tpu.memory_space<any>>) dst(%arg8 : memref<900x700xbf16, #tpu.memory_space<vmem>>)
    %c0_22 = arith.constant 0 : index
    %c0_23 = arith.constant 0 : index
    %50 = vector.load %arg8[%c0_22, %c0_23] : memref<900x700xbf16, #tpu.memory_space<vmem>>, vector<900x700xbf16>
    %51 = arith.truncf %47 : vector<8x900xf32> to vector<8x900xbf16>
    %cst_24 = arith.constant dense<0.000000e+00> : vector<8x700xf32>
    %52 = tpu.matmul %51, %50, %cst_24 {dimension_numbers = #tpu.dot_dimension_numbers<[1], [0], [0], [1], [0, 0, 1, 1], [], []>} : vector<8x900xbf16>, vector<900x700xbf16>, vector<8x700xf32> -> vector<8x700xf32>
    %53 = vector.broadcast %11 : vector<1x700xf32> to vector<8x700xf32>
    %54 = arith.addf %52, %53 : vector<8x700xf32>
    %cst_25 = arith.constant 0.000000e+00 : f32
    %55 = vector.broadcast %cst_25 : f32 to vector<8x700xf32>
    %56 = arith.maximumf %54, %55 : vector<8x700xf32>
    %cst_26 = arith.constant dense<0.000000e+00> : vector<700xf32>
    %57 = vector.multi_reduction <add>, %56, %cst_26 [0] : vector<8x700xf32> to vector<700xf32>
    %58 = vector.shape_cast %57 : vector<700xf32> to vector<1x700xf32>
    %cst_27 = arith.constant 8.000000e+00 : f32
    %59 = vector.broadcast %cst_27 : f32 to vector<1x700xf32>
    %60 = arith.divf %58, %59 : vector<1x700xf32>
    %61 = vector.broadcast %60 : vector<1x700xf32> to vector<8x700xf32>
    %62 = arith.subf %56, %61 : vector<8x700xf32>
    %63 = arith.mulf %62, %62 : vector<8x700xf32>
    %cst_28 = arith.constant dense<0.000000e+00> : vector<700xf32>
    %64 = vector.multi_reduction <add>, %63, %cst_28 [0] : vector<8x700xf32> to vector<700xf32>
    %65 = vector.shape_cast %64 : vector<700xf32> to vector<1x700xf32>
    %cst_29 = arith.constant 8.000000e+00 : f32
    %66 = vector.broadcast %cst_29 : f32 to vector<1x700xf32>
    %67 = arith.divf %65, %66 : vector<1x700xf32>
    %cst_30 = arith.constant 9.99999974E-6 : f32
    %68 = vector.broadcast %cst_30 : f32 to vector<1x700xf32>
    %69 = arith.addf %67, %68 : vector<1x700xf32>
    %70 = math.rsqrt %69 : vector<1x700xf32>
    %71 = arith.mulf %12, %70 : vector<1x700xf32>
    %72 = arith.mulf %60, %71 : vector<1x700xf32>
    %73 = arith.subf %13, %72 : vector<1x700xf32>
    %74 = vector.broadcast %71 : vector<1x700xf32> to vector<8x700xf32>
    %75 = arith.mulf %56, %74 : vector<8x700xf32>
    %76 = vector.broadcast %73 : vector<1x700xf32> to vector<8x700xf32>
    %77 = arith.addf %75, %76 : vector<8x700xf32>
    %c1_i32_31 = arith.constant 1 : i32
    %78 = tpu.memref_slice %arg12[%c1_i32_31] : memref<4x!tpu.dma_semaphore, #tpu.memory_space<semaphore_mem>> -> memref<1x!tpu.dma_semaphore, #tpu.memory_space<semaphore_mem>>
    %79 = tpu.memref_squeeze %78 : memref<1x!tpu.dma_semaphore, #tpu.memory_space<semaphore_mem>> -> memref<!tpu.dma_semaphore, #tpu.memory_space<semaphore_mem>>
    tpu.wait_dma2 semaphore(%79 : memref<!tpu.dma_semaphore, #tpu.memory_space<semaphore_mem>>) src(%arg4 : memref<700x500xbf16, #tpu.memory_space<any>>) dst(%arg9 : memref<700x500xbf16, #tpu.memory_space<vmem>>)
    %c0_32 = arith.constant 0 : index
    %c0_33 = arith.constant 0 : index
    %80 = vector.load %arg9[%c0_32, %c0_33] : memref<700x500xbf16, #tpu.memory_space<vmem>>, vector<700x500xbf16>
    %81 = arith.truncf %77 : vector<8x700xf32> to vector<8x700xbf16>
    %cst_34 = arith.constant dense<0.000000e+00> : vector<8x500xf32>
    %82 = tpu.matmul %81, %80, %cst_34 {dimension_numbers = #tpu.dot_dimension_numbers<[1], [0], [0], [1], [0, 0, 1, 1], [], []>} : vector<8x700xbf16>, vector<700x500xbf16>, vector<8x500xf32> -> vector<8x500xf32>
    %83 = vector.broadcast %14 : vector<1x500xf32> to vector<8x500xf32>
    %84 = arith.addf %82, %83 : vector<8x500xf32>
    %cst_35 = arith.constant 0.000000e+00 : f32
    %85 = vector.broadcast %cst_35 : f32 to vector<8x500xf32>
    %86 = arith.maximumf %84, %85 : vector<8x500xf32>
    %cst_36 = arith.constant dense<0.000000e+00> : vector<500xf32>
    %87 = vector.multi_reduction <add>, %86, %cst_36 [0] : vector<8x500xf32> to vector<500xf32>
    %88 = vector.shape_cast %87 : vector<500xf32> to vector<1x500xf32>
    %cst_37 = arith.constant 8.000000e+00 : f32
    %89 = vector.broadcast %cst_37 : f32 to vector<1x500xf32>
    %90 = arith.divf %88, %89 : vector<1x500xf32>
    %91 = vector.broadcast %90 : vector<1x500xf32> to vector<8x500xf32>
    %92 = arith.subf %86, %91 : vector<8x500xf32>
    %93 = arith.mulf %92, %92 : vector<8x500xf32>
    %cst_38 = arith.constant dense<0.000000e+00> : vector<500xf32>
    %94 = vector.multi_reduction <add>, %93, %cst_38 [0] : vector<8x500xf32> to vector<500xf32>
    %95 = vector.shape_cast %94 : vector<500xf32> to vector<1x500xf32>
    %cst_39 = arith.constant 8.000000e+00 : f32
    %96 = vector.broadcast %cst_39 : f32 to vector<1x500xf32>
    %97 = arith.divf %95, %96 : vector<1x500xf32>
    %cst_40 = arith.constant 9.99999974E-6 : f32
    %98 = vector.broadcast %cst_40 : f32 to vector<1x500xf32>
    %99 = arith.addf %97, %98 : vector<1x500xf32>
    %100 = math.rsqrt %99 : vector<1x500xf32>
    %101 = arith.mulf %15, %100 : vector<1x500xf32>
    %102 = arith.mulf %90, %101 : vector<1x500xf32>
    %103 = arith.subf %16, %102 : vector<1x500xf32>
    %104 = vector.broadcast %101 : vector<1x500xf32> to vector<8x500xf32>
    %105 = arith.mulf %86, %104 : vector<8x500xf32>
    %106 = vector.broadcast %103 : vector<1x500xf32> to vector<8x500xf32>
    %107 = arith.addf %105, %106 : vector<8x500xf32>
    %c2_i32_41 = arith.constant 2 : i32
    %108 = tpu.memref_slice %arg12[%c2_i32_41] : memref<4x!tpu.dma_semaphore, #tpu.memory_space<semaphore_mem>> -> memref<1x!tpu.dma_semaphore, #tpu.memory_space<semaphore_mem>>
    %109 = tpu.memref_squeeze %108 : memref<1x!tpu.dma_semaphore, #tpu.memory_space<semaphore_mem>> -> memref<!tpu.dma_semaphore, #tpu.memory_space<semaphore_mem>>
    tpu.wait_dma2 semaphore(%109 : memref<!tpu.dma_semaphore, #tpu.memory_space<semaphore_mem>>) src(%arg5 : memref<500x300xbf16, #tpu.memory_space<any>>) dst(%arg10 : memref<500x300xbf16, #tpu.memory_space<vmem>>)
    %c0_42 = arith.constant 0 : index
    %c0_43 = arith.constant 0 : index
    %110 = vector.load %arg10[%c0_42, %c0_43] : memref<500x300xbf16, #tpu.memory_space<vmem>>, vector<500x300xbf16>
    %111 = arith.truncf %107 : vector<8x500xf32> to vector<8x500xbf16>
    %cst_44 = arith.constant dense<0.000000e+00> : vector<8x300xf32>
    %112 = tpu.matmul %111, %110, %cst_44 {dimension_numbers = #tpu.dot_dimension_numbers<[1], [0], [0], [1], [0, 0, 1, 1], [], []>} : vector<8x500xbf16>, vector<500x300xbf16>, vector<8x300xf32> -> vector<8x300xf32>
    %113 = vector.broadcast %17 : vector<1x300xf32> to vector<8x300xf32>
    %114 = arith.addf %112, %113 : vector<8x300xf32>
    %cst_45 = arith.constant 0.000000e+00 : f32
    %115 = vector.broadcast %cst_45 : f32 to vector<8x300xf32>
    %116 = arith.maximumf %114, %115 : vector<8x300xf32>
    %c3_i32_46 = arith.constant 3 : i32
    %117 = tpu.memref_slice %arg12[%c3_i32_46] : memref<4x!tpu.dma_semaphore, #tpu.memory_space<semaphore_mem>> -> memref<1x!tpu.dma_semaphore, #tpu.memory_space<semaphore_mem>>
    %118 = tpu.memref_squeeze %117 : memref<1x!tpu.dma_semaphore, #tpu.memory_space<semaphore_mem>> -> memref<!tpu.dma_semaphore, #tpu.memory_space<semaphore_mem>>
    tpu.wait_dma2 semaphore(%118 : memref<!tpu.dma_semaphore, #tpu.memory_space<semaphore_mem>>) src(%arg6 : memref<300x128xbf16, #tpu.memory_space<any>>) dst(%arg11 : memref<300x128xbf16, #tpu.memory_space<vmem>>)
    %c0_47 = arith.constant 0 : index
    %c0_48 = arith.constant 0 : index
    %119 = vector.load %arg11[%c0_47, %c0_48] : memref<300x128xbf16, #tpu.memory_space<vmem>>, vector<300x128xbf16>
    %120 = arith.truncf %116 : vector<8x300xf32> to vector<8x300xbf16>
    %cst_49 = arith.constant dense<0.000000e+00> : vector<8x128xf32>
    %121 = tpu.matmul %120, %119, %cst_49 {dimension_numbers = #tpu.dot_dimension_numbers<[1], [0], [0], [1], [0, 0, 1, 1], [], []>} : vector<8x300xbf16>, vector<300x128xbf16>, vector<8x128xf32> -> vector<8x128xf32>
    %122 = vector.broadcast %18 : vector<1x128xf32> to vector<8x128xf32>
    %123 = arith.addf %121, %122 : vector<8x128xf32>
    %c0_50 = arith.constant 0 : index
    %c0_51 = arith.constant 0 : index
    %124 = vector.load %arg7[%c0_50, %c0_51] : memref<8x128xf32, #tpu.memory_space<vmem>>, vector<8x128xf32>
    tpu.vector_store %arg7[%c0_50, %c0_51], %123 {strides = array<i32>} : memref<8x128xf32, #tpu.memory_space<vmem>>, vector<8x128xf32>,
    return
  }
}

</mosaic_0001>

<llo_original>
// kernel: tpu_custom_call.1
$region0: #{tpu_custom_call.1}
  #allocation0 [shape = 'u32[]', space=smem, size = 0x4, offset = 0x4, fixed_abs, tag = 'smem constant byte address 0x4 - core index']
  #allocation1 [shape = 'u32[144,128]{1,0:T(1,128)}', space=vmem, size = 0x12000, scoped, tag = 'internal scratch']
  #allocation2 [shape = 'bf16[900,700]{1,0:T(8,128)(2,1)}', space=vmem, size = 0x153000, scoped, tag = 'scratch operand']
  #allocation3 [shape = 'bf16[700,500]{1,0:T(8,128)(2,1)}', space=vmem, size = 0xb0000, scoped, tag = 'scratch operand']
  #allocation4 [shape = 'bf16[500,300]{1,0:T(8,128)(2,1)}', space=vmem, size = 0x5e800, scoped, tag = 'scratch operand']
  #allocation5 [shape = 'bf16[300,128]{1,0:T(8,128)(2,1)}', space=vmem, size = 0x13000, scoped, tag = 'scratch operand']
  #allocation6 [shape = 's32[4]{0}', space=sflag, size = 0x10, scoped, tag = 'scratch operand']
  #allocation13 [shape = 's32[]', space=sflag, size = 0x4, offset = 0, fixed_abs, tag = 'sflag constant byte address 0x0 - dummy sync flag']
  #allocation14 [shape = 's32[]', space=sflag, size = 0x4, offset = 0, fixed_abs, tag = 'sflag constant byte address 0x0 - dummy sync flag']
  #allocation15 [shape = 'u32[]', space=smem, size = 0x4, offset = 0x44, fixed_abs, tag = 'smem constant byte address 0x44 - assertion arg 0']
  #allocation16 [shape = 'u32[]', space=smem, size = 0x4, offset = 0x48, fixed_abs, tag = 'smem constant byte address 0x48 - assertion arg 1']
  #allocation17 [shape = 's32[]', space=sflag, size = 0x4, offset = 0, fixed_abs, tag = 'sflag constant byte address 0x0 - dummy sync flag']
  #allocation18 [shape = 's32[]', space=sflag, size = 0x4, offset = 0, fixed_abs, tag = 'sflag constant byte address 0x0 - dummy sync flag']
  #allocation19 [shape = 's32[]', space=sflag, size = 0x4, offset = 0, fixed_abs, tag = 'sflag constant byte address 0x0 - dummy sync flag']
  #allocation20 [shape = 's32[]', space=sflag, size = 0x4, offset = 0, fixed_abs, tag = 'sflag constant byte address 0x0 - dummy sync flag']
  %s0 = inlined_call_operand.hbm [shape: f32[8,128], index: 0, kind: input, shape index: {}]
  %s1 = inlined_call_operand.hbm [shape: f32[11,900], index: 1, kind: input, shape index: {}]
  %s2 = inlined_call_operand.vmem [shape: bf16[128,900], index: 2, kind: input, shape index: {}]
  %s3 = inlined_call_operand.hbm [shape: bf16[900,700], index: 3, kind: input, shape index: {}]
  %s4 = inlined_call_operand.vmem [shape: bf16[700,500], index: 4, kind: input, shape index: {}]
  %s5 = inlined_call_operand.vmem [shape: bf16[500,300], index: 5, kind: input, shape index: {}]
  %s6 = inlined_call_operand.hbm [shape: bf16[300,128], index: 6, kind: input, shape index: {}]
  %s7 = inlined_call_operand.hbm [shape: f32[8,128], index: 7, kind: output, shape index: {}]
  %s8 = sld [smem:[#allocation0]]
  $region109: #{tpu_custom_call.1} parent=0
    _
  %s10 = ssub.s32 1, %s8
  %s11 = scalar_select 0, %s10, %s8
  $region1: #{tpu_custom_call.1} parent=0
    #allocation7 [shape = 'u8[4096]{0}', space=vmem, size = 0x1000, scoped, tag = 'input window, operand 0, single buffered']
    #allocation8 [shape = 's32[1]{0}', space=sflag, size = 0x4, scoped, tag = 'scoped memory for tpu_custom_call.1']
    #allocation9 [shape = 's32[1]{0}', space=sflag, size = 0x4, scoped, tag = 'scoped memory for tpu_custom_call.1']
    #allocation10 [shape = 'u8[65536]{0}', space=vmem, size = 0x10000, scoped, tag = 'input window, operand 1, single buffered']
    #allocation11 [shape = 's32[1]{0}', space=sflag, size = 0x4, scoped, tag = 'scoped memory for tpu_custom_call.1']
    #allocation12 [shape = 'u8[4096]{0}', space=vmem, size = 0x1000, scoped, tag = 'output window, operand 0, single buffered']
    %12 = vsyncpa [#allocation8], 0
    %13 = vsyncpa [#allocation11], 0
    %14 = vsyncpa [#allocation9], 0
    // Predicated region
    $region2: #{tpu_custom_call.1} parent=1 // pred_check
      _
    $region3: #{tpu_custom_call.1} parent=1 // pred_check_branch
      %16 = sbr.rel (0) target = $region5
    $region4: #{tpu_custom_call.1} parent=1 // pred_region
      %s18 = ssub.s32 128, 128
      %19 = vsyncadd [#allocation8], %s18
      %s21 = sshll.u32 [#allocation7], 4
      %s22 = int_to_ptr.vmem [resolvable:$true] %s21
      %24 = dma.hbm_to_vmem [thread:$0]  %s0, 128, %s22, [#allocation8]
    $region5: #{tpu_custom_call.1} parent=1 // pred_fallthru
      _
    // Predicated region
    $region6: #{tpu_custom_call.1} parent=1 // pred_check
      _
    $region7: #{tpu_custom_call.1} parent=1 // pred_check_branch
      %26 = sbr.rel (0) target = $region9
    $region8: #{tpu_custom_call.1} parent=1 // pred_region
      %s28 = ssub.s32 2048, 2048
      %29 = vsyncadd [#allocation11], %s28
      %s30 = sshll.u32 [#allocation10], 4
      %s31 = int_to_ptr.vmem [resolvable:$true] %s30
      %36 = dma.hbm_to_vmem [thread:$0]  %s1, 2048, %s31, [#allocation11], 1024, 1024, 64
    $region9: #{tpu_custom_call.1} parent=1 // pred_fallthru
      _
    // Predicated region
    $region10: #{tpu_custom_call.1} parent=1 // pred_check
      _
    $region11: #{tpu_custom_call.1} parent=1 // pred_check_branch
      %38 = sbr.rel (0) target = $region13
    $region12: #{tpu_custom_call.1} parent=1 // pred_region
      _
    $region13: #{tpu_custom_call.1} parent=1 // pred_fallthru
      _
    // Predicated region
    $region14: #{tpu_custom_call.1} parent=1 // pred_check
      _
    $region15: #{tpu_custom_call.1} parent=1 // pred_check_branch
      %40 = sbr.rel (0) target = $region17
    $region16: #{tpu_custom_call.1} parent=1 // pred_region
      %41 = dma.done [#allocation8], 128
    $region17: #{tpu_custom_call.1} parent=1 // pred_fallthru
      _
    // Predicated region
    $region18: #{tpu_custom_call.1} parent=1 // pred_check
      _
    $region19: #{tpu_custom_call.1} parent=1 // pred_check_branch
      %43 = sbr.rel (0) target = $region21
    $region20: #{tpu_custom_call.1} parent=1 // pred_region
      %44 = dma.done [#allocation11], 2048
    $region21: #{tpu_custom_call.1} parent=1 // pred_fallthru
      _
    // Predicated region
    $region22: #{tpu_custom_call.1} parent=1 // pred_check
      _
    $region23: #{tpu_custom_call.1} parent=1 // pred_check_branch
      %47 = sbr.rel target = $region25
    $region24: #{tpu_custom_call.1} parent=1 // pred_region
      %48 = sst [smem:[#allocation15]] [#allocation14]
      %49 = sst [smem:[#allocation16]] [#allocation13]
    $region25: #{tpu_custom_call.1} parent=1 // pred_fallthru
      _
    %51 = shalt.err (0)
    %s53 = sshll.u32 [#allocation2], 4
    %s54 = int_to_ptr.vmem [resolvable:$true] %s53
    %56 = dma.hbm_to_vmem [thread:$0]  %s3, 43392, %s54, [#allocation6]
    %s57 = scalar_lea.sflag [#allocation6], 1
    %p59 = scmp.lt.u32.totalorder 1408, 8
    %p60 = pneg %p59
    // Predicated region
    $region26: #{tpu_custom_call.1} parent=1 // pred_check
      _
    $region27: #{tpu_custom_call.1} parent=1 // pred_check_branch
      %62 = sbr.rel (%p59) target = $region29
    $region28: #{tpu_custom_call.1} parent=1 // pred_region
      %s78 = sand.u32 1408, 7
      %p79 = scmp.eq.s32.totalorder %s78, 0
      // Predicated region
      $region41: #{tpu_custom_call.1} parent=28 // pred_check
        %p80 = pneg %p79
      $region42: #{tpu_custom_call.1} parent=28 // pred_check_branch
        %82 = sbr.rel (%p80) target = $region44
      $region43: #{tpu_custom_call.1} parent=28 // pred_region
        loop: start=0, step=1, limit=1
        $region45: #{tpu_custom_call.1} parent=43 // loop_pre_header
          _
        $region46: #{tpu_custom_call.1} parent=43 // loop_header
          %s84 = sphi 0, %s88
          %p85 = scmp.ge.s32.totalorder %s84, 1
          %s89 = sphi %s4, %s4
          %s90 = sphi [#allocation3], [#allocation3]
        $region47: #{tpu_custom_call.1} parent=43 // loop_header_branch
          %87 = sbr.rel (%p85) target = $region51
        $region48: #{tpu_custom_call.1} parent=43 // loop_body
          %v91 = vld [vmem:[%s89] sm:$0xff]
          %92 = vst [vmem:[%s90] sm:$0xff] %v91
          %v93 = vld [vmem:[%s89 + $0x8] sm:$0xff]
          %94 = vst [vmem:[%s90 + $0x8] sm:$0xff] %v93
          %v95 = vld [vmem:[%s89 + $0x10] sm:$0xff]
          %96 = vst [vmem:[%s90 + $0x10] sm:$0xff] %v95
          %v97 = vld [vmem:[%s89 + $0x18] sm:$0xff]
          %98 = vst [vmem:[%s90 + $0x18] sm:$0xff] %v97
          %v99 = vld [vmem:[%s89 + $0x20] sm:$0xff]
          %100 = vst [vmem:[%s90 + $0x20] sm:$0xff] %v99
          %v101 = vld [vmem:[%s89 + $0x28] sm:$0xff]
          %102 = vst [vmem:[%s90 + $0x28] sm:$0xff] %v101
          %v103 = vld [vmem:[%s89 + $0x30] sm:$0xff]
          %104 = vst [vmem:[%s90 + $0x30] sm:$0xff] %v103
          %v105 = vld [vmem:[%s89 + $0x38] sm:$0xff]
          %106 = vst [vmem:[%s90 + $0x38] sm:$0xff] %v105
          %v107 = vld [vmem:[%s89 + $0x40] sm:$0xff]
          %108 = vst [vmem:[%s90 + $0x40] sm:$0xff] %v107
          %v109 = vld [vmem:[%s89 + $0x48] sm:$0xff]
          %110 = vst [vmem:[%s90 + $0x48] sm:$0xff] %v109
          %v111 = vld [vmem:[%s89 + $0x50] sm:$0xff]
          %112 = vst [vmem:[%s90 + $0x50] sm:$0xff] %v111
          %v113 = vld [vmem:[%s89 + $0x58] sm:$0xff]
          %114 = vst [vmem:[%s90 + $0x58] sm:$0xff] %v113
          %v115 = vld [vmem:[%s89 + $0x60] sm:$0xff]
          %116 = vst [vmem:[%s90 + $0x60] sm:$0xff] %v115
          %v117 = vld [vmem:[%s89 + $0x68] sm:$0xff]
          %118 = vst [vmem:[%s90 + $0x68] sm:$0xff] %v117
          %v119 = vld [vmem:[%s89 + $0x70] sm:$0xff]
          %120 = vst [vmem:[%s90 + $0x70] sm:$0xff] %v119
          %v121 = vld [vmem:[%s89 + $0x78] sm:$0xff]
          %122 = vst [vmem:[%s90 + $0x78] sm:$0xff] %v121
          %v123 = vld [vmem:[%s89 + $0x80] sm:$0xff]
          %124 = vst [vmem:[%s90 + $0x80] sm:$0xff] %v123
          %v125 = vld [vmem:[%s89 + $0x88] sm:$0xff]
          %126 = vst [vmem:[%s90 + $0x88] sm:$0xff] %v125
          %v127 = vld [vmem:[%s89 + $0x90] sm:$0xff]
          %128 = vst [vmem:[%s90 + $0x90] sm:$0xff] %v127
          %v129 = vld [vmem:[%s89 + $0x98] sm:$0xff]
          %130 = vst [vmem:[%s90 + $0x98] sm:$0xff] %v129
          %v131 = vld [vmem:[%s89 + $0xa0] sm:$0xff]
          %132 = vst [vmem:[%s90 + $0xa0] sm:$0xff] %v131
          %v133 = vld [vmem:[%s89 + $0xa8] sm:$0xff]
          %134 = vst [vmem:[%s90 + $0xa8] sm:$0xff] %v133
          %v135 = vld [vmem:[%s89 + $0xb0] sm:$0xff]
          %136 = vst [vmem:[%s90 + $0xb0] sm:$0xff] %v135
          %v137 = vld [vmem:[%s89 + $0xb8] sm:$0xff]
          %138 = vst [vmem:[%s90 + $0xb8] sm:$0xff] %v137
          %v139 = vld [vmem:[%s89 + $0xc0] sm:$0xff]
          %140 = vst [vmem:[%s90 + $0xc0] sm:$0xff] %v139
          %v141 = vld [vmem:[%s89 + $0xc8] sm:$0xff]
          %142 = vst [vmem:[%s90 + $0xc8] sm:$0xff] %v141
          %v143 = vld [vmem:[%s89 + $0xd0] sm:$0xff]
          %144 = vst [vmem:[%s90 + $0xd0] sm:$0xff] %v143
          %v145 = vld [vmem:[%s89 + $0xd8] sm:$0xff]
          %146 = vst [vmem:[%s90 + $0xd8] sm:$0xff] %v145
          %v147 = vld [vmem:[%s89 + $0xe0] sm:$0xff]
          %148 = vst [vmem:[%s90 + $0xe0] sm:$0xff] %v147
          %v149 = vld [vmem:[%s89 + $0xe8] sm:$0xff]
          %150 = vst [vmem:[%s90 + $0xe8] sm:$0xff] %v149
          %v151 = vld [vmem:[%s89 + $0xf0] sm:$0xff]
          %152 = vst [vmem:[%s90 + $0xf0] sm:$0xff] %v151
          %v153 = vld [vmem:[%s89 + $0xf8] sm:$0xff]
          %154 = vst [vmem:[%s90 + $0xf8] sm:$0xff] %v153
          %v155 = vld [vmem:[%s89 + $0x100] sm:$0xff]
          %156 = vst [vmem:[%s90 + $0x100] sm:$0xff] %v155
          %v157 = vld [vmem:[%s89 + $0x108] sm:$0xff]
          %158 = vst [vmem:[%s90 + $0x108] sm:$0xff] %v157
          %v159 = vld [vmem:[%s89 + $0x110] sm:$0xff]
          %160 = vst [vmem:[%s90 + $0x110] sm:$0xff] %v159
          %v161 = vld [vmem:[%s89 + $0x118] sm:$0xff]
          %162 = vst [vmem:[%s90 + $0x118] sm:$0xff] %v161
          %v163 = vld [vmem:[%s89 + $0x120] sm:$0xff]
          %164 = vst [vmem:[%s90 + $0x120] sm:$0xff] %v163
          %v165 = vld [vmem:[%s89 + $0x128] sm:$0xff]
          %166 = vst [vmem:[%s90 + $0x128] sm:$0xff] %v165
          %v167 = vld [vmem:[%s89 + $0x130] sm:$0xff]
          %168 = vst [vmem:[%s90 + $0x130] sm:$0xff] %v167
          %v169 = vld [vmem:[%s89 + $0x138] sm:$0xff]
          %170 = vst [vmem:[%s90 + $0x138] sm:$0xff] %v169
          %v171 = vld [vmem:[%s89 + $0x140] sm:$0xff]
          %172 = vst [vmem:[%s90 + $0x140] sm:$0xff] %v171
          %v173 = vld [vmem:[%s89 + $0x148] sm:$0xff]
          %174 = vst [vmem:[%s90 + $0x148] sm:$0xff] %v173
          %v175 = vld [vmem:[%s89 + $0x150] sm:$0xff]
          %176 = vst [vmem:[%s90 + $0x150] sm:$0xff] %v175
          %v177 = vld [vmem:[%s89 + $0x158] sm:$0xff]
          %178 = vst [vmem:[%s90 + $0x158] sm:$0xff] %v177
          %v179 = vld [vmem:[%s89 + $0x160] sm:$0xff]
          %180 = vst [vmem:[%s90 + $0x160] sm:$0xff] %v179
          %v181 = vld [vmem:[%s89 + $0x168] sm:$0xff]
          %182 = vst [vmem:[%s90 + $0x168] sm:$0xff] %v181
          %v183 = vld [vmem:[%s89 + $0x170] sm:$0xff]
          %184 = vst [vmem:[%s90 + $0x170] sm:$0xff] %v183
          %v185 = vld [vmem:[%s89 + $0x178] sm:$0xff]
          %186 = vst [vmem:[%s90 + $0x178] sm:$0xff] %v185
          %v187 = vld [vmem:[%s89 + $0x180] sm:$0xff]
          %188 = vst [vmem:[%s90 + $0x180] sm:$0xff] %v187
          %v189 = vld [vmem:[%s89 + $0x188] sm:$0xff]
          %190 = vst [vmem:[%s90 + $0x188] sm:$0xff] %v189
          %v191 = vld [vmem:[%s89 + $0x190] sm:$0xff]
          %192 = vst [vmem:[%s90 + $0x190] sm:$0xff] %v191
          %v193 = vld [vmem:[%s89 + $0x198] sm:$0xff]
          %194 = vst [vmem:[%s90 + $0x198] sm:$0xff] %v193
          %v195 = vld [vmem:[%s89 + $0x1a0] sm:$0xff]
          %196 = vst [vmem:[%s90 + $0x1a0] sm:$0xff] %v195
          %v197 = vld [vmem:[%s89 + $0x1a8] sm:$0xff]
          %198 = vst [vmem:[%s90 + $0x1a8] sm:$0xff] %v197
          %v199 = vld [vmem:[%s89 + $0x1b0] sm:$0xff]
          %200 = vst [vmem:[%s90 + $0x1b0] sm:$0xff] %v199
          %v201 = vld [vmem:[%s89 + $0x1b8] sm:$0xff]
          %202 = vst [vmem:[%s90 + $0x1b8] sm:$0xff] %v201
          %v203 = vld [vmem:[%s89 + $0x1c0] sm:$0xff]
          %204 = vst [vmem:[%s90 + $0x1c0] sm:$0xff] %v203
          %v205 = vld [vmem:[%s89 + $0x1c8] sm:$0xff]
          %206 = vst [vmem:[%s90 + $0x1c8] sm:$0xff] %v205
          %v207 = vld [vmem:[%s89 + $0x1d0] sm:$0xff]
          %208 = vst [vmem:[%s90 + $0x1d0] sm:$0xff] %v207
          %v209 = vld [vmem:[%s89 + $0x1d8] sm:$0xff]
          %210 = vst [vmem:[%s90 + $0x1d8] sm:$0xff] %v209
          %v211 = vld [vmem:[%s89 + $0x1e0] sm:$0xff]
          %212 = vst [vmem:[%s90 + $0x1e0] sm:$0xff] %v211
          %v213 = vld [vmem:[%s89 + $0x1e8] sm:$0xff]
          %214 = vst [vmem:[%s90 + $0x1e8] sm:$0xff] %v213
          %v215 = vld [vmem:[%s89 + $0x1f0] sm:$0xff]
          %216 = vst [vmem:[%s90 + $0x1f0] sm:$0xff] %v215
          %v217 = vld [vmem:[%s89 + $0x1f8] sm:$0xff]
          %218 = vst [vmem:[%s90 + $0x1f8] sm:$0xff] %v217
          %v219 = vld [vmem:[%s89 + $0x200] sm:$0xff]
          %220 = vst [vmem:[%s90 + $0x200] sm:$0xff] %v219
          %v221 = vld [vmem:[%s89 + $0x208] sm:$0xff]
          %222 = vst [vmem:[%s90 + $0x208] sm:$0xff] %v221
          %v223 = vld [vmem:[%s89 + $0x210] sm:$0xff]
          %224 = vst [vmem:[%s90 + $0x210] sm:$0xff] %v223
          %v225 = vld [vmem:[%s89 + $0x218] sm:$0xff]
          %226 = vst [vmem:[%s90 + $0x218] sm:$0xff] %v225
          %v227 = vld [vmem:[%s89 + $0x220] sm:$0xff]
          %228 = vst [vmem:[%s90 + $0x220] sm:$0xff] %v227
          %v229 = vld [vmem:[%s89 + $0x228] sm:$0xff]
          %230 = vst [vmem:[%s90 + $0x228] sm:$0xff] %v229
          %v231 = vld [vmem:[%s89 + $0x230] sm:$0xff]
          %232 = vst [vmem:[%s90 + $0x230] sm:$0xff] %v231
          %v233 = vld [vmem:[%s89 + $0x238] sm:$0xff]
          %234 = vst [vmem:[%s90 + $0x238] sm:$0xff] %v233
          %v235 = vld [vmem:[%s89 + $0x240] sm:$0xff]
          %236 = vst [vmem:[%s90 + $0x240] sm:$0xff] %v235
          %v237 = vld [vmem:[%s89 + $0x248] sm:$0xff]
          %238 = vst [vmem:[%s90 + $0x248] sm:$0xff] %v237
          %v239 = vld [vmem:[%s89 + $0x250] sm:$0xff]
          %240 = vst [vmem:[%s90 + $0x250] sm:$0xff] %v239
          %v241 = vld [vmem:[%s89 + $0x258] sm:$0xff]
          %242 = vst [vmem:[%s90 + $0x258] sm:$0xff] %v241
          %v243 = vld [vmem:[%s89 + $0x260] sm:$0xff]
          %244 = vst [vmem:[%s90 + $0x260] sm:$0xff] %v243
          %v245 = vld [vmem:[%s89 + $0x268] sm:$0xff]
          %246 = vst [vmem:[%s90 + $0x268] sm:$0xff] %v245
          %v247 = vld [vmem:[%s89 + $0x270] sm:$0xff]
          %248 = vst [vmem:[%s90 + $0x270] sm:$0xff] %v247
          %v249 = vld [vmem:[%s89 + $0x278] sm:$0xff]
          %250 = vst [vmem:[%s90 + $0x278] sm:$0xff] %v249
          %v251 = vld [vmem:[%s89 + $0x280] sm:$0xff]
          %252 = vst [vmem:[%s90 + $0x280] sm:$0xff] %v251
          %v253 = vld [vmem:[%s89 + $0x288] sm:$0xff]
          %254 = vst [vmem:[%s90 + $0x288] sm:$0xff] %v253
          %v255 = vld [vmem:[%s89 + $0x290] sm:$0xff]
          %256 = vst [vmem:[%s90 + $0x290] sm:$0xff] %v255
          %v257 = vld [vmem:[%s89 + $0x298] sm:$0xff]
          %258 = vst [vmem:[%s90 + $0x298] sm:$0xff] %v257
          %v259 = vld [vmem:[%s89 + $0x2a0] sm:$0xff]
          %260 = vst [vmem:[%s90 + $0x2a0] sm:$0xff] %v259
          %v261 = vld [vmem:[%s89 + $0x2a8] sm:$0xff]
          %262 = vst [vmem:[%s90 + $0x2a8] sm:$0xff] %v261
          %v263 = vld [vmem:[%s89 + $0x2b0] sm:$0xff]
          %264 = vst [vmem:[%s90 + $0x2b0] sm:$0xff] %v263
          %v265 = vld [vmem:[%s89 + $0x2b8] sm:$0xff]
          %266 = vst [vmem:[%s90 + $0x2b8] sm:$0xff] %v265
          %v267 = vld [vmem:[%s89 + $0x2c0] sm:$0xff]
          %268 = vst [vmem:[%s90 + $0x2c0] sm:$0xff] %v267
          %v269 = vld [vmem:[%s89 + $0x2c8] sm:$0xff]
          %270 = vst [vmem:[%s90 + $0x2c8] sm:$0xff] %v269
          %v271 = vld [vmem:[%s89 + $0x2d0] sm:$0xff]
          %272 = vst [vmem:[%s90 + $0x2d0] sm:$0xff] %v271
          %v273 = vld [vmem:[%s89 + $0x2d8] sm:$0xff]
          %274 = vst [vmem:[%s90 + $0x2d8] sm:$0xff] %v273
          %v275 = vld [vmem:[%s89 + $0x2e0] sm:$0xff]
          %276 = vst [vmem:[%s90 + $0x2e0] sm:$0xff] %v275
          %v277 = vld [vmem:[%s89 + $0x2e8] sm:$0xff]
          %278 = vst [vmem:[%s90 + $0x2e8] sm:$0xff] %v277
          %v279 = vld [vmem:[%s89 + $0x2f0] sm:$0xff]
          %280 = vst [vmem:[%s90 + $0x2f0] sm:$0xff] %v279
          %v281 = vld [vmem:[%s89 + $0x2f8] sm:$0xff]
          %282 = vst [vmem:[%s90 + $0x2f8] sm:$0xff] %v281
          %v283 = vld [vmem:[%s89 + $0x300] sm:$0xff]
          %284 = vst [vmem:[%s90 + $0x300] sm:$0xff] %v283
          %v285 = vld [vmem:[%s89 + $0x308] sm:$0xff]
          %286 = vst [vmem:[%s90 + $0x308] sm:$0xff] %v285
          %v287 = vld [vmem:[%s89 + $0x310] sm:$0xff]
          %288 = vst [vmem:[%s90 + $0x310] sm:$0xff] %v287
          %v289 = vld [vmem:[%s89 + $0x318] sm:$0xff]
          %290 = vst [vmem:[%s90 + $0x318] sm:$0xff] %v289
          %v291 = vld [vmem:[%s89 + $0x320] sm:$0xff]
          %292 = vst [vmem:[%s90 + $0x320] sm:$0xff] %v291
          %v293 = vld [vmem:[%s89 + $0x328] sm:$0xff]
          %294 = vst [vmem:[%s90 + $0x328] sm:$0xff] %v293
          %v295 = vld [vmem:[%s89 + $0x330] sm:$0xff]
          %296 = vst [vmem:[%s90 + $0x330] sm:$0xff] %v295
          %v297 = vld [vmem:[%s89 + $0x338] sm:$0xff]
          %298 = vst [vmem:[%s90 + $0x338] sm:$0xff] %v297
          %v299 = vld [vmem:[%s89 + $0x340] sm:$0xff]
          %300 = vst [vmem:[%s90 + $0x340] sm:$0xff] %v299
          %v301 = vld [vmem:[%s89 + $0x348] sm:$0xff]
          %302 = vst [vmem:[%s90 + $0x348] sm:$0xff] %v301
          %v303 = vld [vmem:[%s89 + $0x350] sm:$0xff]
          %304 = vst [vmem:[%s90 + $0x350] sm:$0xff] %v303
          %v305 = vld [vmem:[%s89 + $0x358] sm:$0xff]
          %306 = vst [vmem:[%s90 + $0x358] sm:$0xff] %v305
          %v307 = vld [vmem:[%s89 + $0x360] sm:$0xff]
          %308 = vst [vmem:[%s90 + $0x360] sm:$0xff] %v307
          %v309 = vld [vmem:[%s89 + $0x368] sm:$0xff]
          %310 = vst [vmem:[%s90 + $0x368] sm:$0xff] %v309
          %v311 = vld [vmem:[%s89 + $0x370] sm:$0xff]
          %312 = vst [vmem:[%s90 + $0x370] sm:$0xff] %v311
          %v313 = vld [vmem:[%s89 + $0x378] sm:$0xff]
          %314 = vst [vmem:[%s90 + $0x378] sm:$0xff] %v313
          %v315 = vld [vmem:[%s89 + $0x380] sm:$0xff]
          %316 = vst [vmem:[%s90 + $0x380] sm:$0xff] %v315
          %v317 = vld [vmem:[%s89 + $0x388] sm:$0xff]
          %318 = vst [vmem:[%s90 + $0x388] sm:$0xff] %v317
          %v319 = vld [vmem:[%s89 + $0x390] sm:$0xff]
          %320 = vst [vmem:[%s90 + $0x390] sm:$0xff] %v319
          %v321 = vld [vmem:[%s89 + $0x398] sm:$0xff]
          %322 = vst [vmem:[%s90 + $0x398] sm:$0xff] %v321
          %v323 = vld [vmem:[%s89 + $0x3a0] sm:$0xff]
          %324 = vst [vmem:[%s90 + $0x3a0] sm:$0xff] %v323
          %v325 = vld [vmem:[%s89 + $0x3a8] sm:$0xff]
          %326 = vst [vmem:[%s90 + $0x3a8] sm:$0xff] %v325
          %v327 = vld [vmem:[%s89 + $0x3b0] sm:$0xff]
          %328 = vst [vmem:[%s90 + $0x3b0] sm:$0xff] %v327
          %v329 = vld [vmem:[%s89 + $0x3b8] sm:$0xff]
          %330 = vst [vmem:[%s90 + $0x3b8] sm:$0xff] %v329
          %v331 = vld [vmem:[%s89 + $0x3c0] sm:$0xff]
          %332 = vst [vmem:[%s90 + $0x3c0] sm:$0xff] %v331
          %v333 = vld [vmem:[%s89 + $0x3c8] sm:$0xff]
          %334 = vst [vmem:[%s90 + $0x3c8] sm:$0xff] %v333
          %v335 = vld [vmem:[%s89 + $0x3d0] sm:$0xff]
          %336 = vst [vmem:[%s90 + $0x3d0] sm:$0xff] %v335
          %v337 = vld [vmem:[%s89 + $0x3d8] sm:$0xff]
          %338 = vst [vmem:[%s90 + $0x3d8] sm:$0xff] %v337
          %v339 = vld [vmem:[%s89 + $0x3e0] sm:$0xff]
          %340 = vst [vmem:[%s90 + $0x3e0] sm:$0xff] %v339
          %v341 = vld [vmem:[%s89 + $0x3e8] sm:$0xff]
          %342 = vst [vmem:[%s90 + $0x3e8] sm:$0xff] %v341
          %v343 = vld [vmem:[%s89 + $0x3f0] sm:$0xff]
          %344 = vst [vmem:[%s90 + $0x3f0] sm:$0xff] %v343
          %v345 = vld [vmem:[%s89 + $0x3f8] sm:$0xff]
          %346 = vst [vmem:[%s90 + $0x3f8] sm:$0xff] %v345
          %v347 = vld [vmem:[%s89 + $0x400] sm:$0xff]
          %348 = vst [vmem:[%s90 + $0x400] sm:$0xff] %v347
          %v349 = vld [vmem:[%s89 + $0x408] sm:$0xff]
          %350 = vst [vmem:[%s90 + $0x408] sm:$0xff] %v349
          %v351 = vld [vmem:[%s89 + $0x410] sm:$0xff]
          %352 = vst [vmem:[%s90 + $0x410] sm:$0xff] %v351
          %v353 = vld [vmem:[%s89 + $0x418] sm:$0xff]
          %354 = vst [vmem:[%s90 + $0x418] sm:$0xff] %v353
          %v355 = vld [vmem:[%s89 + $0x420] sm:$0xff]
          %356 = vst [vmem:[%s90 + $0x420] sm:$0xff] %v355
          %v357 = vld [vmem:[%s89 + $0x428] sm:$0xff]
          %358 = vst [vmem:[%s90 + $0x428] sm:$0xff] %v357
          %v359 = vld [vmem:[%s89 + $0x430] sm:$0xff]
          %360 = vst [vmem:[%s90 + $0x430] sm:$0xff] %v359
          %v361 = vld [vmem:[%s89 + $0x438] sm:$0xff]
          %362 = vst [vmem:[%s90 + $0x438] sm:$0xff] %v361
          %v363 = vld [vmem:[%s89 + $0x440] sm:$0xff]
          %364 = vst [vmem:[%s90 + $0x440] sm:$0xff] %v363
          %v365 = vld [vmem:[%s89 + $0x448] sm:$0xff]
          %366 = vst [vmem:[%s90 + $0x448] sm:$0xff] %v365
          %v367 = vld [vmem:[%s89 + $0x450] sm:$0xff]
          %368 = vst [vmem:[%s90 + $0x450] sm:$0xff] %v367
          %v369 = vld [vmem:[%s89 + $0x458] sm:$0xff]
          %370 = vst [vmem:[%s90 + $0x458] sm:$0xff] %v369
          %v371 = vld [vmem:[%s89 + $0x460] sm:$0xff]
          %372 = vst [vmem:[%s90 + $0x460] sm:$0xff] %v371
          %v373 = vld [vmem:[%s89 + $0x468] sm:$0xff]
          %374 = vst [vmem:[%s90 + $0x468] sm:$0xff] %v373
          %v375 = vld [vmem:[%s89 + $0x470] sm:$0xff]
          %376 = vst [vmem:[%s90 + $0x470] sm:$0xff] %v375
          %v377 = vld [vmem:[%s89 + $0x478] sm:$0xff]
          %378 = vst [vmem:[%s90 + $0x478] sm:$0xff] %v377
          %v379 = vld [vmem:[%s89 + $0x480] sm:$0xff]
          %380 = vst [vmem:[%s90 + $0x480] sm:$0xff] %v379
          %v381 = vld [vmem:[%s89 + $0x488] sm:$0xff]
          %382 = vst [vmem:[%s90 + $0x488] sm:$0xff] %v381
          %v383 = vld [vmem:[%s89 + $0x490] sm:$0xff]
          %384 = vst [vmem:[%s90 + $0x490] sm:$0xff] %v383
          %v385 = vld [vmem:[%s89 + $0x498] sm:$0xff]
          %386 = vst [vmem:[%s90 + $0x498] sm:$0xff] %v385
          %v387 = vld [vmem:[%s89 + $0x4a0] sm:$0xff]
          %388 = vst [vmem:[%s90 + $0x4a0] sm:$0xff] %v387
          %v389 = vld [vmem:[%s89 + $0x4a8] sm:$0xff]
          %390 = vst [vmem:[%s90 + $0x4a8] sm:$0xff] %v389
          %v391 = vld [vmem:[%s89 + $0x4b0] sm:$0xff]
          %392 = vst [vmem:[%s90 + $0x4b0] sm:$0xff] %v391
          %v393 = vld [vmem:[%s89 + $0x4b8] sm:$0xff]
          %394 = vst [vmem:[%s90 + $0x4b8] sm:$0xff] %v393
          %v395 = vld [vmem:[%s89 + $0x4c0] sm:$0xff]
          %396 = vst [vmem:[%s90 + $0x4c0] sm:$0xff] %v395
          %v397 = vld [vmem:[%s89 + $0x4c8] sm:$0xff]
          %398 = vst [vmem:[%s90 + $0x4c8] sm:$0xff] %v397
          %v399 = vld [vmem:[%s89 + $0x4d0] sm:$0xff]
          %400 = vst [vmem:[%s90 + $0x4d0] sm:$0xff] %v399
          %v401 = vld [vmem:[%s89 + $0x4d8] sm:$0xff]
          %402 = vst [vmem:[%s90 + $0x4d8] sm:$0xff] %v401
          %v403 = vld [vmem:[%s89 + $0x4e0] sm:$0xff]
          %404 = vst [vmem:[%s90 + $0x4e0] sm:$0xff] %v403
          %v405 = vld [vmem:[%s89 + $0x4e8] sm:$0xff]
          %406 = vst [vmem:[%s90 + $0x4e8] sm:$0xff] %v405
          %v407 = vld [vmem:[%s89 + $0x4f0] sm:$0xff]
          %408 = vst [vmem:[%s90 + $0x4f0] sm:$0xff] %v407
          %v409 = vld [vmem:[%s89 + $0x4f8] sm:$0xff]
          %410 = vst [vmem:[%s90 + $0x4f8] sm:$0xff] %v409
          %v411 = vld [vmem:[%s89 + $0x500] sm:$0xff]
          %412 = vst [vmem:[%s90 + $0x500] sm:$0xff] %v411
          %v413 = vld [vmem:[%s89 + $0x508] sm:$0xff]
          %414 = vst [vmem:[%s90 + $0x508] sm:$0xff] %v413
          %v415 = vld [vmem:[%s89 + $0x510] sm:$0xff]
          %416 = vst [vmem:[%s90 + $0x510] sm:$0xff] %v415
          %v417 = vld [vmem:[%s89 + $0x518] sm:$0xff]
          %418 = vst [vmem:[%s90 + $0x518] sm:$0xff] %v417
          %v419 = vld [vmem:[%s89 + $0x520] sm:$0xff]
          %420 = vst [vmem:[%s90 + $0x520] sm:$0xff] %v419
          %v421 = vld [vmem:[%s89 + $0x528] sm:$0xff]
          %422 = vst [vmem:[%s90 + $0x528] sm:$0xff] %v421
          %v423 = vld [vmem:[%s89 + $0x530] sm:$0xff]
          %424 = vst [vmem:[%s90 + $0x530] sm:$0xff] %v423
          %v425 = vld [vmem:[%s89 + $0x538] sm:$0xff]
          %426 = vst [vmem:[%s90 + $0x538] sm:$0xff] %v425
          %v427 = vld [vmem:[%s89 + $0x540] sm:$0xff]
          %428 = vst [vmem:[%s90 + $0x540] sm:$0xff] %v427
          %v429 = vld [vmem:[%s89 + $0x548] sm:$0xff]
          %430 = vst [vmem:[%s90 + $0x548] sm:$0xff] %v429
          %v431 = vld [vmem:[%s89 + $0x550] sm:$0xff]
          %432 = vst [vmem:[%s90 + $0x550] sm:$0xff] %v431
          %v433 = vld [vmem:[%s89 + $0x558] sm:$0xff]
          %434 = vst [vmem:[%s90 + $0x558] sm:$0xff] %v433
          %v435 = vld [vmem:[%s89 + $0x560] sm:$0xff]
          %436 = vst [vmem:[%s90 + $0x560] sm:$0xff] %v435
          %v437 = vld [vmem:[%s89 + $0x568] sm:$0xff]
          %438 = vst [vmem:[%s90 + $0x568] sm:$0xff] %v437
          %v439 = vld [vmem:[%s89 + $0x570] sm:$0xff]
          %440 = vst [vmem:[%s90 + $0x570] sm:$0xff] %v439
          %v441 = vld [vmem:[%s89 + $0x578] sm:$0xff]
          %442 = vst [vmem:[%s90 + $0x578] sm:$0xff] %v441
        $region49: #{tpu_custom_call.1} parent=43 // loop_footer
          %s88 = sadd.s32 1, %s84
        $region50: #{tpu_custom_call.1} parent=43 // loop_footer_branch
          %83 = sbr.rel target = $region46
        $region51: #{tpu_custom_call.1} parent=43 // loop_exit
          _
      $region44: #{tpu_custom_call.1} parent=28 // pred_fallthru
        _
      %p443 = pneg %p79
      // Predicated region
      $region52: #{tpu_custom_call.1} parent=28 // pred_check
        _
      $region53: #{tpu_custom_call.1} parent=28 // pred_check_branch
        %445 = sbr.rel (%p79) target = $region55
      $region54: #{tpu_custom_call.1} parent=28 // pred_region
        %s446 = sand.u32 1408, 7
      $region55: #{tpu_custom_call.1} parent=28 // pred_fallthru
        _
    $region29: #{tpu_custom_call.1} parent=1 // pred_fallthru
      _
    // Predicated region
    $region30: #{tpu_custom_call.1} parent=1 // pred_check
      %p63 = pneg %p59
    $region31: #{tpu_custom_call.1} parent=1 // pred_check_branch
      %65 = sbr.rel (%p63) target = $region33
    $region32: #{tpu_custom_call.1} parent=1 // pred_region
      %s66 = sshll.u32 1, 1408
      %s67 = ssub.s32 %s66, 1
      loop: start=0, step=1, limit=1
      $region34: #{tpu_custom_call.1} parent=32 // loop_pre_header
        _
      $region35: #{tpu_custom_call.1} parent=32 // loop_header
        %s69 = sphi 0, %s73
        %p70 = scmp.ge.s32.totalorder %s69, 1
        %s74 = sphi %s4, %s4
        %s75 = sphi [#allocation3], [#allocation3]
      $region36: #{tpu_custom_call.1} parent=32 // loop_header_branch
        %72 = sbr.rel (%p70) target = $region40
      $region37: #{tpu_custom_call.1} parent=32 // loop_body
        %v76 = vld [vmem:[%s74] sm:%s67]
        %77 = vst [vmem:[%s75] sm:%s67] %v76
      $region38: #{tpu_custom_call.1} parent=32 // loop_footer
        %s73 = sadd.s32 1, %s69
      $region39: #{tpu_custom_call.1} parent=32 // loop_footer_branch
        %68 = sbr.rel target = $region35
      $region40: #{tpu_custom_call.1} parent=32 // loop_exit
        _
    $region33: #{tpu_custom_call.1} parent=1 // pred_fallthru
      _
    // Predicated region
    $region56: #{tpu_custom_call.1} parent=1 // pred_check
      _
    $region57: #{tpu_custom_call.1} parent=1 // pred_check_branch
      %449 = sbr.rel (0) target = $region59
    $region58: #{tpu_custom_call.1} parent=1 // pred_region
      %450 = vsyncadd %s57, 22528
    $region59: #{tpu_custom_call.1} parent=1 // pred_fallthru
      _
    %s451 = scalar_lea.sflag [#allocation6], 2
    %p453 = scmp.lt.u32.totalorder 756, 8
    %p454 = pneg %p453
    // Predicated region
    $region60: #{tpu_custom_call.1} parent=1 // pred_check
      _
    $region61: #{tpu_custom_call.1} parent=1 // pred_check_branch
      %456 = sbr.rel (%p453) target = $region63
    $region62: #{tpu_custom_call.1} parent=1 // pred_region
      %s472 = sand.u32 756, 7
      %p473 = scmp.eq.s32.totalorder %s472, 0
      %p474 = pneg %p473
      // Predicated region
      $region75: #{tpu_custom_call.1} parent=62 // pred_check
        _
      $region76: #{tpu_custom_call.1} parent=62 // pred_check_branch
        %476 = sbr.rel (%p473) target = $region78
      $region77: #{tpu_custom_call.1} parent=62 // pred_region
        %s477 = sand.u32 756, 7
        %s478 = ssub.s32 756, %s477
        %s479 = scalar_lea.vmem %s5, %s478
        %s480 = ssub.s32 756, %s477
        %s481 = scalar_lea.vmem [#allocation4], %s480
        loop: start=0, step=1, limit=1
        $region79: #{tpu_custom_call.1} parent=77 // loop_pre_header
          _
        $region80: #{tpu_custom_call.1} parent=77 // loop_header
          %s483 = sphi 0, %s487
          %p484 = scmp.ge.s32.totalorder %s483, 1
          %s488 = sphi %s5, %s5
          %s489 = sphi [#allocation4], [#allocation4]
        $region81: #{tpu_custom_call.1} parent=77 // loop_header_branch
          %486 = sbr.rel (%p484) target = $region85
        $region82: #{tpu_custom_call.1} parent=77 // loop_body
          %v490 = vld [vmem:[%s488] sm:$0xff]
          %491 = vst [vmem:[%s489] sm:$0xff] %v490
          %v492 = vld [vmem:[%s488 + $0x8] sm:$0xff]
          %493 = vst [vmem:[%s489 + $0x8] sm:$0xff] %v492
          %v494 = vld [vmem:[%s488 + $0x10] sm:$0xff]
          %495 = vst [vmem:[%s489 + $0x10] sm:$0xff] %v494
          %v496 = vld [vmem:[%s488 + $0x18] sm:$0xff]
          %497 = vst [vmem:[%s489 + $0x18] sm:$0xff] %v496
          %v498 = vld [vmem:[%s488 + $0x20] sm:$0xff]
          %499 = vst [vmem:[%s489 + $0x20] sm:$0xff] %v498
          %v500 = vld [vmem:[%s488 + $0x28] sm:$0xff]
          %501 = vst [vmem:[%s489 + $0x28] sm:$0xff] %v500
          %v502 = vld [vmem:[%s488 + $0x30] sm:$0xff]
          %503 = vst [vmem:[%s489 + $0x30] sm:$0xff] %v502
          %v504 = vld [vmem:[%s488 + $0x38] sm:$0xff]
          %505 = vst [vmem:[%s489 + $0x38] sm:$0xff] %v504
          %v506 = vld [vmem:[%s488 + $0x40] sm:$0xff]
          %507 = vst [vmem:[%s489 + $0x40] sm:$0xff] %v506
          %v508 = vld [vmem:[%s488 + $0x48] sm:$0xff]
          %509 = vst [vmem:[%s489 + $0x48] sm:$0xff] %v508
          %v510 = vld [vmem:[%s488 + $0x50] sm:$0xff]
          %511 = vst [vmem:[%s489 + $0x50] sm:$0xff] %v510
          %v512 = vld [vmem:[%s488 + $0x58] sm:$0xff]
          %513 = vst [vmem:[%s489 + $0x58] sm:$0xff] %v512
          %v514 = vld [vmem:[%s488 + $0x60] sm:$0xff]
          %515 = vst [vmem:[%s489 + $0x60] sm:$0xff] %v514
          %v516 = vld [vmem:[%s488 + $0x68] sm:$0xff]
          %517 = vst [vmem:[%s489 + $0x68] sm:$0xff] %v516
          %v518 = vld [vmem:[%s488 + $0x70] sm:$0xff]
          %519 = vst [vmem:[%s489 + $0x70] sm:$0xff] %v518
          %v520 = vld [vmem:[%s488 + $0x78] sm:$0xff]
          %521 = vst [vmem:[%s489 + $0x78] sm:$0xff] %v520
          %v522 = vld [vmem:[%s488 + $0x80] sm:$0xff]
          %523 = vst [vmem:[%s489 + $0x80] sm:$0xff] %v522
          %v524 = vld [vmem:[%s488 + $0x88] sm:$0xff]
          %525 = vst [vmem:[%s489 + $0x88] sm:$0xff] %v524
          %v526 = vld [vmem:[%s488 + $0x90] sm:$0xff]
          %527 = vst [vmem:[%s489 + $0x90] sm:$0xff] %v526
          %v528 = vld [vmem:[%s488 + $0x98] sm:$0xff]
          %529 = vst [vmem:[%s489 + $0x98] sm:$0xff] %v528
          %v530 = vld [vmem:[%s488 + $0xa0] sm:$0xff]
          %531 = vst [vmem:[%s489 + $0xa0] sm:$0xff] %v530
          %v532 = vld [vmem:[%s488 + $0xa8] sm:$0xff]
          %533 = vst [vmem:[%s489 + $0xa8] sm:$0xff] %v532
          %v534 = vld [vmem:[%s488 + $0xb0] sm:$0xff]
          %535 = vst [vmem:[%s489 + $0xb0] sm:$0xff] %v534
          %v536 = vld [vmem:[%s488 + $0xb8] sm:$0xff]
          %537 = vst [vmem:[%s489 + $0xb8] sm:$0xff] %v536
          %v538 = vld [vmem:[%s488 + $0xc0] sm:$0xff]
          %539 = vst [vmem:[%s489 + $0xc0] sm:$0xff] %v538
          %v540 = vld [vmem:[%s488 + $0xc8] sm:$0xff]
          %541 = vst [vmem:[%s489 + $0xc8] sm:$0xff] %v540
          %v542 = vld [vmem:[%s488 + $0xd0] sm:$0xff]
          %543 = vst [vmem:[%s489 + $0xd0] sm:$0xff] %v542
          %v544 = vld [vmem:[%s488 + $0xd8] sm:$0xff]
          %545 = vst [vmem:[%s489 + $0xd8] sm:$0xff] %v544
          %v546 = vld [vmem:[%s488 + $0xe0] sm:$0xff]
          %547 = vst [vmem:[%s489 + $0xe0] sm:$0xff] %v546
          %v548 = vld [vmem:[%s488 + $0xe8] sm:$0xff]
          %549 = vst [vmem:[%s489 + $0xe8] sm:$0xff] %v548
          %v550 = vld [vmem:[%s488 + $0xf0] sm:$0xff]
          %551 = vst [vmem:[%s489 + $0xf0] sm:$0xff] %v550
          %v552 = vld [vmem:[%s488 + $0xf8] sm:$0xff]
          %553 = vst [vmem:[%s489 + $0xf8] sm:$0xff] %v552
          %v554 = vld [vmem:[%s488 + $0x100] sm:$0xff]
          %555 = vst [vmem:[%s489 + $0x100] sm:$0xff] %v554
          %v556 = vld [vmem:[%s488 + $0x108] sm:$0xff]
          %557 = vst [vmem:[%s489 + $0x108] sm:$0xff] %v556
          %v558 = vld [vmem:[%s488 + $0x110] sm:$0xff]
          %559 = vst [vmem:[%s489 + $0x110] sm:$0xff] %v558
          %v560 = vld [vmem:[%s488 + $0x118] sm:$0xff]
          %561 = vst [vmem:[%s489 + $0x118] sm:$0xff] %v560
          %v562 = vld [vmem:[%s488 + $0x120] sm:$0xff]
          %563 = vst [vmem:[%s489 + $0x120] sm:$0xff] %v562
          %v564 = vld [vmem:[%s488 + $0x128] sm:$0xff]
          %565 = vst [vmem:[%s489 + $0x128] sm:$0xff] %v564
          %v566 = vld [vmem:[%s488 + $0x130] sm:$0xff]
          %567 = vst [vmem:[%s489 + $0x130] sm:$0xff] %v566
          %v568 = vld [vmem:[%s488 + $0x138] sm:$0xff]
          %569 = vst [vmem:[%s489 + $0x138] sm:$0xff] %v568
          %v570 = vld [vmem:[%s488 + $0x140] sm:$0xff]
          %571 = vst [vmem:[%s489 + $0x140] sm:$0xff] %v570
          %v572 = vld [vmem:[%s488 + $0x148] sm:$0xff]
          %573 = vst [vmem:[%s489 + $0x148] sm:$0xff] %v572
          %v574 = vld [vmem:[%s488 + $0x150] sm:$0xff]
          %575 = vst [vmem:[%s489 + $0x150] sm:$0xff] %v574
          %v576 = vld [vmem:[%s488 + $0x158] sm:$0xff]
          %577 = vst [vmem:[%s489 + $0x158] sm:$0xff] %v576
          %v578 = vld [vmem:[%s488 + $0x160] sm:$0xff]
          %579 = vst [vmem:[%s489 + $0x160] sm:$0xff] %v578
          %v580 = vld [vmem:[%s488 + $0x168] sm:$0xff]
          %581 = vst [vmem:[%s489 + $0x168] sm:$0xff] %v580
          %v582 = vld [vmem:[%s488 + $0x170] sm:$0xff]
          %583 = vst [vmem:[%s489 + $0x170] sm:$0xff] %v582
          %v584 = vld [vmem:[%s488 + $0x178] sm:$0xff]
          %585 = vst [vmem:[%s489 + $0x178] sm:$0xff] %v584
          %v586 = vld [vmem:[%s488 + $0x180] sm:$0xff]
          %587 = vst [vmem:[%s489 + $0x180] sm:$0xff] %v586
          %v588 = vld [vmem:[%s488 + $0x188] sm:$0xff]
          %589 = vst [vmem:[%s489 + $0x188] sm:$0xff] %v588
          %v590 = vld [vmem:[%s488 + $0x190] sm:$0xff]
          %591 = vst [vmem:[%s489 + $0x190] sm:$0xff] %v590
          %v592 = vld [vmem:[%s488 + $0x198] sm:$0xff]
          %593 = vst [vmem:[%s489 + $0x198] sm:$0xff] %v592
          %v594 = vld [vmem:[%s488 + $0x1a0] sm:$0xff]
          %595 = vst [vmem:[%s489 + $0x1a0] sm:$0xff] %v594
          %v596 = vld [vmem:[%s488 + $0x1a8] sm:$0xff]
          %597 = vst [vmem:[%s489 + $0x1a8] sm:$0xff] %v596
          %v598 = vld [vmem:[%s488 + $0x1b0] sm:$0xff]
          %599 = vst [vmem:[%s489 + $0x1b0] sm:$0xff] %v598
          %v600 = vld [vmem:[%s488 + $0x1b8] sm:$0xff]
          %601 = vst [vmem:[%s489 + $0x1b8] sm:$0xff] %v600
          %v602 = vld [vmem:[%s488 + $0x1c0] sm:$0xff]
          %603 = vst [vmem:[%s489 + $0x1c0] sm:$0xff] %v602
          %v604 = vld [vmem:[%s488 + $0x1c8] sm:$0xff]
          %605 = vst [vmem:[%s489 + $0x1c8] sm:$0xff] %v604
          %v606 = vld [vmem:[%s488 + $0x1d0] sm:$0xff]
          %607 = vst [vmem:[%s489 + $0x1d0] sm:$0xff] %v606
          %v608 = vld [vmem:[%s488 + $0x1d8] sm:$0xff]
          %609 = vst [vmem:[%s489 + $0x1d8] sm:$0xff] %v608
          %v610 = vld [vmem:[%s488 + $0x1e0] sm:$0xff]
          %611 = vst [vmem:[%s489 + $0x1e0] sm:$0xff] %v610
          %v612 = vld [vmem:[%s488 + $0x1e8] sm:$0xff]
          %613 = vst [vmem:[%s489 + $0x1e8] sm:$0xff] %v612
          %v614 = vld [vmem:[%s488 + $0x1f0] sm:$0xff]
          %615 = vst [vmem:[%s489 + $0x1f0] sm:$0xff] %v614
          %v616 = vld [vmem:[%s488 + $0x1f8] sm:$0xff]
          %617 = vst [vmem:[%s489 + $0x1f8] sm:$0xff] %v616
          %v618 = vld [vmem:[%s488 + $0x200] sm:$0xff]
          %619 = vst [vmem:[%s489 + $0x200] sm:$0xff] %v618
          %v620 = vld [vmem:[%s488 + $0x208] sm:$0xff]
          %621 = vst [vmem:[%s489 + $0x208] sm:$0xff] %v620
          %v622 = vld [vmem:[%s488 + $0x210] sm:$0xff]
          %623 = vst [vmem:[%s489 + $0x210] sm:$0xff] %v622
          %v624 = vld [vmem:[%s488 + $0x218] sm:$0xff]
          %625 = vst [vmem:[%s489 + $0x218] sm:$0xff] %v624
          %v626 = vld [vmem:[%s488 + $0x220] sm:$0xff]
          %627 = vst [vmem:[%s489 + $0x220] sm:$0xff] %v626
          %v628 = vld [vmem:[%s488 + $0x228] sm:$0xff]
          %629 = vst [vmem:[%s489 + $0x228] sm:$0xff] %v628
          %v630 = vld [vmem:[%s488 + $0x230] sm:$0xff]
          %631 = vst [vmem:[%s489 + $0x230] sm:$0xff] %v630
          %v632 = vld [vmem:[%s488 + $0x238] sm:$0xff]
          %633 = vst [vmem:[%s489 + $0x238] sm:$0xff] %v632
          %v634 = vld [vmem:[%s488 + $0x240] sm:$0xff]
          %635 = vst [vmem:[%s489 + $0x240] sm:$0xff] %v634
          %v636 = vld [vmem:[%s488 + $0x248] sm:$0xff]
          %637 = vst [vmem:[%s489 + $0x248] sm:$0xff] %v636
          %v638 = vld [vmem:[%s488 + $0x250] sm:$0xff]
          %639 = vst [vmem:[%s489 + $0x250] sm:$0xff] %v638
          %v640 = vld [vmem:[%s488 + $0x258] sm:$0xff]
          %641 = vst [vmem:[%s489 + $0x258] sm:$0xff] %v640
          %v642 = vld [vmem:[%s488 + $0x260] sm:$0xff]
          %643 = vst [vmem:[%s489 + $0x260] sm:$0xff] %v642
          %v644 = vld [vmem:[%s488 + $0x268] sm:$0xff]
          %645 = vst [vmem:[%s489 + $0x268] sm:$0xff] %v644
          %v646 = vld [vmem:[%s488 + $0x270] sm:$0xff]
          %647 = vst [vmem:[%s489 + $0x270] sm:$0xff] %v646
          %v648 = vld [vmem:[%s488 + $0x278] sm:$0xff]
          %649 = vst [vmem:[%s489 + $0x278] sm:$0xff] %v648
          %v650 = vld [vmem:[%s488 + $0x280] sm:$0xff]
          %651 = vst [vmem:[%s489 + $0x280] sm:$0xff] %v650
          %v652 = vld [vmem:[%s488 + $0x288] sm:$0xff]
          %653 = vst [vmem:[%s489 + $0x288] sm:$0xff] %v652
          %v654 = vld [vmem:[%s488 + $0x290] sm:$0xff]
          %655 = vst [vmem:[%s489 + $0x290] sm:$0xff] %v654
          %v656 = vld [vmem:[%s488 + $0x298] sm:$0xff]
          %657 = vst [vmem:[%s489 + $0x298] sm:$0xff] %v656
          %v658 = vld [vmem:[%s488 + $0x2a0] sm:$0xff]
          %659 = vst [vmem:[%s489 + $0x2a0] sm:$0xff] %v658
          %v660 = vld [vmem:[%s488 + $0x2a8] sm:$0xff]
          %661 = vst [vmem:[%s489 + $0x2a8] sm:$0xff] %v660
          %v662 = vld [vmem:[%s488 + $0x2b0] sm:$0xff]
          %663 = vst [vmem:[%s489 + $0x2b0] sm:$0xff] %v662
          %v664 = vld [vmem:[%s488 + $0x2b8] sm:$0xff]
          %665 = vst [vmem:[%s489 + $0x2b8] sm:$0xff] %v664
          %v666 = vld [vmem:[%s488 + $0x2c0] sm:$0xff]
          %667 = vst [vmem:[%s489 + $0x2c0] sm:$0xff] %v666
          %v668 = vld [vmem:[%s488 + $0x2c8] sm:$0xff]
          %669 = vst [vmem:[%s489 + $0x2c8] sm:$0xff] %v668
          %v670 = vld [vmem:[%s488 + $0x2d0] sm:$0xff]
          %671 = vst [vmem:[%s489 + $0x2d0] sm:$0xff] %v670
          %v672 = vld [vmem:[%s488 + $0x2d8] sm:$0xff]
          %673 = vst [vmem:[%s489 + $0x2d8] sm:$0xff] %v672
          %v674 = vld [vmem:[%s488 + $0x2e0] sm:$0xff]
          %675 = vst [vmem:[%s489 + $0x2e0] sm:$0xff] %v674
          %v676 = vld [vmem:[%s488 + $0x2e8] sm:$0xff]
          %677 = vst [vmem:[%s489 + $0x2e8] sm:$0xff] %v676
        $region83: #{tpu_custom_call.1} parent=77 // loop_footer
          %s487 = sadd.s32 1, %s483
        $region84: #{tpu_custom_call.1} parent=77 // loop_footer_branch
          %482 = sbr.rel target = $region80
        $region85: #{tpu_custom_call.1} parent=77 // loop_exit
          _
        %s678 = sshll.u32 1, %s477
        %s679 = ssub.s32 %s678, 1
        loop: start=0, step=1, limit=1
        $region86: #{tpu_custom_call.1} parent=77 // loop_pre_header
          _
        $region87: #{tpu_custom_call.1} parent=77 // loop_header
          %s681 = sphi 0, %s685
          %p682 = scmp.ge.s32.totalorder %s681, 1
          %s686 = sphi %s479, %s479
          %s687 = sphi %s481, %s481
        $region88: #{tpu_custom_call.1} parent=77 // loop_header_branch
          %684 = sbr.rel (%p682) target = $region92
        $region89: #{tpu_custom_call.1} parent=77 // loop_body
          %v688 = vld [vmem:[%s686] sm:%s679]
          %689 = vst [vmem:[%s687] sm:%s679] %v688
        $region90: #{tpu_custom_call.1} parent=77 // loop_footer
          %s685 = sadd.s32 1, %s681
        $region91: #{tpu_custom_call.1} parent=77 // loop_footer_branch
          %680 = sbr.rel target = $region87
        $region92: #{tpu_custom_call.1} parent=77 // loop_exit
          _
      $region78: #{tpu_custom_call.1} parent=62 // pred_fallthru
        _
    $region63: #{tpu_custom_call.1} parent=1 // pred_fallthru
      _
    // Predicated region
    $region64: #{tpu_custom_call.1} parent=1 // pred_check
      %p457 = pneg %p453
    $region65: #{tpu_custom_call.1} parent=1 // pred_check_branch
      %459 = sbr.rel (%p457) target = $region67
    $region66: #{tpu_custom_call.1} parent=1 // pred_region
      %s460 = sshll.u32 1, 756
      %s461 = ssub.s32 %s460, 1
      loop: start=0, step=1, limit=1
      $region68: #{tpu_custom_call.1} parent=66 // loop_pre_header
        _
      $region69: #{tpu_custom_call.1} parent=66 // loop_header
        %s463 = sphi 0, %s467
        %p464 = scmp.ge.s32.totalorder %s463, 1
        %s468 = sphi %s5, %s5
        %s469 = sphi [#allocation4], [#allocation4]
      $region70: #{tpu_custom_call.1} parent=66 // loop_header_branch
        %466 = sbr.rel (%p464) target = $region74
      $region71: #{tpu_custom_call.1} parent=66 // loop_body
        %v470 = vld [vmem:[%s468] sm:%s461]
        %471 = vst [vmem:[%s469] sm:%s461] %v470
      $region72: #{tpu_custom_call.1} parent=66 // loop_footer
        %s467 = sadd.s32 1, %s463
      $region73: #{tpu_custom_call.1} parent=66 // loop_footer_branch
        %462 = sbr.rel target = $region69
      $region74: #{tpu_custom_call.1} parent=66 // loop_exit
        _
    $region67: #{tpu_custom_call.1} parent=1 // pred_fallthru
      _
    // Predicated region
    $region93: #{tpu_custom_call.1} parent=1 // pred_check
      _
    $region94: #{tpu_custom_call.1} parent=1 // pred_check_branch
      %692 = sbr.rel (0) target = $region96
    $region95: #{tpu_custom_call.1} parent=1 // pred_region
      %693 = vsyncadd %s451, 12096
    $region96: #{tpu_custom_call.1} parent=1 // pred_fallthru
      _
    %s694 = scalar_lea.sflag [#allocation6], 3
    // Predicated region
    $region97: #{tpu_custom_call.1} parent=1 // pred_check
      _
    $region98: #{tpu_custom_call.1} parent=1 // pred_check_branch
      %696 = sbr.rel target = $region100
    $region99: #{tpu_custom_call.1} parent=1 // pred_region
      %697 = sst [smem:[#allocation15]] [#allocation20]
      %698 = sst [smem:[#allocation16]] [#allocation19]
    $region100: #{tpu_custom_call.1} parent=1 // pred_fallthru
      _
    %700 = shalt.err (0)
    %s702 = sshll.u32 [#allocation5], 4
    %s703 = int_to_ptr.vmem [resolvable:$true] %s702
    %705 = dma.hbm_to_vmem [thread:$0]  %s6, 2432, %s703, %s694
    %v706 = vld [vmem:[#allocation10] ss:$8 sm:$0xf]
    %v707 = vld [vmem:[#allocation10] ss:$8 sm:$0xf0]
    %v708 = vor.u32 %v706, %v707
    %s709 = scalar_lea.vmem [#allocation10], 1
    %v710 = vld [vmem:[%s709] ss:$8 sm:$0xf]
    %v711 = vld [vmem:[%s709] ss:$8 sm:$0xf0]
    %v712 = vor.u32 %v710, %v711
    %s713 = scalar_lea.vmem [#allocation10], 2
    %v714 = vld [vmem:[%s713] ss:$8 sm:$0xf]
    %v715 = vld [vmem:[%s713] ss:$8 sm:$0xf0]
    %v716 = vor.u32 %v714, %v715
    %s717 = scalar_lea.vmem [#allocation10], 3
    %v718 = vld [vmem:[%s717] ss:$8 sm:$0xf]
    %v719 = vld [vmem:[%s717] ss:$8 sm:$0x30]
    %v720 = vor.u32 %v718, %v719
    %s721 = scalar_lea.vmem [#allocation10], 4
    %v722 = vld [vmem:[%s721] ss:$8 sm:$0xf]
    %v723 = vld [vmem:[%s721] ss:$8 sm:$0x30]
    %v724 = vor.u32 %v722, %v723
    %s725 = scalar_lea.vmem [#allocation10], 5
    %v726 = vld [vmem:[%s725] ss:$8 sm:$0xf]
    %v727 = vld [vmem:[%s725] ss:$8 sm:$0x30]
    %v728 = vor.u32 %v726, %v727
    %s729 = scalar_lea.vmem [#allocation10], 6
    %v730 = vld [vmem:[%s729] ss:$8 sm:$0xf]
    %s731 = scalar_lea.vmem [#allocation10], 7
    %v732 = vld [vmem:[%s731] ss:$8 sm:$0xf]
    %s733 = scalar_lea.vmem [#allocation10], 64
    %v734 = vld [vmem:[%s733] ss:$8 sm:$0xf]
    %s735 = scalar_lea.vmem [#allocation10], 65
    %v736 = vld [vmem:[%s735] ss:$8 sm:$0x7]
    %v737 = vld [vmem:[#allocation10 + $0x42] ss:$0 sm:$0xff]
    %v738 = vld [vmem:[#allocation7] sm:$0xff]
    %v739 = vld [vmem:[%s2] sm:$0xff]
    %v740 = vld [vmem:[%s2 + $0x8] sm:$0xff]
    %v741 = vld [vmem:[%s2 + $0x10] sm:$0xff]
    %v742 = vld [vmem:[%s2 + $0x18] sm:$0xff]
    %v743 = vld [vmem:[%s2 + $0x20] sm:$0xff]
    %v744 = vld [vmem:[%s2 + $0x28] sm:$0xff]
    %v745 = vld [vmem:[%s2 + $0x30] sm:$0xff]
    %v746 = vld [vmem:[%s2 + $0x38] sm:$0xff]
    %v747 = vld [vmem:[%s2 + $0x40] sm:$0xff]
    %v748 = vld [vmem:[%s2 + $0x48] sm:$0xff]
    %v749 = vld [vmem:[%s2 + $0x50] sm:$0xff]
    %v750 = vld [vmem:[%s2 + $0x58] sm:$0xff]
    %v751 = vld [vmem:[%s2 + $0x60] sm:$0xff]
    %v752 = vld [vmem:[%s2 + $0x68] sm:$0xff]
    %v753 = vld [vmem:[%s2 + $0x70] sm:$0xff]
    %v754 = vld [vmem:[%s2 + $0x78] sm:$0xff]
    %v755 = vld [vmem:[%s2 + $0x80] sm:$0xff]
    %v756 = vld [vmem:[%s2 + $0x88] sm:$0xff]
    %v757 = vld [vmem:[%s2 + $0x90] sm:$0xff]
    %v758 = vld [vmem:[%s2 + $0x98] sm:$0xff]
    %v759 = vld [vmem:[%s2 + $0xa0] sm:$0xff]
    %v760 = vld [vmem:[%s2 + $0xa8] sm:$0xff]
    %v761 = vld [vmem:[%s2 + $0xb0] sm:$0xff]
    %v762 = vld [vmem:[%s2 + $0xb8] sm:$0xff]
    %v763 = vld [vmem:[%s2 + $0xc0] sm:$0xff]
    %v764 = vld [vmem:[%s2 + $0xc8] sm:$0xff]
    %v765 = vld [vmem:[%s2 + $0xd0] sm:$0xff]
    %v766 = vld [vmem:[%s2 + $0xd8] sm:$0xff]
    %v767 = vld [vmem:[%s2 + $0xe0] sm:$0xff]
    %v768 = vld [vmem:[%s2 + $0xe8] sm:$0xff]
    %v769 = vld [vmem:[%s2 + $0xf0] sm:$0xff]
    %v770 = vld [vmem:[%s2 + $0xf8] sm:$0xff]
    %v771 = vld [vmem:[%s2 + $0x100] sm:$0xff]
    %v772 = vld [vmem:[%s2 + $0x108] sm:$0xff]
    %v773 = vld [vmem:[%s2 + $0x110] sm:$0xff]
    %v774 = vld [vmem:[%s2 + $0x118] sm:$0xff]
    %v775 = vld [vmem:[%s2 + $0x120] sm:$0xff]
    %v776 = vld [vmem:[%s2 + $0x128] sm:$0xff]
    %v777 = vld [vmem:[%s2 + $0x130] sm:$0xff]
    %v778 = vld [vmem:[%s2 + $0x138] sm:$0xff]
    %v779 = vld [vmem:[%s2 + $0x140] sm:$0xff]
    %v780 = vld [vmem:[%s2 + $0x148] sm:$0xff]
    %v781 = vld [vmem:[%s2 + $0x150] sm:$0xff]
    %v782 = vld [vmem:[%s2 + $0x158] sm:$0xff]
    %v783 = vld [vmem:[%s2 + $0x160] sm:$0xff]
    %v784 = vld [vmem:[%s2 + $0x168] sm:$0xff]
    %v785 = vld [vmem:[%s2 + $0x170] sm:$0xff]
    %v786 = vld [vmem:[%s2 + $0x178] sm:$0xff]
    %v787 = vld [vmem:[%s2 + $0x180] sm:$0xff]
    %v788 = vld [vmem:[%s2 + $0x188] sm:$0xff]
    %v789 = vld [vmem:[%s2 + $0x190] sm:$0xff]
    %v790 = vld [vmem:[%s2 + $0x198] sm:$0xff]
    %v791 = vld [vmem:[%s2 + $0x1a0] sm:$0xff]
    %v792 = vld [vmem:[%s2 + $0x1a8] sm:$0xff]
    %v793 = vld [vmem:[%s2 + $0x1b0] sm:$0xff]
    %v794 = vld [vmem:[%s2 + $0x1b8] sm:$0xff]
    %v795 = vld [vmem:[%s2 + $0x1c0] sm:$0xff]
    %v796 = vld [vmem:[%s2 + $0x1c8] sm:$0xff]
    %v797 = vld [vmem:[%s2 + $0x1d0] sm:$0xff]
    %v798 = vld [vmem:[%s2 + $0x1d8] sm:$0xff]
    %v799 = vld [vmem:[%s2 + $0x1e0] sm:$0xff]
    %v800 = vld [vmem:[%s2 + $0x1e8] sm:$0xff]
    %v801 = vld [vmem:[%s2 + $0x1f0] sm:$0xff]
    %v802 = vld [vmem:[%s2 + $0x1f8] sm:$0xff]
    %v803 = vpack.c.bf16 %v738, %v738
    %v805 = vlaneseq
    %v806 = vshrl.u32 %v805, 7
    %v807 = vsub.s32 0, %v806
    %v808 = vrot.slane %v708, %v807
    %v809 = vlaneseq
    %v810 = vshrl.u32 %v809, 7
    %v811 = vsub.s32 1, %v810
    %v812 = vrot.slane %v708, %v811
    %v813 = vlaneseq
    %v814 = vshrl.u32 %v813, 7
    %v815 = vsub.s32 2, %v814
    %v816 = vrot.slane %v708, %v815
    %v817 = vlaneseq
    %v818 = vshrl.u32 %v817, 7
    %v819 = vsub.s32 3, %v818
    %v820 = vrot.slane %v708, %v819
    %v821 = vlaneseq
    %v822 = vshrl.u32 %v821, 7
    %v823 = vsub.s32 4, %v822
    %v824 = vrot.slane %v708, %v823
    %v825 = vlaneseq
    %v826 = vshrl.u32 %v825, 7
    %v827 = vsub.s32 5, %v826
    %v828 = vrot.slane %v708, %v827
    %v829 = vlaneseq
    %v830 = vshrl.u32 %v829, 7
    %v831 = vsub.s32 6, %v830
    %v832 = vrot.slane %v708, %v831
    %v833 = vlaneseq
    %v834 = vshrl.u32 %v833, 7
    %v835 = vsub.s32 7, %v834
    %v836 = vrot.slane %v708, %v835
    %v909 = vunpack.c.l.b16 %v739
    %v910 = vunpack.c.h.b16 %v739
    %v911 = vunpack.c.l.b16 %v740
    %v912 = vunpack.c.h.b16 %v740
    %v913 = vunpack.c.l.b16 %v741
    %v914 = vunpack.c.h.b16 %v741
    %v915 = vunpack.c.l.b16 %v742
    %v916 = vunpack.c.h.b16 %v742
    %v917 = vunpack.c.l.b16 %v743
    %v918 = vunpack.c.h.b16 %v743
    %v919 = vunpack.c.l.b16 %v744
    %v920 = vunpack.c.h.b16 %v744
    %v921 = vunpack.c.l.b16 %v745
    %v922 = vunpack.c.h.b16 %v745
    %v923 = vunpack.c.l.b16 %v746
    %v924 = vunpack.c.h.b16 %v746
    %v925 = vunpack.c.l.b16 %v747
    %v926 = vunpack.c.h.b16 %v747
    %v927 = vunpack.c.l.b16 %v748
    %v928 = vunpack.c.h.b16 %v748
    %v929 = vunpack.c.l.b16 %v749
    %v930 = vunpack.c.h.b16 %v749
    %v931 = vunpack.c.l.b16 %v750
    %v932 = vunpack.c.h.b16 %v750
    %v933 = vunpack.c.l.b16 %v751
    %v934 = vunpack.c.h.b16 %v751
    %v935 = vunpack.c.l.b16 %v752
    %v936 = vunpack.c.h.b16 %v752
    %v937 = vunpack.c.l.b16 %v753
    %v938 = vunpack.c.h.b16 %v753
    %v939 = vunpack.c.l.b16 %v754
    %v940 = vunpack.c.h.b16 %v754
    %v941 = vunpack.c.l.b16 %v755
    %v942 = vunpack.c.h.b16 %v755
    %v943 = vunpack.c.l.b16 %v756
    %v944 = vunpack.c.h.b16 %v756
    %v945 = vunpack.c.l.b16 %v757
    %v946 = vunpack.c.h.b16 %v757
    %v947 = vunpack.c.l.b16 %v758
    %v948 = vunpack.c.h.b16 %v758
    %v949 = vunpack.c.l.b16 %v759
    %v950 = vunpack.c.h.b16 %v759
    %v951 = vunpack.c.l.b16 %v760
    %v952 = vunpack.c.h.b16 %v760
    %v953 = vunpack.c.l.b16 %v761
    %v954 = vunpack.c.h.b16 %v761
    %v955 = vunpack.c.l.b16 %v762
    %v956 = vunpack.c.h.b16 %v762
    %v957 = vunpack.c.l.b16 %v763
    %v958 = vunpack.c.h.b16 %v763
    %v959 = vunpack.c.l.b16 %v764
    %v960 = vunpack.c.h.b16 %v764
    %v961 = vunpack.c.l.b16 %v765
    %v962 = vunpack.c.h.b16 %v765
    %v963 = vunpack.c.l.b16 %v766
    %v964 = vunpack.c.h.b16 %v766
    %v965 = vunpack.c.l.b16 %v767
    %v966 = vunpack.c.h.b16 %v767
    %v967 = vunpack.c.l.b16 %v768
    %v968 = vunpack.c.h.b16 %v768
    %v969 = vunpack.c.l.b16 %v769
    %v970 = vunpack.c.h.b16 %v769
    %v971 = vunpack.c.l.b16 %v770
    %v972 = vunpack.c.h.b16 %v770
    %v973 = vunpack.c.l.b16 %v771
    %v974 = vunpack.c.h.b16 %v771
    %v975 = vunpack.c.l.b16 %v772
    %v976 = vunpack.c.h.b16 %v772
    %v977 = vunpack.c.l.b16 %v773
    %v978 = vunpack.c.h.b16 %v773
    %v979 = vunpack.c.l.b16 %v774
    %v980 = vunpack.c.h.b16 %v774
    %v981 = vunpack.c.l.b16 %v775
    %v982 = vunpack.c.h.b16 %v775
    %v983 = vunpack.c.l.b16 %v776
    %v984 = vunpack.c.h.b16 %v776
    %v985 = vunpack.c.l.b16 %v777
    %v986 = vunpack.c.h.b16 %v777
    %v987 = vunpack.c.l.b16 %v778
    %v988 = vunpack.c.h.b16 %v778
    %v989 = vunpack.c.l.b16 %v779
    %v990 = vunpack.c.h.b16 %v779
    %v991 = vunpack.c.l.b16 %v780
    %v992 = vunpack.c.h.b16 %v780
    %v993 = vunpack.c.l.b16 %v781
    %v994 = vunpack.c.h.b16 %v781
    %v995 = vunpack.c.l.b16 %v782
    %v996 = vunpack.c.h.b16 %v782
    %v997 = vunpack.c.l.b16 %v783
    %v998 = vunpack.c.h.b16 %v783
    %v999 = vunpack.c.l.b16 %v784
    %v1000 = vunpack.c.h.b16 %v784
    %v1001 = vunpack.c.l.b16 %v785
    %v1002 = vunpack.c.h.b16 %v785
    %v1003 = vunpack.c.l.b16 %v786
    %v1004 = vunpack.c.h.b16 %v786
    %v1005 = vunpack.c.l.b16 %v787
    %v1006 = vunpack.c.h.b16 %v787
    %v1007 = vunpack.c.l.b16 %v788
    %v1008 = vunpack.c.h.b16 %v788
    %v1009 = vunpack.c.l.b16 %v789
    %v1010 = vunpack.c.h.b16 %v789
    %v1011 = vunpack.c.l.b16 %v790
    %v1012 = vunpack.c.h.b16 %v790
    %v1013 = vunpack.c.l.b16 %v791
    %v1014 = vunpack.c.h.b16 %v791
    %v1015 = vunpack.c.l.b16 %v792
    %v1016 = vunpack.c.h.b16 %v792
    %v1017 = vunpack.c.l.b16 %v793
    %v1018 = vunpack.c.h.b16 %v793
    %v1019 = vunpack.c.l.b16 %v794
    %v1020 = vunpack.c.h.b16 %v794
    %v1021 = vunpack.c.l.b16 %v795
    %v1022 = vunpack.c.h.b16 %v795
    %v1023 = vunpack.c.l.b16 %v796
    %v1024 = vunpack.c.h.b16 %v796
    %v1025 = vunpack.c.l.b16 %v797
    %v1026 = vunpack.c.h.b16 %v797
    %v1027 = vunpack.c.l.b16 %v798
    %v1028 = vunpack.c.h.b16 %v798
    %v1029 = vunpack.c.l.b16 %v799
    %v1030 = vunpack.c.h.b16 %v799
    %v1031 = vunpack.c.l.b16 %v800
    %v1032 = vunpack.c.h.b16 %v800
    %v1033 = vunpack.c.l.b16 %v801
    %v1034 = vunpack.c.h.b16 %v801
    %v1035 = vunpack.c.l.b16 %v802
    %v1036 = vunpack.c.h.b16 %v802
    %v1037 = vpack.c.b16 %v917, %v909
    %v1038 = vpack.c.b16 %v918, %v910
    %v1039 = vpack.c.b16 %v919, %v911
    %v1040 = vpack.c.b16 %v920, %v912
    %v1041 = vpack.c.b16 %v921, %v913
    %v1042 = vpack.c.b16 %v922, %v914
    %v1043 = vpack.c.b16 %v923, %v915
    %v1044 = vpack.c.b16 %v924, %v916
    %v1045 = vpack.c.b16 %v933, %v925
    %v1046 = vpack.c.b16 %v934, %v926
    %v1047 = vpack.c.b16 %v935, %v927
    %v1048 = vpack.c.b16 %v936, %v928
    %v1049 = vpack.c.b16 %v937, %v929
    %v1050 = vpack.c.b16 %v938, %v930
    %v1051 = vpack.c.b16 %v939, %v931
    %v1052 = vpack.c.b16 %v940, %v932
    %v1053 = vpack.c.b16 %v949, %v941
    %v1054 = vpack.c.b16 %v950, %v942
    %v1055 = vpack.c.b16 %v951, %v943
    %v1056 = vpack.c.b16 %v952, %v944
    %v1057 = vpack.c.b16 %v953, %v945
    %v1058 = vpack.c.b16 %v954, %v946
    %v1059 = vpack.c.b16 %v955, %v947
    %v1060 = vpack.c.b16 %v956, %v948
    %v1061 = vpack.c.b16 %v965, %v957
    %v1062 = vpack.c.b16 %v966, %v958
    %v1063 = vpack.c.b16 %v967, %v959
    %v1064 = vpack.c.b16 %v968, %v960
    %v1065 = vpack.c.b16 %v969, %v961
    %v1066 = vpack.c.b16 %v970, %v962
    %v1067 = vpack.c.b16 %v971, %v963
    %v1068 = vpack.c.b16 %v972, %v964
    %v1069 = vpack.c.b16 %v981, %v973
    %v1070 = vpack.c.b16 %v982, %v974
    %v1071 = vpack.c.b16 %v983, %v975
    %v1072 = vpack.c.b16 %v984, %v976
    %v1073 = vpack.c.b16 %v985, %v977
    %v1074 = vpack.c.b16 %v986, %v978
    %v1075 = vpack.c.b16 %v987, %v979
    %v1076 = vpack.c.b16 %v988, %v980
    %v1077 = vpack.c.b16 %v997, %v989
    %v1078 = vpack.c.b16 %v998, %v990
    %v1079 = vpack.c.b16 %v999, %v991
    %v1080 = vpack.c.b16 %v1000, %v992
    %v1081 = vpack.c.b16 %v1001, %v993
    %v1082 = vpack.c.b16 %v1002, %v994
    %v1083 = vpack.c.b16 %v1003, %v995
    %v1084 = vpack.c.b16 %v1004, %v996
    %v1085 = vpack.c.b16 %v1013, %v1005
    %v1086 = vpack.c.b16 %v1014, %v1006
    %v1087 = vpack.c.b16 %v1015, %v1007
    %v1088 = vpack.c.b16 %v1016, %v1008
    %v1089 = vpack.c.b16 %v1017, %v1009
    %v1090 = vpack.c.b16 %v1018, %v1010
    %v1091 = vpack.c.b16 %v1019, %v1011
    %v1092 = vpack.c.b16 %v1020, %v1012
    %v1093 = vpack.c.b16 %v1029, %v1021
    %v1094 = vpack.c.b16 %v1030, %v1022
    %v1095 = vpack.c.b16 %v1031, %v1023
    %v1096 = vpack.c.b16 %v1032, %v1024
    %v1097 = vpack.c.b16 %v1033, %v1025
    %v1098 = vpack.c.b16 %v1034, %v1026
    %v1099 = vpack.c.b16 %v1035, %v1027
    %v1100 = vpack.c.b16 %v1036, %v1028
    %1165 = vmatprep.subr.bf16.mxu0 %v1094
    %1166 = vmatpush1.bf16.msra.mxu0 %v1093
    %1167 = vmatprep.subr.bf16.mxu0 %v1086
    %1168 = vmatpush1.bf16.msra.mxu0 %v1085
    %1169 = vmatprep.subr.bf16.mxu0 %v1078
    %1170 = vmatpush1.bf16.msra.mxu0 %v1077
    %1171 = vmatprep.subr.bf16.mxu0 %v1070
    %1172 = vmatpush1.bf16.msra.mxu0 %v1069
    %1173 = vmatprep.subr.bf16.mxu0 %v1062
    %1174 = vmatpush1.bf16.msra.mxu0 %v1061
    %1175 = vmatprep.subr.bf16.mxu0 %v1054
    %1176 = vmatpush1.bf16.msra.mxu0 %v1053
    %1177 = vmatprep.subr.bf16.mxu0 %v1046
    %1178 = vmatpush1.bf16.msra.mxu0 %v1045
    %1179 = vmatprep.subr.bf16.mxu0 %v1038
    %1180 = vmatpush1.bf16.msra.mxu0 %v1037
    %1181 = vmatprep.subr.bf16.mxu0 0
    %1182 = vmatpush2.bf16.msra.mxu0 0
    %1183 = vmatprep.subr.bf16.mxu0 0
    %1184 = vmatpush2.bf16.msra.mxu0 0
    %1185 = vmatprep.subr.bf16.mxu0 0
    %1186 = vmatpush2.bf16.msra.mxu0 0
    %1187 = vmatprep.subr.bf16.mxu0 0
    %1188 = vmatpush2.bf16.msra.mxu0 0
    %1189 = vmatprep.subr.bf16.mxu0 0
    %1190 = vmatpush2.bf16.msra.mxu0 0
    %1191 = vmatprep.subr.bf16.mxu0 0
    %1192 = vmatpush2.bf16.msra.mxu0 0
    %1193 = vmatprep.subr.bf16.mxu0 0
    %1194 = vmatpush2.bf16.msra.mxu0 0
    %1195 = vmatprep.subr.bf16.mxu0 0
    %1196 = vmatpush2.bf16.msra.mxu0 0
    %1197 = vmatprep.mubr.bf16.mxu0 0
    %1198 = vmatmul.mubr.bf16.gmra.mxu0 %v803
    %v1199 = vpop.f32.mrf.mxu0
    %v1200 = vadd.f32 %v808, %v1199
    %v1201 = vpop.f32.mrf.mxu0
    %v1202 = vadd.f32 %v812, %v1201
    %v1203 = vpop.f32.mrf.mxu0
    %v1204 = vpop.f32.mrf.mxu0
    %1205 = vdwg.mxu0
    %1206 = vmatprep.subr.bf16.mxu0 %v1096
    %1207 = vmatpush1.bf16.msra.mxu0 %v1095
    %1208 = vmatprep.subr.bf16.mxu0 %v1088
    %1209 = vmatpush1.bf16.msra.mxu0 %v1087
    %1210 = vmatprep.subr.bf16.mxu0 %v1080
    %1211 = vmatpush1.bf16.msra.mxu0 %v1079
    %1212 = vmatprep.subr.bf16.mxu0 %v1072
    %1213 = vmatpush1.bf16.msra.mxu0 %v1071
    %1214 = vmatprep.subr.bf16.mxu0 %v1064
    %1215 = vmatpush1.bf16.msra.mxu0 %v1063
    %1216 = vmatprep.subr.bf16.mxu0 %v1056
    %1217 = vmatpush1.bf16.msra.mxu0 %v1055
    %1218 = vmatprep.subr.bf16.mxu0 %v1048
    %1219 = vmatpush1.bf16.msra.mxu0 %v1047
    %1220 = vmatprep.subr.bf16.mxu0 %v1040
    %1221 = vmatpush1.bf16.msra.mxu0 %v1039
    %1222 = vmatprep.subr.bf16.mxu0 0
    %1223 = vmatpush2.bf16.msra.mxu0 0
    %1224 = vmatprep.subr.bf16.mxu0 0
    %1225 = vmatpush2.bf16.msra.mxu0 0
    %1226 = vmatprep.subr.bf16.mxu0 0
    %1227 = vmatpush2.bf16.msra.mxu0 0
    %1228 = vmatprep.subr.bf16.mxu0 0
    %1229 = vmatpush2.bf16.msra.mxu0 0
    %1230 = vmatprep.subr.bf16.mxu0 0
    %1231 = vmatpush2.bf16.msra.mxu0 0
    %1232 = vmatprep.subr.bf16.mxu0 0
    %1233 = vmatpush2.bf16.msra.mxu0 0
    %1234 = vmatprep.subr.bf16.mxu0 0
    %1235 = vmatpush2.bf16.msra.mxu0 0
    %1236 = vmatprep.subr.bf16.mxu0 0
    %1237 = vmatpush2.bf16.msra.mxu0 0
    %1238 = vmatprep.mubr.bf16.mxu0 0
    %1239 = vmatmul.mubr.bf16.gmra.mxu0 %v803
    %v1240 = vpop.f32.mrf.mxu0
    %v1241 = vadd.f32 %v816, %v1240
    %v1242 = vpop.f32.mrf.mxu0
    %v1243 = vadd.f32 %v820, %v1242
    %v1244 = vpop.f32.mrf.mxu0
    %v1245 = vpop.f32.mrf.mxu0
    %1246 = vdwg.mxu0
    %1247 = vmatprep.subr.bf16.mxu0 %v1098
    %1248 = vmatpush1.bf16.msra.mxu0 %v1097
    %1249 = vmatprep.subr.bf16.mxu0 %v1090
    %1250 = vmatpush1.bf16.msra.mxu0 %v1089
    %1251 = vmatprep.subr.bf16.mxu0 %v1082
    %1252 = vmatpush1.bf16.msra.mxu0 %v1081
    %1253 = vmatprep.subr.bf16.mxu0 %v1074
    %1254 = vmatpush1.bf16.msra.mxu0 %v1073
    %1255 = vmatprep.subr.bf16.mxu0 %v1066
    %1256 = vmatpush1.bf16.msra.mxu0 %v1065
    %1257 = vmatprep.subr.bf16.mxu0 %v1058
    %1258 = vmatpush1.bf16.msra.mxu0 %v1057
    %1259 = vmatprep.subr.bf16.mxu0 %v1050
    %1260 = vmatpush1.bf16.msra.mxu0 %v1049
    %1261 = vmatprep.subr.bf16.mxu0 %v1042
    %1262 = vmatpush1.bf16.msra.mxu0 %v1041
    %1263 = vmatprep.subr.bf16.mxu0 0
    %1264 = vmatpush2.bf16.msra.mxu0 0
    %1265 = vmatprep.subr.bf16.mxu0 0
    %1266 = vmatpush2.bf16.msra.mxu0 0
    %1267 = vmatprep.subr.bf16.mxu0 0
    %1268 = vmatpush2.bf16.msra.mxu0 0
    %1269 = vmatprep.subr.bf16.mxu0 0
    %1270 = vmatpush2.bf16.msra.mxu0 0
    %1271 = vmatprep.subr.bf16.mxu0 0
    %1272 = vmatpush2.bf16.msra.mxu0 0
    %1273 = vmatprep.subr.bf16.mxu0 0
    %1274 = vmatpush2.bf16.msra.mxu0 0
    %1275 = vmatprep.subr.bf16.mxu0 0
    %1276 = vmatpush2.bf16.msra.mxu0 0
    %1277 = vmatprep.subr.bf16.mxu0 0
    %1278 = vmatpush2.bf16.msra.mxu0 0
    %1279 = vmatprep.mubr.bf16.mxu0 0
    %1280 = vmatmul.mubr.bf16.gmra.mxu0 %v803
    %v1281 = vpop.f32.mrf.mxu0
    %v1282 = vadd.f32 %v824, %v1281
    %v1283 = vpop.f32.mrf.mxu0
    %v1284 = vadd.f32 %v828, %v1283
    %v1285 = vpop.f32.mrf.mxu0
    %v1286 = vpop.f32.mrf.mxu0
    %1287 = vdwg.mxu0
    %1288 = vmatprep.subr.bf16.mxu0 %v1100
    %1289 = vmatpush1.bf16.msra.mxu0 %v1099
    %1290 = vmatprep.subr.bf16.mxu0 %v1092
    %1291 = vmatpush1.bf16.msra.mxu0 %v1091
    %1292 = vmatprep.subr.bf16.mxu0 %v1084
    %1293 = vmatpush1.bf16.msra.mxu0 %v1083
    %1294 = vmatprep.subr.bf16.mxu0 %v1076
    %1295 = vmatpush1.bf16.msra.mxu0 %v1075
    %1296 = vmatprep.subr.bf16.mxu0 %v1068
    %1297 = vmatpush1.bf16.msra.mxu0 %v1067
    %1298 = vmatprep.subr.bf16.mxu0 %v1060
    %1299 = vmatpush1.bf16.msra.mxu0 %v1059
    %1300 = vmatprep.subr.bf16.mxu0 %v1052
    %1301 = vmatpush1.bf16.msra.mxu0 %v1051
    %1302 = vmatprep.subr.bf16.mxu0 %v1044
    %1303 = vmatpush1.bf16.msra.mxu0 %v1043
    %1304 = vmatprep.subr.bf16.mxu0 0
    %1305 = vmatpush2.bf16.msra.mxu0 0
    %1306 = vmatprep.subr.bf16.mxu0 0
    %1307 = vmatpush2.bf16.msra.mxu0 0
    %1308 = vmatprep.subr.bf16.mxu0 0
    %1309 = vmatpush2.bf16.msra.mxu0 0
    %1310 = vmatprep.subr.bf16.mxu0 0
    %1311 = vmatpush2.bf16.msra.mxu0 0
    %1312 = vmatprep.subr.bf16.mxu0 0
    %1313 = vmatpush2.bf16.msra.mxu0 0
    %1314 = vmatprep.subr.bf16.mxu0 0
    %1315 = vmatpush2.bf16.msra.mxu0 0
    %1316 = vmatprep.subr.bf16.mxu0 0
    %1317 = vmatpush2.bf16.msra.mxu0 0
    %1318 = vmatprep.subr.bf16.mxu0 0
    %1319 = vmatpush2.bf16.msra.mxu0 0
    %1320 = vmatprep.mubr.bf16.mxu0 0
    %1321 = vmatmul.mubr.bf16.gmra.mxu0 %v803
    %v1322 = vpop.f32.mrf.mxu0
    %v1323 = vadd.f32 %v832, %v1322
    %v1324 = vpop.f32.mrf.mxu0
    %v1325 = vadd.f32 %v836, %v1324
    %v1326 = vpop.f32.mrf.mxu0
    %v1327 = vpop.f32.mrf.mxu0
    %1328 = vdwg.mxu0
    %v1329 = vmax.f32 %v1200, 0.0
    %v1330 = vmax.f32 %v1202, 0.0
    %v1331 = vmax.f32 %v1241, 0.0
    %v1332 = vmax.f32 %v1243, 0.0
    %v1333 = vmax.f32 %v1282, 0.0
    %v1334 = vmax.f32 %v1284, 0.0
    %v1335 = vmax.f32 %v1323, 0.0
    %v1336 = vmax.f32 %v1325, 0.0
    %v1337 = vrot.slane %v1329, 4
    %v1338 = vadd.f32 %v1329, %v1337
    %v1339 = vrot.slane %v1338, 2
    %v1340 = vadd.f32 %v1338, %v1339
    %v1341 = vrot.slane %v1340, 1
    %v1342 = vadd.f32 %v1340, %v1341
    %v1343 = vrot.slane %v1330, 4
    %v1344 = vadd.f32 %v1330, %v1343
    %v1345 = vrot.slane %v1344, 2
    %v1346 = vadd.f32 %v1344, %v1345
    %v1347 = vrot.slane %v1346, 1
    %v1348 = vadd.f32 %v1346, %v1347
    %v1349 = vrot.slane %v1331, 4
    %v1350 = vadd.f32 %v1331, %v1349
    %v1351 = vrot.slane %v1350, 2
    %v1352 = vadd.f32 %v1350, %v1351
    %v1353 = vrot.slane %v1352, 1
    %v1354 = vadd.f32 %v1352, %v1353
    %v1355 = vrot.slane %v1332, 4
    %v1356 = vadd.f32 %v1332, %v1355
    %v1357 = vrot.slane %v1356, 2
    %v1358 = vadd.f32 %v1356, %v1357
    %v1359 = vrot.slane %v1358, 1
    %v1360 = vadd.f32 %v1358, %v1359
    %v1361 = vrot.slane %v1333, 4
    %v1362 = vadd.f32 %v1333, %v1361
    %v1363 = vrot.slane %v1362, 2
    %v1364 = vadd.f32 %v1362, %v1363
    %v1365 = vrot.slane %v1364, 1
    %v1366 = vadd.f32 %v1364, %v1365
    %v1367 = vrot.slane %v1334, 4
    %v1368 = vadd.f32 %v1334, %v1367
    %v1369 = vrot.slane %v1368, 2
    %v1370 = vadd.f32 %v1368, %v1369
    %v1371 = vrot.slane %v1370, 1
    %v1372 = vadd.f32 %v1370, %v1371
    %v1373 = vrot.slane %v1335, 4
    %v1374 = vadd.f32 %v1335, %v1373
    %v1375 = vrot.slane %v1374, 2
    %v1376 = vadd.f32 %v1374, %v1375
    %v1377 = vrot.slane %v1376, 1
    %v1378 = vadd.f32 %v1376, %v1377
    %vm1379 = vcmask 31744
    %v1380 = vsel %vm1379, %v1336, 0.0
    %v1381 = vrot.slane %v1380, 4
    %v1382 = vadd.f32 %v1380, %v1381
    %v1383 = vrot.slane %v1382, 2
    %v1384 = vadd.f32 %v1382, %v1383
    %v1385 = vrot.slane %v1384, 1
    %v1386 = vadd.f32 %v1384, %v1385
    %v1387 = vrcp.pop 8.0
    %v1388 = vmul.f32 %v1342, %v1387
    %v1389 = vmul.f32 %v1348, %v1387
    %v1390 = vmul.f32 %v1354, %v1387
    %v1391 = vmul.f32 %v1360, %v1387
    %v1392 = vmul.f32 %v1366, %v1387
    %v1393 = vmul.f32 %v1372, %v1387
    %v1394 = vmul.f32 %v1378, %v1387
    %v1395 = vmul.f32 %v1386, %v1387
    %v1396 = vsub.f32 %v1329, %v1388
    %v1397 = vsub.f32 %v1330, %v1389
    %v1398 = vsub.f32 %v1331, %v1390
    %v1399 = vsub.f32 %v1332, %v1391
    %v1400 = vsub.f32 %v1333, %v1392
    %v1401 = vsub.f32 %v1334, %v1393
    %v1402 = vsub.f32 %v1335, %v1394
    %v1403 = vsub.f32 %v1336, %v1395
    %v1404 = vmul.f32 %v1396, %v1396
    %v1405 = vmul.f32 %v1397, %v1397
    %v1406 = vmul.f32 %v1398, %v1398
    %v1407 = vmul.f32 %v1399, %v1399
    %v1408 = vmul.f32 %v1400, %v1400
    %v1409 = vmul.f32 %v1401, %v1401
    %v1410 = vmul.f32 %v1402, %v1402
    %v1411 = vmul.f32 %v1403, %v1403
    %v1412 = vrot.slane %v1404, 4
    %v1413 = vadd.f32 %v1404, %v1412
    %v1414 = vrot.slane %v1413, 2
    %v1415 = vadd.f32 %v1413, %v1414
    %v1416 = vrot.slane %v1415, 1
    %v1417 = vadd.f32 %v1415, %v1416
    %v1418 = vrot.slane %v1405, 4
    %v1419 = vadd.f32 %v1405, %v1418
    %v1420 = vrot.slane %v1419, 2
    %v1421 = vadd.f32 %v1419, %v1420
    %v1422 = vrot.slane %v1421, 1
    %v1423 = vadd.f32 %v1421, %v1422
    %v1424 = vrot.slane %v1406, 4
    %v1425 = vadd.f32 %v1406, %v1424
    %v1426 = vrot.slane %v1425, 2
    %v1427 = vadd.f32 %v1425, %v1426
    %v1428 = vrot.slane %v1427, 1
    %v1429 = vadd.f32 %v1427, %v1428
    %v1430 = vrot.slane %v1407, 4
    %v1431 = vadd.f32 %v1407, %v1430
    %v1432 = vrot.slane %v1431, 2
    %v1433 = vadd.f32 %v1431, %v1432
    %v1434 = vrot.slane %v1433, 1
    %v1435 = vadd.f32 %v1433, %v1434
    %v1436 = vrot.slane %v1408, 4
    %v1437 = vadd.f32 %v1408, %v1436
    %v1438 = vrot.slane %v1437, 2
    %v1439 = vadd.f32 %v1437, %v1438
    %v1440 = vrot.slane %v1439, 1
    %v1441 = vadd.f32 %v1439, %v1440
    %v1442 = vrot.slane %v1409, 4
    %v1443 = vadd.f32 %v1409, %v1442
    %v1444 = vrot.slane %v1443, 2
    %v1445 = vadd.f32 %v1443, %v1444
    %v1446 = vrot.slane %v1445, 1
    %v1447 = vadd.f32 %v1445, %v1446
    %v1448 = vrot.slane %v1410, 4
    %v1449 = vadd.f32 %v1410, %v1448
    %v1450 = vrot.slane %v1449, 2
    %v1451 = vadd.f32 %v1449, %v1450
    %v1452 = vrot.slane %v1451, 1
    %v1453 = vadd.f32 %v1451, %v1452
    %v1454 = vsel %vm1379, %v1411, 0.0
    %v1455 = vrot.slane %v1454, 4
    %v1456 = vadd.f32 %v1454, %v1455
    %v1457 = vrot.slane %v1456, 2
    %v1458 = vadd.f32 %v1456, %v1457
    %v1459 = vrot.slane %v1458, 1
    %v1460 = vadd.f32 %v1458, %v1459
    %v1461 = vmul.f32 %v1417, %v1387
    %v1462 = vmul.f32 %v1423, %v1387
    %v1463 = vmul.f32 %v1429, %v1387
    %v1464 = vmul.f32 %v1435, %v1387
    %v1465 = vmul.f32 %v1441, %v1387
    %v1466 = vmul.f32 %v1447, %v1387
    %v1467 = vmul.f32 %v1453, %v1387
    %v1468 = vmul.f32 %v1460, %v1387
    %v1469 = vadd.f32 %v1461, 1e-05
    %v1470 = vadd.f32 %v1462, 1e-05
    %v1471 = vadd.f32 %v1463, 1e-05
    %v1472 = vadd.f32 %v1464, 1e-05
    %v1473 = vadd.f32 %v1465, 1e-05
    %v1474 = vadd.f32 %v1466, 1e-05
    %v1475 = vadd.f32 %v1467, 1e-05
    %v1476 = vadd.f32 %v1468, 1e-05
    %v1477 = vrsqrt.pop %v1469
    %v1478 = vrsqrt.pop %v1470
    %v1479 = vrsqrt.pop %v1471
    %v1480 = vrsqrt.pop %v1472
    %v1481 = vrsqrt.pop %v1473
    %v1482 = vrsqrt.pop %v1474
    %v1483 = vrsqrt.pop %v1475
    %v1484 = vrsqrt.pop %v1476
    %v1493 = vcombine.low %v1477, %v1478
    %v1494 = vcombine.low %v1479, %v1480
    %v1495 = vcombine.low %v1481, %v1482
    %v1496 = vcombine.low %v1483, %v1484
    %v1498 = vunpack.c.l.s4 1966171168
    %v1499 = vunpack.c.0.s8 %v1498
    %v1500 = vlaneseq
    %v1501 = vshrl.u32 %v1500, 7
    %v1502 = vsub.s32 %v1499, %v1501
    %v1503 = vrot.slane %v1493, %v1502
    %v1505 = vunpack.c.l.s4 1966171168
    %v1506 = vunpack.c.0.s8 %v1505
    %v1507 = vlaneseq
    %v1508 = vshrl.u32 %v1507, 7
    %v1509 = vsub.s32 %v1506, %v1508
    %v1510 = vrot.slane %v1494, %v1509
    %v1512 = vunpack.c.l.s4 1966171168
    %v1513 = vunpack.c.0.s8 %v1512
    %v1514 = vlaneseq
    %v1515 = vshrl.u32 %v1514, 7
    %v1516 = vsub.s32 %v1513, %v1515
    %v1517 = vrot.slane %v1495, %v1516
    %v1519 = vunpack.c.l.s4 1966171168
    %v1520 = vunpack.c.0.s8 %v1519
    %v1521 = vlaneseq
    %v1522 = vshrl.u32 %v1521, 7
    %v1523 = vsub.s32 %v1520, %v1522
    %v1524 = vrot.slane %v1496, %v1523
    %v1525 = vcombine.low %v1503, %v1510
    %v1526 = vcombine.low %v1517, %v1524
    %v1528 = vunpack.c.l.s4 1966171168
    %v1529 = vunpack.c.0.s8 %v1528
    %v1530 = vlaneseq
    %v1531 = vshrl.u32 %v1530, 7
    %v1532 = vsub.s32 %v1529, %v1531
    %v1533 = vrot.slane %v1525, %v1532
    %v1535 = vunpack.c.l.s4 1966171168
    %v1536 = vunpack.c.0.s8 %v1535
    %v1537 = vlaneseq
    %v1538 = vshrl.u32 %v1537, 7
    %v1539 = vsub.s32 %v1536, %v1538
    %v1540 = vrot.slane %v1526, %v1539
    %v1541 = vcombine.low %v1533, %v1540
    %v1543 = vmul.f32 %v712, %v1541
    %v1545 = vlaneseq
    %v1546 = vshrl.u32 %v1545, 7
    %v1547 = vsub.s32 0, %v1546
    %v1548 = vrot.slane %v1543, %v1547
    %v1549 = vlaneseq
    %v1550 = vshrl.u32 %v1549, 7
    %v1551 = vsub.s32 1, %v1550
    %v1552 = vrot.slane %v1543, %v1551
    %v1553 = vlaneseq
    %v1554 = vshrl.u32 %v1553, 7
    %v1555 = vsub.s32 2, %v1554
    %v1556 = vrot.slane %v1543, %v1555
    %v1557 = vlaneseq
    %v1558 = vshrl.u32 %v1557, 7
    %v1559 = vsub.s32 3, %v1558
    %v1560 = vrot.slane %v1543, %v1559
    %v1561 = vlaneseq
    %v1562 = vshrl.u32 %v1561, 7
    %v1563 = vsub.s32 4, %v1562
    %v1564 = vrot.slane %v1543, %v1563
    %v1565 = vlaneseq
    %v1566 = vshrl.u32 %v1565, 7
    %v1567 = vsub.s32 5, %v1566
    %v1568 = vrot.slane %v1543, %v1567
    %v1569 = vlaneseq
    %v1570 = vshrl.u32 %v1569, 7
    %v1571 = vsub.s32 6, %v1570
    %v1572 = vrot.slane %v1543, %v1571
    %v1573 = vlaneseq
    %v1574 = vshrl.u32 %v1573, 7
    %v1575 = vsub.s32 7, %v1574
    %v1576 = vrot.slane %v1543, %v1575
    %v1585 = vmul.f32 %v1388, %v1548
    %v1586 = vmul.f32 %v1389, %v1552
    %v1587 = vmul.f32 %v1390, %v1556
    %v1588 = vmul.f32 %v1391, %v1560
    %v1589 = vmul.f32 %v1392, %v1564
    %v1590 = vmul.f32 %v1393, %v1568
    %v1591 = vmul.f32 %v1394, %v1572
    %v1592 = vmul.f32 %v1395, %v1576
    %v1601 = vcombine.low %v1585, %v1586
    %v1602 = vcombine.low %v1587, %v1588
    %v1603 = vcombine.low %v1589, %v1590
    %v1604 = vcombine.low %v1591, %v1592
    %v1606 = vunpack.c.l.s4 1966171168
    %v1607 = vunpack.c.0.s8 %v1606
    %v1608 = vlaneseq
    %v1609 = vshrl.u32 %v1608, 7
    %v1610 = vsub.s32 %v1607, %v1609
    %v1611 = vrot.slane %v1601, %v1610
    %v1613 = vunpack.c.l.s4 1966171168
    %v1614 = vunpack.c.0.s8 %v1613
    %v1615 = vlaneseq
    %v1616 = vshrl.u32 %v1615, 7
    %v1617 = vsub.s32 %v1614, %v1616
    %v1618 = vrot.slane %v1602, %v1617
    %v1620 = vunpack.c.l.s4 1966171168
    %v1621 = vunpack.c.0.s8 %v1620
    %v1622 = vlaneseq
    %v1623 = vshrl.u32 %v1622, 7
    %v1624 = vsub.s32 %v1621, %v1623
    %v1625 = vrot.slane %v1603, %v1624
    %v1627 = vunpack.c.l.s4 1966171168
    %v1628 = vunpack.c.0.s8 %v1627
    %v1629 = vlaneseq
    %v1630 = vshrl.u32 %v1629, 7
    %v1631 = vsub.s32 %v1628, %v1630
    %v1632 = vrot.slane %v1604, %v1631
    %v1633 = vcombine.low %v1611, %v1618
    %v1634 = vcombine.low %v1625, %v1632
    %v1636 = vunpack.c.l.s4 1966171168
    %v1637 = vunpack.c.0.s8 %v1636
    %v1638 = vlaneseq
    %v1639 = vshrl.u32 %v1638, 7
    %v1640 = vsub.s32 %v1637, %v1639
    %v1641 = vrot.slane %v1633, %v1640
    %v1643 = vunpack.c.l.s4 1966171168
    %v1644 = vunpack.c.0.s8 %v1643
    %v1645 = vlaneseq
    %v1646 = vshrl.u32 %v1645, 7
    %v1647 = vsub.s32 %v1644, %v1646
    %v1648 = vrot.slane %v1634, %v1647
    %v1649 = vcombine.low %v1641, %v1648
    %v1651 = vsub.f32 %v716, %v1649
    %v1652 = vmul.f32 %v1329, %v1548
    %v1653 = vmul.f32 %v1330, %v1552
    %v1654 = vmul.f32 %v1331, %v1556
    %v1655 = vmul.f32 %v1332, %v1560
    %v1656 = vmul.f32 %v1333, %v1564
    %v1657 = vmul.f32 %v1334, %v1568
    %v1658 = vmul.f32 %v1335, %v1572
    %v1659 = vmul.f32 %v1336, %v1576
    %v1661 = vlaneseq
    %v1662 = vshrl.u32 %v1661, 7
    %v1663 = vsub.s32 0, %v1662
    %v1664 = vrot.slane %v1651, %v1663
    %v1665 = vlaneseq
    %v1666 = vshrl.u32 %v1665, 7
    %v1667 = vsub.s32 1, %v1666
    %v1668 = vrot.slane %v1651, %v1667
    %v1669 = vlaneseq
    %v1670 = vshrl.u32 %v1669, 7
    %v1671 = vsub.s32 2, %v1670
    %v1672 = vrot.slane %v1651, %v1671
    %v1673 = vlaneseq
    %v1674 = vshrl.u32 %v1673, 7
    %v1675 = vsub.s32 3, %v1674
    %v1676 = vrot.slane %v1651, %v1675
    %v1677 = vlaneseq
    %v1678 = vshrl.u32 %v1677, 7
    %v1679 = vsub.s32 4, %v1678
    %v1680 = vrot.slane %v1651, %v1679
    %v1681 = vlaneseq
    %v1682 = vshrl.u32 %v1681, 7
    %v1683 = vsub.s32 5, %v1682
    %v1684 = vrot.slane %v1651, %v1683
    %v1685 = vlaneseq
    %v1686 = vshrl.u32 %v1685, 7
    %v1687 = vsub.s32 6, %v1686
    %v1688 = vrot.slane %v1651, %v1687
    %v1689 = vlaneseq
    %v1690 = vshrl.u32 %v1689, 7
    %v1691 = vsub.s32 7, %v1690
    %v1692 = vrot.slane %v1651, %v1691
    %v1701 = vadd.f32 %v1652, %v1664
    %v1702 = vadd.f32 %v1653, %v1668
    %v1703 = vadd.f32 %v1654, %v1672
    %v1704 = vadd.f32 %v1655, %v1676
    %v1705 = vadd.f32 %v1656, %v1680
    %v1706 = vadd.f32 %v1657, %v1684
    %v1707 = vadd.f32 %v1658, %v1688
    %v1708 = vadd.f32 %v1659, %v1692
    %s1709 = smul.u32 4, 113
    %s1710 = smul.u32 %s1709, 6
    %s1711 = sshll.u32 %s1710, 4
    %1712 = dma.done [#allocation6], %s1711
    %v1713 = vld [vmem:[#allocation2] sm:$0xff]
    %v1714 = vld [vmem:[#allocation2 + $0x8] sm:$0xff]
    %v1715 = vld [vmem:[#allocation2 + $0x10] sm:$0xff]
    %v1716 = vld [vmem:[#allocation2 + $0x18] sm:$0xff]
    %v1717 = vld [vmem:[#allocation2 + $0x20] sm:$0xff]
    %v1718 = vld [vmem:[#allocation2 + $0x28] sm:$0xff]
    %v1719 = vld [vmem:[#allocation2 + $0x30] sm:$0xff]
    %v1720 = vld [vmem:[#allocation2 + $0x38] sm:$0xff]
    %v1721 = vld [vmem:[#allocation2 + $0x40] sm:$0xff]
    %v1722 = vld [vmem:[#allocation2 + $0x48] sm:$0xff]
    %v1723 = vld [vmem:[#allocation2 + $0x50] sm:$0xff]
    %v1724 = vld [vmem:[#allocation2 + $0x58] sm:$0xff]
    %v1725 = vld [vmem:[#allocation2 + $0x60] sm:$0xff]
    %v1726 = vld [vmem:[#allocation2 + $0x68] sm:$0xff]
    %v1727 = vld [vmem:[#allocation2 + $0x70] sm:$0xff]
    %v1728 = vld [vmem:[#allocation2 + $0x78] sm:$0xff]
    %v1729 = vld [vmem:[#allocation2 + $0x80] sm:$0xff]
    %v1730 = vld [vmem:[#allocation2 + $0x88] sm:$0xff]
    %v1731 = vld [vmem:[#allocation2 + $0x90] sm:$0xff]
    %v1732 = vld [vmem:[#allocation2 + $0x98] sm:$0xff]
    %v1733 = vld [vmem:[#allocation2 + $0xa0] sm:$0xff]
    %v1734 = vld [vmem:[#allocation2 + $0xa8] sm:$0xff]
    %v1735 = vld [vmem:[#allocation2 + $0xb0] sm:$0xff]
    %v1736 = vld [vmem:[#allocation2 + $0xb8] sm:$0xff]
    %v1737 = vld [vmem:[#allocation2 + $0xc0] sm:$0xff]
    %v1738 = vld [vmem:[#allocation2 + $0xc8] sm:$0xff]
    %v1739 = vld [vmem:[#allocation2 + $0xd0] sm:$0xff]
    %v1740 = vld [vmem:[#allocation2 + $0xd8] sm:$0xff]
    %v1741 = vld [vmem:[#allocation2 + $0xe0] sm:$0xff]
    %v1742 = vld [vmem:[#allocation2 + $0xe8] sm:$0xff]
    %v1743 = vld [vmem:[#allocation2 + $0xf0] sm:$0xff]
    %v1744 = vld [vmem:[#allocation2 + $0xf8] sm:$0xff]
    %v1745 = vld [vmem:[#allocation2 + $0x100] sm:$0xff]
    %v1746 = vld [vmem:[#allocation2 + $0x108] sm:$0xff]
    %v1747 = vld [vmem:[#allocation2 + $0x110] sm:$0xff]
    %v1748 = vld [vmem:[#allocation2 + $0x118] sm:$0xff]
    %v1749 = vld [vmem:[#allocation2 + $0x120] sm:$0xff]
    %v1750 = vld [vmem:[#allocation2 + $0x128] sm:$0xff]
    %v1751 = vld [vmem:[#allocation2 + $0x130] sm:$0xff]
    %v1752 = vld [vmem:[#allocation2 + $0x138] sm:$0xff]
    %v1753 = vld [vmem:[#allocation2 + $0x140] sm:$0xff]
    %v1754 = vld [vmem:[#allocation2 + $0x148] sm:$0xff]
    %v1755 = vld [vmem:[#allocation2 + $0x150] sm:$0xff]
    %v1756 = vld [vmem:[#allocation2 + $0x158] sm:$0xff]
    %v1757 = vld [vmem:[#allocation2 + $0x160] sm:$0xff]
    %v1758 = vld [vmem:[#allocation2 + $0x168] sm:$0xff]
    %v1759 = vld [vmem:[#allocation2 + $0x170] sm:$0xff]
    %v1760 = vld [vmem:[#allocation2 + $0x178] sm:$0xff]
    %v1761 = vld [vmem:[#allocation2 + $0x180] sm:$0xff]
    %v1762 = vld [vmem:[#allocation2 + $0x188] sm:$0xff]
    %v1763 = vld [vmem:[#allocation2 + $0x190] sm:$0xff]
    %v1764 = vld [vmem:[#allocation2 + $0x198] sm:$0xff]
    %v1765 = vld [vmem:[#allocation2 + $0x1a0] sm:$0xff]
    %v1766 = vld [vmem:[#allocation2 + $0x1a8] sm:$0xff]
    %v1767 = vld [vmem:[#allocation2 + $0x1b0] sm:$0xff]
    %v1768 = vld [vmem:[#allocation2 + $0x1b8] sm:$0xff]
    %v1769 = vld [vmem:[#allocation2 + $0x1c0] sm:$0xff]
    %v1770 = vld [vmem:[#allocation2 + $0x1c8] sm:$0xff]
    %v1771 = vld [vmem:[#allocation2 + $0x1d0] sm:$0xff]
    %v1772 = vld [vmem:[#allocation2 + $0x1d8] sm:$0xff]
    %v1773 = vld [vmem:[#allocation2 + $0x1e0] sm:$0xff]
    %v1774 = vld [vmem:[#allocation2 + $0x1e8] sm:$0xff]
    %v1775 = vld [vmem:[#allocation2 + $0x1f0] sm:$0xff]
    %v1776 = vld [vmem:[#allocation2 + $0x1f8] sm:$0xff]
    %v1777 = vld [vmem:[#allocation2 + $0x200] sm:$0xff]
    %v1778 = vld [vmem:[#allocation2 + $0x208] sm:$0xff]
    %v1779 = vld [vmem:[#allocation2 + $0x210] sm:$0xff]
    %v1780 = vld [vmem:[#allocation2 + $0x218] sm:$0xff]
    %v1781 = vld [vmem:[#allocation2 + $0x220] sm:$0xff]
    %v1782 = vld [vmem:[#allocation2 + $0x228] sm:$0xff]
    %v1783 = vld [vmem:[#allocation2 + $0x230] sm:$0xff]
    %v1784 = vld [vmem:[#allocation2 + $0x238] sm:$0xff]
    %v1785 = vld [vmem:[#allocation2 + $0x240] sm:$0xff]
    %v1786 = vld [vmem:[#allocation2 + $0x248] sm:$0xff]
    %v1787 = vld [vmem:[#allocation2 + $0x250] sm:$0xff]
    %v1788 = vld [vmem:[#allocation2 + $0x258] sm:$0xff]
    %v1789 = vld [vmem:[#allocation2 + $0x260] sm:$0xff]
    %v1790 = vld [vmem:[#allocation2 + $0x268] sm:$0xff]
    %v1791 = vld [vmem:[#allocation2 + $0x270] sm:$0xff]
    %v1792 = vld [vmem:[#allocation2 + $0x278] sm:$0xff]
    %v1793 = vld [vmem:[#allocation2 + $0x280] sm:$0xff]
    %v1794 = vld [vmem:[#allocation2 + $0x288] sm:$0xff]
    %v1795 = vld [vmem:[#allocation2 + $0x290] sm:$0xff]
    %v1796 = vld [vmem:[#allocation2 + $0x298] sm:$0xff]
    %v1797 = vld [vmem:[#allocation2 + $0x2a0] sm:$0xff]
    %v1798 = vld [vmem:[#allocation2 + $0x2a8] sm:$0xff]
    %v1799 = vld [vmem:[#allocation2 + $0x2b0] sm:$0xff]
    %v1800 = vld [vmem:[#allocation2 + $0x2b8] sm:$0xff]
    %v1801 = vld [vmem:[#allocation2 + $0x2c0] sm:$0xff]
    %v1802 = vld [vmem:[#allocation2 + $0x2c8] sm:$0xff]
    %v1803 = vld [vmem:[#allocation2 + $0x2d0] sm:$0xff]
    %v1804 = vld [vmem:[#allocation2 + $0x2d8] sm:$0xff]
    %v1805 = vld [vmem:[#allocation2 + $0x2e0] sm:$0xff]
    %v1806 = vld [vmem:[#allocation2 + $0x2e8] sm:$0xff]
    %v1807 = vld [vmem:[#allocation2 + $0x2f0] sm:$0xff]
    %v1808 = vld [vmem:[#allocation2 + $0x2f8] sm:$0xff]
    %v1809 = vld [vmem:[#allocation2 + $0x300] sm:$0xff]
    %v1810 = vld [vmem:[#allocation2 + $0x308] sm:$0xff]
    %v1811 = vld [vmem:[#allocation2 + $0x310] sm:$0xff]
    %v1812 = vld [vmem:[#allocation2 + $0x318] sm:$0xff]
    %v1813 = vld [vmem:[#allocation2 + $0x320] sm:$0xff]
    %v1814 = vld [vmem:[#allocation2 + $0x328] sm:$0xff]
    %v1815 = vld [vmem:[#allocation2 + $0x330] sm:$0xff]
    %v1816 = vld [vmem:[#allocation2 + $0x338] sm:$0xff]
    %v1817 = vld [vmem:[#allocation2 + $0x340] sm:$0xff]
    %v1818 = vld [vmem:[#allocation2 + $0x348] sm:$0xff]
    %v1819 = vld [vmem:[#allocation2 + $0x350] sm:$0xff]
    %v1820 = vld [vmem:[#allocation2 + $0x358] sm:$0xff]
    %v1821 = vld [vmem:[#allocation2 + $0x360] sm:$0xff]
    %v1822 = vld [vmem:[#allocation2 + $0x368] sm:$0xff]
    %v1823 = vld [vmem:[#allocation2 + $0x370] sm:$0xff]
    %v1824 = vld [vmem:[#allocation2 + $0x378] sm:$0xff]
    %v1825 = vld [vmem:[#allocation2 + $0x380] sm:$0xff]
    %v1826 = vld [vmem:[#allocation2 + $0x388] sm:$0xff]
    %v1827 = vld [vmem:[#allocation2 + $0x390] sm:$0xff]
    %v1828 = vld [vmem:[#allocation2 + $0x398] sm:$0xff]
    %v1829 = vld [vmem:[#allocation2 + $0x3a0] sm:$0xff]
    %v1830 = vld [vmem:[#allocation2 + $0x3a8] sm:$0xff]
    %v1831 = vld [vmem:[#allocation2 + $0x3b0] sm:$0xff]
    %v1832 = vld [vmem:[#allocation2 + $0x3b8] sm:$0xff]
    %v1833 = vld [vmem:[#allocation2 + $0x3c0] sm:$0xff]
    %v1834 = vld [vmem:[#allocation2 + $0x3c8] sm:$0xff]
    %v1835 = vld [vmem:[#allocation2 + $0x3d0] sm:$0xff]
    %v1836 = vld [vmem:[#allocation2 + $0x3d8] sm:$0xff]
    %v1837 = vld [vmem:[#allocation2 + $0x3e0] sm:$0xff]
    %v1838 = vld [vmem:[#allocation2 + $0x3e8] sm:$0xff]
    %v1839 = vld [vmem:[#allocation2 + $0x3f0] sm:$0xff]
    %v1840 = vld [vmem:[#allocation2 + $0x3f8] sm:$0xff]
    %v1841 = vld [vmem:[#allocation2 + $0x400] sm:$0xff]
    %v1842 = vld [vmem:[#allocation2 + $0x408] sm:$0xff]
    %v1843 = vld [vmem:[#allocation2 + $0x410] sm:$0xff]
    %v1844 = vld [vmem:[#allocation2 + $0x418] sm:$0xff]
    %v1845 = vld [vmem:[#allocation2 + $0x420] sm:$0xff]
    %v1846 = vld [vmem:[#allocation2 + $0x428] sm:$0xff]
    %v1847 = vld [vmem:[#allocation2 + $0x430] sm:$0xff]
    %v1848 = vld [vmem:[#allocation2 + $0x438] sm:$0xff]
    %v1849 = vld [vmem:[#allocation2 + $0x440] sm:$0xff]
    %v1850 = vld [vmem:[#allocation2 + $0x448] sm:$0xff]
    %v1851 = vld [vmem:[#allocation2 + $0x450] sm:$0xff]
    %v1852 = vld [vmem:[#allocation2 + $0x458] sm:$0xff]
    %v1853 = vld [vmem:[#allocation2 + $0x460] sm:$0xff]
    %v1854 = vld [vmem:[#allocation2 + $0x468] sm:$0xff]
    %v1855 = vld [vmem:[#allocation2 + $0x470] sm:$0xff]
    %v1856 = vld [vmem:[#allocation2 + $0x478] sm:$0xff]
    %v1857 = vld [vmem:[#allocation2 + $0x480] sm:$0xff]
    %v1858 = vld [vmem:[#allocation2 + $0x488] sm:$0xff]
    %v1859 = vld [vmem:[#allocation2 + $0x490] sm:$0xff]
    %v1860 = vld [vmem:[#allocation2 + $0x498] sm:$0xff]
    %v1861 = vld [vmem:[#allocation2 + $0x4a0] sm:$0xff]
    %v1862 = vld [vmem:[#allocation2 + $0x4a8] sm:$0xff]
    %v1863 = vld [vmem:[#allocation2 + $0x4b0] sm:$0xff]
    %v1864 = vld [vmem:[#allocation2 + $0x4b8] sm:$0xff]
    %v1865 = vld [vmem:[#allocation2 + $0x4c0] sm:$0xff]
    %v1866 = vld [vmem:[#allocation2 + $0x4c8] sm:$0xff]
    %v1867 = vld [vmem:[#allocation2 + $0x4d0] sm:$0xff]
    %v1868 = vld [vmem:[#allocation2 + $0x4d8] sm:$0xff]
    %v1869 = vld [vmem:[#allocation2 + $0x4e0] sm:$0xff]
    %v1870 = vld [vmem:[#allocation2 + $0x4e8] sm:$0xff]
    %v1871 = vld [vmem:[#allocation2 + $0x4f0] sm:$0xff]
    %v1872 = vld [vmem:[#allocation2 + $0x4f8] sm:$0xff]
    %v1873 = vld [vmem:[#allocation2 + $0x500] sm:$0xff]
    %v1874 = vld [vmem:[#allocation2 + $0x508] sm:$0xff]
    %v1875 = vld [vmem:[#allocation2 + $0x510] sm:$0xff]
    %v1876 = vld [vmem:[#allocation2 + $0x518] sm:$0xff]
    %v1877 = vld [vmem:[#allocation2 + $0x520] sm:$0xff]
    %v1878 = vld [vmem:[#allocation2 + $0x528] sm:$0xff]
    %v1879 = vld [vmem:[#allocation2 + $0x530] sm:$0xff]
    %v1880 = vld [vmem:[#allocation2 + $0x538] sm:$0xff]
    %v1881 = vld [vmem:[#allocation2 + $0x540] sm:$0xff]
    %v1882 = vld [vmem:[#allocation2 + $0x548] sm:$0xff]
    %v1883 = vld [vmem:[#allocation2 + $0x550] sm:$0xff]
    %v1884 = vld [vmem:[#allocation2 + $0x558] sm:$0xff]
    %v1885 = vld [vmem:[#allocation2 + $0x560] sm:$0xff]
    %v1886 = vld [vmem:[#allocation2 + $0x568] sm:$0xff]
    %v1887 = vld [vmem:[#allocation2 + $0x570] sm:$0xff]
    %v1888 = vld [vmem:[#allocation2 + $0x578] sm:$0xff]
    %v1889 = vld [vmem:[#allocation2 + $0x580] sm:$0xff]
    %v1890 = vld [vmem:[#allocation2 + $0x588] sm:$0xff]
    %v1891 = vld [vmem:[#allocation2 + $0x590] sm:$0xff]
    %v1892 = vld [vmem:[#allocation2 + $0x598] sm:$0xff]
    %v1893 = vld [vmem:[#allocation2 + $0x5a0] sm:$0xff]
    %v1894 = vld [vmem:[#allocation2 + $0x5a8] sm:$0xff]
    %v1895 = vld [vmem:[#allocation2 + $0x5b0] sm:$0xff]
    %v1896 = vld [vmem:[#allocation2 + $0x5b8] sm:$0xff]
    %v1897 = vld [vmem:[#allocation2 + $0x5c0] sm:$0xff]
    %v1898 = vld [vmem:[#allocation2 + $0x5c8] sm:$0xff]
    %v1899 = vld [vmem:[#allocation2 + $0x5d0] sm:$0xff]
    %v1900 = vld [vmem:[#allocation2 + $0x5d8] sm:$0xff]
    %v1901 = vld [vmem:[#allocation2 + $0x5e0] sm:$0xff]
    %v1902 = vld [vmem:[#allocation2 + $0x5e8] sm:$0xff]
    %v1903 = vld [vmem:[#allocation2 + $0x5f0] sm:$0xff]
    %v1904 = vld [vmem:[#allocation2 + $0x5f8] sm:$0xff]
    %v1905 = vld [vmem:[#allocation2 + $0x600] sm:$0xff]
    %v1906 = vld [vmem:[#allocation2 + $0x608] sm:$0xff]
    %v1907 = vld [vmem:[#allocation2 + $0x610] sm:$0xff]
    %v1908 = vld [vmem:[#allocation2 + $0x618] sm:$0xff]
    %v1909 = vld [vmem:[#allocation2 + $0x620] sm:$0xff]
    %v1910 = vld [vmem:[#allocation2 + $0x628] sm:$0xff]
    %v1911 = vld [vmem:[#allocation2 + $0x630] sm:$0xff]
    %v1912 = vld [vmem:[#allocation2 + $0x638] sm:$0xff]
    %v1913 = vld [vmem:[#allocation2 + $0x640] sm:$0xff]
    %v1914 = vld [vmem:[#allocation2 + $0x648] sm:$0xff]
    %v1915 = vld [vmem:[#allocation2 + $0x650] sm:$0xff]
    %v1916 = vld [vmem:[#allocation2 + $0x658] sm:$0xff]
    %v1917 = vld [vmem:[#allocation2 + $0x660] sm:$0xff]
    %v1918 = vld [vmem:[#allocation2 + $0x668] sm:$0xff]
    %v1919 = vld [vmem:[#allocation2 + $0x670] sm:$0xff]
    %v1920 = vld [vmem:[#allocation2 + $0x678] sm:$0xff]
    %v1921 = vld [vmem:[#allocation2 + $0x680] sm:$0xff]
    %v1922 = vld [vmem:[#allocation2 + $0x688] sm:$0xff]
    %v1923 = vld [vmem:[#allocation2 + $0x690] sm:$0xff]
    %v1924 = vld [vmem:[#allocation2 + $0x698] sm:$0xff]
    %v1925 = vld [vmem:[#allocation2 + $0x6a0] sm:$0xff]
    %v1926 = vld [vmem:[#allocation2 + $0x6a8] sm:$0xff]
    %v1927 = vld [vmem:[#allocation2 + $0x6b0] sm:$0xff]
    %v1928 = vld [vmem:[#allocation2 + $0x6b8] sm:$0xff]
    %v1929 = vld [vmem:[#allocation2 + $0x6c0] sm:$0xff]
    %v1930 = vld [vmem:[#allocation2 + $0x6c8] sm:$0xff]
    %v1931 = vld [vmem:[#allocation2 + $0x6d0] sm:$0xff]
    %v1932 = vld [vmem:[#allocation2 + $0x6d8] sm:$0xff]
    %v1933 = vld [vmem:[#allocation2 + $0x6e0] sm:$0xff]
    %v1934 = vld [vmem:[#allocation2 + $0x6e8] sm:$0xff]
    %v1935 = vld [vmem:[#allocation2 + $0x6f0] sm:$0xff]
    %v1936 = vld [vmem:[#allocation2 + $0x6f8] sm:$0xff]
    %v1937 = vld [vmem:[#allocation2 + $0x700] sm:$0xff]
    %v1938 = vld [vmem:[#allocation2 + $0x708] sm:$0xff]
    %v1939 = vld [vmem:[#allocation2 + $0x710] sm:$0xff]
    %v1940 = vld [vmem:[#allocation2 + $0x718] sm:$0xff]
    %v1941 = vld [vmem:[#allocation2 + $0x720] sm:$0xff]
    %v1942 = vld [vmem:[#allocation2 + $0x728] sm:$0xff]
    %v1943 = vld [vmem:[#allocation2 + $0x730] sm:$0xff]
    %v1944 = vld [vmem:[#allocation2 + $0x738] sm:$0xff]
    %v1945 = vld [vmem:[#allocation2 + $0x740] sm:$0xff]
    %v1946 = vld [vmem:[#allocation2 + $0x748] sm:$0xff]
    %v1947 = vld [vmem:[#allocation2 + $0x750] sm:$0xff]
    %v1948 = vld [vmem:[#allocation2 + $0x758] sm:$0xff]
    %v1949 = vld [vmem:[#allocation2 + $0x760] sm:$0xff]
    %v1950 = vld [vmem:[#allocation2 + $0x768] sm:$0xff]
    %v1951 = vld [vmem:[#allocation2 + $0x770] sm:$0xff]
    %v1952 = vld [vmem:[#allocation2 + $0x778] sm:$0xff]
    %v1953 = vld [vmem:[#allocation2 + $0x780] sm:$0xff]
    %v1954 = vld [vmem:[#allocation2 + $0x788] sm:$0xff]
    %v1955 = vld [vmem:[#allocation2 + $0x790] sm:$0xff]
    %v1956 = vld [vmem:[#allocation2 + $0x798] sm:$0xff]
    %v1957 = vld [vmem:[#allocation2 + $0x7a0] sm:$0xff]
    %v1958 = vld [vmem:[#allocation2 + $0x7a8] sm:$0xff]
    %v1959 = vld [vmem:[#allocation2 + $0x7b0] sm:$0xff]
    %v1960 = vld [vmem:[#allocation2 + $0x7b8] sm:$0xff]
    %v1961 = vld [vmem:[#allocation2 + $0x7c0] sm:$0xff]
    %v1962 = vld [vmem:[#allocation2 + $0x7c8] sm:$0xff]
    %v1963 = vld [vmem:[#allocation2 + $0x7d0] sm:$0xff]
    %v1964 = vld [vmem:[#allocation2 + $0x7d8] sm:$0xff]
    %v1965 = vld [vmem:[#allocation2 + $0x7e0] sm:$0xff]
    %v1966 = vld [vmem:[#allocation2 + $0x7e8] sm:$0xff]
    %v1967 = vld [vmem:[#allocation2 + $0x7f0] sm:$0xff]
    %v1968 = vld [vmem:[#allocation2 + $0x7f8] sm:$0xff]
    %v1969 = vld [vmem:[#allocation2 + $0x800] sm:$0xff]
    %v1970 = vld [vmem:[#allocation2 + $0x808] sm:$0xff]
    %v1971 = vld [vmem:[#allocation2 + $0x810] sm:$0xff]
    %v1972 = vld [vmem:[#allocation2 + $0x818] sm:$0xff]
    %v1973 = vld [vmem:[#allocation2 + $0x820] sm:$0xff]
    %v1974 = vld [vmem:[#allocation2 + $0x828] sm:$0xff]
    %v1975 = vld [vmem:[#allocation2 + $0x830] sm:$0xff]
    %v1976 = vld [vmem:[#allocation2 + $0x838] sm:$0xff]
    %v1977 = vld [vmem:[#allocation2 + $0x840] sm:$0xff]
    %v1978 = vld [vmem:[#allocation2 + $0x848] sm:$0xff]
    %v1979 = vld [vmem:[#allocation2 + $0x850] sm:$0xff]
    %v1980 = vld [vmem:[#allocation2 + $0x858] sm:$0xff]
    %v1981 = vld [vmem:[#allocation2 + $0x860] sm:$0xff]
    %v1982 = vld [vmem:[#allocation2 + $0x868] sm:$0xff]
    %v1983 = vld [vmem:[#allocation2 + $0x870] sm:$0xff]
    %v1984 = vld [vmem:[#allocation2 + $0x878] sm:$0xff]
    %v1985 = vld [vmem:[#allocation2 + $0x880] sm:$0xff]
    %v1986 = vld [vmem:[#allocation2 + $0x888] sm:$0xff]
    %v1987 = vld [vmem:[#allocation2 + $0x890] sm:$0xff]
    %v1988 = vld [vmem:[#allocation2 + $0x898] sm:$0xff]
    %v1989 = vld [vmem:[#allocation2 + $0x8a0] sm:$0xff]
    %v1990 = vld [vmem:[#allocation2 + $0x8a8] sm:$0xff]
    %v1991 = vld [vmem:[#allocation2 + $0x8b0] sm:$0xff]
    %v1992 = vld [vmem:[#allocation2 + $0x8b8] sm:$0xff]
    %v1993 = vld [vmem:[#allocation2 + $0x8c0] sm:$0xff]
    %v1994 = vld [vmem:[#allocation2 + $0x8c8] sm:$0xff]
    %v1995 = vld [vmem:[#allocation2 + $0x8d0] sm:$0xff]
    %v1996 = vld [vmem:[#allocation2 + $0x8d8] sm:$0xff]
    %v1997 = vld [vmem:[#allocation2 + $0x8e0] sm:$0xff]
    %v1998 = vld [vmem:[#allocation2 + $0x8e8] sm:$0xff]
    %v1999 = vld [vmem:[#allocation2 + $0x8f0] sm:$0xff]
    %v2000 = vld [vmem:[#allocation2 + $0x8f8] sm:$0xff]
    %v2001 = vld [vmem:[#allocation2 + $0x900] sm:$0xff]
    %v2002 = vld [vmem:[#allocation2 + $0x908] sm:$0xff]
    %v2003 = vld [vmem:[#allocation2 + $0x910] sm:$0xff]
    %v2004 = vld [vmem:[#allocation2 + $0x918] sm:$0xff]
    %v2005 = vld [vmem:[#allocation2 + $0x920] sm:$0xff]
    %v2006 = vld [vmem:[#allocation2 + $0x928] sm:$0xff]
    %v2007 = vld [vmem:[#allocation2 + $0x930] sm:$0xff]
    %v2008 = vld [vmem:[#allocation2 + $0x938] sm:$0xff]
    %v2009 = vld [vmem:[#allocation2 + $0x940] sm:$0xff]
    %v2010 = vld [vmem:[#allocation2 + $0x948] sm:$0xff]
    %v2011 = vld [vmem:[#allocation2 + $0x950] sm:$0xff]
    %v2012 = vld [vmem:[#allocation2 + $0x958] sm:$0xff]
    %v2013 = vld [vmem:[#allocation2 + $0x960] sm:$0xff]
    %v2014 = vld [vmem:[#allocation2 + $0x968] sm:$0xff]
    %v2015 = vld [vmem:[#allocation2 + $0x970] sm:$0xff]
    %v2016 = vld [vmem:[#allocation2 + $0x978] sm:$0xff]
    %v2017 = vld [vmem:[#allocation2 + $0x980] sm:$0xff]
    %v2018 = vld [vmem:[#allocation2 + $0x988] sm:$0xff]
    %v2019 = vld [vmem:[#allocation2 + $0x990] sm:$0xff]
    %v2020 = vld [vmem:[#allocation2 + $0x998] sm:$0xff]
    %v2021 = vld [vmem:[#allocation2 + $0x9a0] sm:$0xff]
    %v2022 = vld [vmem:[#allocation2 + $0x9a8] sm:$0xff]
    %v2023 = vld [vmem:[#allocation2 + $0x9b0] sm:$0xff]
    %v2024 = vld [vmem:[#allocation2 + $0x9b8] sm:$0xff]
    %v2025 = vld [vmem:[#allocation2 + $0x9c0] sm:$0xff]
    %v2026 = vld [vmem:[#allocation2 + $0x9c8] sm:$0xff]
    %v2027 = vld [vmem:[#allocation2 + $0x9d0] sm:$0xff]
    %v2028 = vld [vmem:[#allocation2 + $0x9d8] sm:$0xff]
    %v2029 = vld [vmem:[#allocation2 + $0x9e0] sm:$0xff]
    %v2030 = vld [vmem:[#allocation2 + $0x9e8] sm:$0xff]
    %v2031 = vld [vmem:[#allocation2 + $0x9f0] sm:$0xff]
    %v2032 = vld [vmem:[#allocation2 + $0x9f8] sm:$0xff]
    %v2033 = vld [vmem:[#allocation2 + $0xa00] sm:$0xff]
    %v2034 = vld [vmem:[#allocation2 + $0xa08] sm:$0xff]
    %v2035 = vld [vmem:[#allocation2 + $0xa10] sm:$0xff]
    %v2036 = vld [vmem:[#allocation2 + $0xa18] sm:$0xff]
    %v2037 = vld [vmem:[#allocation2 + $0xa20] sm:$0xff]
    %v2038 = vld [vmem:[#allocation2 + $0xa28] sm:$0xff]
    %v2039 = vld [vmem:[#allocation2 + $0xa30] sm:$0xff]
    %v2040 = vld [vmem:[#allocation2 + $0xa38] sm:$0xff]
    %v2041 = vld [vmem:[#allocation2 + $0xa40] sm:$0xff]
    %v2042 = vld [vmem:[#allocation2 + $0xa48] sm:$0xff]
    %v2043 = vld [vmem:[#allocation2 + $0xa50] sm:$0xff]
    %v2044 = vld [vmem:[#allocation2 + $0xa58] sm:$0xff]
    %v2045 = vld [vmem:[#allocation2 + $0xa60] sm:$0xff]
    %v2046 = vld [vmem:[#allocation2 + $0xa68] sm:$0xff]
    %v2047 = vld [vmem:[#allocation2 + $0xa70] sm:$0xff]
    %v2048 = vld [vmem:[#allocation2 + $0xa78] sm:$0xff]
    %v2049 = vld [vmem:[#allocation2 + $0xa80] sm:$0x33]
    %v2050 = vld [vmem:[#allocation2 + $0xa88] sm:$0x33]
    %v2051 = vld [vmem:[#allocation2 + $0xa90] sm:$0x33]
    %v2052 = vpack.c.bf16 %v1701, %v1701
    %v2053 = vpack.c.bf16 %v1702, %v1702
    %v2054 = vpack.c.bf16 %v1703, %v1703
    %v2055 = vpack.c.bf16 %v1704, %v1704
    %v2056 = vpack.c.bf16 %v1705, %v1705
    %v2057 = vpack.c.bf16 %v1706, %v1706
    %v2058 = vpack.c.bf16 %v1707, %v1707
    %v2059 = vpack.c.bf16 %v1708, %v1708
    %v2061 = vlaneseq
    %v2062 = vshrl.u32 %v2061, 7
    %v2063 = vsub.s32 0, %v2062
    %v2064 = vrot.slane %v720, %v2063
    %v2065 = vlaneseq
    %v2066 = vshrl.u32 %v2065, 7
    %v2067 = vsub.s32 1, %v2066
    %v2068 = vrot.slane %v720, %v2067
    %v2069 = vlaneseq
    %v2070 = vshrl.u32 %v2069, 7
    %v2071 = vsub.s32 2, %v2070
    %v2072 = vrot.slane %v720, %v2071
    %v2073 = vlaneseq
    %v2074 = vshrl.u32 %v2073, 7
    %v2075 = vsub.s32 3, %v2074
    %v2076 = vrot.slane %v720, %v2075
    %v2077 = vlaneseq
    %v2078 = vshrl.u32 %v2077, 7
    %v2079 = vsub.s32 4, %v2078
    %v2080 = vrot.slane %v720, %v2079
    %v2081 = vlaneseq
    %v2082 = vshrl.u32 %v2081, 7
    %v2083 = vsub.s32 5, %v2082
    %v2084 = vrot.slane %v720, %v2083
    %v2430 = vunpack.c.l.b16 %v1713
    %v2431 = vunpack.c.h.b16 %v1713
    %v2432 = vunpack.c.l.b16 %v1714
    %v2433 = vunpack.c.h.b16 %v1714
    %v2434 = vunpack.c.l.b16 %v1715
    %v2435 = vunpack.c.h.b16 %v1715
    %v2436 = vunpack.c.l.b16 %v1716
    %v2437 = vunpack.c.h.b16 %v1716
    %v2438 = vunpack.c.l.b16 %v1717
    %v2439 = vunpack.c.h.b16 %v1717
    %v2440 = vunpack.c.l.b16 %v1718
    %v2441 = vunpack.c.h.b16 %v1718
    %v2442 = vunpack.c.l.b16 %v1719
    %v2443 = vunpack.c.h.b16 %v1719
    %v2444 = vunpack.c.l.b16 %v1720
    %v2445 = vunpack.c.h.b16 %v1720
    %v2446 = vunpack.c.l.b16 %v1721
    %v2447 = vunpack.c.h.b16 %v1721
    %v2448 = vunpack.c.l.b16 %v1722
    %v2449 = vunpack.c.h.b16 %v1722
    %v2450 = vunpack.c.l.b16 %v1723
    %v2451 = vunpack.c.h.b16 %v1723
    %v2452 = vunpack.c.l.b16 %v1724
    %v2453 = vunpack.c.h.b16 %v1724
    %v2454 = vunpack.c.l.b16 %v1725
    %v2455 = vunpack.c.h.b16 %v1725
    %v2456 = vunpack.c.l.b16 %v1726
    %v2457 = vunpack.c.h.b16 %v1726
    %v2458 = vunpack.c.l.b16 %v1727
    %v2459 = vunpack.c.h.b16 %v1727
    %v2460 = vunpack.c.l.b16 %v1728
    %v2461 = vunpack.c.h.b16 %v1728
    %v2462 = vunpack.c.l.b16 %v1729
    %v2463 = vunpack.c.h.b16 %v1729
    %v2464 = vunpack.c.l.b16 %v1730
    %v2465 = vunpack.c.h.b16 %v1730
    %v2466 = vunpack.c.l.b16 %v1731
    %v2467 = vunpack.c.h.b16 %v1731
    %v2468 = vunpack.c.l.b16 %v1732
    %v2469 = vunpack.c.h.b16 %v1732
    %v2470 = vunpack.c.l.b16 %v1733
    %v2471 = vunpack.c.h.b16 %v1733
    %v2472 = vunpack.c.l.b16 %v1734
    %v2473 = vunpack.c.h.b16 %v1734
    %v2474 = vunpack.c.l.b16 %v1735
    %v2475 = vunpack.c.h.b16 %v1735
    %v2476 = vunpack.c.l.b16 %v1736
    %v2477 = vunpack.c.h.b16 %v1736
    %v2478 = vunpack.c.l.b16 %v1737
    %v2479 = vunpack.c.h.b16 %v1737
    %v2480 = vunpack.c.l.b16 %v1738
    %v2481 = vunpack.c.h.b16 %v1738
    %v2482 = vunpack.c.l.b16 %v1739
    %v2483 = vunpack.c.h.b16 %v1739
    %v2484 = vunpack.c.l.b16 %v1740
    %v2485 = vunpack.c.h.b16 %v1740
    %v2486 = vunpack.c.l.b16 %v1741
    %v2487 = vunpack.c.h.b16 %v1741
    %v2488 = vunpack.c.l.b16 %v1742
    %v2489 = vunpack.c.h.b16 %v1742
    %v2490 = vunpack.c.l.b16 %v1743
    %v2491 = vunpack.c.h.b16 %v1743
    %v2492 = vunpack.c.l.b16 %v1744
    %v2493 = vunpack.c.h.b16 %v1744
    %v2494 = vunpack.c.l.b16 %v1745
    %v2495 = vunpack.c.h.b16 %v1745
    %v2496 = vunpack.c.l.b16 %v1746
    %v2497 = vunpack.c.h.b16 %v1746
    %v2498 = vunpack.c.l.b16 %v1747
    %v2499 = vunpack.c.h.b16 %v1747
    %v2500 = vunpack.c.l.b16 %v1748
    %v2501 = vunpack.c.h.b16 %v1748
    %v2502 = vunpack.c.l.b16 %v1749
    %v2503 = vunpack.c.h.b16 %v1749
    %v2504 = vunpack.c.l.b16 %v1750
    %v2505 = vunpack.c.h.b16 %v1750
    %v2506 = vunpack.c.l.b16 %v1751
    %v2507 = vunpack.c.h.b16 %v1751
    %v2508 = vunpack.c.l.b16 %v1752
    %v2509 = vunpack.c.h.b16 %v1752
    %v2510 = vunpack.c.l.b16 %v1753
    %v2511 = vunpack.c.h.b16 %v1753
    %v2512 = vunpack.c.l.b16 %v1754
    %v2513 = vunpack.c.h.b16 %v1754
    %v2514 = vunpack.c.l.b16 %v1755
    %v2515 = vunpack.c.h.b16 %v1755
    %v2516 = vunpack.c.l.b16 %v1756
    %v2517 = vunpack.c.h.b16 %v1756
    %v2518 = vunpack.c.l.b16 %v1757
    %v2519 = vunpack.c.h.b16 %v1757
    %v2520 = vunpack.c.l.b16 %v1758
    %v2521 = vunpack.c.h.b16 %v1758
    %v2522 = vunpack.c.l.b16 %v1759
    %v2523 = vunpack.c.h.b16 %v1759
    %v2524 = vunpack.c.l.b16 %v1760
    %v2525 = vunpack.c.h.b16 %v1760
    %v2526 = vunpack.c.l.b16 %v1761
    %v2527 = vunpack.c.h.b16 %v1761
    %v2528 = vunpack.c.l.b16 %v1762
    %v2529 = vunpack.c.h.b16 %v1762
    %v2530 = vunpack.c.l.b16 %v1763
    %v2531 = vunpack.c.h.b16 %v1763
    %v2532 = vunpack.c.l.b16 %v1764
    %v2533 = vunpack.c.h.b16 %v1764
    %v2534 = vunpack.c.l.b16 %v1765
    %v2535 = vunpack.c.h.b16 %v1765
    %v2536 = vunpack.c.l.b16 %v1766
    %v2537 = vunpack.c.h.b16 %v1766
    %v2538 = vunpack.c.l.b16 %v1767
    %v2539 = vunpack.c.h.b16 %v1767
    %v2540 = vunpack.c.l.b16 %v1768
    %v2541 = vunpack.c.h.b16 %v1768
    %v2542 = vunpack.c.l.b16 %v1769
    %v2543 = vunpack.c.h.b16 %v1769
    %v2544 = vunpack.c.l.b16 %v1770
    %v2545 = vunpack.c.h.b16 %v1770
    %v2546 = vunpack.c.l.b16 %v1771
    %v2547 = vunpack.c.h.b16 %v1771
    %v2548 = vunpack.c.l.b16 %v1772
    %v2549 = vunpack.c.h.b16 %v1772
    %v2550 = vunpack.c.l.b16 %v1773
    %v2551 = vunpack.c.h.b16 %v1773
    %v2552 = vunpack.c.l.b16 %v1774
    %v2553 = vunpack.c.h.b16 %v1774
    %v2554 = vunpack.c.l.b16 %v1775
    %v2555 = vunpack.c.h.b16 %v1775
    %v2556 = vunpack.c.l.b16 %v1776
    %v2557 = vunpack.c.h.b16 %v1776
    %v2558 = vunpack.c.l.b16 %v1777
    %v2559 = vunpack.c.h.b16 %v1777
    %v2560 = vunpack.c.l.b16 %v1778
    %v2561 = vunpack.c.h.b16 %v1778
    %v2562 = vunpack.c.l.b16 %v1779
    %v2563 = vunpack.c.h.b16 %v1779
    %v2564 = vunpack.c.l.b16 %v1780
    %v2565 = vunpack.c.h.b16 %v1780
    %v2566 = vunpack.c.l.b16 %v1781
    %v2567 = vunpack.c.h.b16 %v1781
    %v2568 = vunpack.c.l.b16 %v1782
    %v2569 = vunpack.c.h.b16 %v1782
    %v2570 = vunpack.c.l.b16 %v1783
    %v2571 = vunpack.c.h.b16 %v1783
    %v2572 = vunpack.c.l.b16 %v1784
    %v2573 = vunpack.c.h.b16 %v1784
    %v2574 = vunpack.c.l.b16 %v1785
    %v2575 = vunpack.c.h.b16 %v1785
    %v2576 = vunpack.c.l.b16 %v1786
    %v2577 = vunpack.c.h.b16 %v1786
    %v2578 = vunpack.c.l.b16 %v1787
    %v2579 = vunpack.c.h.b16 %v1787
    %v2580 = vunpack.c.l.b16 %v1788
    %v2581 = vunpack.c.h.b16 %v1788
    %v2582 = vunpack.c.l.b16 %v1789
    %v2583 = vunpack.c.h.b16 %v1789
    %v2584 = vunpack.c.l.b16 %v1790
    %v2585 = vunpack.c.h.b16 %v1790
    %v2586 = vunpack.c.l.b16 %v1791
    %v2587 = vunpack.c.h.b16 %v1791
    %v2588 = vunpack.c.l.b16 %v1792
    %v2589 = vunpack.c.h.b16 %v1792
    %v2590 = vunpack.c.l.b16 %v1793
    %v2591 = vunpack.c.h.b16 %v1793
    %v2592 = vunpack.c.l.b16 %v1794
    %v2593 = vunpack.c.h.b16 %v1794
    %v2594 = vunpack.c.l.b16 %v1795
    %v2595 = vunpack.c.h.b16 %v1795
    %v2596 = vunpack.c.l.b16 %v1796
    %v2597 = vunpack.c.h.b16 %v1796
    %v2598 = vunpack.c.l.b16 %v1797
    %v2599 = vunpack.c.h.b16 %v1797
    %v2600 = vunpack.c.l.b16 %v1798
    %v2601 = vunpack.c.h.b16 %v1798
    %v2602 = vunpack.c.l.b16 %v1799
    %v2603 = vunpack.c.h.b16 %v1799
    %v2604 = vunpack.c.l.b16 %v1800
    %v2605 = vunpack.c.h.b16 %v1800
    %v2606 = vunpack.c.l.b16 %v1801
    %v2607 = vunpack.c.h.b16 %v1801
    %v2608 = vunpack.c.l.b16 %v1802
    %v2609 = vunpack.c.h.b16 %v1802
    %v2610 = vunpack.c.l.b16 %v1803
    %v2611 = vunpack.c.h.b16 %v1803
    %v2612 = vunpack.c.l.b16 %v1804
    %v2613 = vunpack.c.h.b16 %v1804
    %v2614 = vunpack.c.l.b16 %v1805
    %v2615 = vunpack.c.h.b16 %v1805
    %v2616 = vunpack.c.l.b16 %v1806
    %v2617 = vunpack.c.h.b16 %v1806
    %v2618 = vunpack.c.l.b16 %v1807
    %v2619 = vunpack.c.h.b16 %v1807
    %v2620 = vunpack.c.l.b16 %v1808
    %v2621 = vunpack.c.h.b16 %v1808
    %v2622 = vunpack.c.l.b16 %v1809
    %v2623 = vunpack.c.h.b16 %v1809
    %v2624 = vunpack.c.l.b16 %v1810
    %v2625 = vunpack.c.h.b16 %v1810
    %v2626 = vunpack.c.l.b16 %v1811
    %v2627 = vunpack.c.h.b16 %v1811
    %v2628 = vunpack.c.l.b16 %v1812
    %v2629 = vunpack.c.h.b16 %v1812
    %v2630 = vunpack.c.l.b16 %v1813
    %v2631 = vunpack.c.h.b16 %v1813
    %v2632 = vunpack.c.l.b16 %v1814
    %v2633 = vunpack.c.h.b16 %v1814
    %v2634 = vunpack.c.l.b16 %v1815
    %v2635 = vunpack.c.h.b16 %v1815
    %v2636 = vunpack.c.l.b16 %v1816
    %v2637 = vunpack.c.h.b16 %v1816
    %v2638 = vunpack.c.l.b16 %v1817
    %v2639 = vunpack.c.h.b16 %v1817
    %v2640 = vunpack.c.l.b16 %v1818
    %v2641 = vunpack.c.h.b16 %v1818
    %v2642 = vunpack.c.l.b16 %v1819
    %v2643 = vunpack.c.h.b16 %v1819
    %v2644 = vunpack.c.l.b16 %v1820
    %v2645 = vunpack.c.h.b16 %v1820
    %v2646 = vunpack.c.l.b16 %v1821
    %v2647 = vunpack.c.h.b16 %v1821
    %v2648 = vunpack.c.l.b16 %v1822
    %v2649 = vunpack.c.h.b16 %v1822
    %v2650 = vunpack.c.l.b16 %v1823
    %v2651 = vunpack.c.h.b16 %v1823
    %v2652 = vunpack.c.l.b16 %v1824
    %v2653 = vunpack.c.h.b16 %v1824
    %v2654 = vunpack.c.l.b16 %v1825
    %v2655 = vunpack.c.h.b16 %v1825
    %v2656 = vunpack.c.l.b16 %v1826
    %v2657 = vunpack.c.h.b16 %v1826
    %v2658 = vunpack.c.l.b16 %v1827
    %v2659 = vunpack.c.h.b16 %v1827
    %v2660 = vunpack.c.l.b16 %v1828
    %v2661 = vunpack.c.h.b16 %v1828
    %v2662 = vunpack.c.l.b16 %v1829
    %v2663 = vunpack.c.h.b16 %v1829
    %v2664 = vunpack.c.l.b16 %v1830
    %v2665 = vunpack.c.h.b16 %v1830
    %v2666 = vunpack.c.l.b16 %v1831
    %v2667 = vunpack.c.h.b16 %v1831
    %v2668 = vunpack.c.l.b16 %v1832
    %v2669 = vunpack.c.h.b16 %v1832
    %v2670 = vunpack.c.l.b16 %v1833
    %v2671 = vunpack.c.h.b16 %v1833
    %v2672 = vunpack.c.l.b16 %v1834
    %v2673 = vunpack.c.h.b16 %v1834
    %v2674 = vunpack.c.l.b16 %v1835
    %v2675 = vunpack.c.h.b16 %v1835
    %v2676 = vunpack.c.l.b16 %v1836
    %v2677 = vunpack.c.h.b16 %v1836
    %v2678 = vunpack.c.l.b16 %v1837
    %v2679 = vunpack.c.h.b16 %v1837
    %v2680 = vunpack.c.l.b16 %v1838
    %v2681 = vunpack.c.h.b16 %v1838
    %v2682 = vunpack.c.l.b16 %v1839
    %v2683 = vunpack.c.h.b16 %v1839
    %v2684 = vunpack.c.l.b16 %v1840
    %v2685 = vunpack.c.h.b16 %v1840
    %v2686 = vunpack.c.l.b16 %v1841
    %v2687 = vunpack.c.h.b16 %v1841
    %v2688 = vunpack.c.l.b16 %v1842
    %v2689 = vunpack.c.h.b16 %v1842
    %v2690 = vunpack.c.l.b16 %v1843
    %v2691 = vunpack.c.h.b16 %v1843
    %v2692 = vunpack.c.l.b16 %v1844
    %v2693 = vunpack.c.h.b16 %v1844
    %v2694 = vunpack.c.l.b16 %v1845
    %v2695 = vunpack.c.h.b16 %v1845
    %v2696 = vunpack.c.l.b16 %v1846
    %v2697 = vunpack.c.h.b16 %v1846
    %v2698 = vunpack.c.l.b16 %v1847
    %v2699 = vunpack.c.h.b16 %v1847
    %v2700 = vunpack.c.l.b16 %v1848
    %v2701 = vunpack.c.h.b16 %v1848
    %v2702 = vunpack.c.l.b16 %v1849
    %v2703 = vunpack.c.h.b16 %v1849
    %v2704 = vunpack.c.l.b16 %v1850
    %v2705 = vunpack.c.h.b16 %v1850
    %v2706 = vunpack.c.l.b16 %v1851
    %v2707 = vunpack.c.h.b16 %v1851
    %v2708 = vunpack.c.l.b16 %v1852
    %v2709 = vunpack.c.h.b16 %v1852
    %v2710 = vunpack.c.l.b16 %v1853
    %v2711 = vunpack.c.h.b16 %v1853
    %v2712 = vunpack.c.l.b16 %v1854
    %v2713 = vunpack.c.h.b16 %v1854
    %v2714 = vunpack.c.l.b16 %v1855
    %v2715 = vunpack.c.h.b16 %v1855
    %v2716 = vunpack.c.l.b16 %v1856
    %v2717 = vunpack.c.h.b16 %v1856
    %v2718 = vunpack.c.l.b16 %v1857
    %v2719 = vunpack.c.h.b16 %v1857
    %v2720 = vunpack.c.l.b16 %v1858
    %v2721 = vunpack.c.h.b16 %v1858
    %v2722 = vunpack.c.l.b16 %v1859
    %v2723 = vunpack.c.h.b16 %v1859
    %v2724 = vunpack.c.l.b16 %v1860
    %v2725 = vunpack.c.h.b16 %v1860
    %v2726 = vunpack.c.l.b16 %v1861
    %v2727 = vunpack.c.h.b16 %v1861
    %v2728 = vunpack.c.l.b16 %v1862
    %v2729 = vunpack.c.h.b16 %v1862
    %v2730 = vunpack.c.l.b16 %v1863
    %v2731 = vunpack.c.h.b16 %v1863
    %v2732 = vunpack.c.l.b16 %v1864
    %v2733 = vunpack.c.h.b16 %v1864
    %v2734 = vunpack.c.l.b16 %v1865
    %v2735 = vunpack.c.h.b16 %v1865
    %v2736 = vunpack.c.l.b16 %v1866
    %v2737 = vunpack.c.h.b16 %v1866
    %v2738 = vunpack.c.l.b16 %v1867
    %v2739 = vunpack.c.h.b16 %v1867
    %v2740 = vunpack.c.l.b16 %v1868
    %v2741 = vunpack.c.h.b16 %v1868
    %v2742 = vunpack.c.l.b16 %v1869
    %v2743 = vunpack.c.h.b16 %v1869
    %v2744 = vunpack.c.l.b16 %v1870
    %v2745 = vunpack.c.h.b16 %v1870
    %v2746 = vunpack.c.l.b16 %v1871
    %v2747 = vunpack.c.h.b16 %v1871
    %v2748 = vunpack.c.l.b16 %v1872
    %v2749 = vunpack.c.h.b16 %v1872
    %v2750 = vunpack.c.l.b16 %v1873
    %v2751 = vunpack.c.h.b16 %v1873
    %v2752 = vunpack.c.l.b16 %v1874
    %v2753 = vunpack.c.h.b16 %v1874
    %v2754 = vunpack.c.l.b16 %v1875
    %v2755 = vunpack.c.h.b16 %v1875
    %v2756 = vunpack.c.l.b16 %v1876
    %v2757 = vunpack.c.h.b16 %v1876
    %v2758 = vunpack.c.l.b16 %v1877
    %v2759 = vunpack.c.h.b16 %v1877
    %v2760 = vunpack.c.l.b16 %v1878
    %v2761 = vunpack.c.h.b16 %v1878
    %v2762 = vunpack.c.l.b16 %v1879
    %v2763 = vunpack.c.h.b16 %v1879
    %v2764 = vunpack.c.l.b16 %v1880
    %v2765 = vunpack.c.h.b16 %v1880
    %v2766 = vunpack.c.l.b16 %v1881
    %v2767 = vunpack.c.h.b16 %v1881
    %v2768 = vunpack.c.l.b16 %v1882
    %v2769 = vunpack.c.h.b16 %v1882
    %v2770 = vunpack.c.l.b16 %v1883
    %v2771 = vunpack.c.h.b16 %v1883
    %v2772 = vunpack.c.l.b16 %v1884
    %v2773 = vunpack.c.h.b16 %v1884
    %v2774 = vunpack.c.l.b16 %v1885
    %v2775 = vunpack.c.h.b16 %v1885
    %v2776 = vunpack.c.l.b16 %v1886
    %v2777 = vunpack.c.h.b16 %v1886
    %v2778 = vunpack.c.l.b16 %v1887
    %v2779 = vunpack.c.h.b16 %v1887
    %v2780 = vunpack.c.l.b16 %v1888
    %v2781 = vunpack.c.h.b16 %v1888
    %v2782 = vunpack.c.l.b16 %v1889
    %v2783 = vunpack.c.h.b16 %v1889
    %v2784 = vunpack.c.l.b16 %v1890
    %v2785 = vunpack.c.h.b16 %v1890
    %v2786 = vunpack.c.l.b16 %v1891
    %v2787 = vunpack.c.h.b16 %v1891
    %v2788 = vunpack.c.l.b16 %v1892
    %v2789 = vunpack.c.h.b16 %v1892
    %v2790 = vunpack.c.l.b16 %v1893
    %v2791 = vunpack.c.h.b16 %v1893
    %v2792 = vunpack.c.l.b16 %v1894
    %v2793 = vunpack.c.h.b16 %v1894
    %v2794 = vunpack.c.l.b16 %v1895
    %v2795 = vunpack.c.h.b16 %v1895
    %v2796 = vunpack.c.l.b16 %v1896
    %v2797 = vunpack.c.h.b16 %v1896
    %v2798 = vunpack.c.l.b16 %v1897
    %v2799 = vunpack.c.h.b16 %v1897
    %v2800 = vunpack.c.l.b16 %v1898
    %v2801 = vunpack.c.h.b16 %v1898
    %v2802 = vunpack.c.l.b16 %v1899
    %v2803 = vunpack.c.h.b16 %v1899
    %v2804 = vunpack.c.l.b16 %v1900
    %v2805 = vunpack.c.h.b16 %v1900
    %v2806 = vunpack.c.l.b16 %v1901
    %v2807 = vunpack.c.h.b16 %v1901
    %v2808 = vunpack.c.l.b16 %v1902
    %v2809 = vunpack.c.h.b16 %v1902
    %v2810 = vunpack.c.l.b16 %v1903
    %v2811 = vunpack.c.h.b16 %v1903
    %v2812 = vunpack.c.l.b16 %v1904
    %v2813 = vunpack.c.h.b16 %v1904
    %v2814 = vunpack.c.l.b16 %v1905
    %v2815 = vunpack.c.h.b16 %v1905
    %v2816 = vunpack.c.l.b16 %v1906
    %v2817 = vunpack.c.h.b16 %v1906
    %v2818 = vunpack.c.l.b16 %v1907
    %v2819 = vunpack.c.h.b16 %v1907
    %v2820 = vunpack.c.l.b16 %v1908
    %v2821 = vunpack.c.h.b16 %v1908
    %v2822 = vunpack.c.l.b16 %v1909
    %v2823 = vunpack.c.h.b16 %v1909
    %v2824 = vunpack.c.l.b16 %v1910
    %v2825 = vunpack.c.h.b16 %v1910
    %v2826 = vunpack.c.l.b16 %v1911
    %v2827 = vunpack.c.h.b16 %v1911
    %v2828 = vunpack.c.l.b16 %v1912
    %v2829 = vunpack.c.h.b16 %v1912
    %v2830 = vunpack.c.l.b16 %v1913
    %v2831 = vunpack.c.h.b16 %v1913
    %v2832 = vunpack.c.l.b16 %v1914
    %v2833 = vunpack.c.h.b16 %v1914
    %v2834 = vunpack.c.l.b16 %v1915
    %v2835 = vunpack.c.h.b16 %v1915
    %v2836 = vunpack.c.l.b16 %v1916
    %v2837 = vunpack.c.h.b16 %v1916
    %v2838 = vunpack.c.l.b16 %v1917
    %v2839 = vunpack.c.h.b16 %v1917
    %v2840 = vunpack.c.l.b16 %v1918
    %v2841 = vunpack.c.h.b16 %v1918
    %v2842 = vunpack.c.l.b16 %v1919
    %v2843 = vunpack.c.h.b16 %v1919
    %v2844 = vunpack.c.l.b16 %v1920
    %v2845 = vunpack.c.h.b16 %v1920
    %v2846 = vunpack.c.l.b16 %v1921
    %v2847 = vunpack.c.h.b16 %v1921
    %v2848 = vunpack.c.l.b16 %v1922
    %v2849 = vunpack.c.h.b16 %v1922
    %v2850 = vunpack.c.l.b16 %v1923
    %v2851 = vunpack.c.h.b16 %v1923
    %v2852 = vunpack.c.l.b16 %v1924
    %v2853 = vunpack.c.h.b16 %v1924
    %v2854 = vunpack.c.l.b16 %v1925
    %v2855 = vunpack.c.h.b16 %v1925
    %v2856 = vunpack.c.l.b16 %v1926
    %v2857 = vunpack.c.h.b16 %v1926
    %v2858 = vunpack.c.l.b16 %v1927
    %v2859 = vunpack.c.h.b16 %v1927
    %v2860 = vunpack.c.l.b16 %v1928
    %v2861 = vunpack.c.h.b16 %v1928
    %v2862 = vunpack.c.l.b16 %v1929
    %v2863 = vunpack.c.h.b16 %v1929
    %v2864 = vunpack.c.l.b16 %v1930
    %v2865 = vunpack.c.h.b16 %v1930
    %v2866 = vunpack.c.l.b16 %v1931
    %v2867 = vunpack.c.h.b16 %v1931
    %v2868 = vunpack.c.l.b16 %v1932
    %v2869 = vunpack.c.h.b16 %v1932
    %v2870 = vunpack.c.l.b16 %v1933
    %v2871 = vunpack.c.h.b16 %v1933
    %v2872 = vunpack.c.l.b16 %v1934
    %v2873 = vunpack.c.h.b16 %v1934
    %v2874 = vunpack.c.l.b16 %v1935
    %v2875 = vunpack.c.h.b16 %v1935
    %v2876 = vunpack.c.l.b16 %v1936
    %v2877 = vunpack.c.h.b16 %v1936
    %v2878 = vunpack.c.l.b16 %v1937
    %v2879 = vunpack.c.h.b16 %v1937
    %v2880 = vunpack.c.l.b16 %v1938
    %v2881 = vunpack.c.h.b16 %v1938
    %v2882 = vunpack.c.l.b16 %v1939
    %v2883 = vunpack.c.h.b16 %v1939
    %v2884 = vunpack.c.l.b16 %v1940
    %v2885 = vunpack.c.h.b16 %v1940
    %v2886 = vunpack.c.l.b16 %v1941
    %v2887 = vunpack.c.h.b16 %v1941
    %v2888 = vunpack.c.l.b16 %v1942
    %v2889 = vunpack.c.h.b16 %v1942
    %v2890 = vunpack.c.l.b16 %v1943
    %v2891 = vunpack.c.h.b16 %v1943
    %v2892 = vunpack.c.l.b16 %v1944
    %v2893 = vunpack.c.h.b16 %v1944
    %v2894 = vunpack.c.l.b16 %v1945
    %v2895 = vunpack.c.h.b16 %v1945
    %v2896 = vunpack.c.l.b16 %v1946
    %v2897 = vunpack.c.h.b16 %v1946
    %v2898 = vunpack.c.l.b16 %v1947
    %v2899 = vunpack.c.h.b16 %v1947
    %v2900 = vunpack.c.l.b16 %v1948
    %v2901 = vunpack.c.h.b16 %v1948
    %v2902 = vunpack.c.l.b16 %v1949
    %v2903 = vunpack.c.h.b16 %v1949
    %v2904 = vunpack.c.l.b16 %v1950
    %v2905 = vunpack.c.h.b16 %v1950
    %v2906 = vunpack.c.l.b16 %v1951
    %v2907 = vunpack.c.h.b16 %v1951
    %v2908 = vunpack.c.l.b16 %v1952
    %v2909 = vunpack.c.h.b16 %v1952
    %v2910 = vunpack.c.l.b16 %v1953
    %v2911 = vunpack.c.h.b16 %v1953
    %v2912 = vunpack.c.l.b16 %v1954
    %v2913 = vunpack.c.h.b16 %v1954
    %v2914 = vunpack.c.l.b16 %v1955
    %v2915 = vunpack.c.h.b16 %v1955
    %v2916 = vunpack.c.l.b16 %v1956
    %v2917 = vunpack.c.h.b16 %v1956
    %v2918 = vunpack.c.l.b16 %v1957
    %v2919 = vunpack.c.h.b16 %v1957
    %v2920 = vunpack.c.l.b16 %v1958
    %v2921 = vunpack.c.h.b16 %v1958
    %v2922 = vunpack.c.l.b16 %v1959
    %v2923 = vunpack.c.h.b16 %v1959
    %v2924 = vunpack.c.l.b16 %v1960
    %v2925 = vunpack.c.h.b16 %v1960
    %v2926 = vunpack.c.l.b16 %v1961
    %v2927 = vunpack.c.h.b16 %v1961
    %v2928 = vunpack.c.l.b16 %v1962
    %v2929 = vunpack.c.h.b16 %v1962
    %v2930 = vunpack.c.l.b16 %v1963
    %v2931 = vunpack.c.h.b16 %v1963
    %v2932 = vunpack.c.l.b16 %v1964
    %v2933 = vunpack.c.h.b16 %v1964
    %v2934 = vunpack.c.l.b16 %v1965
    %v2935 = vunpack.c.h.b16 %v1965
    %v2936 = vunpack.c.l.b16 %v1966
    %v2937 = vunpack.c.h.b16 %v1966
    %v2938 = vunpack.c.l.b16 %v1967
    %v2939 = vunpack.c.h.b16 %v1967
    %v2940 = vunpack.c.l.b16 %v1968
    %v2941 = vunpack.c.h.b16 %v1968
    %v2942 = vunpack.c.l.b16 %v1969
    %v2943 = vunpack.c.h.b16 %v1969
    %v2944 = vunpack.c.l.b16 %v1970
    %v2945 = vunpack.c.h.b16 %v1970
    %v2946 = vunpack.c.l.b16 %v1971
    %v2947 = vunpack.c.h.b16 %v1971
    %v2948 = vunpack.c.l.b16 %v1972
    %v2949 = vunpack.c.h.b16 %v1972
    %v2950 = vunpack.c.l.b16 %v1973
    %v2951 = vunpack.c.h.b16 %v1973
    %v2952 = vunpack.c.l.b16 %v1974
    %v2953 = vunpack.c.h.b16 %v1974
    %v2954 = vunpack.c.l.b16 %v1975
    %v2955 = vunpack.c.h.b16 %v1975
    %v2956 = vunpack.c.l.b16 %v1976
    %v2957 = vunpack.c.h.b16 %v1976
    %v2958 = vunpack.c.l.b16 %v1977
    %v2959 = vunpack.c.h.b16 %v1977
    %v2960 = vunpack.c.l.b16 %v1978
    %v2961 = vunpack.c.h.b16 %v1978
    %v2962 = vunpack.c.l.b16 %v1979
    %v2963 = vunpack.c.h.b16 %v1979
    %v2964 = vunpack.c.l.b16 %v1980
    %v2965 = vunpack.c.h.b16 %v1980
    %v2966 = vunpack.c.l.b16 %v1981
    %v2967 = vunpack.c.h.b16 %v1981
    %v2968 = vunpack.c.l.b16 %v1982
    %v2969 = vunpack.c.h.b16 %v1982
    %v2970 = vunpack.c.l.b16 %v1983
    %v2971 = vunpack.c.h.b16 %v1983
    %v2972 = vunpack.c.l.b16 %v1984
    %v2973 = vunpack.c.h.b16 %v1984
    %v2974 = vunpack.c.l.b16 %v1985
    %v2975 = vunpack.c.h.b16 %v1985
    %v2976 = vunpack.c.l.b16 %v1986
    %v2977 = vunpack.c.h.b16 %v1986
    %v2978 = vunpack.c.l.b16 %v1987
    %v2979 = vunpack.c.h.b16 %v1987
    %v2980 = vunpack.c.l.b16 %v1988
    %v2981 = vunpack.c.h.b16 %v1988
    %v2982 = vunpack.c.l.b16 %v1989
    %v2983 = vunpack.c.h.b16 %v1989
    %v2984 = vunpack.c.l.b16 %v1990
    %v2985 = vunpack.c.h.b16 %v1990
    %v2986 = vunpack.c.l.b16 %v1991
    %v2987 = vunpack.c.h.b16 %v1991
    %v2988 = vunpack.c.l.b16 %v1992
    %v2989 = vunpack.c.h.b16 %v1992
    %v2990 = vunpack.c.l.b16 %v1993
    %v2991 = vunpack.c.h.b16 %v1993
    %v2992 = vunpack.c.l.b16 %v1994
    %v2993 = vunpack.c.h.b16 %v1994
    %v2994 = vunpack.c.l.b16 %v1995
    %v2995 = vunpack.c.h.b16 %v1995
    %v2996 = vunpack.c.l.b16 %v1996
    %v2997 = vunpack.c.h.b16 %v1996
    %v2998 = vunpack.c.l.b16 %v1997
    %v2999 = vunpack.c.h.b16 %v1997
    %v3000 = vunpack.c.l.b16 %v1998
    %v3001 = vunpack.c.h.b16 %v1998
    %v3002 = vunpack.c.l.b16 %v1999
    %v3003 = vunpack.c.h.b16 %v1999
    %v3004 = vunpack.c.l.b16 %v2000
    %v3005 = vunpack.c.h.b16 %v2000
    %v3006 = vunpack.c.l.b16 %v2001
    %v3007 = vunpack.c.h.b16 %v2001
    %v3008 = vunpack.c.l.b16 %v2002
    %v3009 = vunpack.c.h.b16 %v2002
    %v3010 = vunpack.c.l.b16 %v2003
    %v3011 = vunpack.c.h.b16 %v2003
    %v3012 = vunpack.c.l.b16 %v2004
    %v3013 = vunpack.c.h.b16 %v2004
    %v3014 = vunpack.c.l.b16 %v2005
    %v3015 = vunpack.c.h.b16 %v2005
    %v3016 = vunpack.c.l.b16 %v2006
    %v3017 = vunpack.c.h.b16 %v2006
    %v3018 = vunpack.c.l.b16 %v2007
    %v3019 = vunpack.c.h.b16 %v2007
    %v3020 = vunpack.c.l.b16 %v2008
    %v3021 = vunpack.c.h.b16 %v2008
    %v3022 = vunpack.c.l.b16 %v2009
    %v3023 = vunpack.c.h.b16 %v2009
    %v3024 = vunpack.c.l.b16 %v2010
    %v3025 = vunpack.c.h.b16 %v2010
    %v3026 = vunpack.c.l.b16 %v2011
    %v3027 = vunpack.c.h.b16 %v2011
    %v3028 = vunpack.c.l.b16 %v2012
    %v3029 = vunpack.c.h.b16 %v2012
    %v3030 = vunpack.c.l.b16 %v2013
    %v3031 = vunpack.c.h.b16 %v2013
    %v3032 = vunpack.c.l.b16 %v2014
    %v3033 = vunpack.c.h.b16 %v2014
    %v3034 = vunpack.c.l.b16 %v2015
    %v3035 = vunpack.c.h.b16 %v2015
    %v3036 = vunpack.c.l.b16 %v2016
    %v3037 = vunpack.c.h.b16 %v2016
    %v3038 = vunpack.c.l.b16 %v2017
    %v3039 = vunpack.c.h.b16 %v2017
    %v3040 = vunpack.c.l.b16 %v2018
    %v3041 = vunpack.c.h.b16 %v2018
    %v3042 = vunpack.c.l.b16 %v2019
    %v3043 = vunpack.c.h.b16 %v2019
    %v3044 = vunpack.c.l.b16 %v2020
    %v3045 = vunpack.c.h.b16 %v2020
    %v3046 = vunpack.c.l.b16 %v2021
    %v3047 = vunpack.c.h.b16 %v2021
    %v3048 = vunpack.c.l.b16 %v2022
    %v3049 = vunpack.c.h.b16 %v2022
    %v3050 = vunpack.c.l.b16 %v2023
    %v3051 = vunpack.c.h.b16 %v2023
    %v3052 = vunpack.c.l.b16 %v2024
    %v3053 = vunpack.c.h.b16 %v2024
    %v3054 = vunpack.c.l.b16 %v2025
    %v3055 = vunpack.c.h.b16 %v2025
    %v3056 = vunpack.c.l.b16 %v2026
    %v3057 = vunpack.c.h.b16 %v2026
    %v3058 = vunpack.c.l.b16 %v2027
    %v3059 = vunpack.c.h.b16 %v2027
    %v3060 = vunpack.c.l.b16 %v2028
    %v3061 = vunpack.c.h.b16 %v2028
    %v3062 = vunpack.c.l.b16 %v2029
    %v3063 = vunpack.c.h.b16 %v2029
    %v3064 = vunpack.c.l.b16 %v2030
    %v3065 = vunpack.c.h.b16 %v2030
    %v3066 = vunpack.c.l.b16 %v2031
    %v3067 = vunpack.c.h.b16 %v2031
    %v3068 = vunpack.c.l.b16 %v2032
    %v3069 = vunpack.c.h.b16 %v2032
    %v3070 = vunpack.c.l.b16 %v2033
    %v3071 = vunpack.c.h.b16 %v2033
    %v3072 = vunpack.c.l.b16 %v2034
    %v3073 = vunpack.c.h.b16 %v2034
    %v3074 = vunpack.c.l.b16 %v2035
    %v3075 = vunpack.c.h.b16 %v2035
    %v3076 = vunpack.c.l.b16 %v2036
    %v3077 = vunpack.c.h.b16 %v2036
    %v3078 = vunpack.c.l.b16 %v2037
    %v3079 = vunpack.c.h.b16 %v2037
    %v3080 = vunpack.c.l.b16 %v2038
    %v3081 = vunpack.c.h.b16 %v2038
    %v3082 = vunpack.c.l.b16 %v2039
    %v3083 = vunpack.c.h.b16 %v2039
    %v3084 = vunpack.c.l.b16 %v2040
    %v3085 = vunpack.c.h.b16 %v2040
    %v3086 = vunpack.c.l.b16 %v2041
    %v3087 = vunpack.c.h.b16 %v2041
    %v3088 = vunpack.c.l.b16 %v2042
    %v3089 = vunpack.c.h.b16 %v2042
    %v3090 = vunpack.c.l.b16 %v2043
    %v3091 = vunpack.c.h.b16 %v2043
    %v3092 = vunpack.c.l.b16 %v2044
    %v3093 = vunpack.c.h.b16 %v2044
    %v3094 = vunpack.c.l.b16 %v2045
    %v3095 = vunpack.c.h.b16 %v2045
    %v3096 = vunpack.c.l.b16 %v2046
    %v3097 = vunpack.c.h.b16 %v2046
    %v3098 = vunpack.c.l.b16 %v2047
    %v3099 = vunpack.c.h.b16 %v2047
    %v3100 = vunpack.c.l.b16 %v2048
    %v3101 = vunpack.c.h.b16 %v2048
    %v3102 = vunpack.c.l.b16 %v2049
    %v3103 = vunpack.c.h.b16 %v2049
    %v3104 = vunpack.c.l.b16 %v2050
    %v3105 = vunpack.c.h.b16 %v2050
    %v3106 = vunpack.c.l.b16 %v2051
    %v3107 = vunpack.c.h.b16 %v2051
    %v3108 = vpack.c.b16 %v2436, %v2430
    %v3109 = vpack.c.b16 %v2437, %v2431
    %v3110 = vpack.c.b16 %v2438, %v2432
    %v3111 = vpack.c.b16 %v2439, %v2433
    %v3112 = vpack.c.b16 %v2440, %v2434
    %v3113 = vpack.c.b16 %v2441, %v2435
    %v3114 = vpack.c.b16 %v2448, %v2442
    %v3115 = vpack.c.b16 %v2449, %v2443
    %v3116 = vpack.c.b16 %v2450, %v2444
    %v3117 = vpack.c.b16 %v2451, %v2445
    %v3118 = vpack.c.b16 %v2452, %v2446
    %v3119 = vpack.c.b16 %v2453, %v2447
    %v3120 = vpack.c.b16 %v2460, %v2454
    %v3121 = vpack.c.b16 %v2461, %v2455
    %v3122 = vpack.c.b16 %v2462, %v2456
    %v3123 = vpack.c.b16 %v2463, %v2457
    %v3124 = vpack.c.b16 %v2464, %v2458
    %v3125 = vpack.c.b16 %v2465, %v2459
    %v3126 = vpack.c.b16 %v2472, %v2466
    %v3127 = vpack.c.b16 %v2473, %v2467
    %v3128 = vpack.c.b16 %v2474, %v2468
    %v3129 = vpack.c.b16 %v2475, %v2469
    %v3130 = vpack.c.b16 %v2476, %v2470
    %v3131 = vpack.c.b16 %v2477, %v2471
    %v3132 = vpack.c.b16 %v2484, %v2478
    %v3133 = vpack.c.b16 %v2485, %v2479
    %v3134 = vpack.c.b16 %v2486, %v2480
    %v3135 = vpack.c.b16 %v2487, %v2481
    %v3136 = vpack.c.b16 %v2488, %v2482
    %v3137 = vpack.c.b16 %v2489, %v2483
    %v3138 = vpack.c.b16 %v2496, %v2490
    %v3139 = vpack.c.b16 %v2497, %v2491
    %v3140 = vpack.c.b16 %v2498, %v2492
    %v3141 = vpack.c.b16 %v2499, %v2493
    %v3142 = vpack.c.b16 %v2500, %v2494
    %v3143 = vpack.c.b16 %v2501, %v2495
    %v3144 = vpack.c.b16 %v2508, %v2502
    %v3145 = vpack.c.b16 %v2509, %v2503
    %v3146 = vpack.c.b16 %v2510, %v2504
    %v3147 = vpack.c.b16 %v2511, %v2505
    %v3148 = vpack.c.b16 %v2512, %v2506
    %v3149 = vpack.c.b16 %v2513, %v2507
    %v3150 = vpack.c.b16 %v2520, %v2514
    %v3151 = vpack.c.b16 %v2521, %v2515
    %v3152 = vpack.c.b16 %v2522, %v2516
    %v3153 = vpack.c.b16 %v2523, %v2517
    %v3154 = vpack.c.b16 %v2524, %v2518
    %v3155 = vpack.c.b16 %v2525, %v2519
    %v3156 = vpack.c.b16 %v2532, %v2526
    %v3157 = vpack.c.b16 %v2533, %v2527
    %v3158 = vpack.c.b16 %v2534, %v2528
    %v3159 = vpack.c.b16 %v2535, %v2529
    %v3160 = vpack.c.b16 %v2536, %v2530
    %v3161 = vpack.c.b16 %v2537, %v2531
    %v3162 = vpack.c.b16 %v2544, %v2538
    %v3163 = vpack.c.b16 %v2545, %v2539
    %v3164 = vpack.c.b16 %v2546, %v2540
    %v3165 = vpack.c.b16 %v2547, %v2541
    %v3166 = vpack.c.b16 %v2548, %v2542
    %v3167 = vpack.c.b16 %v2549, %v2543
    %v3168 = vpack.c.b16 %v2556, %v2550
    %v3169 = vpack.c.b16 %v2557, %v2551
    %v3170 = vpack.c.b16 %v2558, %v2552
    %v3171 = vpack.c.b16 %v2559, %v2553
    %v3172 = vpack.c.b16 %v2560, %v2554
    %v3173 = vpack.c.b16 %v2561, %v2555
    %v3174 = vpack.c.b16 %v2568, %v2562
    %v3175 = vpack.c.b16 %v2569, %v2563
    %v3176 = vpack.c.b16 %v2570, %v2564
    %v3177 = vpack.c.b16 %v2571, %v2565
    %v3178 = vpack.c.b16 %v2572, %v2566
    %v3179 = vpack.c.b16 %v2573, %v2567
    %v3180 = vpack.c.b16 %v2580, %v2574
    %v3181 = vpack.c.b16 %v2581, %v2575
    %v3182 = vpack.c.b16 %v2582, %v2576
    %v3183 = vpack.c.b16 %v2583, %v2577
    %v3184 = vpack.c.b16 %v2584, %v2578
    %v3185 = vpack.c.b16 %v2585, %v2579
    %v3186 = vpack.c.b16 %v2592, %v2586
    %v3187 = vpack.c.b16 %v2593, %v2587
    %v3188 = vpack.c.b16 %v2594, %v2588
    %v3189 = vpack.c.b16 %v2595, %v2589
    %v3190 = vpack.c.b16 %v2596, %v2590
    %v3191 = vpack.c.b16 %v2597, %v2591
    %v3192 = vpack.c.b16 %v2604, %v2598
    %v3193 = vpack.c.b16 %v2605, %v2599
    %v3194 = vpack.c.b16 %v2606, %v2600
    %v3195 = vpack.c.b16 %v2607, %v2601
    %v3196 = vpack.c.b16 %v2608, %v2602
    %v3197 = vpack.c.b16 %v2609, %v2603
    %v3198 = vpack.c.b16 %v2616, %v2610
    %v3199 = vpack.c.b16 %v2617, %v2611
    %v3200 = vpack.c.b16 %v2618, %v2612
    %v3201 = vpack.c.b16 %v2619, %v2613
    %v3202 = vpack.c.b16 %v2620, %v2614
    %v3203 = vpack.c.b16 %v2621, %v2615
    %v3204 = vpack.c.b16 %v2628, %v2622
    %v3205 = vpack.c.b16 %v2629, %v2623
    %v3206 = vpack.c.b16 %v2630, %v2624
    %v3207 = vpack.c.b16 %v2631, %v2625
    %v3208 = vpack.c.b16 %v2632, %v2626
    %v3209 = vpack.c.b16 %v2633, %v2627
    %v3210 = vpack.c.b16 %v2640, %v2634
    %v3211 = vpack.c.b16 %v2641, %v2635
    %v3212 = vpack.c.b16 %v2642, %v2636
    %v3213 = vpack.c.b16 %v2643, %v2637
    %v3214 = vpack.c.b16 %v2644, %v2638
    %v3215 = vpack.c.b16 %v2645, %v2639
    %v3216 = vpack.c.b16 %v2652, %v2646
    %v3217 = vpack.c.b16 %v2653, %v2647
    %v3218 = vpack.c.b16 %v2654, %v2648
    %v3219 = vpack.c.b16 %v2655, %v2649
    %v3220 = vpack.c.b16 %v2656, %v2650
    %v3221 = vpack.c.b16 %v2657, %v2651
    %v3222 = vpack.c.b16 %v2664, %v2658
    %v3223 = vpack.c.b16 %v2665, %v2659
    %v3224 = vpack.c.b16 %v2666, %v2660
    %v3225 = vpack.c.b16 %v2667, %v2661
    %v3226 = vpack.c.b16 %v2668, %v2662
    %v3227 = vpack.c.b16 %v2669, %v2663
    %v3228 = vpack.c.b16 %v2676, %v2670
    %v3229 = vpack.c.b16 %v2677, %v2671
    %v3230 = vpack.c.b16 %v2678, %v2672
    %v3231 = vpack.c.b16 %v2679, %v2673
    %v3232 = vpack.c.b16 %v2680, %v2674
    %v3233 = vpack.c.b16 %v2681, %v2675
    %v3234 = vpack.c.b16 %v2688, %v2682
    %v3235 = vpack.c.b16 %v2689, %v2683
    %v3236 = vpack.c.b16 %v2690, %v2684
    %v3237 = vpack.c.b16 %v2691, %v2685
    %v3238 = vpack.c.b16 %v2692, %v2686
    %v3239 = vpack.c.b16 %v2693, %v2687
    %v3240 = vpack.c.b16 %v2700, %v2694
    %v3241 = vpack.c.b16 %v2701, %v2695
    %v3242 = vpack.c.b16 %v2702, %v2696
    %v3243 = vpack.c.b16 %v2703, %v2697
    %v3244 = vpack.c.b16 %v2704, %v2698
    %v3245 = vpack.c.b16 %v2705, %v2699
    %v3246 = vpack.c.b16 %v2712, %v2706
    %v3247 = vpack.c.b16 %v2713, %v2707
    %v3248 = vpack.c.b16 %v2714, %v2708
    %v3249 = vpack.c.b16 %v2715, %v2709
    %v3250 = vpack.c.b16 %v2716, %v2710
    %v3251 = vpack.c.b16 %v2717, %v2711
    %v3252 = vpack.c.b16 %v2724, %v2718
    %v3253 = vpack.c.b16 %v2725, %v2719
    %v3254 = vpack.c.b16 %v2726, %v2720
    %v3255 = vpack.c.b16 %v2727, %v2721
    %v3256 = vpack.c.b16 %v2728, %v2722
    %v3257 = vpack.c.b16 %v2729, %v2723
    %v3258 = vpack.c.b16 %v2736, %v2730
    %v3259 = vpack.c.b16 %v2737, %v2731
    %v3260 = vpack.c.b16 %v2738, %v2732
    %v3261 = vpack.c.b16 %v2739, %v2733
    %v3262 = vpack.c.b16 %v2740, %v2734
    %v3263 = vpack.c.b16 %v2741, %v2735
    %v3264 = vpack.c.b16 %v2748, %v2742
    %v3265 = vpack.c.b16 %v2749, %v2743
    %v3266 = vpack.c.b16 %v2750, %v2744
    %v3267 = vpack.c.b16 %v2751, %v2745
    %v3268 = vpack.c.b16 %v2752, %v2746
    %v3269 = vpack.c.b16 %v2753, %v2747
    %v3270 = vpack.c.b16 %v2760, %v2754
    %v3271 = vpack.c.b16 %v2761, %v2755
    %v3272 = vpack.c.b16 %v2762, %v2756
    %v3273 = vpack.c.b16 %v2763, %v2757
    %v3274 = vpack.c.b16 %v2764, %v2758
    %v3275 = vpack.c.b16 %v2765, %v2759
    %v3276 = vpack.c.b16 %v2772, %v2766
    %v3277 = vpack.c.b16 %v2773, %v2767
    %v3278 = vpack.c.b16 %v2774, %v2768
    %v3279 = vpack.c.b16 %v2775, %v2769
    %v3280 = vpack.c.b16 %v2776, %v2770
    %v3281 = vpack.c.b16 %v2777, %v2771
    %v3282 = vpack.c.b16 %v2784, %v2778
    %v3283 = vpack.c.b16 %v2785, %v2779
    %v3284 = vpack.c.b16 %v2786, %v2780
    %v3285 = vpack.c.b16 %v2787, %v2781
    %v3286 = vpack.c.b16 %v2788, %v2782
    %v3287 = vpack.c.b16 %v2789, %v2783
    %v3288 = vpack.c.b16 %v2796, %v2790
    %v3289 = vpack.c.b16 %v2797, %v2791
    %v3290 = vpack.c.b16 %v2798, %v2792
    %v3291 = vpack.c.b16 %v2799, %v2793
    %v3292 = vpack.c.b16 %v2800, %v2794
    %v3293 = vpack.c.b16 %v2801, %v2795
    %v3294 = vpack.c.b16 %v2808, %v2802
    %v3295 = vpack.c.b16 %v2809, %v2803
    %v3296 = vpack.c.b16 %v2810, %v2804
    %v3297 = vpack.c.b16 %v2811, %v2805
    %v3298 = vpack.c.b16 %v2812, %v2806
    %v3299 = vpack.c.b16 %v2813, %v2807
    %v3300 = vpack.c.b16 %v2820, %v2814
    %v3301 = vpack.c.b16 %v2821, %v2815
    %v3302 = vpack.c.b16 %v2822, %v2816
    %v3303 = vpack.c.b16 %v2823, %v2817
    %v3304 = vpack.c.b16 %v2824, %v2818
    %v3305 = vpack.c.b16 %v2825, %v2819
    %v3306 = vpack.c.b16 %v2832, %v2826
    %v3307 = vpack.c.b16 %v2833, %v2827
    %v3308 = vpack.c.b16 %v2834, %v2828
    %v3309 = vpack.c.b16 %v2835, %v2829
    %v3310 = vpack.c.b16 %v2836, %v2830
    %v3311 = vpack.c.b16 %v2837, %v2831
    %v3312 = vpack.c.b16 %v2844, %v2838
    %v3313 = vpack.c.b16 %v2845, %v2839
    %v3314 = vpack.c.b16 %v2846, %v2840
    %v3315 = vpack.c.b16 %v2847, %v2841
    %v3316 = vpack.c.b16 %v2848, %v2842
    %v3317 = vpack.c.b16 %v2849, %v2843
    %v3318 = vpack.c.b16 %v2856, %v2850
    %v3319 = vpack.c.b16 %v2857, %v2851
    %v3320 = vpack.c.b16 %v2858, %v2852
    %v3321 = vpack.c.b16 %v2859, %v2853
    %v3322 = vpack.c.b16 %v2860, %v2854
    %v3323 = vpack.c.b16 %v2861, %v2855
    %v3324 = vpack.c.b16 %v2868, %v2862
    %v3325 = vpack.c.b16 %v2869, %v2863
    %v3326 = vpack.c.b16 %v2870, %v2864
    %v3327 = vpack.c.b16 %v2871, %v2865
    %v3328 = vpack.c.b16 %v2872, %v2866
    %v3329 = vpack.c.b16 %v2873, %v2867
    %v3330 = vpack.c.b16 %v2880, %v2874
    %v3331 = vpack.c.b16 %v2881, %v2875
    %v3332 = vpack.c.b16 %v2882, %v2876
    %v3333 = vpack.c.b16 %v2883, %v2877
    %v3334 = vpack.c.b16 %v2884, %v2878
    %v3335 = vpack.c.b16 %v2885, %v2879
    %v3336 = vpack.c.b16 %v2892, %v2886
    %v3337 = vpack.c.b16 %v2893, %v2887
    %v3338 = vpack.c.b16 %v2894, %v2888
    %v3339 = vpack.c.b16 %v2895, %v2889
    %v3340 = vpack.c.b16 %v2896, %v2890
    %v3341 = vpack.c.b16 %v2897, %v2891
    %v3342 = vpack.c.b16 %v2904, %v2898
    %v3343 = vpack.c.b16 %v2905, %v2899
    %v3344 = vpack.c.b16 %v2906, %v2900
    %v3345 = vpack.c.b16 %v2907, %v2901
    %v3346 = vpack.c.b16 %v2908, %v2902
    %v3347 = vpack.c.b16 %v2909, %v2903
    %v3348 = vpack.c.b16 %v2916, %v2910
    %v3349 = vpack.c.b16 %v2917, %v2911
    %v3350 = vpack.c.b16 %v2918, %v2912
    %v3351 = vpack.c.b16 %v2919, %v2913
    %v3352 = vpack.c.b16 %v2920, %v2914
    %v3353 = vpack.c.b16 %v2921, %v2915
    %v3354 = vpack.c.b16 %v2928, %v2922
    %v3355 = vpack.c.b16 %v2929, %v2923
    %v3356 = vpack.c.b16 %v2930, %v2924
    %v3357 = vpack.c.b16 %v2931, %v2925
    %v3358 = vpack.c.b16 %v2932, %v2926
    %v3359 = vpack.c.b16 %v2933, %v2927
    %v3360 = vpack.c.b16 %v2940, %v2934
    %v3361 = vpack.c.b16 %v2941, %v2935
    %v3362 = vpack.c.b16 %v2942, %v2936
    %v3363 = vpack.c.b16 %v2943, %v2937
    %v3364 = vpack.c.b16 %v2944, %v2938
    %v3365 = vpack.c.b16 %v2945, %v2939
    %v3366 = vpack.c.b16 %v2952, %v2946
    %v3367 = vpack.c.b16 %v2953, %v2947
    %v3368 = vpack.c.b16 %v2954, %v2948
    %v3369 = vpack.c.b16 %v2955, %v2949
    %v3370 = vpack.c.b16 %v2956, %v2950
    %v3371 = vpack.c.b16 %v2957, %v2951
    %v3372 = vpack.c.b16 %v2964, %v2958
    %v3373 = vpack.c.b16 %v2965, %v2959
    %v3374 = vpack.c.b16 %v2966, %v2960
    %v3375 = vpack.c.b16 %v2967, %v2961
    %v3376 = vpack.c.b16 %v2968, %v2962
    %v3377 = vpack.c.b16 %v2969, %v2963
    %v3378 = vpack.c.b16 %v2976, %v2970
    %v3379 = vpack.c.b16 %v2977, %v2971
    %v3380 = vpack.c.b16 %v2978, %v2972
    %v3381 = vpack.c.b16 %v2979, %v2973
    %v3382 = vpack.c.b16 %v2980, %v2974
    %v3383 = vpack.c.b16 %v2981, %v2975
    %v3384 = vpack.c.b16 %v2988, %v2982
    %v3385 = vpack.c.b16 %v2989, %v2983
    %v3386 = vpack.c.b16 %v2990, %v2984
    %v3387 = vpack.c.b16 %v2991, %v2985
    %v3388 = vpack.c.b16 %v2992, %v2986
    %v3389 = vpack.c.b16 %v2993, %v2987
    %v3390 = vpack.c.b16 %v3000, %v2994
    %v3391 = vpack.c.b16 %v3001, %v2995
    %v3392 = vpack.c.b16 %v3002, %v2996
    %v3393 = vpack.c.b16 %v3003, %v2997
    %v3394 = vpack.c.b16 %v3004, %v2998
    %v3395 = vpack.c.b16 %v3005, %v2999
    %v3396 = vpack.c.b16 %v3012, %v3006
    %v3397 = vpack.c.b16 %v3013, %v3007
    %v3398 = vpack.c.b16 %v3014, %v3008
    %v3399 = vpack.c.b16 %v3015, %v3009
    %v3400 = vpack.c.b16 %v3016, %v3010
    %v3401 = vpack.c.b16 %v3017, %v3011
    %v3402 = vpack.c.b16 %v3024, %v3018
    %v3403 = vpack.c.b16 %v3025, %v3019
    %v3404 = vpack.c.b16 %v3026, %v3020
    %v3405 = vpack.c.b16 %v3027, %v3021
    %v3406 = vpack.c.b16 %v3028, %v3022
    %v3407 = vpack.c.b16 %v3029, %v3023
    %v3408 = vpack.c.b16 %v3036, %v3030
    %v3409 = vpack.c.b16 %v3037, %v3031
    %v3410 = vpack.c.b16 %v3038, %v3032
    %v3411 = vpack.c.b16 %v3039, %v3033
    %v3412 = vpack.c.b16 %v3040, %v3034
    %v3413 = vpack.c.b16 %v3041, %v3035
    %v3414 = vpack.c.b16 %v3048, %v3042
    %v3415 = vpack.c.b16 %v3049, %v3043
    %v3416 = vpack.c.b16 %v3050, %v3044
    %v3417 = vpack.c.b16 %v3051, %v3045
    %v3418 = vpack.c.b16 %v3052, %v3046
    %v3419 = vpack.c.b16 %v3053, %v3047
    %v3420 = vpack.c.b16 %v3060, %v3054
    %v3421 = vpack.c.b16 %v3061, %v3055
    %v3422 = vpack.c.b16 %v3062, %v3056
    %v3423 = vpack.c.b16 %v3063, %v3057
    %v3424 = vpack.c.b16 %v3064, %v3058
    %v3425 = vpack.c.b16 %v3065, %v3059
    %v3426 = vpack.c.b16 %v3072, %v3066
    %v3427 = vpack.c.b16 %v3073, %v3067
    %v3428 = vpack.c.b16 %v3074, %v3068
    %v3429 = vpack.c.b16 %v3075, %v3069
    %v3430 = vpack.c.b16 %v3076, %v3070
    %v3431 = vpack.c.b16 %v3077, %v3071
    %v3432 = vpack.c.b16 %v3084, %v3078
    %v3433 = vpack.c.b16 %v3085, %v3079
    %v3434 = vpack.c.b16 %v3086, %v3080
    %v3435 = vpack.c.b16 %v3087, %v3081
    %v3436 = vpack.c.b16 %v3088, %v3082
    %v3437 = vpack.c.b16 %v3089, %v3083
    %v3438 = vpack.c.b16 %v3096, %v3090
    %v3439 = vpack.c.b16 %v3097, %v3091
    %v3440 = vpack.c.b16 %v3098, %v3092
    %v3441 = vpack.c.b16 %v3099, %v3093
    %v3442 = vpack.c.b16 %v3100, %v3094
    %v3443 = vpack.c.b16 %v3101, %v3095
    %v3444 = vpack.c.b16 %v3102, %v3102
    %v3445 = vpack.c.b16 %v3103, %v3103
    %v3446 = vpack.c.b16 %v3104, %v3104
    %v3447 = vpack.c.b16 %v3105, %v3105
    %v3448 = vpack.c.b16 %v3106, %v3106
    %v3449 = vpack.c.b16 %v3107, %v3107
    %v3787 = vsel %vm1379, %v2059, 0
    %vm3789 = vcmask 1041408
    %v3791 = vsel %vm3789, %v3444, 0
    %v3794 = vsel %vm3789, %v3445, 0
    %v3797 = vsel %vm3789, %v3446, 0
    %v3800 = vsel %vm3789, %v3447, 0
    %v3803 = vsel %vm3789, %v3448, 0
    %v3806 = vsel %vm3789, %v3449, 0
    %3808 = vmatprep.subr.bf16.mxu0 %v3151
    %3809 = vmatpush1.bf16.msra.mxu0 %v3150
    %3810 = vmatprep.subr.bf16.mxu0 %v3145
    %3811 = vmatpush1.bf16.msra.mxu0 %v3144
    %3812 = vmatprep.subr.bf16.mxu0 %v3139
    %3813 = vmatpush1.bf16.msra.mxu0 %v3138
    %3814 = vmatprep.subr.bf16.mxu0 %v3133
    %3815 = vmatpush1.bf16.msra.mxu0 %v3132
    %3816 = vmatprep.subr.bf16.mxu0 %v3127
    %3817 = vmatpush1.bf16.msra.mxu0 %v3126
    %3818 = vmatprep.subr.bf16.mxu0 %v3121
    %3819 = vmatpush1.bf16.msra.mxu0 %v3120
    %3820 = vmatprep.subr.bf16.mxu0 %v3115
    %3821 = vmatpush1.bf16.msra.mxu0 %v3114
    %3822 = vmatprep.subr.bf16.mxu0 %v3109
    %3823 = vmatpush1.bf16.msra.mxu0 %v3108
    %3824 = vmatprep.subr.bf16.mxu0 %v3199
    %3825 = vmatpush2.bf16.msra.mxu0 %v3198
    %3826 = vmatprep.subr.bf16.mxu0 %v3193
    %3827 = vmatpush2.bf16.msra.mxu0 %v3192
    %3828 = vmatprep.subr.bf16.mxu0 %v3187
    %3829 = vmatpush2.bf16.msra.mxu0 %v3186
    %3830 = vmatprep.subr.bf16.mxu0 %v3181
    %3831 = vmatpush2.bf16.msra.mxu0 %v3180
    %3832 = vmatprep.subr.bf16.mxu0 %v3175
    %3833 = vmatpush2.bf16.msra.mxu0 %v3174
    %3834 = vmatprep.subr.bf16.mxu0 %v3169
    %3835 = vmatpush2.bf16.msra.mxu0 %v3168
    %3836 = vmatprep.subr.bf16.mxu0 %v3163
    %3837 = vmatpush2.bf16.msra.mxu0 %v3162
    %3838 = vmatprep.subr.bf16.mxu0 %v3157
    %3839 = vmatpush2.bf16.msra.mxu0 %v3156
    %3840 = vmatprep.mubr.bf16.mxu0 %v2053
    %3841 = vmatmul.mubr.bf16.gmra.mxu0 %v2052
    %v3842 = vpop.f32.mrf.mxu0
    %v3843 = vadd.f32 %v2064, %v3842
    %v3844 = vpop.f32.mrf.mxu0
    %v3845 = vadd.f32 %v2068, %v3844
    %v3846 = vpop.f32.mrf.mxu0
    %v3847 = vpop.f32.mrf.mxu0
    %3848 = vdwg.mxu0
    %3849 = vmatprep.subr.bf16.mxu0 %v3247
    %3850 = vmatpush1.bf16.msra.mxu0 %v3246
    %3851 = vmatprep.subr.bf16.mxu0 %v3241
    %3852 = vmatpush1.bf16.msra.mxu0 %v3240
    %3853 = vmatprep.subr.bf16.mxu0 %v3235
    %3854 = vmatpush1.bf16.msra.mxu0 %v3234
    %3855 = vmatprep.subr.bf16.mxu0 %v3229
    %3856 = vmatpush1.bf16.msra.mxu0 %v3228
    %3857 = vmatprep.subr.bf16.mxu0 %v3223
    %3858 = vmatpush1.bf16.msra.mxu0 %v3222
    %3859 = vmatprep.subr.bf16.mxu0 %v3217
    %3860 = vmatpush1.bf16.msra.mxu0 %v3216
    %3861 = vmatprep.subr.bf16.mxu0 %v3211
    %3862 = vmatpush1.bf16.msra.mxu0 %v3210
    %3863 = vmatprep.subr.bf16.mxu0 %v3205
    %3864 = vmatpush1.bf16.msra.mxu0 %v3204
    %3865 = vmatprep.subr.bf16.mxu0 %v3295
    %3866 = vmatpush2.bf16.msra.mxu0 %v3294
    %3867 = vmatprep.subr.bf16.mxu0 %v3289
    %3868 = vmatpush2.bf16.msra.mxu0 %v3288
    %3869 = vmatprep.subr.bf16.mxu0 %v3283
    %3870 = vmatpush2.bf16.msra.mxu0 %v3282
    %3871 = vmatprep.subr.bf16.mxu0 %v3277
    %3872 = vmatpush2.bf16.msra.mxu0 %v3276
    %3873 = vmatprep.subr.bf16.mxu0 %v3271
    %3874 = vmatpush2.bf16.msra.mxu0 %v3270
    %3875 = vmatprep.subr.bf16.mxu0 %v3265
    %3876 = vmatpush2.bf16.msra.mxu0 %v3264
    %3877 = vmatprep.subr.bf16.mxu0 %v3259
    %3878 = vmatpush2.bf16.msra.mxu0 %v3258
    %3879 = vmatprep.subr.bf16.mxu0 %v3253
    %3880 = vmatpush2.bf16.msra.mxu0 %v3252
    %3881 = vmatprep.mubr.bf16.mxu0 %v2055
    %3882 = vmatmul.mubr.bf16.gmra.mxu0 %v2054
    %v3883 = vpop.f32.mrf.mxu0
    %v3884 = vadd.f32 %v3843, %v3883
    %v3885 = vpop.f32.mrf.mxu0
    %v3886 = vadd.f32 %v3845, %v3885
    %v3887 = vpop.f32.mrf.mxu0
    %v3888 = vpop.f32.mrf.mxu0
    %3889 = vdwg.mxu0
    %3890 = vmatprep.subr.bf16.mxu0 %v3343
    %3891 = vmatpush1.bf16.msra.mxu0 %v3342
    %3892 = vmatprep.subr.bf16.mxu0 %v3337
    %3893 = vmatpush1.bf16.msra.mxu0 %v3336
    %3894 = vmatprep.subr.bf16.mxu0 %v3331
    %3895 = vmatpush1.bf16.msra.mxu0 %v3330
    %3896 = vmatprep.subr.bf16.mxu0 %v3325
    %3897 = vmatpush1.bf16.msra.mxu0 %v3324
    %3898 = vmatprep.subr.bf16.mxu0 %v3319
    %3899 = vmatpush1.bf16.msra.mxu0 %v3318
    %3900 = vmatprep.subr.bf16.mxu0 %v3313
    %3901 = vmatpush1.bf16.msra.mxu0 %v3312
    %3902 = vmatprep.subr.bf16.mxu0 %v3307
    %3903 = vmatpush1.bf16.msra.mxu0 %v3306
    %3904 = vmatprep.subr.bf16.mxu0 %v3301
    %3905 = vmatpush1.bf16.msra.mxu0 %v3300
    %3906 = vmatprep.subr.bf16.mxu0 %v3391
    %3907 = vmatpush2.bf16.msra.mxu0 %v3390
    %3908 = vmatprep.subr.bf16.mxu0 %v3385
    %3909 = vmatpush2.bf16.msra.mxu0 %v3384
    %3910 = vmatprep.subr.bf16.mxu0 %v3379
    %3911 = vmatpush2.bf16.msra.mxu0 %v3378
    %3912 = vmatprep.subr.bf16.mxu0 %v3373
    %3913 = vmatpush2.bf16.msra.mxu0 %v3372
    %3914 = vmatprep.subr.bf16.mxu0 %v3367
    %3915 = vmatpush2.bf16.msra.mxu0 %v3366
    %3916 = vmatprep.subr.bf16.mxu0 %v3361
    %3917 = vmatpush2.bf16.msra.mxu0 %v3360
    %3918 = vmatprep.subr.bf16.mxu0 %v3355
    %3919 = vmatpush2.bf16.msra.mxu0 %v3354
    %3920 = vmatprep.subr.bf16.mxu0 %v3349
    %3921 = vmatpush2.bf16.msra.mxu0 %v3348
    %3922 = vmatprep.mubr.bf16.mxu0 %v2057
    %3923 = vmatmul.mubr.bf16.gmra.mxu0 %v2056
    %v3924 = vpop.f32.mrf.mxu0
    %v3925 = vadd.f32 %v3884, %v3924
    %v3926 = vpop.f32.mrf.mxu0
    %v3927 = vadd.f32 %v3886, %v3926
    %v3928 = vpop.f32.mrf.mxu0
    %v3929 = vpop.f32.mrf.mxu0
    %3930 = vdwg.mxu0
    %3931 = vmatprep.subr.bf16.mxu0 %v3439
    %3932 = vmatpush1.bf16.msra.mxu0 %v3438
    %3933 = vmatprep.subr.bf16.mxu0 %v3433
    %3934 = vmatpush1.bf16.msra.mxu0 %v3432
    %3935 = vmatprep.subr.bf16.mxu0 %v3427
    %3936 = vmatpush1.bf16.msra.mxu0 %v3426
    %3937 = vmatprep.subr.bf16.mxu0 %v3421
    %3938 = vmatpush1.bf16.msra.mxu0 %v3420
    %3939 = vmatprep.subr.bf16.mxu0 %v3415
    %3940 = vmatpush1.bf16.msra.mxu0 %v3414
    %3941 = vmatprep.subr.bf16.mxu0 %v3409
    %3942 = vmatpush1.bf16.msra.mxu0 %v3408
    %3943 = vmatprep.subr.bf16.mxu0 %v3403
    %3944 = vmatpush1.bf16.msra.mxu0 %v3402
    %3945 = vmatprep.subr.bf16.mxu0 %v3397
    %3946 = vmatpush1.bf16.msra.mxu0 %v3396
    %3947 = vmatprep.subr.bf16.mxu0 0
    %3948 = vmatpush2.bf16.msra.mxu0 0
    %3949 = vmatprep.subr.bf16.mxu0 0
    %3950 = vmatpush2.bf16.msra.mxu0 0
    %3951 = vmatprep.subr.bf16.mxu0 0
    %3952 = vmatpush2.bf16.msra.mxu0 0
    %3953 = vmatprep.subr.bf16.mxu0 0
    %3954 = vmatpush2.bf16.msra.mxu0 0
    %3955 = vmatprep.subr.bf16.mxu0 0
    %3956 = vmatpush2.bf16.msra.mxu0 0
    %3957 = vmatprep.subr.bf16.mxu0 0
    %3958 = vmatpush2.bf16.msra.mxu0 0
    %3959 = vmatprep.subr.bf16.mxu0 0
    %3960 = vmatpush2.bf16.msra.mxu0 0
    %3961 = vmatprep.subr.bf16.mxu0 %v3794
    %3962 = vmatpush2.bf16.msra.mxu0 %v3791
    %3963 = vmatprep.mubr.bf16.mxu0 %v3787
    %3964 = vmatmul.mubr.bf16.gmra.mxu0 %v2058
    %v3965 = vpop.f32.mrf.mxu0
    %v3966 = vadd.f32 %v3925, %v3965
    %v3967 = vpop.f32.mrf.mxu0
    %v3968 = vadd.f32 %v3927, %v3967
    %v3969 = vpop.f32.mrf.mxu0
    %v3970 = vpop.f32.mrf.mxu0
    %3971 = vdwg.mxu0
    %3972 = vmatprep.subr.bf16.mxu0 %v3153
    %3973 = vmatpush1.bf16.msra.mxu0 %v3152
    %3974 = vmatprep.subr.bf16.mxu0 %v3147
    %3975 = vmatpush1.bf16.msra.mxu0 %v3146
    %3976 = vmatprep.subr.bf16.mxu0 %v3141
    %3977 = vmatpush1.bf16.msra.mxu0 %v3140
    %3978 = vmatprep.subr.bf16.mxu0 %v3135
    %3979 = vmatpush1.bf16.msra.mxu0 %v3134
    %3980 = vmatprep.subr.bf16.mxu0 %v3129
    %3981 = vmatpush1.bf16.msra.mxu0 %v3128
    %3982 = vmatprep.subr.bf16.mxu0 %v3123
    %3983 = vmatpush1.bf16.msra.mxu0 %v3122
    %3984 = vmatprep.subr.bf16.mxu0 %v3117
    %3985 = vmatpush1.bf16.msra.mxu0 %v3116
    %3986 = vmatprep.subr.bf16.mxu0 %v3111
    %3987 = vmatpush1.bf16.msra.mxu0 %v3110
    %3988 = vmatprep.subr.bf16.mxu0 %v3201
    %3989 = vmatpush2.bf16.msra.mxu0 %v3200
    %3990 = vmatprep.subr.bf16.mxu0 %v3195
    %3991 = vmatpush2.bf16.msra.mxu0 %v3194
    %3992 = vmatprep.subr.bf16.mxu0 %v3189
    %3993 = vmatpush2.bf16.msra.mxu0 %v3188
    %3994 = vmatprep.subr.bf16.mxu0 %v3183
    %3995 = vmatpush2.bf16.msra.mxu0 %v3182
    %3996 = vmatprep.subr.bf16.mxu0 %v3177
    %3997 = vmatpush2.bf16.msra.mxu0 %v3176
    %3998 = vmatprep.subr.bf16.mxu0 %v3171
    %3999 = vmatpush2.bf16.msra.mxu0 %v3170
    %4000 = vmatprep.subr.bf16.mxu0 %v3165
    %4001 = vmatpush2.bf16.msra.mxu0 %v3164
    %4002 = vmatprep.subr.bf16.mxu0 %v3159
    %4003 = vmatpush2.bf16.msra.mxu0 %v3158
    %4004 = vmatprep.mubr.bf16.mxu0 %v2053
    %4005 = vmatmul.mubr.bf16.gmra.mxu0 %v2052
    %v4006 = vpop.f32.mrf.mxu0
    %v4007 = vadd.f32 %v2072, %v4006
    %v4008 = vpop.f32.mrf.mxu0
    %v4009 = vadd.f32 %v2076, %v4008
    %v4010 = vpop.f32.mrf.mxu0
    %v4011 = vpop.f32.mrf.mxu0
    %4012 = vdwg.mxu0
    %4013 = vmatprep.subr.bf16.mxu0 %v3249
    %4014 = vmatpush1.bf16.msra.mxu0 %v3248
    %4015 = vmatprep.subr.bf16.mxu0 %v3243
    %4016 = vmatpush1.bf16.msra.mxu0 %v3242
    %4017 = vmatprep.subr.bf16.mxu0 %v3237
    %4018 = vmatpush1.bf16.msra.mxu0 %v3236
    %4019 = vmatprep.subr.bf16.mxu0 %v3231
    %4020 = vmatpush1.bf16.msra.mxu0 %v3230
    %4021 = vmatprep.subr.bf16.mxu0 %v3225
    %4022 = vmatpush1.bf16.msra.mxu0 %v3224
    %4023 = vmatprep.subr.bf16.mxu0 %v3219
    %4024 = vmatpush1.bf16.msra.mxu0 %v3218
    %4025 = vmatprep.subr.bf16.mxu0 %v3213
    %4026 = vmatpush1.bf16.msra.mxu0 %v3212
    %4027 = vmatprep.subr.bf16.mxu0 %v3207
    %4028 = vmatpush1.bf16.msra.mxu0 %v3206
    %4029 = vmatprep.subr.bf16.mxu0 %v3297
    %4030 = vmatpush2.bf16.msra.mxu0 %v3296
    %4031 = vmatprep.subr.bf16.mxu0 %v3291
    %4032 = vmatpush2.bf16.msra.mxu0 %v3290
    %4033 = vmatprep.subr.bf16.mxu0 %v3285
    %4034 = vmatpush2.bf16.msra.mxu0 %v3284
    %4035 = vmatprep.subr.bf16.mxu0 %v3279
    %4036 = vmatpush2.bf16.msra.mxu0 %v3278
    %4037 = vmatprep.subr.bf16.mxu0 %v3273
    %4038 = vmatpush2.bf16.msra.mxu0 %v3272
    %4039 = vmatprep.subr.bf16.mxu0 %v3267
    %4040 = vmatpush2.bf16.msra.mxu0 %v3266
    %4041 = vmatprep.subr.bf16.mxu0 %v3261
    %4042 = vmatpush2.bf16.msra.mxu0 %v3260
    %4043 = vmatprep.subr.bf16.mxu0 %v3255
    %4044 = vmatpush2.bf16.msra.mxu0 %v3254
    %4045 = vmatprep.mubr.bf16.mxu0 %v2055
    %4046 = vmatmul.mubr.bf16.gmra.mxu0 %v2054
    %v4047 = vpop.f32.mrf.mxu0
    %v4048 = vadd.f32 %v4007, %v4047
    %v4049 = vpop.f32.mrf.mxu0
    %v4050 = vadd.f32 %v4009, %v4049
    %v4051 = vpop.f32.mrf.mxu0
    %v4052 = vpop.f32.mrf.mxu0
    %4053 = vdwg.mxu0
    %4054 = vmatprep.subr.bf16.mxu0 %v3345
    %4055 = vmatpush1.bf16.msra.mxu0 %v3344
    %4056 = vmatprep.subr.bf16.mxu0 %v3339
    %4057 = vmatpush1.bf16.msra.mxu0 %v3338
    %4058 = vmatprep.subr.bf16.mxu0 %v3333
    %4059 = vmatpush1.bf16.msra.mxu0 %v3332
    %4060 = vmatprep.subr.bf16.mxu0 %v3327
    %4061 = vmatpush1.bf16.msra.mxu0 %v3326
    %4062 = vmatprep.subr.bf16.mxu0 %v3321
    %4063 = vmatpush1.bf16.msra.mxu0 %v3320
    %4064 = vmatprep.subr.bf16.mxu0 %v3315
    %4065 = vmatpush1.bf16.msra.mxu0 %v3314
    %4066 = vmatprep.subr.bf16.mxu0 %v3309
    %4067 = vmatpush1.bf16.msra.mxu0 %v3308
    %4068 = vmatprep.subr.bf16.mxu0 %v3303
    %4069 = vmatpush1.bf16.msra.mxu0 %v3302
    %4070 = vmatprep.subr.bf16.mxu0 %v3393
    %4071 = vmatpush2.bf16.msra.mxu0 %v3392
    %4072 = vmatprep.subr.bf16.mxu0 %v3387
    %4073 = vmatpush2.bf16.msra.mxu0 %v3386
    %4074 = vmatprep.subr.bf16.mxu0 %v3381
    %4075 = vmatpush2.bf16.msra.mxu0 %v3380
    %4076 = vmatprep.subr.bf16.mxu0 %v3375
    %4077 = vmatpush2.bf16.msra.mxu0 %v3374
    %4078 = vmatprep.subr.bf16.mxu0 %v3369
    %4079 = vmatpush2.bf16.msra.mxu0 %v3368
    %4080 = vmatprep.subr.bf16.mxu0 %v3363
    %4081 = vmatpush2.bf16.msra.mxu0 %v3362
    %4082 = vmatprep.subr.bf16.mxu0 %v3357
    %4083 = vmatpush2.bf16.msra.mxu0 %v3356
    %4084 = vmatprep.subr.bf16.mxu0 %v3351
    %4085 = vmatpush2.bf16.msra.mxu0 %v3350
    %4086 = vmatprep.mubr.bf16.mxu0 %v2057
    %4087 = vmatmul.mubr.bf16.gmra.mxu0 %v2056
    %v4088 = vpop.f32.mrf.mxu0
    %v4089 = vadd.f32 %v4048, %v4088
    %v4090 = vpop.f32.mrf.mxu0
    %v4091 = vadd.f32 %v4050, %v4090
    %v4092 = vpop.f32.mrf.mxu0
    %v4093 = vpop.f32.mrf.mxu0
    %4094 = vdwg.mxu0
    %4095 = vmatprep.subr.bf16.mxu0 %v3441
    %4096 = vmatpush1.bf16.msra.mxu0 %v3440
    %4097 = vmatprep.subr.bf16.mxu0 %v3435
    %4098 = vmatpush1.bf16.msra.mxu0 %v3434
    %4099 = vmatprep.subr.bf16.mxu0 %v3429
    %4100 = vmatpush1.bf16.msra.mxu0 %v3428
    %4101 = vmatprep.subr.bf16.mxu0 %v3423
    %4102 = vmatpush1.bf16.msra.mxu0 %v3422
    %4103 = vmatprep.subr.bf16.mxu0 %v3417
    %4104 = vmatpush1.bf16.msra.mxu0 %v3416
    %4105 = vmatprep.subr.bf16.mxu0 %v3411
    %4106 = vmatpush1.bf16.msra.mxu0 %v3410
    %4107 = vmatprep.subr.bf16.mxu0 %v3405
    %4108 = vmatpush1.bf16.msra.mxu0 %v3404
    %4109 = vmatprep.subr.bf16.mxu0 %v3399
    %4110 = vmatpush1.bf16.msra.mxu0 %v3398
    %4111 = vmatprep.subr.bf16.mxu0 0
    %4112 = vmatpush2.bf16.msra.mxu0 0
    %4113 = vmatprep.subr.bf16.mxu0 0
    %4114 = vmatpush2.bf16.msra.mxu0 0
    %4115 = vmatprep.subr.bf16.mxu0 0
    %4116 = vmatpush2.bf16.msra.mxu0 0
    %4117 = vmatprep.subr.bf16.mxu0 0
    %4118 = vmatpush2.bf16.msra.mxu0 0
    %4119 = vmatprep.subr.bf16.mxu0 0
    %4120 = vmatpush2.bf16.msra.mxu0 0
    %4121 = vmatprep.subr.bf16.mxu0 0
    %4122 = vmatpush2.bf16.msra.mxu0 0
    %4123 = vmatprep.subr.bf16.mxu0 0
    %4124 = vmatpush2.bf16.msra.mxu0 0
    %4125 = vmatprep.subr.bf16.mxu0 %v3800
    %4126 = vmatpush2.bf16.msra.mxu0 %v3797
    %4127 = vmatprep.mubr.bf16.mxu0 %v3787
    %4128 = vmatmul.mubr.bf16.gmra.mxu0 %v2058
    %v4129 = vpop.f32.mrf.mxu0
    %v4130 = vadd.f32 %v4089, %v4129
    %v4131 = vpop.f32.mrf.mxu0
    %v4132 = vadd.f32 %v4091, %v4131
    %v4133 = vpop.f32.mrf.mxu0
    %v4134 = vpop.f32.mrf.mxu0
    %4135 = vdwg.mxu0
    %4136 = vmatprep.subr.bf16.mxu0 %v3155
    %4137 = vmatpush1.bf16.msra.mxu0 %v3154
    %4138 = vmatprep.subr.bf16.mxu0 %v3149
    %4139 = vmatpush1.bf16.msra.mxu0 %v3148
    %4140 = vmatprep.subr.bf16.mxu0 %v3143
    %4141 = vmatpush1.bf16.msra.mxu0 %v3142
    %4142 = vmatprep.subr.bf16.mxu0 %v3137
    %4143 = vmatpush1.bf16.msra.mxu0 %v3136
    %4144 = vmatprep.subr.bf16.mxu0 %v3131
    %4145 = vmatpush1.bf16.msra.mxu0 %v3130
    %4146 = vmatprep.subr.bf16.mxu0 %v3125
    %4147 = vmatpush1.bf16.msra.mxu0 %v3124
    %4148 = vmatprep.subr.bf16.mxu0 %v3119
    %4149 = vmatpush1.bf16.msra.mxu0 %v3118
    %4150 = vmatprep.subr.bf16.mxu0 %v3113
    %4151 = vmatpush1.bf16.msra.mxu0 %v3112
    %4152 = vmatprep.subr.bf16.mxu0 %v3203
    %4153 = vmatpush2.bf16.msra.mxu0 %v3202
    %4154 = vmatprep.subr.bf16.mxu0 %v3197
    %4155 = vmatpush2.bf16.msra.mxu0 %v3196
    %4156 = vmatprep.subr.bf16.mxu0 %v3191
    %4157 = vmatpush2.bf16.msra.mxu0 %v3190
    %4158 = vmatprep.subr.bf16.mxu0 %v3185
    %4159 = vmatpush2.bf16.msra.mxu0 %v3184
    %4160 = vmatprep.subr.bf16.mxu0 %v3179
    %4161 = vmatpush2.bf16.msra.mxu0 %v3178
    %4162 = vmatprep.subr.bf16.mxu0 %v3173
    %4163 = vmatpush2.bf16.msra.mxu0 %v3172
    %4164 = vmatprep.subr.bf16.mxu0 %v3167
    %4165 = vmatpush2.bf16.msra.mxu0 %v3166
    %4166 = vmatprep.subr.bf16.mxu0 %v3161
    %4167 = vmatpush2.bf16.msra.mxu0 %v3160
    %4168 = vmatprep.mubr.bf16.mxu0 %v2053
    %4169 = vmatmul.mubr.bf16.gmra.mxu0 %v2052
    %v4170 = vpop.f32.mrf.mxu0
    %v4171 = vadd.f32 %v2080, %v4170
    %v4172 = vpop.f32.mrf.mxu0
    %v4173 = vadd.f32 %v2084, %v4172
    %v4174 = vpop.f32.mrf.mxu0
    %v4175 = vpop.f32.mrf.mxu0
    %4176 = vdwg.mxu0
    %4177 = vmatprep.subr.bf16.mxu0 %v3251
    %4178 = vmatpush1.bf16.msra.mxu0 %v3250
    %4179 = vmatprep.subr.bf16.mxu0 %v3245
    %4180 = vmatpush1.bf16.msra.mxu0 %v3244
    %4181 = vmatprep.subr.bf16.mxu0 %v3239
    %4182 = vmatpush1.bf16.msra.mxu0 %v3238
    %4183 = vmatprep.subr.bf16.mxu0 %v3233
    %4184 = vmatpush1.bf16.msra.mxu0 %v3232
    %4185 = vmatprep.subr.bf16.mxu0 %v3227
    %4186 = vmatpush1.bf16.msra.mxu0 %v3226
    %4187 = vmatprep.subr.bf16.mxu0 %v3221
    %4188 = vmatpush1.bf16.msra.mxu0 %v3220
    %4189 = vmatprep.subr.bf16.mxu0 %v3215
    %4190 = vmatpush1.bf16.msra.mxu0 %v3214
    %4191 = vmatprep.subr.bf16.mxu0 %v3209
    %4192 = vmatpush1.bf16.msra.mxu0 %v3208
    %4193 = vmatprep.subr.bf16.mxu0 %v3299
    %4194 = vmatpush2.bf16.msra.mxu0 %v3298
    %4195 = vmatprep.subr.bf16.mxu0 %v3293
    %4196 = vmatpush2.bf16.msra.mxu0 %v3292
    %4197 = vmatprep.subr.bf16.mxu0 %v3287
    %4198 = vmatpush2.bf16.msra.mxu0 %v3286
    %4199 = vmatprep.subr.bf16.mxu0 %v3281
    %4200 = vmatpush2.bf16.msra.mxu0 %v3280
    %4201 = vmatprep.subr.bf16.mxu0 %v3275
    %4202 = vmatpush2.bf16.msra.mxu0 %v3274
    %4203 = vmatprep.subr.bf16.mxu0 %v3269
    %4204 = vmatpush2.bf16.msra.mxu0 %v3268
    %4205 = vmatprep.subr.bf16.mxu0 %v3263
    %4206 = vmatpush2.bf16.msra.mxu0 %v3262
    %4207 = vmatprep.subr.bf16.mxu0 %v3257
    %4208 = vmatpush2.bf16.msra.mxu0 %v3256
    %4209 = vmatprep.mubr.bf16.mxu0 %v2055
    %4210 = vmatmul.mubr.bf16.gmra.mxu0 %v2054
    %v4211 = vpop.f32.mrf.mxu0
    %v4212 = vadd.f32 %v4171, %v4211
    %v4213 = vpop.f32.mrf.mxu0
    %v4214 = vadd.f32 %v4173, %v4213
    %v4215 = vpop.f32.mrf.mxu0
    %v4216 = vpop.f32.mrf.mxu0
    %4217 = vdwg.mxu0
    %4218 = vmatprep.subr.bf16.mxu0 %v3347
    %4219 = vmatpush1.bf16.msra.mxu0 %v3346
    %4220 = vmatprep.subr.bf16.mxu0 %v3341
    %4221 = vmatpush1.bf16.msra.mxu0 %v3340
    %4222 = vmatprep.subr.bf16.mxu0 %v3335
    %4223 = vmatpush1.bf16.msra.mxu0 %v3334
    %4224 = vmatprep.subr.bf16.mxu0 %v3329
    %4225 = vmatpush1.bf16.msra.mxu0 %v3328
    %4226 = vmatprep.subr.bf16.mxu0 %v3323
    %4227 = vmatpush1.bf16.msra.mxu0 %v3322
    %4228 = vmatprep.subr.bf16.mxu0 %v3317
    %4229 = vmatpush1.bf16.msra.mxu0 %v3316
    %4230 = vmatprep.subr.bf16.mxu0 %v3311
    %4231 = vmatpush1.bf16.msra.mxu0 %v3310
    %4232 = vmatprep.subr.bf16.mxu0 %v3305
    %4233 = vmatpush1.bf16.msra.mxu0 %v3304
    %4234 = vmatprep.subr.bf16.mxu0 %v3395
    %4235 = vmatpush2.bf16.msra.mxu0 %v3394
    %4236 = vmatprep.subr.bf16.mxu0 %v3389
    %4237 = vmatpush2.bf16.msra.mxu0 %v3388
    %4238 = vmatprep.subr.bf16.mxu0 %v3383
    %4239 = vmatpush2.bf16.msra.mxu0 %v3382
    %4240 = vmatprep.subr.bf16.mxu0 %v3377
    %4241 = vmatpush2.bf16.msra.mxu0 %v3376
    %4242 = vmatprep.subr.bf16.mxu0 %v3371
    %4243 = vmatpush2.bf16.msra.mxu0 %v3370
    %4244 = vmatprep.subr.bf16.mxu0 %v3365
    %4245 = vmatpush2.bf16.msra.mxu0 %v3364
    %4246 = vmatprep.subr.bf16.mxu0 %v3359
    %4247 = vmatpush2.bf16.msra.mxu0 %v3358
    %4248 = vmatprep.subr.bf16.mxu0 %v3353
    %4249 = vmatpush2.bf16.msra.mxu0 %v3352
    %4250 = vmatprep.mubr.bf16.mxu0 %v2057
    %4251 = vmatmul.mubr.bf16.gmra.mxu0 %v2056
    %v4252 = vpop.f32.mrf.mxu0
    %v4253 = vadd.f32 %v4212, %v4252
    %v4254 = vpop.f32.mrf.mxu0
    %v4255 = vadd.f32 %v4214, %v4254
    %v4256 = vpop.f32.mrf.mxu0
    %v4257 = vpop.f32.mrf.mxu0
    %4258 = vdwg.mxu0
    %4259 = vmatprep.subr.bf16.mxu0 %v3443
    %4260 = vmatpush1.bf16.msra.mxu0 %v3442
    %4261 = vmatprep.subr.bf16.mxu0 %v3437
    %4262 = vmatpush1.bf16.msra.mxu0 %v3436
    %4263 = vmatprep.subr.bf16.mxu0 %v3431
    %4264 = vmatpush1.bf16.msra.mxu0 %v3430
    %4265 = vmatprep.subr.bf16.mxu0 %v3425
    %4266 = vmatpush1.bf16.msra.mxu0 %v3424
    %4267 = vmatprep.subr.bf16.mxu0 %v3419
    %4268 = vmatpush1.bf16.msra.mxu0 %v3418
    %4269 = vmatprep.subr.bf16.mxu0 %v3413
    %4270 = vmatpush1.bf16.msra.mxu0 %v3412
    %4271 = vmatprep.subr.bf16.mxu0 %v3407
    %4272 = vmatpush1.bf16.msra.mxu0 %v3406
    %4273 = vmatprep.subr.bf16.mxu0 %v3401
    %4274 = vmatpush1.bf16.msra.mxu0 %v3400
    %4275 = vmatprep.subr.bf16.mxu0 0
    %4276 = vmatpush2.bf16.msra.mxu0 0
    %4277 = vmatprep.subr.bf16.mxu0 0
    %4278 = vmatpush2.bf16.msra.mxu0 0
    %4279 = vmatprep.subr.bf16.mxu0 0
    %4280 = vmatpush2.bf16.msra.mxu0 0
    %4281 = vmatprep.subr.bf16.mxu0 0
    %4282 = vmatpush2.bf16.msra.mxu0 0
    %4283 = vmatprep.subr.bf16.mxu0 0
    %4284 = vmatpush2.bf16.msra.mxu0 0
    %4285 = vmatprep.subr.bf16.mxu0 0
    %4286 = vmatpush2.bf16.msra.mxu0 0
    %4287 = vmatprep.subr.bf16.mxu0 0
    %4288 = vmatpush2.bf16.msra.mxu0 0
    %4289 = vmatprep.subr.bf16.mxu0 %v3806
    %4290 = vmatpush2.bf16.msra.mxu0 %v3803
    %4291 = vmatprep.mubr.bf16.mxu0 %v3787
    %4292 = vmatmul.mubr.bf16.gmra.mxu0 %v2058
    %v4293 = vpop.f32.mrf.mxu0
    %v4294 = vadd.f32 %v4253, %v4293
    %v4295 = vpop.f32.mrf.mxu0
    %v4296 = vadd.f32 %v4255, %v4295
    %v4297 = vpop.f32.mrf.mxu0
    %v4298 = vpop.f32.mrf.mxu0
    %4299 = vdwg.mxu0
    %v4300 = vmax.f32 %v3966, 0.0
    %v4301 = vmax.f32 %v3968, 0.0
    %v4302 = vmax.f32 %v4130, 0.0
    %v4303 = vmax.f32 %v4132, 0.0
    %v4304 = vmax.f32 %v4294, 0.0
    %v4305 = vmax.f32 %v4296, 0.0
    %v4306 = vrot.slane %v4300, 4
    %v4307 = vadd.f32 %v4300, %v4306
    %v4308 = vrot.slane %v4307, 2
    %v4309 = vadd.f32 %v4307, %v4308
    %v4310 = vrot.slane %v4309, 1
    %v4311 = vadd.f32 %v4309, %v4310
    %v4312 = vrot.slane %v4301, 4
    %v4313 = vadd.f32 %v4301, %v4312
    %v4314 = vrot.slane %v4313, 2
    %v4315 = vadd.f32 %v4313, %v4314
    %v4316 = vrot.slane %v4315, 1
    %v4317 = vadd.f32 %v4315, %v4316
    %v4318 = vrot.slane %v4302, 4
    %v4319 = vadd.f32 %v4302, %v4318
    %v4320 = vrot.slane %v4319, 2
    %v4321 = vadd.f32 %v4319, %v4320
    %v4322 = vrot.slane %v4321, 1
    %v4323 = vadd.f32 %v4321, %v4322
    %v4324 = vrot.slane %v4303, 4
    %v4325 = vadd.f32 %v4303, %v4324
    %v4326 = vrot.slane %v4325, 2
    %v4327 = vadd.f32 %v4325, %v4326
    %v4328 = vrot.slane %v4327, 1
    %v4329 = vadd.f32 %v4327, %v4328
    %v4330 = vrot.slane %v4304, 4
    %v4331 = vadd.f32 %v4304, %v4330
    %v4332 = vrot.slane %v4331, 2
    %v4333 = vadd.f32 %v4331, %v4332
    %v4334 = vrot.slane %v4333, 1
    %v4335 = vadd.f32 %v4333, %v4334
    %vm4336 = vcmask 490496
    %v4337 = vsel %vm4336, %v4305, 0.0
    %v4338 = vrot.slane %v4337, 4
    %v4339 = vadd.f32 %v4337, %v4338
    %v4340 = vrot.slane %v4339, 2
    %v4341 = vadd.f32 %v4339, %v4340
    %v4342 = vrot.slane %v4341, 1
    %v4343 = vadd.f32 %v4341, %v4342
    %v4344 = vmul.f32 %v4311, %v1387
    %v4345 = vmul.f32 %v4317, %v1387
    %v4346 = vmul.f32 %v4323, %v1387
    %v4347 = vmul.f32 %v4329, %v1387
    %v4348 = vmul.f32 %v4335, %v1387
    %v4349 = vmul.f32 %v4343, %v1387
    %v4350 = vsub.f32 %v4300, %v4344
    %v4351 = vsub.f32 %v4301, %v4345
    %v4352 = vsub.f32 %v4302, %v4346
    %v4353 = vsub.f32 %v4303, %v4347
    %v4354 = vsub.f32 %v4304, %v4348
    %v4355 = vsub.f32 %v4305, %v4349
    %v4356 = vmul.f32 %v4350, %v4350
    %v4357 = vmul.f32 %v4351, %v4351
    %v4358 = vmul.f32 %v4352, %v4352
    %v4359 = vmul.f32 %v4353, %v4353
    %v4360 = vmul.f32 %v4354, %v4354
    %v4361 = vmul.f32 %v4355, %v4355
    %v4362 = vrot.slane %v4356, 4
    %v4363 = vadd.f32 %v4356, %v4362
    %v4364 = vrot.slane %v4363, 2
    %v4365 = vadd.f32 %v4363, %v4364
    %v4366 = vrot.slane %v4365, 1
    %v4367 = vadd.f32 %v4365, %v4366
    %v4368 = vrot.slane %v4357, 4
    %v4369 = vadd.f32 %v4357, %v4368
    %v4370 = vrot.slane %v4369, 2
    %v4371 = vadd.f32 %v4369, %v4370
    %v4372 = vrot.slane %v4371, 1
    %v4373 = vadd.f32 %v4371, %v4372
    %v4374 = vrot.slane %v4358, 4
    %v4375 = vadd.f32 %v4358, %v4374
    %v4376 = vrot.slane %v4375, 2
    %v4377 = vadd.f32 %v4375, %v4376
    %v4378 = vrot.slane %v4377, 1
    %v4379 = vadd.f32 %v4377, %v4378
    %v4380 = vrot.slane %v4359, 4
    %v4381 = vadd.f32 %v4359, %v4380
    %v4382 = vrot.slane %v4381, 2
    %v4383 = vadd.f32 %v4381, %v4382
    %v4384 = vrot.slane %v4383, 1
    %v4385 = vadd.f32 %v4383, %v4384
    %v4386 = vrot.slane %v4360, 4
    %v4387 = vadd.f32 %v4360, %v4386
    %v4388 = vrot.slane %v4387, 2
    %v4389 = vadd.f32 %v4387, %v4388
    %v4390 = vrot.slane %v4389, 1
    %v4391 = vadd.f32 %v4389, %v4390
    %v4392 = vsel %vm4336, %v4361, 0.0
    %v4393 = vrot.slane %v4392, 4
    %v4394 = vadd.f32 %v4392, %v4393
    %v4395 = vrot.slane %v4394, 2
    %v4396 = vadd.f32 %v4394, %v4395
    %v4397 = vrot.slane %v4396, 1
    %v4398 = vadd.f32 %v4396, %v4397
    %v4399 = vmul.f32 %v4367, %v1387
    %v4400 = vmul.f32 %v4373, %v1387
    %v4401 = vmul.f32 %v4379, %v1387
    %v4402 = vmul.f32 %v4385, %v1387
    %v4403 = vmul.f32 %v4391, %v1387
    %v4404 = vmul.f32 %v4398, %v1387
    %v4405 = vadd.f32 %v4399, 1e-05
    %v4406 = vadd.f32 %v4400, 1e-05
    %v4407 = vadd.f32 %v4401, 1e-05
    %v4408 = vadd.f32 %v4402, 1e-05
    %v4409 = vadd.f32 %v4403, 1e-05
    %v4410 = vadd.f32 %v4404, 1e-05
    %v4411 = vrsqrt.pop %v4405
    %v4412 = vrsqrt.pop %v4406
    %v4413 = vrsqrt.pop %v4407
    %v4414 = vrsqrt.pop %v4408
    %v4415 = vrsqrt.pop %v4409
    %v4416 = vrsqrt.pop %v4410
    %v4423 = vcombine.low %v4411, %v4412
    %v4424 = vcombine.low %v4413, %v4414
    %v4425 = vcombine.low %v4415, %v4416
    %v4427 = vunpack.c.l.s4 1966171168
    %v4428 = vunpack.c.0.s8 %v4427
    %v4429 = vlaneseq
    %v4430 = vshrl.u32 %v4429, 7
    %v4431 = vsub.s32 %v4428, %v4430
    %v4432 = vrot.slane %v4423, %v4431
    %v4434 = vunpack.c.l.s4 1966171168
    %v4435 = vunpack.c.0.s8 %v4434
    %v4436 = vlaneseq
    %v4437 = vshrl.u32 %v4436, 7
    %v4438 = vsub.s32 %v4435, %v4437
    %v4439 = vrot.slane %v4424, %v4438
    %v4441 = vunpack.c.l.s4 1966171168
    %v4442 = vunpack.c.0.s8 %v4441
    %v4443 = vlaneseq
    %v4444 = vshrl.u32 %v4443, 7
    %v4445 = vsub.s32 %v4442, %v4444
    %v4446 = vrot.slane %v4425, %v4445
    %v4447 = vcombine.low %v4432, %v4439
    %v4449 = vunpack.c.l.s4 1966171168
    %v4450 = vunpack.c.0.s8 %v4449
    %v4451 = vlaneseq
    %v4452 = vshrl.u32 %v4451, 7
    %v4453 = vsub.s32 %v4450, %v4452
    %v4454 = vrot.slane %v4447, %v4453
    %v4456 = vunpack.c.l.s4 1966171168
    %v4457 = vunpack.c.0.s8 %v4456
    %v4458 = vlaneseq
    %v4459 = vshrl.u32 %v4458, 7
    %v4460 = vsub.s32 %v4457, %v4459
    %v4461 = vrot.slane %v4446, %v4460
    %v4462 = vcombine.low %v4454, %v4461
    %v4464 = vmul.f32 %v724, %v4462
    %v4466 = vlaneseq
    %v4467 = vshrl.u32 %v4466, 7
    %v4468 = vsub.s32 0, %v4467
    %v4469 = vrot.slane %v4464, %v4468
    %v4470 = vlaneseq
    %v4471 = vshrl.u32 %v4470, 7
    %v4472 = vsub.s32 1, %v4471
    %v4473 = vrot.slane %v4464, %v4472
    %v4474 = vlaneseq
    %v4475 = vshrl.u32 %v4474, 7
    %v4476 = vsub.s32 2, %v4475
    %v4477 = vrot.slane %v4464, %v4476
    %v4478 = vlaneseq
    %v4479 = vshrl.u32 %v4478, 7
    %v4480 = vsub.s32 3, %v4479
    %v4481 = vrot.slane %v4464, %v4480
    %v4482 = vlaneseq
    %v4483 = vshrl.u32 %v4482, 7
    %v4484 = vsub.s32 4, %v4483
    %v4485 = vrot.slane %v4464, %v4484
    %v4486 = vlaneseq
    %v4487 = vshrl.u32 %v4486, 7
    %v4488 = vsub.s32 5, %v4487
    %v4489 = vrot.slane %v4464, %v4488
    %v4496 = vmul.f32 %v4344, %v4469
    %v4497 = vmul.f32 %v4345, %v4473
    %v4498 = vmul.f32 %v4346, %v4477
    %v4499 = vmul.f32 %v4347, %v4481
    %v4500 = vmul.f32 %v4348, %v4485
    %v4501 = vmul.f32 %v4349, %v4489
    %v4508 = vcombine.low %v4496, %v4497
    %v4509 = vcombine.low %v4498, %v4499
    %v4510 = vcombine.low %v4500, %v4501
    %v4512 = vunpack.c.l.s4 1966171168
    %v4513 = vunpack.c.0.s8 %v4512
    %v4514 = vlaneseq
    %v4515 = vshrl.u32 %v4514, 7
    %v4516 = vsub.s32 %v4513, %v4515
    %v4517 = vrot.slane %v4508, %v4516
    %v4519 = vunpack.c.l.s4 1966171168
    %v4520 = vunpack.c.0.s8 %v4519
    %v4521 = vlaneseq
    %v4522 = vshrl.u32 %v4521, 7
    %v4523 = vsub.s32 %v4520, %v4522
    %v4524 = vrot.slane %v4509, %v4523
    %v4526 = vunpack.c.l.s4 1966171168
    %v4527 = vunpack.c.0.s8 %v4526
    %v4528 = vlaneseq
    %v4529 = vshrl.u32 %v4528, 7
    %v4530 = vsub.s32 %v4527, %v4529
    %v4531 = vrot.slane %v4510, %v4530
    %v4532 = vcombine.low %v4517, %v4524
    %v4534 = vunpack.c.l.s4 1966171168
    %v4535 = vunpack.c.0.s8 %v4534
    %v4536 = vlaneseq
    %v4537 = vshrl.u32 %v4536, 7
    %v4538 = vsub.s32 %v4535, %v4537
    %v4539 = vrot.slane %v4532, %v4538
    %v4541 = vunpack.c.l.s4 1966171168
    %v4542 = vunpack.c.0.s8 %v4541
    %v4543 = vlaneseq
    %v4544 = vshrl.u32 %v4543, 7
    %v4545 = vsub.s32 %v4542, %v4544
    %v4546 = vrot.slane %v4531, %v4545
    %v4547 = vcombine.low %v4539, %v4546
    %v4549 = vsub.f32 %v728, %v4547
    %v4550 = vmul.f32 %v4300, %v4469
    %v4551 = vmul.f32 %v4301, %v4473
    %v4552 = vmul.f32 %v4302, %v4477
    %v4553 = vmul.f32 %v4303, %v4481
    %v4554 = vmul.f32 %v4304, %v4485
    %v4555 = vmul.f32 %v4305, %v4489
    %v4557 = vlaneseq
    %v4558 = vshrl.u32 %v4557, 7
    %v4559 = vsub.s32 0, %v4558
    %v4560 = vrot.slane %v4549, %v4559
    %v4561 = vlaneseq
    %v4562 = vshrl.u32 %v4561, 7
    %v4563 = vsub.s32 1, %v4562
    %v4564 = vrot.slane %v4549, %v4563
    %v4565 = vlaneseq
    %v4566 = vshrl.u32 %v4565, 7
    %v4567 = vsub.s32 2, %v4566
    %v4568 = vrot.slane %v4549, %v4567
    %v4569 = vlaneseq
    %v4570 = vshrl.u32 %v4569, 7
    %v4571 = vsub.s32 3, %v4570
    %v4572 = vrot.slane %v4549, %v4571
    %v4573 = vlaneseq
    %v4574 = vshrl.u32 %v4573, 7
    %v4575 = vsub.s32 4, %v4574
    %v4576 = vrot.slane %v4549, %v4575
    %v4577 = vlaneseq
    %v4578 = vshrl.u32 %v4577, 7
    %v4579 = vsub.s32 5, %v4578
    %v4580 = vrot.slane %v4549, %v4579
    %v4587 = vadd.f32 %v4550, %v4560
    %v4588 = vadd.f32 %v4551, %v4564
    %v4589 = vadd.f32 %v4552, %v4568
    %v4590 = vadd.f32 %v4553, %v4572
    %v4591 = vadd.f32 %v4554, %v4576
    %v4592 = vadd.f32 %v4555, %v4580
    %s4593 = smul.u32 4, 88
    %s4594 = smul.u32 %s4593, 4
    %s4595 = sshll.u32 %s4594, 4
    %4596 = dma.done %s57, %s4595
    %v4597 = vld [vmem:[#allocation3] sm:$0xff]
    %v4598 = vld [vmem:[#allocation3 + $0x8] sm:$0xff]
    %v4599 = vld [vmem:[#allocation3 + $0x10] sm:$0xff]
    %v4600 = vld [vmem:[#allocation3 + $0x18] sm:$0xff]
    %v4601 = vld [vmem:[#allocation3 + $0x20] sm:$0xff]
    %v4602 = vld [vmem:[#allocation3 + $0x28] sm:$0xff]
    %v4603 = vld [vmem:[#allocation3 + $0x30] sm:$0xff]
    %v4604 = vld [vmem:[#allocation3 + $0x38] sm:$0xff]
    %v4605 = vld [vmem:[#allocation3 + $0x40] sm:$0xff]
    %v4606 = vld [vmem:[#allocation3 + $0x48] sm:$0xff]
    %v4607 = vld [vmem:[#allocation3 + $0x50] sm:$0xff]
    %v4608 = vld [vmem:[#allocation3 + $0x58] sm:$0xff]
    %v4609 = vld [vmem:[#allocation3 + $0x60] sm:$0xff]
    %v4610 = vld [vmem:[#allocation3 + $0x68] sm:$0xff]
    %v4611 = vld [vmem:[#allocation3 + $0x70] sm:$0xff]
    %v4612 = vld [vmem:[#allocation3 + $0x78] sm:$0xff]
    %v4613 = vld [vmem:[#allocation3 + $0x80] sm:$0xff]
    %v4614 = vld [vmem:[#allocation3 + $0x88] sm:$0xff]
    %v4615 = vld [vmem:[#allocation3 + $0x90] sm:$0xff]
    %v4616 = vld [vmem:[#allocation3 + $0x98] sm:$0xff]
    %v4617 = vld [vmem:[#allocation3 + $0xa0] sm:$0xff]
    %v4618 = vld [vmem:[#allocation3 + $0xa8] sm:$0xff]
    %v4619 = vld [vmem:[#allocation3 + $0xb0] sm:$0xff]
    %v4620 = vld [vmem:[#allocation3 + $0xb8] sm:$0xff]
    %v4621 = vld [vmem:[#allocation3 + $0xc0] sm:$0xff]
    %v4622 = vld [vmem:[#allocation3 + $0xc8] sm:$0xff]
    %v4623 = vld [vmem:[#allocation3 + $0xd0] sm:$0xff]
    %v4624 = vld [vmem:[#allocation3 + $0xd8] sm:$0xff]
    %v4625 = vld [vmem:[#allocation3 + $0xe0] sm:$0xff]
    %v4626 = vld [vmem:[#allocation3 + $0xe8] sm:$0xff]
    %v4627 = vld [vmem:[#allocation3 + $0xf0] sm:$0xff]
    %v4628 = vld [vmem:[#allocation3 + $0xf8] sm:$0xff]
    %v4629 = vld [vmem:[#allocation3 + $0x100] sm:$0xff]
    %v4630 = vld [vmem:[#allocation3 + $0x108] sm:$0xff]
    %v4631 = vld [vmem:[#allocation3 + $0x110] sm:$0xff]
    %v4632 = vld [vmem:[#allocation3 + $0x118] sm:$0xff]
    %v4633 = vld [vmem:[#allocation3 + $0x120] sm:$0xff]
    %v4634 = vld [vmem:[#allocation3 + $0x128] sm:$0xff]
    %v4635 = vld [vmem:[#allocation3 + $0x130] sm:$0xff]
    %v4636 = vld [vmem:[#allocation3 + $0x138] sm:$0xff]
    %v4637 = vld [vmem:[#allocation3 + $0x140] sm:$0xff]
    %v4638 = vld [vmem:[#allocation3 + $0x148] sm:$0xff]
    %v4639 = vld [vmem:[#allocation3 + $0x150] sm:$0xff]
    %v4640 = vld [vmem:[#allocation3 + $0x158] sm:$0xff]
    %v4641 = vld [vmem:[#allocation3 + $0x160] sm:$0xff]
    %v4642 = vld [vmem:[#allocation3 + $0x168] sm:$0xff]
    %v4643 = vld [vmem:[#allocation3 + $0x170] sm:$0xff]
    %v4644 = vld [vmem:[#allocation3 + $0x178] sm:$0xff]
    %v4645 = vld [vmem:[#allocation3 + $0x180] sm:$0xff]
    %v4646 = vld [vmem:[#allocation3 + $0x188] sm:$0xff]
    %v4647 = vld [vmem:[#allocation3 + $0x190] sm:$0xff]
    %v4648 = vld [vmem:[#allocation3 + $0x198] sm:$0xff]
    %v4649 = vld [vmem:[#allocation3 + $0x1a0] sm:$0xff]
    %v4650 = vld [vmem:[#allocation3 + $0x1a8] sm:$0xff]
    %v4651 = vld [vmem:[#allocation3 + $0x1b0] sm:$0xff]
    %v4652 = vld [vmem:[#allocation3 + $0x1b8] sm:$0xff]
    %v4653 = vld [vmem:[#allocation3 + $0x1c0] sm:$0xff]
    %v4654 = vld [vmem:[#allocation3 + $0x1c8] sm:$0xff]
    %v4655 = vld [vmem:[#allocation3 + $0x1d0] sm:$0xff]
    %v4656 = vld [vmem:[#allocation3 + $0x1d8] sm:$0xff]
    %v4657 = vld [vmem:[#allocation3 + $0x1e0] sm:$0xff]
    %v4658 = vld [vmem:[#allocation3 + $0x1e8] sm:$0xff]
    %v4659 = vld [vmem:[#allocation3 + $0x1f0] sm:$0xff]
    %v4660 = vld [vmem:[#allocation3 + $0x1f8] sm:$0xff]
    %v4661 = vld [vmem:[#allocation3 + $0x200] sm:$0xff]
    %v4662 = vld [vmem:[#allocation3 + $0x208] sm:$0xff]
    %v4663 = vld [vmem:[#allocation3 + $0x210] sm:$0xff]
    %v4664 = vld [vmem:[#allocation3 + $0x218] sm:$0xff]
    %v4665 = vld [vmem:[#allocation3 + $0x220] sm:$0xff]
    %v4666 = vld [vmem:[#allocation3 + $0x228] sm:$0xff]
    %v4667 = vld [vmem:[#allocation3 + $0x230] sm:$0xff]
    %v4668 = vld [vmem:[#allocation3 + $0x238] sm:$0xff]
    %v4669 = vld [vmem:[#allocation3 + $0x240] sm:$0xff]
    %v4670 = vld [vmem:[#allocation3 + $0x248] sm:$0xff]
    %v4671 = vld [vmem:[#allocation3 + $0x250] sm:$0xff]
    %v4672 = vld [vmem:[#allocation3 + $0x258] sm:$0xff]
    %v4673 = vld [vmem:[#allocation3 + $0x260] sm:$0xff]
    %v4674 = vld [vmem:[#allocation3 + $0x268] sm:$0xff]
    %v4675 = vld [vmem:[#allocation3 + $0x270] sm:$0xff]
    %v4676 = vld [vmem:[#allocation3 + $0x278] sm:$0xff]
    %v4677 = vld [vmem:[#allocation3 + $0x280] sm:$0xff]
    %v4678 = vld [vmem:[#allocation3 + $0x288] sm:$0xff]
    %v4679 = vld [vmem:[#allocation3 + $0x290] sm:$0xff]
    %v4680 = vld [vmem:[#allocation3 + $0x298] sm:$0xff]
    %v4681 = vld [vmem:[#allocation3 + $0x2a0] sm:$0xff]
    %v4682 = vld [vmem:[#allocation3 + $0x2a8] sm:$0xff]
    %v4683 = vld [vmem:[#allocation3 + $0x2b0] sm:$0xff]
    %v4684 = vld [vmem:[#allocation3 + $0x2b8] sm:$0xff]
    %v4685 = vld [vmem:[#allocation3 + $0x2c0] sm:$0xff]
    %v4686 = vld [vmem:[#allocation3 + $0x2c8] sm:$0xff]
    %v4687 = vld [vmem:[#allocation3 + $0x2d0] sm:$0xff]
    %v4688 = vld [vmem:[#allocation3 + $0x2d8] sm:$0xff]
    %v4689 = vld [vmem:[#allocation3 + $0x2e0] sm:$0xff]
    %v4690 = vld [vmem:[#allocation3 + $0x2e8] sm:$0xff]
    %v4691 = vld [vmem:[#allocation3 + $0x2f0] sm:$0xff]
    %v4692 = vld [vmem:[#allocation3 + $0x2f8] sm:$0xff]
    %v4693 = vld [vmem:[#allocation3 + $0x300] sm:$0xff]
    %v4694 = vld [vmem:[#allocation3 + $0x308] sm:$0xff]
    %v4695 = vld [vmem:[#allocation3 + $0x310] sm:$0xff]
    %v4696 = vld [vmem:[#allocation3 + $0x318] sm:$0xff]
    %v4697 = vld [vmem:[#allocation3 + $0x320] sm:$0xff]
    %v4698 = vld [vmem:[#allocation3 + $0x328] sm:$0xff]
    %v4699 = vld [vmem:[#allocation3 + $0x330] sm:$0xff]
    %v4700 = vld [vmem:[#allocation3 + $0x338] sm:$0xff]
    %v4701 = vld [vmem:[#allocation3 + $0x340] sm:$0xff]
    %v4702 = vld [vmem:[#allocation3 + $0x348] sm:$0xff]
    %v4703 = vld [vmem:[#allocation3 + $0x350] sm:$0xff]
    %v4704 = vld [vmem:[#allocation3 + $0x358] sm:$0xff]
    %v4705 = vld [vmem:[#allocation3 + $0x360] sm:$0xff]
    %v4706 = vld [vmem:[#allocation3 + $0x368] sm:$0xff]
    %v4707 = vld [vmem:[#allocation3 + $0x370] sm:$0xff]
    %v4708 = vld [vmem:[#allocation3 + $0x378] sm:$0xff]
    %v4709 = vld [vmem:[#allocation3 + $0x380] sm:$0xff]
    %v4710 = vld [vmem:[#allocation3 + $0x388] sm:$0xff]
    %v4711 = vld [vmem:[#allocation3 + $0x390] sm:$0xff]
    %v4712 = vld [vmem:[#allocation3 + $0x398] sm:$0xff]
    %v4713 = vld [vmem:[#allocation3 + $0x3a0] sm:$0xff]
    %v4714 = vld [vmem:[#allocation3 + $0x3a8] sm:$0xff]
    %v4715 = vld [vmem:[#allocation3 + $0x3b0] sm:$0xff]
    %v4716 = vld [vmem:[#allocation3 + $0x3b8] sm:$0xff]
    %v4717 = vld [vmem:[#allocation3 + $0x3c0] sm:$0xff]
    %v4718 = vld [vmem:[#allocation3 + $0x3c8] sm:$0xff]
    %v4719 = vld [vmem:[#allocation3 + $0x3d0] sm:$0xff]
    %v4720 = vld [vmem:[#allocation3 + $0x3d8] sm:$0xff]
    %v4721 = vld [vmem:[#allocation3 + $0x3e0] sm:$0xff]
    %v4722 = vld [vmem:[#allocation3 + $0x3e8] sm:$0xff]
    %v4723 = vld [vmem:[#allocation3 + $0x3f0] sm:$0xff]
    %v4724 = vld [vmem:[#allocation3 + $0x3f8] sm:$0xff]
    %v4725 = vld [vmem:[#allocation3 + $0x400] sm:$0xff]
    %v4726 = vld [vmem:[#allocation3 + $0x408] sm:$0xff]
    %v4727 = vld [vmem:[#allocation3 + $0x410] sm:$0xff]
    %v4728 = vld [vmem:[#allocation3 + $0x418] sm:$0xff]
    %v4729 = vld [vmem:[#allocation3 + $0x420] sm:$0xff]
    %v4730 = vld [vmem:[#allocation3 + $0x428] sm:$0xff]
    %v4731 = vld [vmem:[#allocation3 + $0x430] sm:$0xff]
    %v4732 = vld [vmem:[#allocation3 + $0x438] sm:$0xff]
    %v4733 = vld [vmem:[#allocation3 + $0x440] sm:$0xff]
    %v4734 = vld [vmem:[#allocation3 + $0x448] sm:$0xff]
    %v4735 = vld [vmem:[#allocation3 + $0x450] sm:$0xff]
    %v4736 = vld [vmem:[#allocation3 + $0x458] sm:$0xff]
    %v4737 = vld [vmem:[#allocation3 + $0x460] sm:$0xff]
    %v4738 = vld [vmem:[#allocation3 + $0x468] sm:$0xff]
    %v4739 = vld [vmem:[#allocation3 + $0x470] sm:$0xff]
    %v4740 = vld [vmem:[#allocation3 + $0x478] sm:$0xff]
    %v4741 = vld [vmem:[#allocation3 + $0x480] sm:$0xff]
    %v4742 = vld [vmem:[#allocation3 + $0x488] sm:$0xff]
    %v4743 = vld [vmem:[#allocation3 + $0x490] sm:$0xff]
    %v4744 = vld [vmem:[#allocation3 + $0x498] sm:$0xff]
    %v4745 = vld [vmem:[#allocation3 + $0x4a0] sm:$0xff]
    %v4746 = vld [vmem:[#allocation3 + $0x4a8] sm:$0xff]
    %v4747 = vld [vmem:[#allocation3 + $0x4b0] sm:$0xff]
    %v4748 = vld [vmem:[#allocation3 + $0x4b8] sm:$0xff]
    %v4749 = vld [vmem:[#allocation3 + $0x4c0] sm:$0xff]
    %v4750 = vld [vmem:[#allocation3 + $0x4c8] sm:$0xff]
    %v4751 = vld [vmem:[#allocation3 + $0x4d0] sm:$0xff]
    %v4752 = vld [vmem:[#allocation3 + $0x4d8] sm:$0xff]
    %v4753 = vld [vmem:[#allocation3 + $0x4e0] sm:$0xff]
    %v4754 = vld [vmem:[#allocation3 + $0x4e8] sm:$0xff]
    %v4755 = vld [vmem:[#allocation3 + $0x4f0] sm:$0xff]
    %v4756 = vld [vmem:[#allocation3 + $0x4f8] sm:$0xff]
    %v4757 = vld [vmem:[#allocation3 + $0x500] sm:$0xff]
    %v4758 = vld [vmem:[#allocation3 + $0x508] sm:$0xff]
    %v4759 = vld [vmem:[#allocation3 + $0x510] sm:$0xff]
    %v4760 = vld [vmem:[#allocation3 + $0x518] sm:$0xff]
    %v4761 = vld [vmem:[#allocation3 + $0x520] sm:$0xff]
    %v4762 = vld [vmem:[#allocation3 + $0x528] sm:$0xff]
    %v4763 = vld [vmem:[#allocation3 + $0x530] sm:$0xff]
    %v4764 = vld [vmem:[#allocation3 + $0x538] sm:$0xff]
    %v4765 = vld [vmem:[#allocation3 + $0x540] sm:$0xff]
    %v4766 = vld [vmem:[#allocation3 + $0x548] sm:$0xff]
    %v4767 = vld [vmem:[#allocation3 + $0x550] sm:$0xff]
    %v4768 = vld [vmem:[#allocation3 + $0x558] sm:$0xff]
    %v4769 = vld [vmem:[#allocation3 + $0x560] sm:$0xff]
    %v4770 = vld [vmem:[#allocation3 + $0x568] sm:$0xff]
    %v4771 = vld [vmem:[#allocation3 + $0x570] sm:$0x33]
    %v4772 = vld [vmem:[#allocation3 + $0x578] sm:$0x33]
    %v4773 = vpack.c.bf16 %v4587, %v4587
    %v4774 = vpack.c.bf16 %v4588, %v4588
    %v4775 = vpack.c.bf16 %v4589, %v4589
    %v4776 = vpack.c.bf16 %v4590, %v4590
    %v4777 = vpack.c.bf16 %v4591, %v4591
    %v4778 = vpack.c.bf16 %v4592, %v4592
    %v4780 = vlaneseq
    %v4781 = vshrl.u32 %v4780, 7
    %v4782 = vsub.s32 0, %v4781
    %v4783 = vrot.slane %v730, %v4782
    %v4784 = vlaneseq
    %v4785 = vshrl.u32 %v4784, 7
    %v4786 = vsub.s32 1, %v4785
    %v4787 = vrot.slane %v730, %v4786
    %v4788 = vlaneseq
    %v4789 = vshrl.u32 %v4788, 7
    %v4790 = vsub.s32 2, %v4789
    %v4791 = vrot.slane %v730, %v4790
    %v4792 = vlaneseq
    %v4793 = vshrl.u32 %v4792, 7
    %v4794 = vsub.s32 3, %v4793
    %v4795 = vrot.slane %v730, %v4794
    %v4976 = vunpack.c.l.b16 %v4597
    %v4977 = vunpack.c.h.b16 %v4597
    %v4978 = vunpack.c.l.b16 %v4598
    %v4979 = vunpack.c.h.b16 %v4598
    %v4980 = vunpack.c.l.b16 %v4599
    %v4981 = vunpack.c.h.b16 %v4599
    %v4982 = vunpack.c.l.b16 %v4600
    %v4983 = vunpack.c.h.b16 %v4600
    %v4984 = vunpack.c.l.b16 %v4601
    %v4985 = vunpack.c.h.b16 %v4601
    %v4986 = vunpack.c.l.b16 %v4602
    %v4987 = vunpack.c.h.b16 %v4602
    %v4988 = vunpack.c.l.b16 %v4603
    %v4989 = vunpack.c.h.b16 %v4603
    %v4990 = vunpack.c.l.b16 %v4604
    %v4991 = vunpack.c.h.b16 %v4604
    %v4992 = vunpack.c.l.b16 %v4605
    %v4993 = vunpack.c.h.b16 %v4605
    %v4994 = vunpack.c.l.b16 %v4606
    %v4995 = vunpack.c.h.b16 %v4606
    %v4996 = vunpack.c.l.b16 %v4607
    %v4997 = vunpack.c.h.b16 %v4607
    %v4998 = vunpack.c.l.b16 %v4608
    %v4999 = vunpack.c.h.b16 %v4608
    %v5000 = vunpack.c.l.b16 %v4609
    %v5001 = vunpack.c.h.b16 %v4609
    %v5002 = vunpack.c.l.b16 %v4610
    %v5003 = vunpack.c.h.b16 %v4610
    %v5004 = vunpack.c.l.b16 %v4611
    %v5005 = vunpack.c.h.b16 %v4611
    %v5006 = vunpack.c.l.b16 %v4612
    %v5007 = vunpack.c.h.b16 %v4612
    %v5008 = vunpack.c.l.b16 %v4613
    %v5009 = vunpack.c.h.b16 %v4613
    %v5010 = vunpack.c.l.b16 %v4614
    %v5011 = vunpack.c.h.b16 %v4614
    %v5012 = vunpack.c.l.b16 %v4615
    %v5013 = vunpack.c.h.b16 %v4615
    %v5014 = vunpack.c.l.b16 %v4616
    %v5015 = vunpack.c.h.b16 %v4616
    %v5016 = vunpack.c.l.b16 %v4617
    %v5017 = vunpack.c.h.b16 %v4617
    %v5018 = vunpack.c.l.b16 %v4618
    %v5019 = vunpack.c.h.b16 %v4618
    %v5020 = vunpack.c.l.b16 %v4619
    %v5021 = vunpack.c.h.b16 %v4619
    %v5022 = vunpack.c.l.b16 %v4620
    %v5023 = vunpack.c.h.b16 %v4620
    %v5024 = vunpack.c.l.b16 %v4621
    %v5025 = vunpack.c.h.b16 %v4621
    %v5026 = vunpack.c.l.b16 %v4622
    %v5027 = vunpack.c.h.b16 %v4622
    %v5028 = vunpack.c.l.b16 %v4623
    %v5029 = vunpack.c.h.b16 %v4623
    %v5030 = vunpack.c.l.b16 %v4624
    %v5031 = vunpack.c.h.b16 %v4624
    %v5032 = vunpack.c.l.b16 %v4625
    %v5033 = vunpack.c.h.b16 %v4625
    %v5034 = vunpack.c.l.b16 %v4626
    %v5035 = vunpack.c.h.b16 %v4626
    %v5036 = vunpack.c.l.b16 %v4627
    %v5037 = vunpack.c.h.b16 %v4627
    %v5038 = vunpack.c.l.b16 %v4628
    %v5039 = vunpack.c.h.b16 %v4628
    %v5040 = vunpack.c.l.b16 %v4629
    %v5041 = vunpack.c.h.b16 %v4629
    %v5042 = vunpack.c.l.b16 %v4630
    %v5043 = vunpack.c.h.b16 %v4630
    %v5044 = vunpack.c.l.b16 %v4631
    %v5045 = vunpack.c.h.b16 %v4631
    %v5046 = vunpack.c.l.b16 %v4632
    %v5047 = vunpack.c.h.b16 %v4632
    %v5048 = vunpack.c.l.b16 %v4633
    %v5049 = vunpack.c.h.b16 %v4633
    %v5050 = vunpack.c.l.b16 %v4634
    %v5051 = vunpack.c.h.b16 %v4634
    %v5052 = vunpack.c.l.b16 %v4635
    %v5053 = vunpack.c.h.b16 %v4635
    %v5054 = vunpack.c.l.b16 %v4636
    %v5055 = vunpack.c.h.b16 %v4636
    %v5056 = vunpack.c.l.b16 %v4637
    %v5057 = vunpack.c.h.b16 %v4637
    %v5058 = vunpack.c.l.b16 %v4638
    %v5059 = vunpack.c.h.b16 %v4638
    %v5060 = vunpack.c.l.b16 %v4639
    %v5061 = vunpack.c.h.b16 %v4639
    %v5062 = vunpack.c.l.b16 %v4640
    %v5063 = vunpack.c.h.b16 %v4640
    %v5064 = vunpack.c.l.b16 %v4641
    %v5065 = vunpack.c.h.b16 %v4641
    %v5066 = vunpack.c.l.b16 %v4642
    %v5067 = vunpack.c.h.b16 %v4642
    %v5068 = vunpack.c.l.b16 %v4643
    %v5069 = vunpack.c.h.b16 %v4643
    %v5070 = vunpack.c.l.b16 %v4644
    %v5071 = vunpack.c.h.b16 %v4644
    %v5072 = vunpack.c.l.b16 %v4645
    %v5073 = vunpack.c.h.b16 %v4645
    %v5074 = vunpack.c.l.b16 %v4646
    %v5075 = vunpack.c.h.b16 %v4646
    %v5076 = vunpack.c.l.b16 %v4647
    %v5077 = vunpack.c.h.b16 %v4647
    %v5078 = vunpack.c.l.b16 %v4648
    %v5079 = vunpack.c.h.b16 %v4648
    %v5080 = vunpack.c.l.b16 %v4649
    %v5081 = vunpack.c.h.b16 %v4649
    %v5082 = vunpack.c.l.b16 %v4650
    %v5083 = vunpack.c.h.b16 %v4650
    %v5084 = vunpack.c.l.b16 %v4651
    %v5085 = vunpack.c.h.b16 %v4651
    %v5086 = vunpack.c.l.b16 %v4652
    %v5087 = vunpack.c.h.b16 %v4652
    %v5088 = vunpack.c.l.b16 %v4653
    %v5089 = vunpack.c.h.b16 %v4653
    %v5090 = vunpack.c.l.b16 %v4654
    %v5091 = vunpack.c.h.b16 %v4654
    %v5092 = vunpack.c.l.b16 %v4655
    %v5093 = vunpack.c.h.b16 %v4655
    %v5094 = vunpack.c.l.b16 %v4656
    %v5095 = vunpack.c.h.b16 %v4656
    %v5096 = vunpack.c.l.b16 %v4657
    %v5097 = vunpack.c.h.b16 %v4657
    %v5098 = vunpack.c.l.b16 %v4658
    %v5099 = vunpack.c.h.b16 %v4658
    %v5100 = vunpack.c.l.b16 %v4659
    %v5101 = vunpack.c.h.b16 %v4659
    %v5102 = vunpack.c.l.b16 %v4660
    %v5103 = vunpack.c.h.b16 %v4660
    %v5104 = vunpack.c.l.b16 %v4661
    %v5105 = vunpack.c.h.b16 %v4661
    %v5106 = vunpack.c.l.b16 %v4662
    %v5107 = vunpack.c.h.b16 %v4662
    %v5108 = vunpack.c.l.b16 %v4663
    %v5109 = vunpack.c.h.b16 %v4663
    %v5110 = vunpack.c.l.b16 %v4664
    %v5111 = vunpack.c.h.b16 %v4664
    %v5112 = vunpack.c.l.b16 %v4665
    %v5113 = vunpack.c.h.b16 %v4665
    %v5114 = vunpack.c.l.b16 %v4666
    %v5115 = vunpack.c.h.b16 %v4666
    %v5116 = vunpack.c.l.b16 %v4667
    %v5117 = vunpack.c.h.b16 %v4667
    %v5118 = vunpack.c.l.b16 %v4668
    %v5119 = vunpack.c.h.b16 %v4668
    %v5120 = vunpack.c.l.b16 %v4669
    %v5121 = vunpack.c.h.b16 %v4669
    %v5122 = vunpack.c.l.b16 %v4670
    %v5123 = vunpack.c.h.b16 %v4670
    %v5124 = vunpack.c.l.b16 %v4671
    %v5125 = vunpack.c.h.b16 %v4671
    %v5126 = vunpack.c.l.b16 %v4672
    %v5127 = vunpack.c.h.b16 %v4672
    %v5128 = vunpack.c.l.b16 %v4673
    %v5129 = vunpack.c.h.b16 %v4673
    %v5130 = vunpack.c.l.b16 %v4674
    %v5131 = vunpack.c.h.b16 %v4674
    %v5132 = vunpack.c.l.b16 %v4675
    %v5133 = vunpack.c.h.b16 %v4675
    %v5134 = vunpack.c.l.b16 %v4676
    %v5135 = vunpack.c.h.b16 %v4676
    %v5136 = vunpack.c.l.b16 %v4677
    %v5137 = vunpack.c.h.b16 %v4677
    %v5138 = vunpack.c.l.b16 %v4678
    %v5139 = vunpack.c.h.b16 %v4678
    %v5140 = vunpack.c.l.b16 %v4679
    %v5141 = vunpack.c.h.b16 %v4679
    %v5142 = vunpack.c.l.b16 %v4680
    %v5143 = vunpack.c.h.b16 %v4680
    %v5144 = vunpack.c.l.b16 %v4681
    %v5145 = vunpack.c.h.b16 %v4681
    %v5146 = vunpack.c.l.b16 %v4682
    %v5147 = vunpack.c.h.b16 %v4682
    %v5148 = vunpack.c.l.b16 %v4683
    %v5149 = vunpack.c.h.b16 %v4683
    %v5150 = vunpack.c.l.b16 %v4684
    %v5151 = vunpack.c.h.b16 %v4684
    %v5152 = vunpack.c.l.b16 %v4685
    %v5153 = vunpack.c.h.b16 %v4685
    %v5154 = vunpack.c.l.b16 %v4686
    %v5155 = vunpack.c.h.b16 %v4686
    %v5156 = vunpack.c.l.b16 %v4687
    %v5157 = vunpack.c.h.b16 %v4687
    %v5158 = vunpack.c.l.b16 %v4688
    %v5159 = vunpack.c.h.b16 %v4688
    %v5160 = vunpack.c.l.b16 %v4689
    %v5161 = vunpack.c.h.b16 %v4689
    %v5162 = vunpack.c.l.b16 %v4690
    %v5163 = vunpack.c.h.b16 %v4690
    %v5164 = vunpack.c.l.b16 %v4691
    %v5165 = vunpack.c.h.b16 %v4691
    %v5166 = vunpack.c.l.b16 %v4692
    %v5167 = vunpack.c.h.b16 %v4692
    %v5168 = vunpack.c.l.b16 %v4693
    %v5169 = vunpack.c.h.b16 %v4693
    %v5170 = vunpack.c.l.b16 %v4694
    %v5171 = vunpack.c.h.b16 %v4694
    %v5172 = vunpack.c.l.b16 %v4695
    %v5173 = vunpack.c.h.b16 %v4695
    %v5174 = vunpack.c.l.b16 %v4696
    %v5175 = vunpack.c.h.b16 %v4696
    %v5176 = vunpack.c.l.b16 %v4697
    %v5177 = vunpack.c.h.b16 %v4697
    %v5178 = vunpack.c.l.b16 %v4698
    %v5179 = vunpack.c.h.b16 %v4698
    %v5180 = vunpack.c.l.b16 %v4699
    %v5181 = vunpack.c.h.b16 %v4699
    %v5182 = vunpack.c.l.b16 %v4700
    %v5183 = vunpack.c.h.b16 %v4700
    %v5184 = vunpack.c.l.b16 %v4701
    %v5185 = vunpack.c.h.b16 %v4701
    %v5186 = vunpack.c.l.b16 %v4702
    %v5187 = vunpack.c.h.b16 %v4702
    %v5188 = vunpack.c.l.b16 %v4703
    %v5189 = vunpack.c.h.b16 %v4703
    %v5190 = vunpack.c.l.b16 %v4704
    %v5191 = vunpack.c.h.b16 %v4704
    %v5192 = vunpack.c.l.b16 %v4705
    %v5193 = vunpack.c.h.b16 %v4705
    %v5194 = vunpack.c.l.b16 %v4706
    %v5195 = vunpack.c.h.b16 %v4706
    %v5196 = vunpack.c.l.b16 %v4707
    %v5197 = vunpack.c.h.b16 %v4707
    %v5198 = vunpack.c.l.b16 %v4708
    %v5199 = vunpack.c.h.b16 %v4708
    %v5200 = vunpack.c.l.b16 %v4709
    %v5201 = vunpack.c.h.b16 %v4709
    %v5202 = vunpack.c.l.b16 %v4710
    %v5203 = vunpack.c.h.b16 %v4710
    %v5204 = vunpack.c.l.b16 %v4711
    %v5205 = vunpack.c.h.b16 %v4711
    %v5206 = vunpack.c.l.b16 %v4712
    %v5207 = vunpack.c.h.b16 %v4712
    %v5208 = vunpack.c.l.b16 %v4713
    %v5209 = vunpack.c.h.b16 %v4713
    %v5210 = vunpack.c.l.b16 %v4714
    %v5211 = vunpack.c.h.b16 %v4714
    %v5212 = vunpack.c.l.b16 %v4715
    %v5213 = vunpack.c.h.b16 %v4715
    %v5214 = vunpack.c.l.b16 %v4716
    %v5215 = vunpack.c.h.b16 %v4716
    %v5216 = vunpack.c.l.b16 %v4717
    %v5217 = vunpack.c.h.b16 %v4717
    %v5218 = vunpack.c.l.b16 %v4718
    %v5219 = vunpack.c.h.b16 %v4718
    %v5220 = vunpack.c.l.b16 %v4719
    %v5221 = vunpack.c.h.b16 %v4719
    %v5222 = vunpack.c.l.b16 %v4720
    %v5223 = vunpack.c.h.b16 %v4720
    %v5224 = vunpack.c.l.b16 %v4721
    %v5225 = vunpack.c.h.b16 %v4721
    %v5226 = vunpack.c.l.b16 %v4722
    %v5227 = vunpack.c.h.b16 %v4722
    %v5228 = vunpack.c.l.b16 %v4723
    %v5229 = vunpack.c.h.b16 %v4723
    %v5230 = vunpack.c.l.b16 %v4724
    %v5231 = vunpack.c.h.b16 %v4724
    %v5232 = vunpack.c.l.b16 %v4725
    %v5233 = vunpack.c.h.b16 %v4725
    %v5234 = vunpack.c.l.b16 %v4726
    %v5235 = vunpack.c.h.b16 %v4726
    %v5236 = vunpack.c.l.b16 %v4727
    %v5237 = vunpack.c.h.b16 %v4727
    %v5238 = vunpack.c.l.b16 %v4728
    %v5239 = vunpack.c.h.b16 %v4728
    %v5240 = vunpack.c.l.b16 %v4729
    %v5241 = vunpack.c.h.b16 %v4729
    %v5242 = vunpack.c.l.b16 %v4730
    %v5243 = vunpack.c.h.b16 %v4730
    %v5244 = vunpack.c.l.b16 %v4731
    %v5245 = vunpack.c.h.b16 %v4731
    %v5246 = vunpack.c.l.b16 %v4732
    %v5247 = vunpack.c.h.b16 %v4732
    %v5248 = vunpack.c.l.b16 %v4733
    %v5249 = vunpack.c.h.b16 %v4733
    %v5250 = vunpack.c.l.b16 %v4734
    %v5251 = vunpack.c.h.b16 %v4734
    %v5252 = vunpack.c.l.b16 %v4735
    %v5253 = vunpack.c.h.b16 %v4735
    %v5254 = vunpack.c.l.b16 %v4736
    %v5255 = vunpack.c.h.b16 %v4736
    %v5256 = vunpack.c.l.b16 %v4737
    %v5257 = vunpack.c.h.b16 %v4737
    %v5258 = vunpack.c.l.b16 %v4738
    %v5259 = vunpack.c.h.b16 %v4738
    %v5260 = vunpack.c.l.b16 %v4739
    %v5261 = vunpack.c.h.b16 %v4739
    %v5262 = vunpack.c.l.b16 %v4740
    %v5263 = vunpack.c.h.b16 %v4740
    %v5264 = vunpack.c.l.b16 %v4741
    %v5265 = vunpack.c.h.b16 %v4741
    %v5266 = vunpack.c.l.b16 %v4742
    %v5267 = vunpack.c.h.b16 %v4742
    %v5268 = vunpack.c.l.b16 %v4743
    %v5269 = vunpack.c.h.b16 %v4743
    %v5270 = vunpack.c.l.b16 %v4744
    %v5271 = vunpack.c.h.b16 %v4744
    %v5272 = vunpack.c.l.b16 %v4745
    %v5273 = vunpack.c.h.b16 %v4745
    %v5274 = vunpack.c.l.b16 %v4746
    %v5275 = vunpack.c.h.b16 %v4746
    %v5276 = vunpack.c.l.b16 %v4747
    %v5277 = vunpack.c.h.b16 %v4747
    %v5278 = vunpack.c.l.b16 %v4748
    %v5279 = vunpack.c.h.b16 %v4748
    %v5280 = vunpack.c.l.b16 %v4749
    %v5281 = vunpack.c.h.b16 %v4749
    %v5282 = vunpack.c.l.b16 %v4750
    %v5283 = vunpack.c.h.b16 %v4750
    %v5284 = vunpack.c.l.b16 %v4751
    %v5285 = vunpack.c.h.b16 %v4751
    %v5286 = vunpack.c.l.b16 %v4752
    %v5287 = vunpack.c.h.b16 %v4752
    %v5288 = vunpack.c.l.b16 %v4753
    %v5289 = vunpack.c.h.b16 %v4753
    %v5290 = vunpack.c.l.b16 %v4754
    %v5291 = vunpack.c.h.b16 %v4754
    %v5292 = vunpack.c.l.b16 %v4755
    %v5293 = vunpack.c.h.b16 %v4755
    %v5294 = vunpack.c.l.b16 %v4756
    %v5295 = vunpack.c.h.b16 %v4756
    %v5296 = vunpack.c.l.b16 %v4757
    %v5297 = vunpack.c.h.b16 %v4757
    %v5298 = vunpack.c.l.b16 %v4758
    %v5299 = vunpack.c.h.b16 %v4758
    %v5300 = vunpack.c.l.b16 %v4759
    %v5301 = vunpack.c.h.b16 %v4759
    %v5302 = vunpack.c.l.b16 %v4760
    %v5303 = vunpack.c.h.b16 %v4760
    %v5304 = vunpack.c.l.b16 %v4761
    %v5305 = vunpack.c.h.b16 %v4761
    %v5306 = vunpack.c.l.b16 %v4762
    %v5307 = vunpack.c.h.b16 %v4762
    %v5308 = vunpack.c.l.b16 %v4763
    %v5309 = vunpack.c.h.b16 %v4763
    %v5310 = vunpack.c.l.b16 %v4764
    %v5311 = vunpack.c.h.b16 %v4764
    %v5312 = vunpack.c.l.b16 %v4765
    %v5313 = vunpack.c.h.b16 %v4765
    %v5314 = vunpack.c.l.b16 %v4766
    %v5315 = vunpack.c.h.b16 %v4766
    %v5316 = vunpack.c.l.b16 %v4767
    %v5317 = vunpack.c.h.b16 %v4767
    %v5318 = vunpack.c.l.b16 %v4768
    %v5319 = vunpack.c.h.b16 %v4768
    %v5320 = vunpack.c.l.b16 %v4769
    %v5321 = vunpack.c.h.b16 %v4769
    %v5322 = vunpack.c.l.b16 %v4770
    %v5323 = vunpack.c.h.b16 %v4770
    %v5324 = vunpack.c.l.b16 %v4771
    %v5325 = vunpack.c.h.b16 %v4771
    %v5326 = vunpack.c.l.b16 %v4772
    %v5327 = vunpack.c.h.b16 %v4772
    %v5328 = vpack.c.b16 %v4980, %v4976
    %v5329 = vpack.c.b16 %v4981, %v4977
    %v5330 = vpack.c.b16 %v4982, %v4978
    %v5331 = vpack.c.b16 %v4983, %v4979
    %v5332 = vpack.c.b16 %v4988, %v4984
    %v5333 = vpack.c.b16 %v4989, %v4985
    %v5334 = vpack.c.b16 %v4990, %v4986
    %v5335 = vpack.c.b16 %v4991, %v4987
    %v5336 = vpack.c.b16 %v4996, %v4992
    %v5337 = vpack.c.b16 %v4997, %v4993
    %v5338 = vpack.c.b16 %v4998, %v4994
    %v5339 = vpack.c.b16 %v4999, %v4995
    %v5340 = vpack.c.b16 %v5004, %v5000
    %v5341 = vpack.c.b16 %v5005, %v5001
    %v5342 = vpack.c.b16 %v5006, %v5002
    %v5343 = vpack.c.b16 %v5007, %v5003
    %v5344 = vpack.c.b16 %v5012, %v5008
    %v5345 = vpack.c.b16 %v5013, %v5009
    %v5346 = vpack.c.b16 %v5014, %v5010
    %v5347 = vpack.c.b16 %v5015, %v5011
    %v5348 = vpack.c.b16 %v5020, %v5016
    %v5349 = vpack.c.b16 %v5021, %v5017
    %v5350 = vpack.c.b16 %v5022, %v5018
    %v5351 = vpack.c.b16 %v5023, %v5019
    %v5352 = vpack.c.b16 %v5028, %v5024
    %v5353 = vpack.c.b16 %v5029, %v5025
    %v5354 = vpack.c.b16 %v5030, %v5026
    %v5355 = vpack.c.b16 %v5031, %v5027
    %v5356 = vpack.c.b16 %v5036, %v5032
    %v5357 = vpack.c.b16 %v5037, %v5033
    %v5358 = vpack.c.b16 %v5038, %v5034
    %v5359 = vpack.c.b16 %v5039, %v5035
    %v5360 = vpack.c.b16 %v5044, %v5040
    %v5361 = vpack.c.b16 %v5045, %v5041
    %v5362 = vpack.c.b16 %v5046, %v5042
    %v5363 = vpack.c.b16 %v5047, %v5043
    %v5364 = vpack.c.b16 %v5052, %v5048
    %v5365 = vpack.c.b16 %v5053, %v5049
    %v5366 = vpack.c.b16 %v5054, %v5050
    %v5367 = vpack.c.b16 %v5055, %v5051
    %v5368 = vpack.c.b16 %v5060, %v5056
    %v5369 = vpack.c.b16 %v5061, %v5057
    %v5370 = vpack.c.b16 %v5062, %v5058
    %v5371 = vpack.c.b16 %v5063, %v5059
    %v5372 = vpack.c.b16 %v5068, %v5064
    %v5373 = vpack.c.b16 %v5069, %v5065
    %v5374 = vpack.c.b16 %v5070, %v5066
    %v5375 = vpack.c.b16 %v5071, %v5067
    %v5376 = vpack.c.b16 %v5076, %v5072
    %v5377 = vpack.c.b16 %v5077, %v5073
    %v5378 = vpack.c.b16 %v5078, %v5074
    %v5379 = vpack.c.b16 %v5079, %v5075
    %v5380 = vpack.c.b16 %v5084, %v5080
    %v5381 = vpack.c.b16 %v5085, %v5081
    %v5382 = vpack.c.b16 %v5086, %v5082
    %v5383 = vpack.c.b16 %v5087, %v5083
    %v5384 = vpack.c.b16 %v5092, %v5088
    %v5385 = vpack.c.b16 %v5093, %v5089
    %v5386 = vpack.c.b16 %v5094, %v5090
    %v5387 = vpack.c.b16 %v5095, %v5091
    %v5388 = vpack.c.b16 %v5100, %v5096
    %v5389 = vpack.c.b16 %v5101, %v5097
    %v5390 = vpack.c.b16 %v5102, %v5098
    %v5391 = vpack.c.b16 %v5103, %v5099
    %v5392 = vpack.c.b16 %v5108, %v5104
    %v5393 = vpack.c.b16 %v5109, %v5105
    %v5394 = vpack.c.b16 %v5110, %v5106
    %v5395 = vpack.c.b16 %v5111, %v5107
    %v5396 = vpack.c.b16 %v5116, %v5112
    %v5397 = vpack.c.b16 %v5117, %v5113
    %v5398 = vpack.c.b16 %v5118, %v5114
    %v5399 = vpack.c.b16 %v5119, %v5115
    %v5400 = vpack.c.b16 %v5124, %v5120
    %v5401 = vpack.c.b16 %v5125, %v5121
    %v5402 = vpack.c.b16 %v5126, %v5122
    %v5403 = vpack.c.b16 %v5127, %v5123
    %v5404 = vpack.c.b16 %v5132, %v5128
    %v5405 = vpack.c.b16 %v5133, %v5129
    %v5406 = vpack.c.b16 %v5134, %v5130
    %v5407 = vpack.c.b16 %v5135, %v5131
    %v5408 = vpack.c.b16 %v5140, %v5136
    %v5409 = vpack.c.b16 %v5141, %v5137
    %v5410 = vpack.c.b16 %v5142, %v5138
    %v5411 = vpack.c.b16 %v5143, %v5139
    %v5412 = vpack.c.b16 %v5148, %v5144
    %v5413 = vpack.c.b16 %v5149, %v5145
    %v5414 = vpack.c.b16 %v5150, %v5146
    %v5415 = vpack.c.b16 %v5151, %v5147
    %v5416 = vpack.c.b16 %v5156, %v5152
    %v5417 = vpack.c.b16 %v5157, %v5153
    %v5418 = vpack.c.b16 %v5158, %v5154
    %v5419 = vpack.c.b16 %v5159, %v5155
    %v5420 = vpack.c.b16 %v5164, %v5160
    %v5421 = vpack.c.b16 %v5165, %v5161
    %v5422 = vpack.c.b16 %v5166, %v5162
    %v5423 = vpack.c.b16 %v5167, %v5163
    %v5424 = vpack.c.b16 %v5172, %v5168
    %v5425 = vpack.c.b16 %v5173, %v5169
    %v5426 = vpack.c.b16 %v5174, %v5170
    %v5427 = vpack.c.b16 %v5175, %v5171
    %v5428 = vpack.c.b16 %v5180, %v5176
    %v5429 = vpack.c.b16 %v5181, %v5177
    %v5430 = vpack.c.b16 %v5182, %v5178
    %v5431 = vpack.c.b16 %v5183, %v5179
    %v5432 = vpack.c.b16 %v5188, %v5184
    %v5433 = vpack.c.b16 %v5189, %v5185
    %v5434 = vpack.c.b16 %v5190, %v5186
    %v5435 = vpack.c.b16 %v5191, %v5187
    %v5436 = vpack.c.b16 %v5196, %v5192
    %v5437 = vpack.c.b16 %v5197, %v5193
    %v5438 = vpack.c.b16 %v5198, %v5194
    %v5439 = vpack.c.b16 %v5199, %v5195
    %v5440 = vpack.c.b16 %v5204, %v5200
    %v5441 = vpack.c.b16 %v5205, %v5201
    %v5442 = vpack.c.b16 %v5206, %v5202
    %v5443 = vpack.c.b16 %v5207, %v5203
    %v5444 = vpack.c.b16 %v5212, %v5208
    %v5445 = vpack.c.b16 %v5213, %v5209
    %v5446 = vpack.c.b16 %v5214, %v5210
    %v5447 = vpack.c.b16 %v5215, %v5211
    %v5448 = vpack.c.b16 %v5220, %v5216
    %v5449 = vpack.c.b16 %v5221, %v5217
    %v5450 = vpack.c.b16 %v5222, %v5218
    %v5451 = vpack.c.b16 %v5223, %v5219
    %v5452 = vpack.c.b16 %v5228, %v5224
    %v5453 = vpack.c.b16 %v5229, %v5225
    %v5454 = vpack.c.b16 %v5230, %v5226
    %v5455 = vpack.c.b16 %v5231, %v5227
    %v5456 = vpack.c.b16 %v5236, %v5232
    %v5457 = vpack.c.b16 %v5237, %v5233
    %v5458 = vpack.c.b16 %v5238, %v5234
    %v5459 = vpack.c.b16 %v5239, %v5235
    %v5460 = vpack.c.b16 %v5244, %v5240
    %v5461 = vpack.c.b16 %v5245, %v5241
    %v5462 = vpack.c.b16 %v5246, %v5242
    %v5463 = vpack.c.b16 %v5247, %v5243
    %v5464 = vpack.c.b16 %v5252, %v5248
    %v5465 = vpack.c.b16 %v5253, %v5249
    %v5466 = vpack.c.b16 %v5254, %v5250
    %v5467 = vpack.c.b16 %v5255, %v5251
    %v5468 = vpack.c.b16 %v5260, %v5256
    %v5469 = vpack.c.b16 %v5261, %v5257
    %v5470 = vpack.c.b16 %v5262, %v5258
    %v5471 = vpack.c.b16 %v5263, %v5259
    %v5472 = vpack.c.b16 %v5268, %v5264
    %v5473 = vpack.c.b16 %v5269, %v5265
    %v5474 = vpack.c.b16 %v5270, %v5266
    %v5475 = vpack.c.b16 %v5271, %v5267
    %v5476 = vpack.c.b16 %v5276, %v5272
    %v5477 = vpack.c.b16 %v5277, %v5273
    %v5478 = vpack.c.b16 %v5278, %v5274
    %v5479 = vpack.c.b16 %v5279, %v5275
    %v5480 = vpack.c.b16 %v5284, %v5280
    %v5481 = vpack.c.b16 %v5285, %v5281
    %v5482 = vpack.c.b16 %v5286, %v5282
    %v5483 = vpack.c.b16 %v5287, %v5283
    %v5484 = vpack.c.b16 %v5292, %v5288
    %v5485 = vpack.c.b16 %v5293, %v5289
    %v5486 = vpack.c.b16 %v5294, %v5290
    %v5487 = vpack.c.b16 %v5295, %v5291
    %v5488 = vpack.c.b16 %v5300, %v5296
    %v5489 = vpack.c.b16 %v5301, %v5297
    %v5490 = vpack.c.b16 %v5302, %v5298
    %v5491 = vpack.c.b16 %v5303, %v5299
    %v5492 = vpack.c.b16 %v5308, %v5304
    %v5493 = vpack.c.b16 %v5309, %v5305
    %v5494 = vpack.c.b16 %v5310, %v5306
    %v5495 = vpack.c.b16 %v5311, %v5307
    %v5496 = vpack.c.b16 %v5316, %v5312
    %v5497 = vpack.c.b16 %v5317, %v5313
    %v5498 = vpack.c.b16 %v5318, %v5314
    %v5499 = vpack.c.b16 %v5319, %v5315
    %v5500 = vpack.c.b16 %v5324, %v5320
    %v5501 = vpack.c.b16 %v5325, %v5321
    %v5502 = vpack.c.b16 %v5326, %v5322
    %v5503 = vpack.c.b16 %v5327, %v5323
    %v5677 = vsel %vm4336, %v4778, 0
    %vm5679 = vcmask 1045504
    %v5681 = vsel %vm5679, %v5500, 0
    %v5684 = vsel %vm5679, %v5501, 0
    %v5687 = vsel %vm5679, %v5502, 0
    %v5690 = vsel %vm5679, %v5503, 0
    %5692 = vmatprep.subr.bf16.mxu0 %v5357
    %5693 = vmatpush1.bf16.msra.mxu0 %v5356
    %5694 = vmatprep.subr.bf16.mxu0 %v5353
    %5695 = vmatpush1.bf16.msra.mxu0 %v5352
    %5696 = vmatprep.subr.bf16.mxu0 %v5349
    %5697 = vmatpush1.bf16.msra.mxu0 %v5348
    %5698 = vmatprep.subr.bf16.mxu0 %v5345
    %5699 = vmatpush1.bf16.msra.mxu0 %v5344
    %5700 = vmatprep.subr.bf16.mxu0 %v5341
    %5701 = vmatpush1.bf16.msra.mxu0 %v5340
    %5702 = vmatprep.subr.bf16.mxu0 %v5337
    %5703 = vmatpush1.bf16.msra.mxu0 %v5336
    %5704 = vmatprep.subr.bf16.mxu0 %v5333
    %5705 = vmatpush1.bf16.msra.mxu0 %v5332
    %5706 = vmatprep.subr.bf16.mxu0 %v5329
    %5707 = vmatpush1.bf16.msra.mxu0 %v5328
    %5708 = vmatprep.subr.bf16.mxu0 %v5389
    %5709 = vmatpush2.bf16.msra.mxu0 %v5388
    %5710 = vmatprep.subr.bf16.mxu0 %v5385
    %5711 = vmatpush2.bf16.msra.mxu0 %v5384
    %5712 = vmatprep.subr.bf16.mxu0 %v5381
    %5713 = vmatpush2.bf16.msra.mxu0 %v5380
    %5714 = vmatprep.subr.bf16.mxu0 %v5377
    %5715 = vmatpush2.bf16.msra.mxu0 %v5376
    %5716 = vmatprep.subr.bf16.mxu0 %v5373
    %5717 = vmatpush2.bf16.msra.mxu0 %v5372
    %5718 = vmatprep.subr.bf16.mxu0 %v5369
    %5719 = vmatpush2.bf16.msra.mxu0 %v5368
    %5720 = vmatprep.subr.bf16.mxu0 %v5365
    %5721 = vmatpush2.bf16.msra.mxu0 %v5364
    %5722 = vmatprep.subr.bf16.mxu0 %v5361
    %5723 = vmatpush2.bf16.msra.mxu0 %v5360
    %5724 = vmatprep.mubr.bf16.mxu0 %v4774
    %5725 = vmatmul.mubr.bf16.gmra.mxu0 %v4773
    %v5726 = vpop.f32.mrf.mxu0
    %v5727 = vadd.f32 %v4783, %v5726
    %v5728 = vpop.f32.mrf.mxu0
    %v5729 = vadd.f32 %v4787, %v5728
    %v5730 = vpop.f32.mrf.mxu0
    %v5731 = vpop.f32.mrf.mxu0
    %5732 = vdwg.mxu0
    %5733 = vmatprep.subr.bf16.mxu0 %v5421
    %5734 = vmatpush1.bf16.msra.mxu0 %v5420
    %5735 = vmatprep.subr.bf16.mxu0 %v5417
    %5736 = vmatpush1.bf16.msra.mxu0 %v5416
    %5737 = vmatprep.subr.bf16.mxu0 %v5413
    %5738 = vmatpush1.bf16.msra.mxu0 %v5412
    %5739 = vmatprep.subr.bf16.mxu0 %v5409
    %5740 = vmatpush1.bf16.msra.mxu0 %v5408
    %5741 = vmatprep.subr.bf16.mxu0 %v5405
    %5742 = vmatpush1.bf16.msra.mxu0 %v5404
    %5743 = vmatprep.subr.bf16.mxu0 %v5401
    %5744 = vmatpush1.bf16.msra.mxu0 %v5400
    %5745 = vmatprep.subr.bf16.mxu0 %v5397
    %5746 = vmatpush1.bf16.msra.mxu0 %v5396
    %5747 = vmatprep.subr.bf16.mxu0 %v5393
    %5748 = vmatpush1.bf16.msra.mxu0 %v5392
    %5749 = vmatprep.subr.bf16.mxu0 %v5453
    %5750 = vmatpush2.bf16.msra.mxu0 %v5452
    %5751 = vmatprep.subr.bf16.mxu0 %v5449
    %5752 = vmatpush2.bf16.msra.mxu0 %v5448
    %5753 = vmatprep.subr.bf16.mxu0 %v5445
    %5754 = vmatpush2.bf16.msra.mxu0 %v5444
    %5755 = vmatprep.subr.bf16.mxu0 %v5441
    %5756 = vmatpush2.bf16.msra.mxu0 %v5440
    %5757 = vmatprep.subr.bf16.mxu0 %v5437
    %5758 = vmatpush2.bf16.msra.mxu0 %v5436
    %5759 = vmatprep.subr.bf16.mxu0 %v5433
    %5760 = vmatpush2.bf16.msra.mxu0 %v5432
    %5761 = vmatprep.subr.bf16.mxu0 %v5429
    %5762 = vmatpush2.bf16.msra.mxu0 %v5428
    %5763 = vmatprep.subr.bf16.mxu0 %v5425
    %5764 = vmatpush2.bf16.msra.mxu0 %v5424
    %5765 = vmatprep.mubr.bf16.mxu0 %v4776
    %5766 = vmatmul.mubr.bf16.gmra.mxu0 %v4775
    %v5767 = vpop.f32.mrf.mxu0
    %v5768 = vadd.f32 %v5727, %v5767
    %v5769 = vpop.f32.mrf.mxu0
    %v5770 = vadd.f32 %v5729, %v5769
    %v5771 = vpop.f32.mrf.mxu0
    %v5772 = vpop.f32.mrf.mxu0
    %5773 = vdwg.mxu0
    %5774 = vmatprep.subr.bf16.mxu0 %v5485
    %5775 = vmatpush1.bf16.msra.mxu0 %v5484
    %5776 = vmatprep.subr.bf16.mxu0 %v5481
    %5777 = vmatpush1.bf16.msra.mxu0 %v5480
    %5778 = vmatprep.subr.bf16.mxu0 %v5477
    %5779 = vmatpush1.bf16.msra.mxu0 %v5476
    %5780 = vmatprep.subr.bf16.mxu0 %v5473
    %5781 = vmatpush1.bf16.msra.mxu0 %v5472
    %5782 = vmatprep.subr.bf16.mxu0 %v5469
    %5783 = vmatpush1.bf16.msra.mxu0 %v5468
    %5784 = vmatprep.subr.bf16.mxu0 %v5465
    %5785 = vmatpush1.bf16.msra.mxu0 %v5464
    %5786 = vmatprep.subr.bf16.mxu0 %v5461
    %5787 = vmatpush1.bf16.msra.mxu0 %v5460
    %5788 = vmatprep.subr.bf16.mxu0 %v5457
    %5789 = vmatpush1.bf16.msra.mxu0 %v5456
    %5790 = vmatprep.subr.bf16.mxu0 0
    %5791 = vmatpush2.bf16.msra.mxu0 0
    %5792 = vmatprep.subr.bf16.mxu0 0
    %5793 = vmatpush2.bf16.msra.mxu0 0
    %5794 = vmatprep.subr.bf16.mxu0 0
    %5795 = vmatpush2.bf16.msra.mxu0 0
    %5796 = vmatprep.subr.bf16.mxu0 0
    %5797 = vmatpush2.bf16.msra.mxu0 0
    %5798 = vmatprep.subr.bf16.mxu0 %v5684
    %5799 = vmatpush2.bf16.msra.mxu0 %v5681
    %5800 = vmatprep.subr.bf16.mxu0 %v5497
    %5801 = vmatpush2.bf16.msra.mxu0 %v5496
    %5802 = vmatprep.subr.bf16.mxu0 %v5493
    %5803 = vmatpush2.bf16.msra.mxu0 %v5492
    %5804 = vmatprep.subr.bf16.mxu0 %v5489
    %5805 = vmatpush2.bf16.msra.mxu0 %v5488
    %5806 = vmatprep.mubr.bf16.mxu0 %v5677
    %5807 = vmatmul.mubr.bf16.gmra.mxu0 %v4777
    %v5808 = vpop.f32.mrf.mxu0
    %v5809 = vadd.f32 %v5768, %v5808
    %v5810 = vpop.f32.mrf.mxu0
    %v5811 = vadd.f32 %v5770, %v5810
    %v5812 = vpop.f32.mrf.mxu0
    %v5813 = vpop.f32.mrf.mxu0
    %5814 = vdwg.mxu0
    %5815 = vmatprep.subr.bf16.mxu0 %v5359
    %5816 = vmatpush1.bf16.msra.mxu0 %v5358
    %5817 = vmatprep.subr.bf16.mxu0 %v5355
    %5818 = vmatpush1.bf16.msra.mxu0 %v5354
    %5819 = vmatprep.subr.bf16.mxu0 %v5351
    %5820 = vmatpush1.bf16.msra.mxu0 %v5350
    %5821 = vmatprep.subr.bf16.mxu0 %v5347
    %5822 = vmatpush1.bf16.msra.mxu0 %v5346
    %5823 = vmatprep.subr.bf16.mxu0 %v5343
    %5824 = vmatpush1.bf16.msra.mxu0 %v5342
    %5825 = vmatprep.subr.bf16.mxu0 %v5339
    %5826 = vmatpush1.bf16.msra.mxu0 %v5338
    %5827 = vmatprep.subr.bf16.mxu0 %v5335
    %5828 = vmatpush1.bf16.msra.mxu0 %v5334
    %5829 = vmatprep.subr.bf16.mxu0 %v5331
    %5830 = vmatpush1.bf16.msra.mxu0 %v5330
    %5831 = vmatprep.subr.bf16.mxu0 %v5391
    %5832 = vmatpush2.bf16.msra.mxu0 %v5390
    %5833 = vmatprep.subr.bf16.mxu0 %v5387
    %5834 = vmatpush2.bf16.msra.mxu0 %v5386
    %5835 = vmatprep.subr.bf16.mxu0 %v5383
    %5836 = vmatpush2.bf16.msra.mxu0 %v5382
    %5837 = vmatprep.subr.bf16.mxu0 %v5379
    %5838 = vmatpush2.bf16.msra.mxu0 %v5378
    %5839 = vmatprep.subr.bf16.mxu0 %v5375
    %5840 = vmatpush2.bf16.msra.mxu0 %v5374
    %5841 = vmatprep.subr.bf16.mxu0 %v5371
    %5842 = vmatpush2.bf16.msra.mxu0 %v5370
    %5843 = vmatprep.subr.bf16.mxu0 %v5367
    %5844 = vmatpush2.bf16.msra.mxu0 %v5366
    %5845 = vmatprep.subr.bf16.mxu0 %v5363
    %5846 = vmatpush2.bf16.msra.mxu0 %v5362
    %5847 = vmatprep.mubr.bf16.mxu0 %v4774
    %5848 = vmatmul.mubr.bf16.gmra.mxu0 %v4773
    %v5849 = vpop.f32.mrf.mxu0
    %v5850 = vadd.f32 %v4791, %v5849
    %v5851 = vpop.f32.mrf.mxu0
    %v5852 = vadd.f32 %v4795, %v5851
    %v5853 = vpop.f32.mrf.mxu0
    %v5854 = vpop.f32.mrf.mxu0
    %5855 = vdwg.mxu0
    %5856 = vmatprep.subr.bf16.mxu0 %v5423
    %5857 = vmatpush1.bf16.msra.mxu0 %v5422
    %5858 = vmatprep.subr.bf16.mxu0 %v5419
    %5859 = vmatpush1.bf16.msra.mxu0 %v5418
    %5860 = vmatprep.subr.bf16.mxu0 %v5415
    %5861 = vmatpush1.bf16.msra.mxu0 %v5414
    %5862 = vmatprep.subr.bf16.mxu0 %v5411
    %5863 = vmatpush1.bf16.msra.mxu0 %v5410
    %5864 = vmatprep.subr.bf16.mxu0 %v5407
    %5865 = vmatpush1.bf16.msra.mxu0 %v5406
    %5866 = vmatprep.subr.bf16.mxu0 %v5403
    %5867 = vmatpush1.bf16.msra.mxu0 %v5402
    %5868 = vmatprep.subr.bf16.mxu0 %v5399
    %5869 = vmatpush1.bf16.msra.mxu0 %v5398
    %5870 = vmatprep.subr.bf16.mxu0 %v5395
    %5871 = vmatpush1.bf16.msra.mxu0 %v5394
    %5872 = vmatprep.subr.bf16.mxu0 %v5455
    %5873 = vmatpush2.bf16.msra.mxu0 %v5454
    %5874 = vmatprep.subr.bf16.mxu0 %v5451
    %5875 = vmatpush2.bf16.msra.mxu0 %v5450
    %5876 = vmatprep.subr.bf16.mxu0 %v5447
    %5877 = vmatpush2.bf16.msra.mxu0 %v5446
    %5878 = vmatprep.subr.bf16.mxu0 %v5443
    %5879 = vmatpush2.bf16.msra.mxu0 %v5442
    %5880 = vmatprep.subr.bf16.mxu0 %v5439
    %5881 = vmatpush2.bf16.msra.mxu0 %v5438
    %5882 = vmatprep.subr.bf16.mxu0 %v5435
    %5883 = vmatpush2.bf16.msra.mxu0 %v5434
    %5884 = vmatprep.subr.bf16.mxu0 %v5431
    %5885 = vmatpush2.bf16.msra.mxu0 %v5430
    %5886 = vmatprep.subr.bf16.mxu0 %v5427
    %5887 = vmatpush2.bf16.msra.mxu0 %v5426
    %5888 = vmatprep.mubr.bf16.mxu0 %v4776
    %5889 = vmatmul.mubr.bf16.gmra.mxu0 %v4775
    %v5890 = vpop.f32.mrf.mxu0
    %v5891 = vadd.f32 %v5850, %v5890
    %v5892 = vpop.f32.mrf.mxu0
    %v5893 = vadd.f32 %v5852, %v5892
    %v5894 = vpop.f32.mrf.mxu0
    %v5895 = vpop.f32.mrf.mxu0
    %5896 = vdwg.mxu0
    %5897 = vmatprep.subr.bf16.mxu0 %v5487
    %5898 = vmatpush1.bf16.msra.mxu0 %v5486
    %5899 = vmatprep.subr.bf16.mxu0 %v5483
    %5900 = vmatpush1.bf16.msra.mxu0 %v5482
    %5901 = vmatprep.subr.bf16.mxu0 %v5479
    %5902 = vmatpush1.bf16.msra.mxu0 %v5478
    %5903 = vmatprep.subr.bf16.mxu0 %v5475
    %5904 = vmatpush1.bf16.msra.mxu0 %v5474
    %5905 = vmatprep.subr.bf16.mxu0 %v5471
    %5906 = vmatpush1.bf16.msra.mxu0 %v5470
    %5907 = vmatprep.subr.bf16.mxu0 %v5467
    %5908 = vmatpush1.bf16.msra.mxu0 %v5466
    %5909 = vmatprep.subr.bf16.mxu0 %v5463
    %5910 = vmatpush1.bf16.msra.mxu0 %v5462
    %5911 = vmatprep.subr.bf16.mxu0 %v5459
    %5912 = vmatpush1.bf16.msra.mxu0 %v5458
    %5913 = vmatprep.subr.bf16.mxu0 0
    %5914 = vmatpush2.bf16.msra.mxu0 0
    %5915 = vmatprep.subr.bf16.mxu0 0
    %5916 = vmatpush2.bf16.msra.mxu0 0
    %5917 = vmatprep.subr.bf16.mxu0 0
    %5918 = vmatpush2.bf16.msra.mxu0 0
    %5919 = vmatprep.subr.bf16.mxu0 0
    %5920 = vmatpush2.bf16.msra.mxu0 0
    %5921 = vmatprep.subr.bf16.mxu0 %v5690
    %5922 = vmatpush2.bf16.msra.mxu0 %v5687
    %5923 = vmatprep.subr.bf16.mxu0 %v5499
    %5924 = vmatpush2.bf16.msra.mxu0 %v5498
    %5925 = vmatprep.subr.bf16.mxu0 %v5495
    %5926 = vmatpush2.bf16.msra.mxu0 %v5494
    %5927 = vmatprep.subr.bf16.mxu0 %v5491
    %5928 = vmatpush2.bf16.msra.mxu0 %v5490
    %5929 = vmatprep.mubr.bf16.mxu0 %v5677
    %5930 = vmatmul.mubr.bf16.gmra.mxu0 %v4777
    %v5931 = vpop.f32.mrf.mxu0
    %v5932 = vadd.f32 %v5891, %v5931
    %v5933 = vpop.f32.mrf.mxu0
    %v5934 = vadd.f32 %v5893, %v5933
    %v5935 = vpop.f32.mrf.mxu0
    %v5936 = vpop.f32.mrf.mxu0
    %5937 = vdwg.mxu0
    %v5938 = vmax.f32 %v5809, 0.0
    %v5939 = vmax.f32 %v5811, 0.0
    %v5940 = vmax.f32 %v5932, 0.0
    %v5941 = vmax.f32 %v5934, 0.0
    %v5942 = vrot.slane %v5938, 4
    %v5943 = vadd.f32 %v5938, %v5942
    %v5944 = vrot.slane %v5943, 2
    %v5945 = vadd.f32 %v5943, %v5944
    %v5946 = vrot.slane %v5945, 1
    %v5947 = vadd.f32 %v5945, %v5946
    %v5948 = vrot.slane %v5939, 4
    %v5949 = vadd.f32 %v5939, %v5948
    %v5950 = vrot.slane %v5949, 2
    %v5951 = vadd.f32 %v5949, %v5950
    %v5952 = vrot.slane %v5951, 1
    %v5953 = vadd.f32 %v5951, %v5952
    %v5954 = vrot.slane %v5940, 4
    %v5955 = vadd.f32 %v5940, %v5954
    %v5956 = vrot.slane %v5955, 2
    %v5957 = vadd.f32 %v5955, %v5956
    %v5958 = vrot.slane %v5957, 1
    %v5959 = vadd.f32 %v5957, %v5958
    %vm5960 = vcmask 949248
    %v5961 = vsel %vm5960, %v5941, 0.0
    %v5962 = vrot.slane %v5961, 4
    %v5963 = vadd.f32 %v5961, %v5962
    %v5964 = vrot.slane %v5963, 2
    %v5965 = vadd.f32 %v5963, %v5964
    %v5966 = vrot.slane %v5965, 1
    %v5967 = vadd.f32 %v5965, %v5966
    %v5968 = vmul.f32 %v5947, %v1387
    %v5969 = vmul.f32 %v5953, %v1387
    %v5970 = vmul.f32 %v5959, %v1387
    %v5971 = vmul.f32 %v5967, %v1387
    %v5972 = vsub.f32 %v5938, %v5968
    %v5973 = vsub.f32 %v5939, %v5969
    %v5974 = vsub.f32 %v5940, %v5970
    %v5975 = vsub.f32 %v5941, %v5971
    %v5976 = vmul.f32 %v5972, %v5972
    %v5977 = vmul.f32 %v5973, %v5973
    %v5978 = vmul.f32 %v5974, %v5974
    %v5979 = vmul.f32 %v5975, %v5975
    %v5980 = vrot.slane %v5976, 4
    %v5981 = vadd.f32 %v5976, %v5980
    %v5982 = vrot.slane %v5981, 2
    %v5983 = vadd.f32 %v5981, %v5982
    %v5984 = vrot.slane %v5983, 1
    %v5985 = vadd.f32 %v5983, %v5984
    %v5986 = vrot.slane %v5977, 4
    %v5987 = vadd.f32 %v5977, %v5986
    %v5988 = vrot.slane %v5987, 2
    %v5989 = vadd.f32 %v5987, %v5988
    %v5990 = vrot.slane %v5989, 1
    %v5991 = vadd.f32 %v5989, %v5990
    %v5992 = vrot.slane %v5978, 4
    %v5993 = vadd.f32 %v5978, %v5992
    %v5994 = vrot.slane %v5993, 2
    %v5995 = vadd.f32 %v5993, %v5994
    %v5996 = vrot.slane %v5995, 1
    %v5997 = vadd.f32 %v5995, %v5996
    %v5998 = vsel %vm5960, %v5979, 0.0
    %v5999 = vrot.slane %v5998, 4
    %v6000 = vadd.f32 %v5998, %v5999
    %v6001 = vrot.slane %v6000, 2
    %v6002 = vadd.f32 %v6000, %v6001
    %v6003 = vrot.slane %v6002, 1
    %v6004 = vadd.f32 %v6002, %v6003
    %v6005 = vmul.f32 %v5985, %v1387
    %v6006 = vmul.f32 %v5991, %v1387
    %v6007 = vmul.f32 %v5997, %v1387
    %v6008 = vmul.f32 %v6004, %v1387
    %v6009 = vadd.f32 %v6005, 1e-05
    %v6010 = vadd.f32 %v6006, 1e-05
    %v6011 = vadd.f32 %v6007, 1e-05
    %v6012 = vadd.f32 %v6008, 1e-05
    %v6013 = vrsqrt.pop %v6009
    %v6014 = vrsqrt.pop %v6010
    %v6015 = vrsqrt.pop %v6011
    %v6016 = vrsqrt.pop %v6012
    %v6021 = vcombine.low %v6013, %v6014
    %v6022 = vcombine.low %v6015, %v6016
    %v6024 = vunpack.c.l.s4 1966171168
    %v6025 = vunpack.c.0.s8 %v6024
    %v6026 = vlaneseq
    %v6027 = vshrl.u32 %v6026, 7
    %v6028 = vsub.s32 %v6025, %v6027
    %v6029 = vrot.slane %v6021, %v6028
    %v6031 = vunpack.c.l.s4 1966171168
    %v6032 = vunpack.c.0.s8 %v6031
    %v6033 = vlaneseq
    %v6034 = vshrl.u32 %v6033, 7
    %v6035 = vsub.s32 %v6032, %v6034
    %v6036 = vrot.slane %v6022, %v6035
    %v6037 = vcombine.low %v6029, %v6036
    %v6039 = vunpack.c.l.s4 1966171168
    %v6040 = vunpack.c.0.s8 %v6039
    %v6041 = vlaneseq
    %v6042 = vshrl.u32 %v6041, 7
    %v6043 = vsub.s32 %v6040, %v6042
    %v6044 = vrot.slane %v6037, %v6043
    %v6046 = vmul.f32 %v732, %v6044
    %v6048 = vlaneseq
    %v6049 = vshrl.u32 %v6048, 7
    %v6050 = vsub.s32 0, %v6049
    %v6051 = vrot.slane %v6046, %v6050
    %v6052 = vlaneseq
    %v6053 = vshrl.u32 %v6052, 7
    %v6054 = vsub.s32 1, %v6053
    %v6055 = vrot.slane %v6046, %v6054
    %v6056 = vlaneseq
    %v6057 = vshrl.u32 %v6056, 7
    %v6058 = vsub.s32 2, %v6057
    %v6059 = vrot.slane %v6046, %v6058
    %v6060 = vlaneseq
    %v6061 = vshrl.u32 %v6060, 7
    %v6062 = vsub.s32 3, %v6061
    %v6063 = vrot.slane %v6046, %v6062
    %v6068 = vmul.f32 %v5968, %v6051
    %v6069 = vmul.f32 %v5969, %v6055
    %v6070 = vmul.f32 %v5970, %v6059
    %v6071 = vmul.f32 %v5971, %v6063
    %v6076 = vcombine.low %v6068, %v6069
    %v6077 = vcombine.low %v6070, %v6071
    %v6079 = vunpack.c.l.s4 1966171168
    %v6080 = vunpack.c.0.s8 %v6079
    %v6081 = vlaneseq
    %v6082 = vshrl.u32 %v6081, 7
    %v6083 = vsub.s32 %v6080, %v6082
    %v6084 = vrot.slane %v6076, %v6083
    %v6086 = vunpack.c.l.s4 1966171168
    %v6087 = vunpack.c.0.s8 %v6086
    %v6088 = vlaneseq
    %v6089 = vshrl.u32 %v6088, 7
    %v6090 = vsub.s32 %v6087, %v6089
    %v6091 = vrot.slane %v6077, %v6090
    %v6092 = vcombine.low %v6084, %v6091
    %v6094 = vunpack.c.l.s4 1966171168
    %v6095 = vunpack.c.0.s8 %v6094
    %v6096 = vlaneseq
    %v6097 = vshrl.u32 %v6096, 7
    %v6098 = vsub.s32 %v6095, %v6097
    %v6099 = vrot.slane %v6092, %v6098
    %v6101 = vsub.f32 %v734, %v6099
    %v6102 = vmul.f32 %v5938, %v6051
    %v6103 = vmul.f32 %v5939, %v6055
    %v6104 = vmul.f32 %v5940, %v6059
    %v6105 = vmul.f32 %v5941, %v6063
    %v6107 = vlaneseq
    %v6108 = vshrl.u32 %v6107, 7
    %v6109 = vsub.s32 0, %v6108
    %v6110 = vrot.slane %v6101, %v6109
    %v6111 = vlaneseq
    %v6112 = vshrl.u32 %v6111, 7
    %v6113 = vsub.s32 1, %v6112
    %v6114 = vrot.slane %v6101, %v6113
    %v6115 = vlaneseq
    %v6116 = vshrl.u32 %v6115, 7
    %v6117 = vsub.s32 2, %v6116
    %v6118 = vrot.slane %v6101, %v6117
    %v6119 = vlaneseq
    %v6120 = vshrl.u32 %v6119, 7
    %v6121 = vsub.s32 3, %v6120
    %v6122 = vrot.slane %v6101, %v6121
    %v6127 = vadd.f32 %v6102, %v6110
    %v6128 = vadd.f32 %v6103, %v6114
    %v6129 = vadd.f32 %v6104, %v6118
    %v6130 = vadd.f32 %v6105, %v6122
    %s6131 = smul.u32 4, 63
    %s6132 = smul.u32 %s6131, 3
    %s6133 = sshll.u32 %s6132, 4
    %6134 = dma.done %s451, %s6133
    %v6135 = vld [vmem:[#allocation4] sm:$0xff]
    %v6136 = vld [vmem:[#allocation4 + $0x8] sm:$0xf]
    %v6137 = vld [vmem:[#allocation4 + $0xc] sm:$0xff]
    %v6138 = vld [vmem:[#allocation4 + $0x14] sm:$0xf]
    %v6139 = vld [vmem:[#allocation4 + $0x18] sm:$0xff]
    %v6140 = vld [vmem:[#allocation4 + $0x20] sm:$0xf]
    %v6141 = vld [vmem:[#allocation4 + $0x24] sm:$0xff]
    %v6142 = vld [vmem:[#allocation4 + $0x2c] sm:$0xf]
    %v6143 = vld [vmem:[#allocation4 + $0x30] sm:$0xff]
    %v6144 = vld [vmem:[#allocation4 + $0x38] sm:$0xf]
    %v6145 = vld [vmem:[#allocation4 + $0x3c] sm:$0xff]
    %v6146 = vld [vmem:[#allocation4 + $0x44] sm:$0xf]
    %v6147 = vld [vmem:[#allocation4 + $0x48] sm:$0xff]
    %v6148 = vld [vmem:[#allocation4 + $0x50] sm:$0xf]
    %v6149 = vld [vmem:[#allocation4 + $0x54] sm:$0xff]
    %v6150 = vld [vmem:[#allocation4 + $0x5c] sm:$0xf]
    %v6151 = vld [vmem:[#allocation4 + $0x60] sm:$0xff]
    %v6152 = vld [vmem:[#allocation4 + $0x68] sm:$0xf]
    %v6153 = vld [vmem:[#allocation4 + $0x6c] sm:$0xff]
    %v6154 = vld [vmem:[#allocation4 + $0x74] sm:$0xf]
    %v6155 = vld [vmem:[#allocation4 + $0x78] sm:$0xff]
    %v6156 = vld [vmem:[#allocation4 + $0x80] sm:$0xf]
    %v6157 = vld [vmem:[#allocation4 + $0x84] sm:$0xff]
    %v6158 = vld [vmem:[#allocation4 + $0x8c] sm:$0xf]
    %v6159 = vld [vmem:[#allocation4 + $0x90] sm:$0xff]
    %v6160 = vld [vmem:[#allocation4 + $0x98] sm:$0xf]
    %v6161 = vld [vmem:[#allocation4 + $0x9c] sm:$0xff]
    %v6162 = vld [vmem:[#allocation4 + $0xa4] sm:$0xf]
    %v6163 = vld [vmem:[#allocation4 + $0xa8] sm:$0xff]
    %v6164 = vld [vmem:[#allocation4 + $0xb0] sm:$0xf]
    %v6165 = vld [vmem:[#allocation4 + $0xb4] sm:$0xff]
    %v6166 = vld [vmem:[#allocation4 + $0xbc] sm:$0xf]
    %v6167 = vld [vmem:[#allocation4 + $0xc0] sm:$0xff]
    %v6168 = vld [vmem:[#allocation4 + $0xc8] sm:$0xf]
    %v6169 = vld [vmem:[#allocation4 + $0xcc] sm:$0xff]
    %v6170 = vld [vmem:[#allocation4 + $0xd4] sm:$0xf]
    %v6171 = vld [vmem:[#allocation4 + $0xd8] sm:$0xff]
    %v6172 = vld [vmem:[#allocation4 + $0xe0] sm:$0xf]
    %v6173 = vld [vmem:[#allocation4 + $0xe4] sm:$0xff]
    %v6174 = vld [vmem:[#allocation4 + $0xec] sm:$0xf]
    %v6175 = vld [vmem:[#allocation4 + $0xf0] sm:$0xff]
    %v6176 = vld [vmem:[#allocation4 + $0xf8] sm:$0xf]
    %v6177 = vld [vmem:[#allocation4 + $0xfc] sm:$0xff]
    %v6178 = vld [vmem:[#allocation4 + $0x104] sm:$0xf]
    %v6179 = vld [vmem:[#allocation4 + $0x108] sm:$0xff]
    %v6180 = vld [vmem:[#allocation4 + $0x110] sm:$0xf]
    %v6181 = vld [vmem:[#allocation4 + $0x114] sm:$0xff]
    %v6182 = vld [vmem:[#allocation4 + $0x11c] sm:$0xf]
    %v6183 = vld [vmem:[#allocation4 + $0x120] sm:$0xff]
    %v6184 = vld [vmem:[#allocation4 + $0x128] sm:$0xf]
    %v6185 = vld [vmem:[#allocation4 + $0x12c] sm:$0xff]
    %v6186 = vld [vmem:[#allocation4 + $0x134] sm:$0xf]
    %v6187 = vld [vmem:[#allocation4 + $0x138] sm:$0xff]
    %v6188 = vld [vmem:[#allocation4 + $0x140] sm:$0xf]
    %v6189 = vld [vmem:[#allocation4 + $0x144] sm:$0xff]
    %v6190 = vld [vmem:[#allocation4 + $0x14c] sm:$0xf]
    %v6191 = vld [vmem:[#allocation4 + $0x150] sm:$0xff]
    %v6192 = vld [vmem:[#allocation4 + $0x158] sm:$0xf]
    %v6193 = vld [vmem:[#allocation4 + $0x15c] sm:$0xff]
    %v6194 = vld [vmem:[#allocation4 + $0x164] sm:$0xf]
    %v6195 = vld [vmem:[#allocation4 + $0x168] sm:$0xff]
    %v6196 = vld [vmem:[#allocation4 + $0x170] sm:$0xf]
    %v6197 = vld [vmem:[#allocation4 + $0x174] sm:$0xff]
    %v6198 = vld [vmem:[#allocation4 + $0x17c] sm:$0xf]
    %v6199 = vld [vmem:[#allocation4 + $0x180] sm:$0xff]
    %v6200 = vld [vmem:[#allocation4 + $0x188] sm:$0xf]
    %v6201 = vld [vmem:[#allocation4 + $0x18c] sm:$0xff]
    %v6202 = vld [vmem:[#allocation4 + $0x194] sm:$0xf]
    %v6203 = vld [vmem:[#allocation4 + $0x198] sm:$0xff]
    %v6204 = vld [vmem:[#allocation4 + $0x1a0] sm:$0xf]
    %v6205 = vld [vmem:[#allocation4 + $0x1a4] sm:$0xff]
    %v6206 = vld [vmem:[#allocation4 + $0x1ac] sm:$0xf]
    %v6207 = vld [vmem:[#allocation4 + $0x1b0] sm:$0xff]
    %v6208 = vld [vmem:[#allocation4 + $0x1b8] sm:$0xf]
    %v6209 = vld [vmem:[#allocation4 + $0x1bc] sm:$0xff]
    %v6210 = vld [vmem:[#allocation4 + $0x1c4] sm:$0xf]
    %v6211 = vld [vmem:[#allocation4 + $0x1c8] sm:$0xff]
    %v6212 = vld [vmem:[#allocation4 + $0x1d0] sm:$0xf]
    %v6213 = vld [vmem:[#allocation4 + $0x1d4] sm:$0xff]
    %v6214 = vld [vmem:[#allocation4 + $0x1dc] sm:$0xf]
    %v6215 = vld [vmem:[#allocation4 + $0x1e0] sm:$0xff]
    %v6216 = vld [vmem:[#allocation4 + $0x1e8] sm:$0xf]
    %v6217 = vld [vmem:[#allocation4 + $0x1ec] sm:$0xff]
    %v6218 = vld [vmem:[#allocation4 + $0x1f4] sm:$0xf]
    %v6219 = vld [vmem:[#allocation4 + $0x1f8] sm:$0xff]
    %v6220 = vld [vmem:[#allocation4 + $0x200] sm:$0xf]
    %v6221 = vld [vmem:[#allocation4 + $0x204] sm:$0xff]
    %v6222 = vld [vmem:[#allocation4 + $0x20c] sm:$0xf]
    %v6223 = vld [vmem:[#allocation4 + $0x210] sm:$0xff]
    %v6224 = vld [vmem:[#allocation4 + $0x218] sm:$0xf]
    %v6225 = vld [vmem:[#allocation4 + $0x21c] sm:$0xff]
    %v6226 = vld [vmem:[#allocation4 + $0x224] sm:$0xf]
    %v6227 = vld [vmem:[#allocation4 + $0x228] sm:$0xff]
    %v6228 = vld [vmem:[#allocation4 + $0x230] sm:$0xf]
    %v6229 = vld [vmem:[#allocation4 + $0x234] sm:$0xff]
    %v6230 = vld [vmem:[#allocation4 + $0x23c] sm:$0xf]
    %v6231 = vld [vmem:[#allocation4 + $0x240] sm:$0xff]
    %v6232 = vld [vmem:[#allocation4 + $0x248] sm:$0xf]
    %v6233 = vld [vmem:[#allocation4 + $0x24c] sm:$0xff]
    %v6234 = vld [vmem:[#allocation4 + $0x254] sm:$0xf]
    %v6235 = vld [vmem:[#allocation4 + $0x258] sm:$0xff]
    %v6236 = vld [vmem:[#allocation4 + $0x260] sm:$0xf]
    %v6237 = vld [vmem:[#allocation4 + $0x264] sm:$0xff]
    %v6238 = vld [vmem:[#allocation4 + $0x26c] sm:$0xf]
    %v6239 = vld [vmem:[#allocation4 + $0x270] sm:$0xff]
    %v6240 = vld [vmem:[#allocation4 + $0x278] sm:$0xf]
    %v6241 = vld [vmem:[#allocation4 + $0x27c] sm:$0xff]
    %v6242 = vld [vmem:[#allocation4 + $0x284] sm:$0xf]
    %v6243 = vld [vmem:[#allocation4 + $0x288] sm:$0xff]
    %v6244 = vld [vmem:[#allocation4 + $0x290] sm:$0xf]
    %v6245 = vld [vmem:[#allocation4 + $0x294] sm:$0xff]
    %v6246 = vld [vmem:[#allocation4 + $0x29c] sm:$0xf]
    %v6247 = vld [vmem:[#allocation4 + $0x2a0] sm:$0xff]
    %v6248 = vld [vmem:[#allocation4 + $0x2a8] sm:$0xf]
    %v6249 = vld [vmem:[#allocation4 + $0x2ac] sm:$0xff]
    %v6250 = vld [vmem:[#allocation4 + $0x2b4] sm:$0xf]
    %v6251 = vld [vmem:[#allocation4 + $0x2b8] sm:$0xff]
    %v6252 = vld [vmem:[#allocation4 + $0x2c0] sm:$0xf]
    %v6253 = vld [vmem:[#allocation4 + $0x2c4] sm:$0xff]
    %v6254 = vld [vmem:[#allocation4 + $0x2cc] sm:$0xf]
    %v6255 = vld [vmem:[#allocation4 + $0x2d0] sm:$0xff]
    %v6256 = vld [vmem:[#allocation4 + $0x2d8] sm:$0xf]
    %v6257 = vld [vmem:[#allocation4 + $0x2dc] sm:$0xff]
    %v6258 = vld [vmem:[#allocation4 + $0x2e4] sm:$0xf]
    %v6259 = vld [vmem:[#allocation4 + $0x2e8] sm:$0x33]
    %v6260 = vld [vmem:[#allocation4 + $0x2f0] sm:$0x3]
    %v6261 = vpack.c.bf16 %v6127, %v6127
    %v6262 = vpack.c.bf16 %v6128, %v6128
    %v6263 = vpack.c.bf16 %v6129, %v6129
    %v6264 = vpack.c.bf16 %v6130, %v6130
    %v6266 = vlaneseq
    %v6267 = vshrl.u32 %v6266, 7
    %v6268 = vsub.s32 0, %v6267
    %v6269 = vrot.slane %v736, %v6268
    %v6270 = vlaneseq
    %v6271 = vshrl.u32 %v6270, 7
    %v6272 = vsub.s32 1, %v6271
    %v6273 = vrot.slane %v736, %v6272
    %v6274 = vlaneseq
    %v6275 = vshrl.u32 %v6274, 7
    %v6276 = vsub.s32 2, %v6275
    %v6277 = vrot.slane %v736, %v6276
    %v6407 = vunpack.c.l.b16 %v6135
    %v6408 = vunpack.c.h.b16 %v6135
    %v6409 = vunpack.c.l.b16 %v6136
    %v6410 = vunpack.c.l.b16 %v6137
    %v6411 = vunpack.c.h.b16 %v6137
    %v6412 = vunpack.c.l.b16 %v6138
    %v6413 = vunpack.c.l.b16 %v6139
    %v6414 = vunpack.c.h.b16 %v6139
    %v6415 = vunpack.c.l.b16 %v6140
    %v6416 = vunpack.c.l.b16 %v6141
    %v6417 = vunpack.c.h.b16 %v6141
    %v6418 = vunpack.c.l.b16 %v6142
    %v6419 = vunpack.c.l.b16 %v6143
    %v6420 = vunpack.c.h.b16 %v6143
    %v6421 = vunpack.c.l.b16 %v6144
    %v6422 = vunpack.c.l.b16 %v6145
    %v6423 = vunpack.c.h.b16 %v6145
    %v6424 = vunpack.c.l.b16 %v6146
    %v6425 = vunpack.c.l.b16 %v6147
    %v6426 = vunpack.c.h.b16 %v6147
    %v6427 = vunpack.c.l.b16 %v6148
    %v6428 = vunpack.c.l.b16 %v6149
    %v6429 = vunpack.c.h.b16 %v6149
    %v6430 = vunpack.c.l.b16 %v6150
    %v6431 = vunpack.c.l.b16 %v6151
    %v6432 = vunpack.c.h.b16 %v6151
    %v6433 = vunpack.c.l.b16 %v6152
    %v6434 = vunpack.c.l.b16 %v6153
    %v6435 = vunpack.c.h.b16 %v6153
    %v6436 = vunpack.c.l.b16 %v6154
    %v6437 = vunpack.c.l.b16 %v6155
    %v6438 = vunpack.c.h.b16 %v6155
    %v6439 = vunpack.c.l.b16 %v6156
    %v6440 = vunpack.c.l.b16 %v6157
    %v6441 = vunpack.c.h.b16 %v6157
    %v6442 = vunpack.c.l.b16 %v6158
    %v6443 = vunpack.c.l.b16 %v6159
    %v6444 = vunpack.c.h.b16 %v6159
    %v6445 = vunpack.c.l.b16 %v6160
    %v6446 = vunpack.c.l.b16 %v6161
    %v6447 = vunpack.c.h.b16 %v6161
    %v6448 = vunpack.c.l.b16 %v6162
    %v6449 = vunpack.c.l.b16 %v6163
    %v6450 = vunpack.c.h.b16 %v6163
    %v6451 = vunpack.c.l.b16 %v6164
    %v6452 = vunpack.c.l.b16 %v6165
    %v6453 = vunpack.c.h.b16 %v6165
    %v6454 = vunpack.c.l.b16 %v6166
    %v6455 = vunpack.c.l.b16 %v6167
    %v6456 = vunpack.c.h.b16 %v6167
    %v6457 = vunpack.c.l.b16 %v6168
    %v6458 = vunpack.c.l.b16 %v6169
    %v6459 = vunpack.c.h.b16 %v6169
    %v6460 = vunpack.c.l.b16 %v6170
    %v6461 = vunpack.c.l.b16 %v6171
    %v6462 = vunpack.c.h.b16 %v6171
    %v6463 = vunpack.c.l.b16 %v6172
    %v6464 = vunpack.c.l.b16 %v6173
    %v6465 = vunpack.c.h.b16 %v6173
    %v6466 = vunpack.c.l.b16 %v6174
    %v6467 = vunpack.c.l.b16 %v6175
    %v6468 = vunpack.c.h.b16 %v6175
    %v6469 = vunpack.c.l.b16 %v6176
    %v6470 = vunpack.c.l.b16 %v6177
    %v6471 = vunpack.c.h.b16 %v6177
    %v6472 = vunpack.c.l.b16 %v6178
    %v6473 = vunpack.c.l.b16 %v6179
    %v6474 = vunpack.c.h.b16 %v6179
    %v6475 = vunpack.c.l.b16 %v6180
    %v6476 = vunpack.c.l.b16 %v6181
    %v6477 = vunpack.c.h.b16 %v6181
    %v6478 = vunpack.c.l.b16 %v6182
    %v6479 = vunpack.c.l.b16 %v6183
    %v6480 = vunpack.c.h.b16 %v6183
    %v6481 = vunpack.c.l.b16 %v6184
    %v6482 = vunpack.c.l.b16 %v6185
    %v6483 = vunpack.c.h.b16 %v6185
    %v6484 = vunpack.c.l.b16 %v6186
    %v6485 = vunpack.c.l.b16 %v6187
    %v6486 = vunpack.c.h.b16 %v6187
    %v6487 = vunpack.c.l.b16 %v6188
    %v6488 = vunpack.c.l.b16 %v6189
    %v6489 = vunpack.c.h.b16 %v6189
    %v6490 = vunpack.c.l.b16 %v6190
    %v6491 = vunpack.c.l.b16 %v6191
    %v6492 = vunpack.c.h.b16 %v6191
    %v6493 = vunpack.c.l.b16 %v6192
    %v6494 = vunpack.c.l.b16 %v6193
    %v6495 = vunpack.c.h.b16 %v6193
    %v6496 = vunpack.c.l.b16 %v6194
    %v6497 = vunpack.c.l.b16 %v6195
    %v6498 = vunpack.c.h.b16 %v6195
    %v6499 = vunpack.c.l.b16 %v6196
    %v6500 = vunpack.c.l.b16 %v6197
    %v6501 = vunpack.c.h.b16 %v6197
    %v6502 = vunpack.c.l.b16 %v6198
    %v6503 = vunpack.c.l.b16 %v6199
    %v6504 = vunpack.c.h.b16 %v6199
    %v6505 = vunpack.c.l.b16 %v6200
    %v6506 = vunpack.c.l.b16 %v6201
    %v6507 = vunpack.c.h.b16 %v6201
    %v6508 = vunpack.c.l.b16 %v6202
    %v6509 = vunpack.c.l.b16 %v6203
    %v6510 = vunpack.c.h.b16 %v6203
    %v6511 = vunpack.c.l.b16 %v6204
    %v6512 = vunpack.c.l.b16 %v6205
    %v6513 = vunpack.c.h.b16 %v6205
    %v6514 = vunpack.c.l.b16 %v6206
    %v6515 = vunpack.c.l.b16 %v6207
    %v6516 = vunpack.c.h.b16 %v6207
    %v6517 = vunpack.c.l.b16 %v6208
    %v6518 = vunpack.c.l.b16 %v6209
    %v6519 = vunpack.c.h.b16 %v6209
    %v6520 = vunpack.c.l.b16 %v6210
    %v6521 = vunpack.c.l.b16 %v6211
    %v6522 = vunpack.c.h.b16 %v6211
    %v6523 = vunpack.c.l.b16 %v6212
    %v6524 = vunpack.c.l.b16 %v6213
    %v6525 = vunpack.c.h.b16 %v6213
    %v6526 = vunpack.c.l.b16 %v6214
    %v6527 = vunpack.c.l.b16 %v6215
    %v6528 = vunpack.c.h.b16 %v6215
    %v6529 = vunpack.c.l.b16 %v6216
    %v6530 = vunpack.c.l.b16 %v6217
    %v6531 = vunpack.c.h.b16 %v6217
    %v6532 = vunpack.c.l.b16 %v6218
    %v6533 = vunpack.c.l.b16 %v6219
    %v6534 = vunpack.c.h.b16 %v6219
    %v6535 = vunpack.c.l.b16 %v6220
    %v6536 = vunpack.c.l.b16 %v6221
    %v6537 = vunpack.c.h.b16 %v6221
    %v6538 = vunpack.c.l.b16 %v6222
    %v6539 = vunpack.c.l.b16 %v6223
    %v6540 = vunpack.c.h.b16 %v6223
    %v6541 = vunpack.c.l.b16 %v6224
    %v6542 = vunpack.c.l.b16 %v6225
    %v6543 = vunpack.c.h.b16 %v6225
    %v6544 = vunpack.c.l.b16 %v6226
    %v6545 = vunpack.c.l.b16 %v6227
    %v6546 = vunpack.c.h.b16 %v6227
    %v6547 = vunpack.c.l.b16 %v6228
    %v6548 = vunpack.c.l.b16 %v6229
    %v6549 = vunpack.c.h.b16 %v6229
    %v6550 = vunpack.c.l.b16 %v6230
    %v6551 = vunpack.c.l.b16 %v6231
    %v6552 = vunpack.c.h.b16 %v6231
    %v6553 = vunpack.c.l.b16 %v6232
    %v6554 = vunpack.c.l.b16 %v6233
    %v6555 = vunpack.c.h.b16 %v6233
    %v6556 = vunpack.c.l.b16 %v6234
    %v6557 = vunpack.c.l.b16 %v6235
    %v6558 = vunpack.c.h.b16 %v6235
    %v6559 = vunpack.c.l.b16 %v6236
    %v6560 = vunpack.c.l.b16 %v6237
    %v6561 = vunpack.c.h.b16 %v6237
    %v6562 = vunpack.c.l.b16 %v6238
    %v6563 = vunpack.c.l.b16 %v6239
    %v6564 = vunpack.c.h.b16 %v6239
    %v6565 = vunpack.c.l.b16 %v6240
    %v6566 = vunpack.c.l.b16 %v6241
    %v6567 = vunpack.c.h.b16 %v6241
    %v6568 = vunpack.c.l.b16 %v6242
    %v6569 = vunpack.c.l.b16 %v6243
    %v6570 = vunpack.c.h.b16 %v6243
    %v6571 = vunpack.c.l.b16 %v6244
    %v6572 = vunpack.c.l.b16 %v6245
    %v6573 = vunpack.c.h.b16 %v6245
    %v6574 = vunpack.c.l.b16 %v6246
    %v6575 = vunpack.c.l.b16 %v6247
    %v6576 = vunpack.c.h.b16 %v6247
    %v6577 = vunpack.c.l.b16 %v6248
    %v6578 = vunpack.c.l.b16 %v6249
    %v6579 = vunpack.c.h.b16 %v6249
    %v6580 = vunpack.c.l.b16 %v6250
    %v6581 = vunpack.c.l.b16 %v6251
    %v6582 = vunpack.c.h.b16 %v6251
    %v6583 = vunpack.c.l.b16 %v6252
    %v6584 = vunpack.c.l.b16 %v6253
    %v6585 = vunpack.c.h.b16 %v6253
    %v6586 = vunpack.c.l.b16 %v6254
    %v6587 = vunpack.c.l.b16 %v6255
    %v6588 = vunpack.c.h.b16 %v6255
    %v6589 = vunpack.c.l.b16 %v6256
    %v6590 = vunpack.c.l.b16 %v6257
    %v6591 = vunpack.c.h.b16 %v6257
    %v6592 = vunpack.c.l.b16 %v6258
    %v6593 = vunpack.c.l.b16 %v6259
    %v6594 = vunpack.c.h.b16 %v6259
    %v6595 = vunpack.c.l.b16 %v6260
    %v6596 = vpack.c.b16 %v6410, %v6407
    %v6597 = vpack.c.b16 %v6411, %v6408
    %v6598 = vpack.c.b16 %v6412, %v6409
    %v6599 = vpack.c.b16 %v6416, %v6413
    %v6600 = vpack.c.b16 %v6417, %v6414
    %v6601 = vpack.c.b16 %v6418, %v6415
    %v6602 = vpack.c.b16 %v6422, %v6419
    %v6603 = vpack.c.b16 %v6423, %v6420
    %v6604 = vpack.c.b16 %v6424, %v6421
    %v6605 = vpack.c.b16 %v6428, %v6425
    %v6606 = vpack.c.b16 %v6429, %v6426
    %v6607 = vpack.c.b16 %v6430, %v6427
    %v6608 = vpack.c.b16 %v6434, %v6431
    %v6609 = vpack.c.b16 %v6435, %v6432
    %v6610 = vpack.c.b16 %v6436, %v6433
    %v6611 = vpack.c.b16 %v6440, %v6437
    %v6612 = vpack.c.b16 %v6441, %v6438
    %v6613 = vpack.c.b16 %v6442, %v6439
    %v6614 = vpack.c.b16 %v6446, %v6443
    %v6615 = vpack.c.b16 %v6447, %v6444
    %v6616 = vpack.c.b16 %v6448, %v6445
    %v6617 = vpack.c.b16 %v6452, %v6449
    %v6618 = vpack.c.b16 %v6453, %v6450
    %v6619 = vpack.c.b16 %v6454, %v6451
    %v6620 = vpack.c.b16 %v6458, %v6455
    %v6621 = vpack.c.b16 %v6459, %v6456
    %v6622 = vpack.c.b16 %v6460, %v6457
    %v6623 = vpack.c.b16 %v6464, %v6461
    %v6624 = vpack.c.b16 %v6465, %v6462
    %v6625 = vpack.c.b16 %v6466, %v6463
    %v6626 = vpack.c.b16 %v6470, %v6467
    %v6627 = vpack.c.b16 %v6471, %v6468
    %v6628 = vpack.c.b16 %v6472, %v6469
    %v6629 = vpack.c.b16 %v6476, %v6473
    %v6630 = vpack.c.b16 %v6477, %v6474
    %v6631 = vpack.c.b16 %v6478, %v6475
    %v6632 = vpack.c.b16 %v6482, %v6479
    %v6633 = vpack.c.b16 %v6483, %v6480
    %v6634 = vpack.c.b16 %v6484, %v6481
    %v6635 = vpack.c.b16 %v6488, %v6485
    %v6636 = vpack.c.b16 %v6489, %v6486
    %v6637 = vpack.c.b16 %v6490, %v6487
    %v6638 = vpack.c.b16 %v6494, %v6491
    %v6639 = vpack.c.b16 %v6495, %v6492
    %v6640 = vpack.c.b16 %v6496, %v6493
    %v6641 = vpack.c.b16 %v6500, %v6497
    %v6642 = vpack.c.b16 %v6501, %v6498
    %v6643 = vpack.c.b16 %v6502, %v6499
    %v6644 = vpack.c.b16 %v6506, %v6503
    %v6645 = vpack.c.b16 %v6507, %v6504
    %v6646 = vpack.c.b16 %v6508, %v6505
    %v6647 = vpack.c.b16 %v6512, %v6509
    %v6648 = vpack.c.b16 %v6513, %v6510
    %v6649 = vpack.c.b16 %v6514, %v6511
    %v6650 = vpack.c.b16 %v6518, %v6515
    %v6651 = vpack.c.b16 %v6519, %v6516
    %v6652 = vpack.c.b16 %v6520, %v6517
    %v6653 = vpack.c.b16 %v6524, %v6521
    %v6654 = vpack.c.b16 %v6525, %v6522
    %v6655 = vpack.c.b16 %v6526, %v6523
    %v6656 = vpack.c.b16 %v6530, %v6527
    %v6657 = vpack.c.b16 %v6531, %v6528
    %v6658 = vpack.c.b16 %v6532, %v6529
    %v6659 = vpack.c.b16 %v6536, %v6533
    %v6660 = vpack.c.b16 %v6537, %v6534
    %v6661 = vpack.c.b16 %v6538, %v6535
    %v6662 = vpack.c.b16 %v6542, %v6539
    %v6663 = vpack.c.b16 %v6543, %v6540
    %v6664 = vpack.c.b16 %v6544, %v6541
    %v6665 = vpack.c.b16 %v6548, %v6545
    %v6666 = vpack.c.b16 %v6549, %v6546
    %v6667 = vpack.c.b16 %v6550, %v6547
    %v6668 = vpack.c.b16 %v6554, %v6551
    %v6669 = vpack.c.b16 %v6555, %v6552
    %v6670 = vpack.c.b16 %v6556, %v6553
    %v6671 = vpack.c.b16 %v6560, %v6557
    %v6672 = vpack.c.b16 %v6561, %v6558
    %v6673 = vpack.c.b16 %v6562, %v6559
    %v6674 = vpack.c.b16 %v6566, %v6563
    %v6675 = vpack.c.b16 %v6567, %v6564
    %v6676 = vpack.c.b16 %v6568, %v6565
    %v6677 = vpack.c.b16 %v6572, %v6569
    %v6678 = vpack.c.b16 %v6573, %v6570
    %v6679 = vpack.c.b16 %v6574, %v6571
    %v6680 = vpack.c.b16 %v6578, %v6575
    %v6681 = vpack.c.b16 %v6579, %v6576
    %v6682 = vpack.c.b16 %v6580, %v6577
    %v6683 = vpack.c.b16 %v6584, %v6581
    %v6684 = vpack.c.b16 %v6585, %v6582
    %v6685 = vpack.c.b16 %v6586, %v6583
    %v6686 = vpack.c.b16 %v6590, %v6587
    %v6687 = vpack.c.b16 %v6591, %v6588
    %v6688 = vpack.c.b16 %v6592, %v6589
    %v6689 = vpack.c.b16 %v6593, %v6593
    %v6690 = vpack.c.b16 %v6594, %v6594
    %v6691 = vpack.c.b16 %v6595, %v6595
    %v6786 = vsel %vm5960, %v6264, 0
    %v6789 = vsel %vm3789, %v6689, 0
    %v6792 = vsel %vm3789, %v6690, 0
    %v6795 = vsel %vm3789, %v6691, 0
    %6797 = vmatprep.subr.bf16.mxu0 %v6618
    %6798 = vmatpush1.bf16.msra.mxu0 %v6617
    %6799 = vmatprep.subr.bf16.mxu0 %v6615
    %6800 = vmatpush1.bf16.msra.mxu0 %v6614
    %6801 = vmatprep.subr.bf16.mxu0 %v6612
    %6802 = vmatpush1.bf16.msra.mxu0 %v6611
    %6803 = vmatprep.subr.bf16.mxu0 %v6609
    %6804 = vmatpush1.bf16.msra.mxu0 %v6608
    %6805 = vmatprep.subr.bf16.mxu0 %v6606
    %6806 = vmatpush1.bf16.msra.mxu0 %v6605
    %6807 = vmatprep.subr.bf16.mxu0 %v6603
    %6808 = vmatpush1.bf16.msra.mxu0 %v6602
    %6809 = vmatprep.subr.bf16.mxu0 %v6600
    %6810 = vmatpush1.bf16.msra.mxu0 %v6599
    %6811 = vmatprep.subr.bf16.mxu0 %v6597
    %6812 = vmatpush1.bf16.msra.mxu0 %v6596
    %6813 = vmatprep.subr.bf16.mxu0 %v6642
    %6814 = vmatpush2.bf16.msra.mxu0 %v6641
    %6815 = vmatprep.subr.bf16.mxu0 %v6639
    %6816 = vmatpush2.bf16.msra.mxu0 %v6638
    %6817 = vmatprep.subr.bf16.mxu0 %v6636
    %6818 = vmatpush2.bf16.msra.mxu0 %v6635
    %6819 = vmatprep.subr.bf16.mxu0 %v6633
    %6820 = vmatpush2.bf16.msra.mxu0 %v6632
    %6821 = vmatprep.subr.bf16.mxu0 %v6630
    %6822 = vmatpush2.bf16.msra.mxu0 %v6629
    %6823 = vmatprep.subr.bf16.mxu0 %v6627
    %6824 = vmatpush2.bf16.msra.mxu0 %v6626
    %6825 = vmatprep.subr.bf16.mxu0 %v6624
    %6826 = vmatpush2.bf16.msra.mxu0 %v6623
    %6827 = vmatprep.subr.bf16.mxu0 %v6621
    %6828 = vmatpush2.bf16.msra.mxu0 %v6620
    %6829 = vmatprep.mubr.bf16.mxu0 %v6262
    %6830 = vmatmul.mubr.bf16.gmra.mxu0 %v6261
    %v6831 = vpop.f32.mrf.mxu0
    %v6832 = vadd.f32 %v6269, %v6831
    %v6833 = vpop.f32.mrf.mxu0
    %v6834 = vadd.f32 %v6273, %v6833
    %v6835 = vpop.f32.mrf.mxu0
    %v6836 = vpop.f32.mrf.mxu0
    %6837 = vdwg.mxu0
    %6838 = vmatprep.subr.bf16.mxu0 %v6666
    %6839 = vmatpush1.bf16.msra.mxu0 %v6665
    %6840 = vmatprep.subr.bf16.mxu0 %v6663
    %6841 = vmatpush1.bf16.msra.mxu0 %v6662
    %6842 = vmatprep.subr.bf16.mxu0 %v6660
    %6843 = vmatpush1.bf16.msra.mxu0 %v6659
    %6844 = vmatprep.subr.bf16.mxu0 %v6657
    %6845 = vmatpush1.bf16.msra.mxu0 %v6656
    %6846 = vmatprep.subr.bf16.mxu0 %v6654
    %6847 = vmatpush1.bf16.msra.mxu0 %v6653
    %6848 = vmatprep.subr.bf16.mxu0 %v6651
    %6849 = vmatpush1.bf16.msra.mxu0 %v6650
    %6850 = vmatprep.subr.bf16.mxu0 %v6648
    %6851 = vmatpush1.bf16.msra.mxu0 %v6647
    %6852 = vmatprep.subr.bf16.mxu0 %v6645
    %6853 = vmatpush1.bf16.msra.mxu0 %v6644
    %6854 = vmatprep.subr.bf16.mxu0 %v6792
    %6855 = vmatpush2.bf16.msra.mxu0 %v6789
    %6856 = vmatprep.subr.bf16.mxu0 %v6687
    %6857 = vmatpush2.bf16.msra.mxu0 %v6686
    %6858 = vmatprep.subr.bf16.mxu0 %v6684
    %6859 = vmatpush2.bf16.msra.mxu0 %v6683
    %6860 = vmatprep.subr.bf16.mxu0 %v6681
    %6861 = vmatpush2.bf16.msra.mxu0 %v6680
    %6862 = vmatprep.subr.bf16.mxu0 %v6678
    %6863 = vmatpush2.bf16.msra.mxu0 %v6677
    %6864 = vmatprep.subr.bf16.mxu0 %v6675
    %6865 = vmatpush2.bf16.msra.mxu0 %v6674
    %6866 = vmatprep.subr.bf16.mxu0 %v6672
    %6867 = vmatpush2.bf16.msra.mxu0 %v6671
    %6868 = vmatprep.subr.bf16.mxu0 %v6669
    %6869 = vmatpush2.bf16.msra.mxu0 %v6668
    %6870 = vmatprep.mubr.bf16.mxu0 %v6786
    %6871 = vmatmul.mubr.bf16.gmra.mxu0 %v6263
    %v6872 = vpop.f32.mrf.mxu0
    %v6873 = vadd.f32 %v6832, %v6872
    %v6874 = vpop.f32.mrf.mxu0
    %v6875 = vadd.f32 %v6834, %v6874
    %v6876 = vpop.f32.mrf.mxu0
    %v6877 = vpop.f32.mrf.mxu0
    %6878 = vdwg.mxu0
    %6879 = vmatprep.subr.bf16.mxu0 0
    %6880 = vmatpush1.bf16.msra.mxu0 %v6619
    %6881 = vmatprep.subr.bf16.mxu0 0
    %6882 = vmatpush1.bf16.msra.mxu0 %v6616
    %6883 = vmatprep.subr.bf16.mxu0 0
    %6884 = vmatpush1.bf16.msra.mxu0 %v6613
    %6885 = vmatprep.subr.bf16.mxu0 0
    %6886 = vmatpush1.bf16.msra.mxu0 %v6610
    %6887 = vmatprep.subr.bf16.mxu0 0
    %6888 = vmatpush1.bf16.msra.mxu0 %v6607
    %6889 = vmatprep.subr.bf16.mxu0 0
    %6890 = vmatpush1.bf16.msra.mxu0 %v6604
    %6891 = vmatprep.subr.bf16.mxu0 0
    %6892 = vmatpush1.bf16.msra.mxu0 %v6601
    %6893 = vmatprep.subr.bf16.mxu0 0
    %6894 = vmatpush1.bf16.msra.mxu0 %v6598
    %6895 = vmatprep.subr.bf16.mxu0 0
    %6896 = vmatpush2.bf16.msra.mxu0 %v6643
    %6897 = vmatprep.subr.bf16.mxu0 0
    %6898 = vmatpush2.bf16.msra.mxu0 %v6640
    %6899 = vmatprep.subr.bf16.mxu0 0
    %6900 = vmatpush2.bf16.msra.mxu0 %v6637
    %6901 = vmatprep.subr.bf16.mxu0 0
    %6902 = vmatpush2.bf16.msra.mxu0 %v6634
    %6903 = vmatprep.subr.bf16.mxu0 0
    %6904 = vmatpush2.bf16.msra.mxu0 %v6631
    %6905 = vmatprep.subr.bf16.mxu0 0
    %6906 = vmatpush2.bf16.msra.mxu0 %v6628
    %6907 = vmatprep.subr.bf16.mxu0 0
    %6908 = vmatpush2.bf16.msra.mxu0 %v6625
    %6909 = vmatprep.subr.bf16.mxu0 0
    %6910 = vmatpush2.bf16.msra.mxu0 %v6622
    %6911 = vmatprep.mubr.bf16.mxu0 %v6262
    %6912 = vmatmul.mubr.bf16.gmra.mxu0 %v6261
    %v6913 = vpop.f32.mrf.mxu0
    %v6914 = vadd.f32 %v6277, %v6913
    %v6915 = vpop.f32.mrf.mxu0
    %v6916 = vpop.f32.mrf.mxu0
    %v6917 = vpop.f32.mrf.mxu0
    %6918 = vdwg.mxu0
    %6919 = vmatprep.subr.bf16.mxu0 0
    %6920 = vmatpush1.bf16.msra.mxu0 %v6667
    %6921 = vmatprep.subr.bf16.mxu0 0
    %6922 = vmatpush1.bf16.msra.mxu0 %v6664
    %6923 = vmatprep.subr.bf16.mxu0 0
    %6924 = vmatpush1.bf16.msra.mxu0 %v6661
    %6925 = vmatprep.subr.bf16.mxu0 0
    %6926 = vmatpush1.bf16.msra.mxu0 %v6658
    %6927 = vmatprep.subr.bf16.mxu0 0
    %6928 = vmatpush1.bf16.msra.mxu0 %v6655
    %6929 = vmatprep.subr.bf16.mxu0 0
    %6930 = vmatpush1.bf16.msra.mxu0 %v6652
    %6931 = vmatprep.subr.bf16.mxu0 0
    %6932 = vmatpush1.bf16.msra.mxu0 %v6649
    %6933 = vmatprep.subr.bf16.mxu0 0
    %6934 = vmatpush1.bf16.msra.mxu0 %v6646
    %6935 = vmatprep.subr.bf16.mxu0 0
    %6936 = vmatpush2.bf16.msra.mxu0 %v6795
    %6937 = vmatprep.subr.bf16.mxu0 0
    %6938 = vmatpush2.bf16.msra.mxu0 %v6688
    %6939 = vmatprep.subr.bf16.mxu0 0
    %6940 = vmatpush2.bf16.msra.mxu0 %v6685
    %6941 = vmatprep.subr.bf16.mxu0 0
    %6942 = vmatpush2.bf16.msra.mxu0 %v6682
    %6943 = vmatprep.subr.bf16.mxu0 0
    %6944 = vmatpush2.bf16.msra.mxu0 %v6679
    %6945 = vmatprep.subr.bf16.mxu0 0
    %6946 = vmatpush2.bf16.msra.mxu0 %v6676
    %6947 = vmatprep.subr.bf16.mxu0 0
    %6948 = vmatpush2.bf16.msra.mxu0 %v6673
    %6949 = vmatprep.subr.bf16.mxu0 0
    %6950 = vmatpush2.bf16.msra.mxu0 %v6670
    %6951 = vmatprep.mubr.bf16.mxu0 %v6786
    %6952 = vmatmul.mubr.bf16.gmra.mxu0 %v6263
    %v6953 = vpop.f32.mrf.mxu0
    %v6954 = vadd.f32 %v6914, %v6953
    %v6955 = vpop.f32.mrf.mxu0
    %v6956 = vpop.f32.mrf.mxu0
    %v6957 = vpop.f32.mrf.mxu0
    %6958 = vdwg.mxu0
    %v6959 = vmax.f32 %v6873, 0.0
    %v6960 = vmax.f32 %v6875, 0.0
    %v6961 = vmax.f32 %v6954, 0.0
    %s6962 = smul.u32 4, 38
    %s6963 = smul.u32 %s6962, 1
    %s6964 = sshll.u32 %s6963, 4
    %6965 = dma.done %s694, %s6964
    %v6966 = vld [vmem:[#allocation5] sm:$0xf]
    %v6967 = vld [vmem:[#allocation5 + $0x4] sm:$0xf]
    %v6968 = vld [vmem:[#allocation5 + $0x8] sm:$0xf]
    %v6969 = vld [vmem:[#allocation5 + $0xc] sm:$0xf]
    %v6970 = vld [vmem:[#allocation5 + $0x10] sm:$0xf]
    %v6971 = vld [vmem:[#allocation5 + $0x14] sm:$0xf]
    %v6972 = vld [vmem:[#allocation5 + $0x18] sm:$0xf]
    %v6973 = vld [vmem:[#allocation5 + $0x1c] sm:$0xf]
    %v6974 = vld [vmem:[#allocation5 + $0x20] sm:$0xf]
    %v6975 = vld [vmem:[#allocation5 + $0x24] sm:$0xf]
    %v6976 = vld [vmem:[#allocation5 + $0x28] sm:$0xf]
    %v6977 = vld [vmem:[#allocation5 + $0x2c] sm:$0xf]
    %v6978 = vld [vmem:[#allocation5 + $0x30] sm:$0xf]
    %v6979 = vld [vmem:[#allocation5 + $0x34] sm:$0xf]
    %v6980 = vld [vmem:[#allocation5 + $0x38] sm:$0xf]
    %v6981 = vld [vmem:[#allocation5 + $0x3c] sm:$0xf]
    %v6982 = vld [vmem:[#allocation5 + $0x40] sm:$0xf]
    %v6983 = vld [vmem:[#allocation5 + $0x44] sm:$0xf]
    %v6984 = vld [vmem:[#allocation5 + $0x48] sm:$0xf]
    %v6985 = vld [vmem:[#allocation5 + $0x4c] sm:$0xf]
    %v6986 = vld [vmem:[#allocation5 + $0x50] sm:$0xf]
    %v6987 = vld [vmem:[#allocation5 + $0x54] sm:$0xf]
    %v6988 = vld [vmem:[#allocation5 + $0x58] sm:$0xf]
    %v6989 = vld [vmem:[#allocation5 + $0x5c] sm:$0xf]
    %v6990 = vld [vmem:[#allocation5 + $0x60] sm:$0xf]
    %v6991 = vld [vmem:[#allocation5 + $0x64] sm:$0xf]
    %v6992 = vld [vmem:[#allocation5 + $0x68] sm:$0xf]
    %v6993 = vld [vmem:[#allocation5 + $0x6c] sm:$0xf]
    %v6994 = vld [vmem:[#allocation5 + $0x70] sm:$0xf]
    %v6995 = vld [vmem:[#allocation5 + $0x74] sm:$0xf]
    %v6996 = vld [vmem:[#allocation5 + $0x78] sm:$0xf]
    %v6997 = vld [vmem:[#allocation5 + $0x7c] sm:$0xf]
    %v6998 = vld [vmem:[#allocation5 + $0x80] sm:$0xf]
    %v6999 = vld [vmem:[#allocation5 + $0x84] sm:$0xf]
    %v7000 = vld [vmem:[#allocation5 + $0x88] sm:$0xf]
    %v7001 = vld [vmem:[#allocation5 + $0x8c] sm:$0xf]
    %v7002 = vld [vmem:[#allocation5 + $0x90] sm:$0xf]
    %v7003 = vld [vmem:[#allocation5 + $0x94] sm:$0x3]
    %v7004 = vpack.c.bf16 %v6959, %v6959
    %v7005 = vpack.c.bf16 %v6960, %v6960
    %v7006 = vpack.c.bf16 %v6961, %v6961
    %v7045 = vunpack.c.l.b16 %v6966
    %v7046 = vunpack.c.l.b16 %v6967
    %v7047 = vunpack.c.l.b16 %v6968
    %v7048 = vunpack.c.l.b16 %v6969
    %v7049 = vunpack.c.l.b16 %v6970
    %v7050 = vunpack.c.l.b16 %v6971
    %v7051 = vunpack.c.l.b16 %v6972
    %v7052 = vunpack.c.l.b16 %v6973
    %v7053 = vunpack.c.l.b16 %v6974
    %v7054 = vunpack.c.l.b16 %v6975
    %v7055 = vunpack.c.l.b16 %v6976
    %v7056 = vunpack.c.l.b16 %v6977
    %v7057 = vunpack.c.l.b16 %v6978
    %v7058 = vunpack.c.l.b16 %v6979
    %v7059 = vunpack.c.l.b16 %v6980
    %v7060 = vunpack.c.l.b16 %v6981
    %v7061 = vunpack.c.l.b16 %v6982
    %v7062 = vunpack.c.l.b16 %v6983
    %v7063 = vunpack.c.l.b16 %v6984
    %v7064 = vunpack.c.l.b16 %v6985
    %v7065 = vunpack.c.l.b16 %v6986
    %v7066 = vunpack.c.l.b16 %v6987
    %v7067 = vunpack.c.l.b16 %v6988
    %v7068 = vunpack.c.l.b16 %v6989
    %v7069 = vunpack.c.l.b16 %v6990
    %v7070 = vunpack.c.l.b16 %v6991
    %v7071 = vunpack.c.l.b16 %v6992
    %v7072 = vunpack.c.l.b16 %v6993
    %v7073 = vunpack.c.l.b16 %v6994
    %v7074 = vunpack.c.l.b16 %v6995
    %v7075 = vunpack.c.l.b16 %v6996
    %v7076 = vunpack.c.l.b16 %v6997
    %v7077 = vunpack.c.l.b16 %v6998
    %v7078 = vunpack.c.l.b16 %v6999
    %v7079 = vunpack.c.l.b16 %v7000
    %v7080 = vunpack.c.l.b16 %v7001
    %v7081 = vunpack.c.l.b16 %v7002
    %v7082 = vunpack.c.l.b16 %v7003
    %v7083 = vpack.c.b16 %v7046, %v7045
    %v7084 = vpack.c.b16 %v7048, %v7047
    %v7085 = vpack.c.b16 %v7050, %v7049
    %v7086 = vpack.c.b16 %v7052, %v7051
    %v7087 = vpack.c.b16 %v7054, %v7053
    %v7088 = vpack.c.b16 %v7056, %v7055
    %v7089 = vpack.c.b16 %v7058, %v7057
    %v7090 = vpack.c.b16 %v7060, %v7059
    %v7091 = vpack.c.b16 %v7062, %v7061
    %v7092 = vpack.c.b16 %v7064, %v7063
    %v7093 = vpack.c.b16 %v7066, %v7065
    %v7094 = vpack.c.b16 %v7068, %v7067
    %v7095 = vpack.c.b16 %v7070, %v7069
    %v7096 = vpack.c.b16 %v7072, %v7071
    %v7097 = vpack.c.b16 %v7074, %v7073
    %v7098 = vpack.c.b16 %v7076, %v7075
    %v7099 = vpack.c.b16 %v7078, %v7077
    %v7100 = vpack.c.b16 %v7080, %v7079
    %v7101 = vpack.c.b16 %v7082, %v7081
    %vm7120 = vcmask 359424
    %v7122 = vsel %vm7120, %v7006, 0
    %v7125 = vsel %vm5679, %v7101, 0
    %7127 = vmatprep.subr.bf16.mxu0 0
    %7128 = vmatpush1.bf16.msra.mxu0 %v7090
    %7129 = vmatprep.subr.bf16.mxu0 0
    %7130 = vmatpush1.bf16.msra.mxu0 %v7089
    %7131 = vmatprep.subr.bf16.mxu0 0
    %7132 = vmatpush1.bf16.msra.mxu0 %v7088
    %7133 = vmatprep.subr.bf16.mxu0 0
    %7134 = vmatpush1.bf16.msra.mxu0 %v7087
    %7135 = vmatprep.subr.bf16.mxu0 0
    %7136 = vmatpush1.bf16.msra.mxu0 %v7086
    %7137 = vmatprep.subr.bf16.mxu0 0
    %7138 = vmatpush1.bf16.msra.mxu0 %v7085
    %7139 = vmatprep.subr.bf16.mxu0 0
    %7140 = vmatpush1.bf16.msra.mxu0 %v7084
    %7141 = vmatprep.subr.bf16.mxu0 0
    %7142 = vmatpush1.bf16.msra.mxu0 %v7083
    %7143 = vmatprep.subr.bf16.mxu0 0
    %7144 = vmatpush2.bf16.msra.mxu0 %v7098
    %7145 = vmatprep.subr.bf16.mxu0 0
    %7146 = vmatpush2.bf16.msra.mxu0 %v7097
    %7147 = vmatprep.subr.bf16.mxu0 0
    %7148 = vmatpush2.bf16.msra.mxu0 %v7096
    %7149 = vmatprep.subr.bf16.mxu0 0
    %7150 = vmatpush2.bf16.msra.mxu0 %v7095
    %7151 = vmatprep.subr.bf16.mxu0 0
    %7152 = vmatpush2.bf16.msra.mxu0 %v7094
    %7153 = vmatprep.subr.bf16.mxu0 0
    %7154 = vmatpush2.bf16.msra.mxu0 %v7093
    %7155 = vmatprep.subr.bf16.mxu0 0
    %7156 = vmatpush2.bf16.msra.mxu0 %v7092
    %7157 = vmatprep.subr.bf16.mxu0 0
    %7158 = vmatpush2.bf16.msra.mxu0 %v7091
    %7159 = vmatprep.mubr.bf16.mxu0 %v7005
    %7160 = vmatmul.mubr.bf16.gmra.mxu0 %v7004
    %v7161 = vpop.f32.mrf.mxu0
    %v7162 = vadd.f32 %v737, %v7161
    %v7163 = vpop.f32.mrf.mxu0
    %v7164 = vpop.f32.mrf.mxu0
    %v7165 = vpop.f32.mrf.mxu0
    %7166 = vdwg.mxu0
    %7167 = vmatprep.subr.bf16.mxu0 0
    %7168 = vmatpush1.bf16.msra.mxu0 0
    %7169 = vmatprep.subr.bf16.mxu0 0
    %7170 = vmatpush1.bf16.msra.mxu0 0
    %7171 = vmatprep.subr.bf16.mxu0 0
    %7172 = vmatpush1.bf16.msra.mxu0 0
    %7173 = vmatprep.subr.bf16.mxu0 0
    %7174 = vmatpush1.bf16.msra.mxu0 0
    %7175 = vmatprep.subr.bf16.mxu0 0
    %7176 = vmatpush1.bf16.msra.mxu0 0
    %7177 = vmatprep.subr.bf16.mxu0 0
    %7178 = vmatpush1.bf16.msra.mxu0 %v7125
    %7179 = vmatprep.subr.bf16.mxu0 0
    %7180 = vmatpush1.bf16.msra.mxu0 %v7100
    %7181 = vmatprep.subr.bf16.mxu0 0
    %7182 = vmatpush1.bf16.msra.mxu0 %v7099
    %7183 = vmatprep.subr.bf16.mxu0 0
    %7184 = vmatpush2.bf16.msra.mxu0 0
    %7185 = vmatprep.subr.bf16.mxu0 0
    %7186 = vmatpush2.bf16.msra.mxu0 0
    %7187 = vmatprep.subr.bf16.mxu0 0
    %7188 = vmatpush2.bf16.msra.mxu0 0
    %7189 = vmatprep.subr.bf16.mxu0 0
    %7190 = vmatpush2.bf16.msra.mxu0 0
    %7191 = vmatprep.subr.bf16.mxu0 0
    %7192 = vmatpush2.bf16.msra.mxu0 0
    %7193 = vmatprep.subr.bf16.mxu0 0
    %7194 = vmatpush2.bf16.msra.mxu0 0
    %7195 = vmatprep.subr.bf16.mxu0 0
    %7196 = vmatpush2.bf16.msra.mxu0 0
    %7197 = vmatprep.subr.bf16.mxu0 0
    %7198 = vmatpush2.bf16.msra.mxu0 0
    %7199 = vmatprep.mubr.bf16.mxu0 0
    %7200 = vmatmul.mubr.bf16.gmra.mxu0 %v7122
    %v7201 = vpop.f32.mrf.mxu0
    %v7202 = vadd.f32 %v7162, %v7201
    %v7203 = vpop.f32.mrf.mxu0
    %v7204 = vpop.f32.mrf.mxu0
    %v7205 = vpop.f32.mrf.mxu0
    %7206 = vdwg.mxu0
    %7207 = vst [vmem:[#allocation12] sm:$0xff] %v7202
    // Predicated region
    $region101: #{tpu_custom_call.1} parent=1 // pred_check
      _
    $region102: #{tpu_custom_call.1} parent=1 // pred_check_branch
      %7209 = sbr.rel (0) target = $region104
    $region103: #{tpu_custom_call.1} parent=1 // pred_region
      %s7211 = ssub.s32 128, 128
      %7212 = vsyncadd [#allocation9], %s7211
      %s7214 = sshll.u32 [#allocation12], 4
      %s7215 = int_to_ptr.vmem [resolvable:$true] %s7214
      %7217 = dma.vmem_to_hbm [thread:$0]  %s7215, 128, %s7, [#allocation9]
    $region104: #{tpu_custom_call.1} parent=1 // pred_fallthru
      _
    // Predicated region
    $region105: #{tpu_custom_call.1} parent=1 // pred_check
      _
    $region106: #{tpu_custom_call.1} parent=1 // pred_check_branch
      %7219 = sbr.rel (0) target = $region108
    $region107: #{tpu_custom_call.1} parent=1 // pred_region
      %7220 = dma.done [#allocation9], 128
    $region108: #{tpu_custom_call.1} parent=1 // pred_fallthru
      _
    %7221 = vsyncpa [#allocation8], 1
    %7222 = vsyncpa [#allocation11], 1
    %7223 = vsyncpa [#allocation9], 1
  %7224 = vsyncmov [#allocation6]
  %s7225 = vpop.sfrf %7224
  %p7226 = scmp.eq.s32.totalorder %s7225, 0
  %p7227 = pneg %p7226
  %7229 = shalt.err (%p7227)
  %s7230 = scalar_lea.sflag [#allocation6], 1
  %7231 = vsyncmov %s7230
  %s7232 = vpop.sfrf %7231
  %p7233 = scmp.eq.s32.totalorder %s7232, 0
  %p7234 = pneg %p7233
  %7236 = shalt.err (%p7234)
  %s7237 = scalar_lea.sflag [#allocation6], 2
  %7238 = vsyncmov %s7237
  %s7239 = vpop.sfrf %7238
  %p7240 = scmp.eq.s32.totalorder %s7239, 0
  %p7241 = pneg %p7240
  %7243 = shalt.err (%p7241)
  %s7244 = scalar_lea.sflag [#allocation6], 3
  %7245 = vsyncmov %s7244
  %s7246 = vpop.sfrf %7245
  %p7247 = scmp.eq.s32.totalorder %s7246, 0
  %p7248 = pneg %p7247
  %7250 = shalt.err (%p7248)

</llo_original>
